<compile_context>
chip_gen: v6e
topology: v6e:2x2x1
jax: 0.10.0
libtpu: 0.0.40
codegen_flags: <defaults>
</compile_context>

<pallas_src>
import functools

import jax
import jax.numpy as jnp
from jax.experimental import pallas as pl
from jax.experimental.pallas import tpu as pltpu

LANE = 128  # all channel-ish dims are zero-padded to this (lane-dense)


# ----------------------------------------------------------------------------
# Pallas kernel: whole mini-network for one image per grid step
# ----------------------------------------------------------------------------
def _mini_resnet_kernel(x_ref, w_ref, bn_ref, mask_ref, o_ref,
                        yp_scr, hp_scr, *, H, W, inv_hw):
    C = o_ref.shape[-1]                 # padded channel width (= LANE)
    Wp = W + 2                          # flat row stride of the halo layout
    HWp = H * Wp                        # rows per conv-output slab
    FLAT = yp_scr.shape[0]              # scratch rows (incl. slack)
    OFF = Wp + 1                        # interior store offset: (i,j)->(i+1,j+1)

    # 1.0 on valid output columns, 0.0 on the two wrap-around columns.
    mask = mask_ref[...]                # (HWp, 1) f32

    def conv3x3(src_ref, tap0):
        # 3x3 / stride-1 / pad-1 conv as 9 CONTIGUOUS (HWp, C) slab loads,
        # each fed straight to a (C, C) MXU matmul with f32 accumulation.
        # In the flat (row-stride Wp) layout tap (dy,dx) is simply the slab
        # starting at row dy*Wp+dx -- no strided window gather, no reshape.
        acc = None
        for s in range(9):
            dy, dx = divmod(s, 3)
            base = dy * Wp + dx
            slab = src_ref[base:base + HWp, :].astype(jnp.bfloat16)
            part = jnp.dot(slab, w_ref[tap0 + s],
                           preferred_element_type=jnp.float32)
            acc = part if acc is None else acc + part
        return acc

    def store_halo(dst_ref, act_f32):
        # Zero ONLY the border slices that the interior store does not cover;
        # the masked wrap-around columns inside the store window already carry
        # the zeros the left/right halo columns need.
        dst_ref[0:OFF, :] = jnp.zeros((OFF, C), dst_ref.dtype)
        dst_ref[OFF + HWp:FLAT, :] = jnp.zeros((FLAT - OFF - HWp, C),
                                               dst_ref.dtype)
        dst_ref[OFF:OFF + HWp, :] = act_f32

    # ---- stem: one (HWp, 128) x (128, 128) dot on wrapper-side im2col ----
    y = jnp.dot(x_ref[0], w_ref[0], preferred_element_type=jnp.float32)
    y = jnp.maximum(y * bn_ref[0:1, :] + bn_ref[1:2, :], 0.0) * mask
    store_halo(yp_scr, y)

    # ---- basic block, conv1 + BN + ReLU ----
    h = conv3x3(yp_scr, 1)
    h = jnp.maximum(h * bn_ref[2:3, :] + bn_ref[3:4, :], 0.0) * mask
    store_halo(hp_scr, h)

    # ---- basic block, conv2 + BN + residual(stem output) + ReLU ----
    identity = yp_scr[OFF:OFF + HWp, :]                 # f32, already masked
    h2 = conv3x3(hp_scr, 10)
    h2 = jnp.maximum(h2 * bn_ref[4:5, :] + bn_ref[5:6, :] + identity, 0.0)
    h2 = h2 * mask

    # ---- fused global-average-pool + fc head ----
    pooled = jnp.sum(h2, axis=0, keepdims=True) * inv_hw          # (1, C) f32
    logits = jnp.dot(pooled.astype(jnp.bfloat16), w_ref[19],
                     preferred_element_type=jnp.float32) + bn_ref[6:7, :]
    o_ref[0] = logits


def _mini_resnet_pallas(patches, weights, bn_vecs, mask, *, H, W):
    N = patches.shape[0]
    C = LANE
    Wp = W + 2
    HWp = H * Wp
    # flat halo buffer; +8 slack rows so the last tap's contiguous slab load
    # (max index (H+2)*Wp + 1) stays inside the allocation.
    FLAT = (H + 2) * Wp + 8
    kernel = functools.partial(_mini_resnet_kernel,
                               H=H, W=W, inv_hw=1.0 / (H * W))

    return pl.pallas_call(
        kernel,
        out_shape=jax.ShapeDtypeStruct((N, 1, C), jnp.float32),
        grid=(N,),
        in_specs=[
            pl.BlockSpec((1, HWp, C), lambda n: (n, 0, 0)),   # stem im2col (bf16)
            pl.BlockSpec((20, C, C), lambda n: (0, 0, 0)),    # packed weights
            pl.BlockSpec((8, C), lambda n: (0, 0)),           # BN vecs + fc bias
            pl.BlockSpec((HWp, 1), lambda n: (0, 0)),         # valid-column mask
        ],
        out_specs=pl.BlockSpec((1, 1, C), lambda n: (n, 0, 0)),
        scratch_shapes=[
            pltpu.VMEM((FLAT, C), jnp.float32),   # flat halo of stem output
            pltpu.VMEM((FLAT, C), jnp.float32),   # flat halo of conv1 output
        ],
        compiler_params=pltpu.CompilerParams(
            dimension_semantics=("parallel",)),
    )(patches, weights, bn_vecs, mask)


# ----------------------------------------------------------------------------
# Plain-JAX glue: channel padding, BN folding, weight packing, param init
# ----------------------------------------------------------------------------
def _pad_last(a, target):
    return jnp.pad(a, [(0, 0)] * (a.ndim - 1) + [(0, target - a.shape[-1])])


def _conv_w_to_taps(w_oihw, cpad=LANE):
    """PyTorch (Cout, Cin, 3, 3) -> (9, Cin_pad, Cout_pad) f32, tap-major."""
    cout, cin, kh, kw = w_oihw.shape
    w = jnp.transpose(w_oihw, (2, 3, 1, 0)).reshape(kh * kw, cin, cout)
    return jnp.pad(w, ((0, 0), (0, cpad - cin), (0, cpad - cout)))


def fold_bn(gamma, beta, mean, var, eps=1e-5):
    scale = gamma / jnp.sqrt(var + eps)
    bias = beta - mean * scale
    return scale, bias


def _bn_vec(gamma, beta, mean, var, cpad=LANE):
    scale, bias = fold_bn(gamma, beta, mean, var)
    return (_pad_last(scale, cpad).astype(jnp.float32),
            _pad_last(bias, cpad).astype(jnp.float32))


def init_params(key, in_ch=3, width=8, num_classes=5):
    ks = jax.random.split(key, 12)

    def bn_params(k):
        k1, k2, k3, k4 = jax.random.split(k, 4)
        gamma = 1.0 + 0.1 * jax.random.normal(k1, (width,), jnp.float32)
        beta = 0.1 * jax.random.normal(k2, (width,), jnp.float32)
        mean = 0.1 * jax.random.normal(k3, (width,), jnp.float32)
        var = 0.5 + 0.1 * jnp.abs(jax.random.normal(k4, (width,), jnp.float32))
        return (gamma, beta, mean, var)

    return {
        "stem_w": 0.1 * jax.random.normal(ks[0], (width, in_ch, 3, 3), jnp.float32),
        "stem_bn": bn_params(ks[1]),
        "b_conv1_w": 0.1 * jax.random.normal(ks[2], (width, width, 3, 3), jnp.float32),
        "b_bn1": bn_params(ks[3]),
        "b_conv2_w": 0.1 * jax.random.normal(ks[4], (width, width, 3, 3), jnp.float32),
        "b_bn2": bn_params(ks[5]),
        # replaced classifier head (nn.Linear(num_ftrs, num_classes))
        "fc_w": 0.1 * jax.random.normal(ks[6], (num_classes, width), jnp.float32),
        "fc_b": 0.1 * jax.random.normal(ks[7], (num_classes,), jnp.float32),
    }


@functools.partial(jax.jit, static_argnames=("num_classes",))
def forward(x_nchw, params, num_classes=5):
    N, cin, H, W = x_nchw.shape
    Wp, HWp = W + 2, H * (W + 2)
    width = params["stem_w"].shape[0]

    # ---- stem im2col (wrapper side): 9*Cin = 27 <= 128 lanes, bf16, already
    #      laid out with the kernel's flat row stride of W+2 ----
    x = jnp.transpose(x_nchw, (0, 2, 3, 1)).astype(jnp.float32)       # NHWC
    xp = jnp.pad(x, ((0, 0), (1, 1), (1, 1), (0, 0)))                 # 1-px halo
    taps = [xp[:, dy:dy + H, dx:dx + W, :] for dy in range(3) for dx in range(3)]
    patches = jnp.concatenate(taps, axis=-1)                          # (N,H,W,9*cin)
    patches = jnp.pad(patches, ((0, 0), (0, 0), (0, 2), (0, LANE - 9 * cin)))
    patches = patches.reshape(N, HWp, LANE).astype(jnp.bfloat16)

    # ---- packed weights: [stem | conv1 taps x9 | conv2 taps x9 | fc] ----
    stem_w = jnp.transpose(params["stem_w"], (2, 3, 1, 0)).reshape(9 * cin, width)
    stem_w = jnp.pad(stem_w, ((0, LANE - 9 * cin), (0, LANE - width)))
    fc_w = jnp.pad(params["fc_w"].T, ((0, LANE - width), (0, LANE - num_classes)))
    weights = jnp.concatenate(
        [stem_w[None], _conv_w_to_taps(params["b_conv1_w"]),
         _conv_w_to_taps(params["b_conv2_w"]), fc_w[None]],
        axis=0).astype(jnp.bfloat16)                                  # (20,128,128)

    # ---- folded BN scale/bias vectors + fc bias: one (8,128) f32 operand ----
    ss, bs = _bn_vec(*params["stem_bn"])
    s1, b1 = _bn_vec(*params["b_bn1"])
    s2, b2 = _bn_vec(*params["b_bn2"])
    fcb = _pad_last(params["fc_b"], LANE).astype(jnp.float32)
    bn_vecs = jnp.stack([ss, bs, s1, b1, s2, b2, fcb,
                         jnp.zeros((LANE,), jnp.float32)], axis=0)

    # valid-column mask for the flat (row-stride W+2) layout
    mask = (jnp.arange(HWp, dtype=jnp.int32) % Wp < W)
    mask = mask.astype(jnp.float32).reshape(HWp, 1)

    logits_pad = _mini_resnet_pallas(patches, weights, bn_vecs, mask,
                                     H=H, W=W)                        # (N, 1, C)
    return logits_pad.reshape(N, LANE)[:, :num_classes]


# ----------------------------------------------------------------------------
# Pure-JAX reference (for a correctness check against the fused kernel)
# ----------------------------------------------------------------------------
def reference_forward(x_nchw, params):
    x = jnp.transpose(x_nchw, (0, 2, 3, 1)).astype(jnp.float32)

    def conv(x, w_oihw):
        w = jnp.transpose(w_oihw, (2, 3, 1, 0))   # HWIO
        return jax.lax.conv_general_dilated(
            x, w, window_strides=(1, 1), padding=((1, 1), (1, 1)),
            dimension_numbers=("NHWC", "HWIO", "NHWC"))

    s, b = fold_bn(*params["stem_bn"])
    y = jnp.maximum(conv(x, params["stem_w"]) * s + b, 0.0)
    s1, b1 = fold_bn(*params["b_bn1"])
    h = jnp.maximum(conv(y, params["b_conv1_w"]) * s1 + b1, 0.0)
    s2, b2 = fold_bn(*params["b_bn2"])
    h = jnp.maximum(conv(h, params["b_conv2_w"]) * s2 + b2 + y, 0.0)
    pooled = jnp.mean(h, axis=(1, 2))
    return pooled @ params["fc_w"].T + params["fc_b"]


if __name__ == "__main__":
    key = jax.random.PRNGKey(0)
    k_params, k_x = jax.random.split(key)

    num_classes = 5
    params = init_params(k_params, in_ch=3, width=8, num_classes=num_classes)
    x = jax.random.normal(k_x, (2, 3, 16, 16), jnp.float32)   # NCHW, like PyTorch

    logits = forward(x, params, num_classes=num_classes)
    jax.block_until_ready(logits)

    assert logits.shape == (2, num_classes) and logits.dtype == jnp.float32
    assert bool(jnp.all(jnp.isfinite(logits)))
    ref = reference_forward(x, params)
    assert bool(jnp.allclose(logits, ref, atol=5e-2, rtol=5e-2))
    print("KERNEL_OK")
</pallas_src>

<mosaic_0001>
module attributes {stable_mosaic.version = 11 : i64} {
  func.func @_mini_resnet_kernel(%arg0: i32, %arg1: memref<1x288x128xbf16, #tpu.memory_space<vmem>>, %arg2: memref<20x128x128xbf16, #tpu.memory_space<vmem>>, %arg3: memref<8x128xf32, #tpu.memory_space<vmem>>, %arg4: memref<288x1xf32, #tpu.memory_space<vmem>>, %arg5: memref<1x1x128xf32, #tpu.memory_space<vmem>>, %arg6: memref<332x128xf32, #tpu.memory_space<vmem>>, %arg7: memref<332x128xf32, #tpu.memory_space<vmem>>) attributes {dimension_semantics = [#tpu.dimension_semantics<parallel>], iteration_bounds = array<i64: 2>, scalar_prefetch = 0 : i64, scratch_operands = 2 : i64, tpu.core_type = #tpu.core_type<tc>, window_params = [{transform_indices = @transform_0, window_bounds = array<i64: 1, 288, 128>}, {pipeline_mode = #tpu.pipeline_mode<synchronous>, transform_indices = @transform_1, window_bounds = array<i64: 20, 128, 128>}, {pipeline_mode = #tpu.pipeline_mode<synchronous>, transform_indices = @transform_2, window_bounds = array<i64: 8, 128>}, {pipeline_mode = #tpu.pipeline_mode<synchronous>, transform_indices = @transform_3, window_bounds = array<i64: 288, 1>}, {transform_indices = @transform_4, window_bounds = array<i64: 1, 1, 128>}]} {
    %c0 = arith.constant 0 : index
    %c0_0 = arith.constant 0 : index
    %0 = vector.load %arg4[%c0, %c0_0] : memref<288x1xf32, #tpu.memory_space<vmem>>, vector<288x1xf32>
    %c0_1 = arith.constant 0 : index
    %c0_2 = arith.constant 0 : index
    %c0_3 = arith.constant 0 : index
    %1 = vector.load %arg1[%c0_1, %c0_2, %c0_3] : memref<1x288x128xbf16, #tpu.memory_space<vmem>>, vector<1x288x128xbf16>
    %2 = vector.shape_cast %1 : vector<1x288x128xbf16> to vector<288x128xbf16>
    %c0_4 = arith.constant 0 : index
    %c0_5 = arith.constant 0 : index
    %c0_6 = arith.constant 0 : index
    %3 = vector.load %arg2[%c0_4, %c0_5, %c0_6] : memref<20x128x128xbf16, #tpu.memory_space<vmem>>, vector<1x128x128xbf16>
    %4 = vector.shape_cast %3 : vector<1x128x128xbf16> to vector<128x128xbf16>
    %cst = arith.constant dense<0.000000e+00> : vector<288x128xf32>
    %5 = tpu.matmul %2, %4, %cst {dimension_numbers = #tpu.dot_dimension_numbers<[1], [0], [0], [1], [0, 0, 1, 1], [], []>} : vector<288x128xbf16>, vector<128x128xbf16>, vector<288x128xf32> -> vector<288x128xf32>
    %c0_7 = arith.constant 0 : index
    %c0_8 = arith.constant 0 : index
    %6 = vector.load %arg3[%c0_7, %c0_8] : memref<8x128xf32, #tpu.memory_space<vmem>>, vector<1x128xf32>
    %7 = vector.broadcast %6 : vector<1x128xf32> to vector<288x128xf32>
    %8 = arith.mulf %5, %7 : vector<288x128xf32>
    %c1 = arith.constant 1 : index
    %c0_9 = arith.constant 0 : index
    %9 = vector.load %arg3[%c1, %c0_9] : memref<8x128xf32, #tpu.memory_space<vmem>>, vector<1x128xf32>
    %10 = vector.broadcast %9 : vector<1x128xf32> to vector<288x128xf32>
    %11 = arith.addf %8, %10 : vector<288x128xf32>
    %cst_10 = arith.constant 0.000000e+00 : f32
    %12 = vector.broadcast %cst_10 : f32 to vector<288x128xf32>
    %13 = arith.maximumf %11, %12 : vector<288x128xf32>
    %14 = vector.broadcast %0 : vector<288x1xf32> to vector<288x128xf32>
    %15 = arith.mulf %13, %14 : vector<288x128xf32>
    %cst_11 = arith.constant 0.000000e+00 : f32
    %16 = vector.broadcast %cst_11 : f32 to vector<19x128xf32>
    %c0_12 = arith.constant 0 : index
    %c0_13 = arith.constant 0 : index
    %17 = vector.load %arg6[%c0_12, %c0_13] : memref<332x128xf32, #tpu.memory_space<vmem>>, vector<19x128xf32>
    tpu.vector_store %arg6[%c0_12, %c0_13], %16 {strides = array<i32>} : memref<332x128xf32, #tpu.memory_space<vmem>>, vector<19x128xf32>,
    %cst_14 = arith.constant 0.000000e+00 : f32
    %18 = vector.broadcast %cst_14 : f32 to vector<25x128xf32>
    %c307 = arith.constant 307 : index
    %c0_15 = arith.constant 0 : index
    %19 = vector.load %arg6[%c307, %c0_15] : memref<332x128xf32, #tpu.memory_space<vmem>>, vector<25x128xf32>
    tpu.vector_store %arg6[%c307, %c0_15], %18 {strides = array<i32>} : memref<332x128xf32, #tpu.memory_space<vmem>>, vector<25x128xf32>,
    %c19 = arith.constant 19 : index
    %c0_16 = arith.constant 0 : index
    %20 = vector.load %arg6[%c19, %c0_16] : memref<332x128xf32, #tpu.memory_space<vmem>>, vector<288x128xf32>
    tpu.vector_store %arg6[%c19, %c0_16], %15 {strides = array<i32>} : memref<332x128xf32, #tpu.memory_space<vmem>>, vector<288x128xf32>,
    %c0_17 = arith.constant 0 : index
    %c0_18 = arith.constant 0 : index
    %21 = vector.load %arg6[%c0_17, %c0_18] : memref<332x128xf32, #tpu.memory_space<vmem>>, vector<288x128xf32>
    %22 = arith.truncf %21 : vector<288x128xf32> to vector<288x128xbf16>
    %c1_19 = arith.constant 1 : index
    %c0_20 = arith.constant 0 : index
    %c0_21 = arith.constant 0 : index
    %23 = vector.load %arg2[%c1_19, %c0_20, %c0_21] : memref<20x128x128xbf16, #tpu.memory_space<vmem>>, vector<1x128x128xbf16>
    %24 = vector.shape_cast %23 : vector<1x128x128xbf16> to vector<128x128xbf16>
    %cst_22 = arith.constant dense<0.000000e+00> : vector<288x128xf32>
    %25 = tpu.matmul %22, %24, %cst_22 {dimension_numbers = #tpu.dot_dimension_numbers<[1], [0], [0], [1], [0, 0, 1, 1], [], []>} : vector<288x128xbf16>, vector<128x128xbf16>, vector<288x128xf32> -> vector<288x128xf32>
    %c1_23 = arith.constant 1 : index
    %c0_24 = arith.constant 0 : index
    %26 = vector.load %arg6[%c1_23, %c0_24] : memref<332x128xf32, #tpu.memory_space<vmem>>, vector<288x128xf32>
    %27 = arith.truncf %26 : vector<288x128xf32> to vector<288x128xbf16>
    %c2 = arith.constant 2 : index
    %c0_25 = arith.constant 0 : index
    %c0_26 = arith.constant 0 : index
    %28 = vector.load %arg2[%c2, %c0_25, %c0_26] : memref<20x128x128xbf16, #tpu.memory_space<vmem>>, vector<1x128x128xbf16>
    %29 = vector.shape_cast %28 : vector<1x128x128xbf16> to vector<128x128xbf16>
    %cst_27 = arith.constant dense<0.000000e+00> : vector<288x128xf32>
    %30 = tpu.matmul %27, %29, %cst_27 {dimension_numbers = #tpu.dot_dimension_numbers<[1], [0], [0], [1], [0, 0, 1, 1], [], []>} : vector<288x128xbf16>, vector<128x128xbf16>, vector<288x128xf32> -> vector<288x128xf32>
    %31 = arith.addf %25, %30 : vector<288x128xf32>
    %c2_28 = arith.constant 2 : index
    %c0_29 = arith.constant 0 : index
    %32 = vector.load %arg6[%c2_28, %c0_29] : memref<332x128xf32, #tpu.memory_space<vmem>>, vector<288x128xf32>
    %33 = arith.truncf %32 : vector<288x128xf32> to vector<288x128xbf16>
    %c3 = arith.constant 3 : index
    %c0_30 = arith.constant 0 : index
    %c0_31 = arith.constant 0 : index
    %34 = vector.load %arg2[%c3, %c0_30, %c0_31] : memref<20x128x128xbf16, #tpu.memory_space<vmem>>, vector<1x128x128xbf16>
    %35 = vector.shape_cast %34 : vector<1x128x128xbf16> to vector<128x128xbf16>
    %cst_32 = arith.constant dense<0.000000e+00> : vector<288x128xf32>
    %36 = tpu.matmul %33, %35, %cst_32 {dimension_numbers = #tpu.dot_dimension_numbers<[1], [0], [0], [1], [0, 0, 1, 1], [], []>} : vector<288x128xbf16>, vector<128x128xbf16>, vector<288x128xf32> -> vector<288x128xf32>
    %37 = arith.addf %31, %36 : vector<288x128xf32>
    %c18 = arith.constant 18 : index
    %c0_33 = arith.constant 0 : index
    %38 = vector.load %arg6[%c18, %c0_33] : memref<332x128xf32, #tpu.memory_space<vmem>>, vector<288x128xf32>
    %39 = arith.truncf %38 : vector<288x128xf32> to vector<288x128xbf16>
    %c4 = arith.constant 4 : index
    %c0_34 = arith.constant 0 : index
    %c0_35 = arith.constant 0 : index
    %40 = vector.load %arg2[%c4, %c0_34, %c0_35] : memref<20x128x128xbf16, #tpu.memory_space<vmem>>, vector<1x128x128xbf16>
    %41 = vector.shape_cast %40 : vector<1x128x128xbf16> to vector<128x128xbf16>
    %cst_36 = arith.constant dense<0.000000e+00> : vector<288x128xf32>
    %42 = tpu.matmul %39, %41, %cst_36 {dimension_numbers = #tpu.dot_dimension_numbers<[1], [0], [0], [1], [0, 0, 1, 1], [], []>} : vector<288x128xbf16>, vector<128x128xbf16>, vector<288x128xf32> -> vector<288x128xf32>
    %43 = arith.addf %37, %42 : vector<288x128xf32>
    %c19_37 = arith.constant 19 : index
    %c0_38 = arith.constant 0 : index
    %44 = vector.load %arg6[%c19_37, %c0_38] : memref<332x128xf32, #tpu.memory_space<vmem>>, vector<288x128xf32>
    %45 = arith.truncf %44 : vector<288x128xf32> to vector<288x128xbf16>
    %c5 = arith.constant 5 : index
    %c0_39 = arith.constant 0 : index
    %c0_40 = arith.constant 0 : index
    %46 = vector.load %arg2[%c5, %c0_39, %c0_40] : memref<20x128x128xbf16, #tpu.memory_space<vmem>>, vector<1x128x128xbf16>
    %47 = vector.shape_cast %46 : vector<1x128x128xbf16> to vector<128x128xbf16>
    %cst_41 = arith.constant dense<0.000000e+00> : vector<288x128xf32>
    %48 = tpu.matmul %45, %47, %cst_41 {dimension_numbers = #tpu.dot_dimension_numbers<[1], [0], [0], [1], [0, 0, 1, 1], [], []>} : vector<288x128xbf16>, vector<128x128xbf16>, vector<288x128xf32> -> vector<288x128xf32>
    %49 = arith.addf %43, %48 : vector<288x128xf32>
    %c20 = arith.constant 20 : index
    %c0_42 = arith.constant 0 : index
    %50 = vector.load %arg6[%c20, %c0_42] : memref<332x128xf32, #tpu.memory_space<vmem>>, vector<288x128xf32>
    %51 = arith.truncf %50 : vector<288x128xf32> to vector<288x128xbf16>
    %c6 = arith.constant 6 : index
    %c0_43 = arith.constant 0 : index
    %c0_44 = arith.constant 0 : index
    %52 = vector.load %arg2[%c6, %c0_43, %c0_44] : memref<20x128x128xbf16, #tpu.memory_space<vmem>>, vector<1x128x128xbf16>
    %53 = vector.shape_cast %52 : vector<1x128x128xbf16> to vector<128x128xbf16>
    %cst_45 = arith.constant dense<0.000000e+00> : vector<288x128xf32>
    %54 = tpu.matmul %51, %53, %cst_45 {dimension_numbers = #tpu.dot_dimension_numbers<[1], [0], [0], [1], [0, 0, 1, 1], [], []>} : vector<288x128xbf16>, vector<128x128xbf16>, vector<288x128xf32> -> vector<288x128xf32>
    %55 = arith.addf %49, %54 : vector<288x128xf32>
    %c36 = arith.constant 36 : index
    %c0_46 = arith.constant 0 : index
    %56 = vector.load %arg6[%c36, %c0_46] : memref<332x128xf32, #tpu.memory_space<vmem>>, vector<288x128xf32>
    %57 = arith.truncf %56 : vector<288x128xf32> to vector<288x128xbf16>
    %c7 = arith.constant 7 : index
    %c0_47 = arith.constant 0 : index
    %c0_48 = arith.constant 0 : index
    %58 = vector.load %arg2[%c7, %c0_47, %c0_48] : memref<20x128x128xbf16, #tpu.memory_space<vmem>>, vector<1x128x128xbf16>
    %59 = vector.shape_cast %58 : vector<1x128x128xbf16> to vector<128x128xbf16>
    %cst_49 = arith.constant dense<0.000000e+00> : vector<288x128xf32>
    %60 = tpu.matmul %57, %59, %cst_49 {dimension_numbers = #tpu.dot_dimension_numbers<[1], [0], [0], [1], [0, 0, 1, 1], [], []>} : vector<288x128xbf16>, vector<128x128xbf16>, vector<288x128xf32> -> vector<288x128xf32>
    %61 = arith.addf %55, %60 : vector<288x128xf32>
    %c37 = arith.constant 37 : index
    %c0_50 = arith.constant 0 : index
    %62 = vector.load %arg6[%c37, %c0_50] : memref<332x128xf32, #tpu.memory_space<vmem>>, vector<288x128xf32>
    %63 = arith.truncf %62 : vector<288x128xf32> to vector<288x128xbf16>
    %c8 = arith.constant 8 : index
    %c0_51 = arith.constant 0 : index
    %c0_52 = arith.constant 0 : index
    %64 = vector.load %arg2[%c8, %c0_51, %c0_52] : memref<20x128x128xbf16, #tpu.memory_space<vmem>>, vector<1x128x128xbf16>
    %65 = vector.shape_cast %64 : vector<1x128x128xbf16> to vector<128x128xbf16>
    %cst_53 = arith.constant dense<0.000000e+00> : vector<288x128xf32>
    %66 = tpu.matmul %63, %65, %cst_53 {dimension_numbers = #tpu.dot_dimension_numbers<[1], [0], [0], [1], [0, 0, 1, 1], [], []>} : vector<288x128xbf16>, vector<128x128xbf16>, vector<288x128xf32> -> vector<288x128xf32>
    %67 = arith.addf %61, %66 : vector<288x128xf32>
    %c38 = arith.constant 38 : index
    %c0_54 = arith.constant 0 : index
    %68 = vector.load %arg6[%c38, %c0_54] : memref<332x128xf32, #tpu.memory_space<vmem>>, vector<288x128xf32>
    %69 = arith.truncf %68 : vector<288x128xf32> to vector<288x128xbf16>
    %c9 = arith.constant 9 : index
    %c0_55 = arith.constant 0 : index
    %c0_56 = arith.constant 0 : index
    %70 = vector.load %arg2[%c9, %c0_55, %c0_56] : memref<20x128x128xbf16, #tpu.memory_space<vmem>>, vector<1x128x128xbf16>
    %71 = vector.shape_cast %70 : vector<1x128x128xbf16> to vector<128x128xbf16>
    %cst_57 = arith.constant dense<0.000000e+00> : vector<288x128xf32>
    %72 = tpu.matmul %69, %71, %cst_57 {dimension_numbers = #tpu.dot_dimension_numbers<[1], [0], [0], [1], [0, 0, 1, 1], [], []>} : vector<288x128xbf16>, vector<128x128xbf16>, vector<288x128xf32> -> vector<288x128xf32>
    %73 = arith.addf %67, %72 : vector<288x128xf32>
    %c2_58 = arith.constant 2 : index
    %c0_59 = arith.constant 0 : index
    %74 = vector.load %arg3[%c2_58, %c0_59] : memref<8x128xf32, #tpu.memory_space<vmem>>, vector<1x128xf32>
    %75 = vector.broadcast %74 : vector<1x128xf32> to vector<288x128xf32>
    %76 = arith.mulf %73, %75 : vector<288x128xf32>
    %c3_60 = arith.constant 3 : index
    %c0_61 = arith.constant 0 : index
    %77 = vector.load %arg3[%c3_60, %c0_61] : memref<8x128xf32, #tpu.memory_space<vmem>>, vector<1x128xf32>
    %78 = vector.broadcast %77 : vector<1x128xf32> to vector<288x128xf32>
    %79 = arith.addf %76, %78 : vector<288x128xf32>
    %cst_62 = arith.constant 0.000000e+00 : f32
    %80 = vector.broadcast %cst_62 : f32 to vector<288x128xf32>
    %81 = arith.maximumf %79, %80 : vector<288x128xf32>
    %82 = vector.broadcast %0 : vector<288x1xf32> to vector<288x128xf32>
    %83 = arith.mulf %81, %82 : vector<288x128xf32>
    %cst_63 = arith.constant 0.000000e+00 : f32
    %84 = vector.broadcast %cst_63 : f32 to vector<19x128xf32>
    %c0_64 = arith.constant 0 : index
    %c0_65 = arith.constant 0 : index
    %85 = vector.load %arg7[%c0_64, %c0_65] : memref<332x128xf32, #tpu.memory_space<vmem>>, vector<19x128xf32>
    tpu.vector_store %arg7[%c0_64, %c0_65], %84 {strides = array<i32>} : memref<332x128xf32, #tpu.memory_space<vmem>>, vector<19x128xf32>,
    %cst_66 = arith.constant 0.000000e+00 : f32
    %86 = vector.broadcast %cst_66 : f32 to vector<25x128xf32>
    %c307_67 = arith.constant 307 : index
    %c0_68 = arith.constant 0 : index
    %87 = vector.load %arg7[%c307_67, %c0_68] : memref<332x128xf32, #tpu.memory_space<vmem>>, vector<25x128xf32>
    tpu.vector_store %arg7[%c307_67, %c0_68], %86 {strides = array<i32>} : memref<332x128xf32, #tpu.memory_space<vmem>>, vector<25x128xf32>,
    %c19_69 = arith.constant 19 : index
    %c0_70 = arith.constant 0 : index
    %88 = vector.load %arg7[%c19_69, %c0_70] : memref<332x128xf32, #tpu.memory_space<vmem>>, vector<288x128xf32>
    tpu.vector_store %arg7[%c19_69, %c0_70], %83 {strides = array<i32>} : memref<332x128xf32, #tpu.memory_space<vmem>>, vector<288x128xf32>,
    %c19_71 = arith.constant 19 : index
    %c0_72 = arith.constant 0 : index
    %89 = vector.load %arg6[%c19_71, %c0_72] : memref<332x128xf32, #tpu.memory_space<vmem>>, vector<288x128xf32>
    %c0_73 = arith.constant 0 : index
    %c0_74 = arith.constant 0 : index
    %90 = vector.load %arg7[%c0_73, %c0_74] : memref<332x128xf32, #tpu.memory_space<vmem>>, vector<288x128xf32>
    %91 = arith.truncf %90 : vector<288x128xf32> to vector<288x128xbf16>
    %c10 = arith.constant 10 : index
    %c0_75 = arith.constant 0 : index
    %c0_76 = arith.constant 0 : index
    %92 = vector.load %arg2[%c10, %c0_75, %c0_76] : memref<20x128x128xbf16, #tpu.memory_space<vmem>>, vector<1x128x128xbf16>
    %93 = vector.shape_cast %92 : vector<1x128x128xbf16> to vector<128x128xbf16>
    %cst_77 = arith.constant dense<0.000000e+00> : vector<288x128xf32>
    %94 = tpu.matmul %91, %93, %cst_77 {dimension_numbers = #tpu.dot_dimension_numbers<[1], [0], [0], [1], [0, 0, 1, 1], [], []>} : vector<288x128xbf16>, vector<128x128xbf16>, vector<288x128xf32> -> vector<288x128xf32>
    %c1_78 = arith.constant 1 : index
    %c0_79 = arith.constant 0 : index
    %95 = vector.load %arg7[%c1_78, %c0_79] : memref<332x128xf32, #tpu.memory_space<vmem>>, vector<288x128xf32>
    %96 = arith.truncf %95 : vector<288x128xf32> to vector<288x128xbf16>
    %c11 = arith.constant 11 : index
    %c0_80 = arith.constant 0 : index
    %c0_81 = arith.constant 0 : index
    %97 = vector.load %arg2[%c11, %c0_80, %c0_81] : memref<20x128x128xbf16, #tpu.memory_space<vmem>>, vector<1x128x128xbf16>
    %98 = vector.shape_cast %97 : vector<1x128x128xbf16> to vector<128x128xbf16>
    %cst_82 = arith.constant dense<0.000000e+00> : vector<288x128xf32>
    %99 = tpu.matmul %96, %98, %cst_82 {dimension_numbers = #tpu.dot_dimension_numbers<[1], [0], [0], [1], [0, 0, 1, 1], [], []>} : vector<288x128xbf16>, vector<128x128xbf16>, vector<288x128xf32> -> vector<288x128xf32>
    %100 = arith.addf %94, %99 : vector<288x128xf32>
    %c2_83 = arith.constant 2 : index
    %c0_84 = arith.constant 0 : index
    %101 = vector.load %arg7[%c2_83, %c0_84] : memref<332x128xf32, #tpu.memory_space<vmem>>, vector<288x128xf32>
    %102 = arith.truncf %101 : vector<288x128xf32> to vector<288x128xbf16>
    %c12 = arith.constant 12 : index
    %c0_85 = arith.constant 0 : index
    %c0_86 = arith.constant 0 : index
    %103 = vector.load %arg2[%c12, %c0_85, %c0_86] : memref<20x128x128xbf16, #tpu.memory_space<vmem>>, vector<1x128x128xbf16>
    %104 = vector.shape_cast %103 : vector<1x128x128xbf16> to vector<128x128xbf16>
    %cst_87 = arith.constant dense<0.000000e+00> : vector<288x128xf32>
    %105 = tpu.matmul %102, %104, %cst_87 {dimension_numbers = #tpu.dot_dimension_numbers<[1], [0], [0], [1], [0, 0, 1, 1], [], []>} : vector<288x128xbf16>, vector<128x128xbf16>, vector<288x128xf32> -> vector<288x128xf32>
    %106 = arith.addf %100, %105 : vector<288x128xf32>
    %c18_88 = arith.constant 18 : index
    %c0_89 = arith.constant 0 : index
    %107 = vector.load %arg7[%c18_88, %c0_89] : memref<332x128xf32, #tpu.memory_space<vmem>>, vector<288x128xf32>
    %108 = arith.truncf %107 : vector<288x128xf32> to vector<288x128xbf16>
    %c13 = arith.constant 13 : index
    %c0_90 = arith.constant 0 : index
    %c0_91 = arith.constant 0 : index
    %109 = vector.load %arg2[%c13, %c0_90, %c0_91] : memref<20x128x128xbf16, #tpu.memory_space<vmem>>, vector<1x128x128xbf16>
    %110 = vector.shape_cast %109 : vector<1x128x128xbf16> to vector<128x128xbf16>
    %cst_92 = arith.constant dense<0.000000e+00> : vector<288x128xf32>
    %111 = tpu.matmul %108, %110, %cst_92 {dimension_numbers = #tpu.dot_dimension_numbers<[1], [0], [0], [1], [0, 0, 1, 1], [], []>} : vector<288x128xbf16>, vector<128x128xbf16>, vector<288x128xf32> -> vector<288x128xf32>
    %112 = arith.addf %106, %111 : vector<288x128xf32>
    %c19_93 = arith.constant 19 : index
    %c0_94 = arith.constant 0 : index
    %113 = vector.load %arg7[%c19_93, %c0_94] : memref<332x128xf32, #tpu.memory_space<vmem>>, vector<288x128xf32>
    %114 = arith.truncf %113 : vector<288x128xf32> to vector<288x128xbf16>
    %c14 = arith.constant 14 : index
    %c0_95 = arith.constant 0 : index
    %c0_96 = arith.constant 0 : index
    %115 = vector.load %arg2[%c14, %c0_95, %c0_96] : memref<20x128x128xbf16, #tpu.memory_space<vmem>>, vector<1x128x128xbf16>
    %116 = vector.shape_cast %115 : vector<1x128x128xbf16> to vector<128x128xbf16>
    %cst_97 = arith.constant dense<0.000000e+00> : vector<288x128xf32>
    %117 = tpu.matmul %114, %116, %cst_97 {dimension_numbers = #tpu.dot_dimension_numbers<[1], [0], [0], [1], [0, 0, 1, 1], [], []>} : vector<288x128xbf16>, vector<128x128xbf16>, vector<288x128xf32> -> vector<288x128xf32>
    %118 = arith.addf %112, %117 : vector<288x128xf32>
    %c20_98 = arith.constant 20 : index
    %c0_99 = arith.constant 0 : index
    %119 = vector.load %arg7[%c20_98, %c0_99] : memref<332x128xf32, #tpu.memory_space<vmem>>, vector<288x128xf32>
    %120 = arith.truncf %119 : vector<288x128xf32> to vector<288x128xbf16>
    %c15 = arith.constant 15 : index
    %c0_100 = arith.constant 0 : index
    %c0_101 = arith.constant 0 : index
    %121 = vector.load %arg2[%c15, %c0_100, %c0_101] : memref<20x128x128xbf16, #tpu.memory_space<vmem>>, vector<1x128x128xbf16>
    %122 = vector.shape_cast %121 : vector<1x128x128xbf16> to vector<128x128xbf16>
    %cst_102 = arith.constant dense<0.000000e+00> : vector<288x128xf32>
    %123 = tpu.matmul %120, %122, %cst_102 {dimension_numbers = #tpu.dot_dimension_numbers<[1], [0], [0], [1], [0, 0, 1, 1], [], []>} : vector<288x128xbf16>, vector<128x128xbf16>, vector<288x128xf32> -> vector<288x128xf32>
    %124 = arith.addf %118, %123 : vector<288x128xf32>
    %c36_103 = arith.constant 36 : index
    %c0_104 = arith.constant 0 : index
    %125 = vector.load %arg7[%c36_103, %c0_104] : memref<332x128xf32, #tpu.memory_space<vmem>>, vector<288x128xf32>
    %126 = arith.truncf %125 : vector<288x128xf32> to vector<288x128xbf16>
    %c16 = arith.constant 16 : index
    %c0_105 = arith.constant 0 : index
    %c0_106 = arith.constant 0 : index
    %127 = vector.load %arg2[%c16, %c0_105, %c0_106] : memref<20x128x128xbf16, #tpu.memory_space<vmem>>, vector<1x128x128xbf16>
    %128 = vector.shape_cast %127 : vector<1x128x128xbf16> to vector<128x128xbf16>
    %cst_107 = arith.constant dense<0.000000e+00> : vector<288x128xf32>
    %129 = tpu.matmul %126, %128, %cst_107 {dimension_numbers = #tpu.dot_dimension_numbers<[1], [0], [0], [1], [0, 0, 1, 1], [], []>} : vector<288x128xbf16>, vector<128x128xbf16>, vector<288x128xf32> -> vector<288x128xf32>
    %130 = arith.addf %124, %129 : vector<288x128xf32>
    %c37_108 = arith.constant 37 : index
    %c0_109 = arith.constant 0 : index
    %131 = vector.load %arg7[%c37_108, %c0_109] : memref<332x128xf32, #tpu.memory_space<vmem>>, vector<288x128xf32>
    %132 = arith.truncf %131 : vector<288x128xf32> to vector<288x128xbf16>
    %c17 = arith.constant 17 : index
    %c0_110 = arith.constant 0 : index
    %c0_111 = arith.constant 0 : index
    %133 = vector.load %arg2[%c17, %c0_110, %c0_111] : memref<20x128x128xbf16, #tpu.memory_space<vmem>>, vector<1x128x128xbf16>
    %134 = vector.shape_cast %133 : vector<1x128x128xbf16> to vector<128x128xbf16>
    %cst_112 = arith.constant dense<0.000000e+00> : vector<288x128xf32>
    %135 = tpu.matmul %132, %134, %cst_112 {dimension_numbers = #tpu.dot_dimension_numbers<[1], [0], [0], [1], [0, 0, 1, 1], [], []>} : vector<288x128xbf16>, vector<128x128xbf16>, vector<288x128xf32> -> vector<288x128xf32>
    %136 = arith.addf %130, %135 : vector<288x128xf32>
    %c38_113 = arith.constant 38 : index
    %c0_114 = arith.constant 0 : index
    %137 = vector.load %arg7[%c38_113, %c0_114] : memref<332x128xf32, #tpu.memory_space<vmem>>, vector<288x128xf32>
    %138 = arith.truncf %137 : vector<288x128xf32> to vector<288x128xbf16>
    %c18_115 = arith.constant 18 : index
    %c0_116 = arith.constant 0 : index
    %c0_117 = arith.constant 0 : index
    %139 = vector.load %arg2[%c18_115, %c0_116, %c0_117] : memref<20x128x128xbf16, #tpu.memory_space<vmem>>, vector<1x128x128xbf16>
    %140 = vector.shape_cast %139 : vector<1x128x128xbf16> to vector<128x128xbf16>
    %cst_118 = arith.constant dense<0.000000e+00> : vector<288x128xf32>
    %141 = tpu.matmul %138, %140, %cst_118 {dimension_numbers = #tpu.dot_dimension_numbers<[1], [0], [0], [1], [0, 0, 1, 1], [], []>} : vector<288x128xbf16>, vector<128x128xbf16>, vector<288x128xf32> -> vector<288x128xf32>
    %142 = arith.addf %136, %141 : vector<288x128xf32>
    %c4_119 = arith.constant 4 : index
    %c0_120 = arith.constant 0 : index
    %143 = vector.load %arg3[%c4_119, %c0_120] : memref<8x128xf32, #tpu.memory_space<vmem>>, vector<1x128xf32>
    %144 = vector.broadcast %143 : vector<1x128xf32> to vector<288x128xf32>
    %145 = arith.mulf %142, %144 : vector<288x128xf32>
    %c5_121 = arith.constant 5 : index
    %c0_122 = arith.constant 0 : index
    %146 = vector.load %arg3[%c5_121, %c0_122] : memref<8x128xf32, #tpu.memory_space<vmem>>, vector<1x128xf32>
    %147 = vector.broadcast %146 : vector<1x128xf32> to vector<288x128xf32>
    %148 = arith.addf %145, %147 : vector<288x128xf32>
    %149 = arith.addf %148, %89 : vector<288x128xf32>
    %cst_123 = arith.constant 0.000000e+00 : f32
    %150 = vector.broadcast %cst_123 : f32 to vector<288x128xf32>
    %151 = arith.maximumf %149, %150 : vector<288x128xf32>
    %152 = vector.broadcast %0 : vector<288x1xf32> to vector<288x128xf32>
    %153 = arith.mulf %151, %152 : vector<288x128xf32>
    %cst_124 = arith.constant dense<0.000000e+00> : vector<128xf32>
    %154 = vector.multi_reduction <add>, %153, %cst_124 [0] : vector<288x128xf32> to vector<128xf32>
    %155 = vector.shape_cast %154 : vector<128xf32> to vector<1x128xf32>
    %cst_125 = arith.constant 3.906250e-03 : f32
    %156 = vector.broadcast %cst_125 : f32 to vector<1x128xf32>
    %157 = arith.mulf %155, %156 : vector<1x128xf32>
    %158 = arith.truncf %157 : vector<1x128xf32> to vector<1x128xbf16>
    %c19_126 = arith.constant 19 : index
    %c0_127 = arith.constant 0 : index
    %c0_128 = arith.constant 0 : index
    %159 = vector.load %arg2[%c19_126, %c0_127, %c0_128] : memref<20x128x128xbf16, #tpu.memory_space<vmem>>, vector<1x128x128xbf16>
    %160 = vector.shape_cast %159 : vector<1x128x128xbf16> to vector<128x128xbf16>
    %cst_129 = arith.constant dense<0.000000e+00> : vector<1x128xf32>
    %161 = tpu.matmul %158, %160, %cst_129 {dimension_numbers = #tpu.dot_dimension_numbers<[1], [0], [0], [1], [0, 0, 1, 1], [], []>} : vector<1x128xbf16>, vector<128x128xbf16>, vector<1x128xf32> -> vector<1x128xf32>
    %c6_130 = arith.constant 6 : index
    %c0_131 = arith.constant 0 : index
    %162 = vector.load %arg3[%c6_130, %c0_131] : memref<8x128xf32, #tpu.memory_space<vmem>>, vector<1x128xf32>
    %163 = arith.addf %161, %162 : vector<1x128xf32>
    %c0_132 = arith.constant 0 : index
    %c0_133 = arith.constant 0 : index
    %c0_134 = arith.constant 0 : index
    %164 = vector.load %arg5[%c0_132, %c0_133, %c0_134] : memref<1x1x128xf32, #tpu.memory_space<vmem>>, vector<1x1x128xf32>
    %165 = vector.shape_cast %164 : vector<1x1x128xf32> to vector<1x128xf32>
    %166 = vector.shape_cast %163 : vector<1x128xf32> to vector<1x1x128xf32>
    tpu.vector_store %arg5[%c0_132, %c0_133, %c0_134], %166 {strides = array<i32>} : memref<1x1x128xf32, #tpu.memory_space<vmem>>, vector<1x1x128xf32>,
    return
  }
  func.func @transform_0(%arg0: i32) -> (i32, i32, i32) {
    %c0_i32 = arith.constant 0 : i32
    %c0_i32_0 = arith.constant 0 : i32
    %c0_i32_1 = arith.constant 0 : i32
    return %arg0, %c0_i32, %c0_i32_0 : i32, i32, i32
  }
  func.func @transform_1(%arg0: i32) -> (i32, i32, i32) {
    %c0_i32 = arith.constant 0 : i32
    %c0_i32_0 = arith.constant 0 : i32
    %c0_i32_1 = arith.constant 0 : i32
    %c0_i32_2 = arith.constant 0 : i32
    return %c0_i32, %c0_i32_0, %c0_i32_1 : i32, i32, i32
  }
  func.func @transform_2(%arg0: i32) -> (i32, i32) {
    %c0_i32 = arith.constant 0 : i32
    %c0_i32_0 = arith.constant 0 : i32
    %c0_i32_1 = arith.constant 0 : i32
    return %c0_i32, %c0_i32_0 : i32, i32
  }
  func.func @transform_3(%arg0: i32) -> (i32, i32) {
    %c0_i32 = arith.constant 0 : i32
    %c0_i32_0 = arith.constant 0 : i32
    %c0_i32_1 = arith.constant 0 : i32
    return %c0_i32, %c0_i32_0 : i32, i32
  }
  func.func @transform_4(%arg0: i32) -> (i32, i32, i32) {
    %c0_i32 = arith.constant 0 : i32
    %c0_i32_0 = arith.constant 0 : i32
    %c0_i32_1 = arith.constant 0 : i32
    return %arg0, %c0_i32, %c0_i32_0 : i32, i32, i32
  }
}

</mosaic_0001>

<llo_original>
// kernel: forward.1
$region0: #{forward.1}
  #allocation0 [shape = 'u32[]', space=smem, size = 0x4, offset = 0x4, fixed_abs, tag = 'smem constant byte address 0x4 - core index']
  #allocation1 [shape = 'u32[144,128]{1,0:T(1,128)}', space=vmem, size = 0x12000, scoped, tag = 'internal scratch']
  #allocation2 [shape = 'f32[332,128]{1,0:T(8,128)}', space=vmem, size = 0x2a000, scoped, tag = 'scratch operand']
  #allocation3 [shape = 'f32[332,128]{1,0:T(8,128)}', space=vmem, size = 0x2a000, scoped, tag = 'scratch operand']
  %s0 = inlined_call_operand.vmem [shape: bf16[2,288,128], index: 0, kind: input, shape index: {}]
  %s1 = inlined_call_operand.vmem [shape: bf16[20,128,128], index: 1, kind: input, shape index: {}]
  %s2 = inlined_call_operand.vmem [shape: f32[8,128], index: 2, kind: input, shape index: {}]
  %s3 = inlined_call_operand.vmem [shape: f32[288,1], index: 3, kind: input, shape index: {}]
  %s4 = inlined_call_operand.hbm [shape: f32[2,1,128], index: 4, kind: output, shape index: {}]
  %s5 = sld [smem:[#allocation0]]
  $region49: #{forward.1} parent=0
    _
  %s7 = ssub.s32 1, %s5
  %s8 = scalar_select 0, %s7, %s5
  $region1: #{forward.1} parent=0
    #allocation4 [shape = 'u8[1024]{0}', space=vmem, size = 0x400, scoped, tag = 'output window, operand 0']
    #allocation5 [shape = 's32[2]{0}', space=sflag, size = 0x8, scoped, tag = 'scoped memory for forward.1']
    %9 = vsyncpa [#allocation5], 0
    %s10 = scalar_lea.sflag [#allocation5], 1
    %11 = vsyncpa %s10, 0
    loop: start=0, step=1, limit=4
    $region2: #{forward.1} parent=1 // loop_pre_header
      _
    $region3: #{forward.1} parent=1 // loop_header
      %s13 = sphi 0, %s17
      %p14 = scmp.ge.s32.totalorder %s13, 4
      %s23 = sphi 0, %s25
      %s26 = sphi 0, %s23
      %s27 = sphi 0, %s26
      %s43 = sphi 0, %s27
      %s47 = sphi 0, %s47
      %s49 = sphi 0, %s47
      %s50 = sphi 0, %s49
      %s64 = sphi 0, %s50
      %s68 = sphi 0, %s68
      %s70 = sphi 0, %s68
      %s71 = sphi 0, %s70
      %s85 = sphi 0, %s71
      %s89 = sphi 0, %s89
      %s91 = sphi 0, %s89
      %s92 = sphi 0, %s91
      %s106 = sphi 0, %s92
      %s112 = sphi 0, %s114
      %s115 = sphi 0, %s112
      %s116 = sphi 0, %s115
      %s132 = sphi 0, %s116
    $region4: #{forward.1} parent=1 // loop_header_branch
      %16 = sbr.rel (%p14) target = $region8
    $region5: #{forward.1} parent=1 // loop_body
      %s18 = ssub.s32 %s13, 1
      %s19 = ssub.s32 %s13, 2
      %s20 = sadd.s32 %s13, 1
      %s21 = ssub.s32 %s13, %s20
      %p22 = scmp.eq.s32.totalorder %s21, 0
      %s24 = sadd.s32 %s23, 1
      %s25 = scalar_select %p22, %s23, %s24
      %p28 = pneg %p22
      %p29 = scmp.eq.s32.totalorder %s13, 1
      %p30 = por %p28, %p29
      %p31 = scmp.ne.s32.totalorder %s23, %s26
      %p32 = scmp.eq.s32.totalorder %s13, 0
      %p33 = por %p31, %p32
      %p34 = scmp.ne.s32.totalorder %s23, %s26
      %p35 = scmp.eq.s32.totalorder %s18, 1
      %p36 = por %p34, %p35
      %p37 = scmp.ne.s32.totalorder %s26, %s27
      %p38 = scmp.eq.s32.totalorder %s18, 0
      %p39 = por %p37, %p38
      %p40 = scmp.ne.s32.totalorder %s26, %s27
      %p41 = scmp.eq.s32.totalorder %s19, 1
      %p42 = por %p40, %p41
      %p44 = scmp.ne.s32.totalorder %s27, %s43
      %p45 = scmp.eq.s32.totalorder %s19, 0
      %p46 = por %p44, %p45
      %s48 = sadd.s32 %s47, 1
      %p51 = scmp.eq.s32.totalorder %s13, 1
      %p52 = scmp.ne.s32.totalorder %s47, %s49
      %p53 = scmp.eq.s32.totalorder %s13, 0
      %p54 = por %p52, %p53
      %p55 = scmp.ne.s32.totalorder %s47, %s49
      %p56 = scmp.eq.s32.totalorder %s18, 1
      %p57 = por %p55, %p56
      %p58 = scmp.ne.s32.totalorder %s49, %s50
      %p59 = scmp.eq.s32.totalorder %s18, 0
      %p60 = por %p58, %p59
      %p61 = scmp.ne.s32.totalorder %s49, %s50
      %p62 = scmp.eq.s32.totalorder %s19, 1
      %p63 = por %p61, %p62
      %p65 = scmp.ne.s32.totalorder %s50, %s64
      %p66 = scmp.eq.s32.totalorder %s19, 0
      %p67 = por %p65, %p66
      %s69 = sadd.s32 %s68, 1
      %p72 = scmp.eq.s32.totalorder %s13, 1
      %p73 = scmp.ne.s32.totalorder %s68, %s70
      %p74 = scmp.eq.s32.totalorder %s13, 0
      %p75 = por %p73, %p74
      %p76 = scmp.ne.s32.totalorder %s68, %s70
      %p77 = scmp.eq.s32.totalorder %s18, 1
      %p78 = por %p76, %p77
      %p79 = scmp.ne.s32.totalorder %s70, %s71
      %p80 = scmp.eq.s32.totalorder %s18, 0
      %p81 = por %p79, %p80
      %p82 = scmp.ne.s32.totalorder %s70, %s71
      %p83 = scmp.eq.s32.totalorder %s19, 1
      %p84 = por %p82, %p83
      %p86 = scmp.ne.s32.totalorder %s71, %s85
      %p87 = scmp.eq.s32.totalorder %s19, 0
      %p88 = por %p86, %p87
      %s90 = sadd.s32 %s89, 1
      %p93 = scmp.eq.s32.totalorder %s13, 1
      %p94 = scmp.ne.s32.totalorder %s89, %s91
      %p95 = scmp.eq.s32.totalorder %s13, 0
      %p96 = por %p94, %p95
      %p97 = scmp.ne.s32.totalorder %s89, %s91
      %p98 = scmp.eq.s32.totalorder %s18, 1
      %p99 = por %p97, %p98
      %p100 = scmp.ne.s32.totalorder %s91, %s92
      %p101 = scmp.eq.s32.totalorder %s18, 0
      %p102 = por %p100, %p101
      %p103 = scmp.ne.s32.totalorder %s91, %s92
      %p104 = scmp.eq.s32.totalorder %s19, 1
      %p105 = por %p103, %p104
      %p107 = scmp.ne.s32.totalorder %s92, %s106
      %p108 = scmp.eq.s32.totalorder %s19, 0
      %p109 = por %p107, %p108
      %s110 = ssub.s32 %s13, %s20
      %p111 = scmp.eq.s32.totalorder %s110, 0
      %s113 = sadd.s32 %s112, 1
      %s114 = scalar_select %p111, %s112, %s113
      %p117 = pneg %p111
      %p118 = scmp.eq.s32.totalorder %s13, 1
      %p119 = por %p117, %p118
      %p120 = scmp.ne.s32.totalorder %s112, %s115
      %p121 = scmp.eq.s32.totalorder %s13, 0
      %p122 = por %p120, %p121
      %p123 = scmp.ne.s32.totalorder %s112, %s115
      %p124 = scmp.eq.s32.totalorder %s18, 1
      %p125 = por %p123, %p124
      %p126 = scmp.ne.s32.totalorder %s115, %s116
      %p127 = scmp.eq.s32.totalorder %s18, 0
      %p128 = por %p126, %p127
      %p129 = scmp.ne.s32.totalorder %s115, %s116
      %p130 = scmp.eq.s32.totalorder %s19, 1
      %p131 = por %p129, %p130
      %p133 = scmp.ne.s32.totalorder %s116, %s132
      %p134 = scmp.eq.s32.totalorder %s19, 0
      %p135 = por %p133, %p134
      %p136 = scmp.le.s32.totalorder 1, %s13
      %p137 = scmp.lt.s32.totalorder %s13, 3
      %p138 = pnand %p136, %p137
      %p139 = pneg %p138
      // Predicated region
      $region9: #{forward.1} parent=5 // pred_check
        _
      $region10: #{forward.1} parent=5 // pred_check_branch
        %141 = sbr.rel (%p138) target = $region12
      $region11: #{forward.1} parent=5 // pred_region
        %s142 = ssub.s32 %s13, 1
        // Predicated region
        $region13: #{forward.1} parent=11 // pred_check
          %p143 = pneg %p60
        $region14: #{forward.1} parent=11 // pred_check_branch
          %145 = sbr.rel (%p143) target = $region16
        $region15: #{forward.1} parent=11 // pred_region
          _
        $region16: #{forward.1} parent=11 // pred_fallthru
          _
        // Predicated region
        $region17: #{forward.1} parent=11 // pred_check
          %p146 = pneg %p81
        $region18: #{forward.1} parent=11 // pred_check_branch
          %148 = sbr.rel (%p146) target = $region20
        $region19: #{forward.1} parent=11 // pred_region
          _
        $region20: #{forward.1} parent=11 // pred_fallthru
          _
        // Predicated region
        $region21: #{forward.1} parent=11 // pred_check
          %p149 = pneg %p102
        $region22: #{forward.1} parent=11 // pred_check_branch
          %151 = sbr.rel (%p149) target = $region24
        $region23: #{forward.1} parent=11 // pred_region
          _
        $region24: #{forward.1} parent=11 // pred_fallthru
          _
      $region12: #{forward.1} parent=5 // pred_fallthru
        _
      %p152 = scmp.lt.s32.totalorder %s13, 2
      // Predicated region
      $region25: #{forward.1} parent=5 // pred_check
        %p153 = pneg %p152
      $region26: #{forward.1} parent=5 // pred_check_branch
        %155 = sbr.rel (%p153) target = $region28
      $region27: #{forward.1} parent=5 // pred_region
        // Predicated region
        $region29: #{forward.1} parent=27 // pred_check
          %p156 = pneg %p33
        $region30: #{forward.1} parent=27 // pred_check_branch
          %158 = sbr.rel (%p156) target = $region32
        $region31: #{forward.1} parent=27 // pred_region
          %p159 = scmp.lt.s32.totalorder %s13, 1
          %s160 = scalar_select %p159, %s13, 1
          %s161 = smul.addr %s160, 36
          %s162 = smul.addr %s161, 4
          %s163 = scalar_lea.vmem %s0, %s162
        $region32: #{forward.1} parent=27 // pred_fallthru
          _
      $region28: #{forward.1} parent=5 // pred_fallthru
        _
      %p164 = scmp.le.s32.totalorder 1, %s13
      %p165 = scmp.lt.s32.totalorder %s13, 3
      %p166 = pnand %p164, %p165
      %p167 = pneg %p166
      // Predicated region
      $region33: #{forward.1} parent=5 // pred_check
        _
      $region34: #{forward.1} parent=5 // pred_check_branch
        %169 = sbr.rel (%p166) target = $region36
      $region35: #{forward.1} parent=5 // pred_region
        %s170 = ssub.s32 %s13, 1
        %p171 = scmp.lt.s32.totalorder %s18, 1
        %s172 = scalar_select %p171, %s18, 1
        %s173 = smul.addr %s172, 36
        %s174 = smul.addr %s173, 4
        %s175 = scalar_lea.vmem %s0, %s174
        %p176 = pneg %p39
        %p177 = pneg %p36
        %p178 = pneg %p60
        %p179 = pneg %p57
        %p180 = pneg %p81
        %p181 = pneg %p78
        %p182 = pneg %p102
        %p183 = pneg %p99
        %p184 = pneg %p128
        %p185 = pneg %p125
        %s186 = sand.u32 %s115, 1
        %s187 = scalar_lea.sflag [#allocation5], %s186
        %s188 = sand.u32 %s115, 1
        %s189 = scalar_lea.vmem [#allocation4], %s188
        %p190 = scmp.lt.s32.totalorder %s18, 1
        %s191 = scalar_select %p190, %s18, 1
        %s192 = smul.addr %s191, 36
        %s193 = smul.addr %s192, 4
        %s194 = scalar_lea.vmem %s0, %s193
        %v196 = vld [vmem:[%s3] sm:$0xff]
        %v197 = vld [vmem:[%s3 + $0x8] sm:$0xff]
        %v198 = vld [vmem:[%s3 + $0x10] sm:$0xff]
        %v199 = vld [vmem:[%s3 + $0x18] sm:$0xff]
        %v200 = vld [vmem:[%s3 + $0x20] sm:$0xff]
        %v201 = vld [vmem:[%s3 + $0x28] sm:$0xff]
        %v202 = vld [vmem:[%s3 + $0x30] sm:$0xff]
        %v203 = vld [vmem:[%s3 + $0x38] sm:$0xff]
        %v204 = vld [vmem:[%s3 + $0x40] sm:$0xff]
        %v205 = vld [vmem:[%s3 + $0x48] sm:$0xff]
        %v206 = vld [vmem:[%s3 + $0x50] sm:$0xff]
        %v207 = vld [vmem:[%s3 + $0x58] sm:$0xff]
        %v208 = vld [vmem:[%s3 + $0x60] sm:$0xff]
        %v209 = vld [vmem:[%s3 + $0x68] sm:$0xff]
        %v210 = vld [vmem:[%s3 + $0x70] sm:$0xff]
        %v211 = vld [vmem:[%s3 + $0x78] sm:$0xff]
        %v212 = vld [vmem:[%s3 + $0x80] sm:$0xff]
        %v213 = vld [vmem:[%s3 + $0x88] sm:$0xff]
        %v214 = vld [vmem:[%s3 + $0x90] sm:$0xff]
        %v215 = vld [vmem:[%s3 + $0x98] sm:$0xff]
        %v216 = vld [vmem:[%s3 + $0xa0] sm:$0xff]
        %v217 = vld [vmem:[%s3 + $0xa8] sm:$0xff]
        %v218 = vld [vmem:[%s3 + $0xb0] sm:$0xff]
        %v219 = vld [vmem:[%s3 + $0xb8] sm:$0xff]
        %v220 = vld [vmem:[%s3 + $0xc0] sm:$0xff]
        %v221 = vld [vmem:[%s3 + $0xc8] sm:$0xff]
        %v222 = vld [vmem:[%s3 + $0xd0] sm:$0xff]
        %v223 = vld [vmem:[%s3 + $0xd8] sm:$0xff]
        %v224 = vld [vmem:[%s3 + $0xe0] sm:$0xff]
        %v225 = vld [vmem:[%s3 + $0xe8] sm:$0xff]
        %v226 = vld [vmem:[%s3 + $0xf0] sm:$0xff]
        %v227 = vld [vmem:[%s3 + $0xf8] sm:$0xff]
        %v228 = vld [vmem:[%s3 + $0x100] sm:$0xff]
        %v229 = vld [vmem:[%s3 + $0x108] sm:$0xff]
        %v230 = vld [vmem:[%s3 + $0x110] sm:$0xff]
        %v231 = vld [vmem:[%s3 + $0x118] sm:$0xff]
        %v232 = vld [vmem:[%s194] sm:$0xf]
        %v233 = vld [vmem:[%s194 + $0x4] sm:$0xf]
        %v234 = vld [vmem:[%s194 + $0x8] sm:$0xf]
        %v235 = vld [vmem:[%s194 + $0xc] sm:$0xf]
        %v236 = vld [vmem:[%s194 + $0x10] sm:$0xf]
        %v237 = vld [vmem:[%s194 + $0x14] sm:$0xf]
        %v238 = vld [vmem:[%s194 + $0x18] sm:$0xf]
        %v239 = vld [vmem:[%s194 + $0x1c] sm:$0xf]
        %v240 = vld [vmem:[%s194 + $0x20] sm:$0xf]
        %v241 = vld [vmem:[%s194 + $0x24] sm:$0xf]
        %v242 = vld [vmem:[%s194 + $0x28] sm:$0xf]
        %v243 = vld [vmem:[%s194 + $0x2c] sm:$0xf]
        %v244 = vld [vmem:[%s194 + $0x30] sm:$0xf]
        %v245 = vld [vmem:[%s194 + $0x34] sm:$0xf]
        %v246 = vld [vmem:[%s194 + $0x38] sm:$0xf]
        %v247 = vld [vmem:[%s194 + $0x3c] sm:$0xf]
        %v248 = vld [vmem:[%s194 + $0x40] sm:$0xf]
        %v249 = vld [vmem:[%s194 + $0x44] sm:$0xf]
        %v250 = vld [vmem:[%s194 + $0x48] sm:$0xf]
        %v251 = vld [vmem:[%s194 + $0x4c] sm:$0xf]
        %v252 = vld [vmem:[%s194 + $0x50] sm:$0xf]
        %v253 = vld [vmem:[%s194 + $0x54] sm:$0xf]
        %v254 = vld [vmem:[%s194 + $0x58] sm:$0xf]
        %v255 = vld [vmem:[%s194 + $0x5c] sm:$0xf]
        %v256 = vld [vmem:[%s194 + $0x60] sm:$0xf]
        %v257 = vld [vmem:[%s194 + $0x64] sm:$0xf]
        %v258 = vld [vmem:[%s194 + $0x68] sm:$0xf]
        %v259 = vld [vmem:[%s194 + $0x6c] sm:$0xf]
        %v260 = vld [vmem:[%s194 + $0x70] sm:$0xf]
        %v261 = vld [vmem:[%s194 + $0x74] sm:$0xf]
        %v262 = vld [vmem:[%s194 + $0x78] sm:$0xf]
        %v263 = vld [vmem:[%s194 + $0x7c] sm:$0xf]
        %v264 = vld [vmem:[%s194 + $0x80] sm:$0xf]
        %v265 = vld [vmem:[%s194 + $0x84] sm:$0xf]
        %v266 = vld [vmem:[%s194 + $0x88] sm:$0xf]
        %v267 = vld [vmem:[%s194 + $0x8c] sm:$0xf]
        %v268 = vld [vmem:[%s1] sm:$0xf]
        %v269 = vld [vmem:[%s1 + $0x4] sm:$0xf]
        %v270 = vld [vmem:[%s1 + $0x8] sm:$0xf]
        %v271 = vld [vmem:[%s1 + $0xc] sm:$0xf]
        %v272 = vld [vmem:[%s1 + $0x10] sm:$0xf]
        %v273 = vld [vmem:[%s1 + $0x14] sm:$0xf]
        %v274 = vld [vmem:[%s1 + $0x18] sm:$0xf]
        %v275 = vld [vmem:[%s1 + $0x1c] sm:$0xf]
        %v276 = vld [vmem:[%s1 + $0x20] sm:$0xf]
        %v277 = vld [vmem:[%s1 + $0x24] sm:$0xf]
        %v278 = vld [vmem:[%s1 + $0x28] sm:$0xf]
        %v279 = vld [vmem:[%s1 + $0x2c] sm:$0xf]
        %v280 = vld [vmem:[%s1 + $0x30] sm:$0xf]
        %v281 = vld [vmem:[%s1 + $0x34] sm:$0xf]
        %v282 = vld [vmem:[%s1 + $0x38] sm:$0xf]
        %v283 = vld [vmem:[%s1 + $0x3c] sm:$0xf]
        %v320 = vunpack.c.l.b16 %v232
        %v321 = vunpack.c.l.b16 %v233
        %v322 = vunpack.c.l.b16 %v234
        %v323 = vunpack.c.l.b16 %v235
        %v324 = vunpack.c.l.b16 %v236
        %v325 = vunpack.c.l.b16 %v237
        %v326 = vunpack.c.l.b16 %v238
        %v327 = vunpack.c.l.b16 %v239
        %v328 = vunpack.c.l.b16 %v240
        %v329 = vunpack.c.l.b16 %v241
        %v330 = vunpack.c.l.b16 %v242
        %v331 = vunpack.c.l.b16 %v243
        %v332 = vunpack.c.l.b16 %v244
        %v333 = vunpack.c.l.b16 %v245
        %v334 = vunpack.c.l.b16 %v246
        %v335 = vunpack.c.l.b16 %v247
        %v336 = vunpack.c.l.b16 %v248
        %v337 = vunpack.c.l.b16 %v249
        %v338 = vunpack.c.l.b16 %v250
        %v339 = vunpack.c.l.b16 %v251
        %v340 = vunpack.c.l.b16 %v252
        %v341 = vunpack.c.l.b16 %v253
        %v342 = vunpack.c.l.b16 %v254
        %v343 = vunpack.c.l.b16 %v255
        %v344 = vunpack.c.l.b16 %v256
        %v345 = vunpack.c.l.b16 %v257
        %v346 = vunpack.c.l.b16 %v258
        %v347 = vunpack.c.l.b16 %v259
        %v348 = vunpack.c.l.b16 %v260
        %v349 = vunpack.c.l.b16 %v261
        %v350 = vunpack.c.l.b16 %v262
        %v351 = vunpack.c.l.b16 %v263
        %v352 = vunpack.c.l.b16 %v264
        %v353 = vunpack.c.l.b16 %v265
        %v354 = vunpack.c.l.b16 %v266
        %v355 = vunpack.c.l.b16 %v267
        %v356 = vpack.c.b16 %v321, %v320
        %v357 = vpack.c.b16 %v323, %v322
        %v358 = vpack.c.b16 %v325, %v324
        %v359 = vpack.c.b16 %v327, %v326
        %v360 = vpack.c.b16 %v329, %v328
        %v361 = vpack.c.b16 %v331, %v330
        %v362 = vpack.c.b16 %v333, %v332
        %v363 = vpack.c.b16 %v335, %v334
        %v364 = vpack.c.b16 %v337, %v336
        %v365 = vpack.c.b16 %v339, %v338
        %v366 = vpack.c.b16 %v341, %v340
        %v367 = vpack.c.b16 %v343, %v342
        %v368 = vpack.c.b16 %v345, %v344
        %v369 = vpack.c.b16 %v347, %v346
        %v370 = vpack.c.b16 %v349, %v348
        %v371 = vpack.c.b16 %v351, %v350
        %v372 = vpack.c.b16 %v353, %v352
        %v373 = vpack.c.b16 %v355, %v354
        %v408 = vunpack.c.l.b16 %v268
        %v409 = vunpack.c.l.b16 %v269
        %v410 = vunpack.c.l.b16 %v270
        %v411 = vunpack.c.l.b16 %v271
        %v412 = vunpack.c.l.b16 %v272
        %v413 = vunpack.c.l.b16 %v273
        %v414 = vunpack.c.l.b16 %v274
        %v415 = vunpack.c.l.b16 %v275
        %v416 = vunpack.c.l.b16 %v276
        %v417 = vunpack.c.l.b16 %v277
        %v418 = vunpack.c.l.b16 %v278
        %v419 = vunpack.c.l.b16 %v279
        %v420 = vunpack.c.l.b16 %v280
        %v421 = vunpack.c.l.b16 %v281
        %v422 = vunpack.c.l.b16 %v282
        %v423 = vunpack.c.l.b16 %v283
        %v424 = vpack.c.b16 %v409, %v408
        %v425 = vpack.c.b16 %v411, %v410
        %v426 = vpack.c.b16 %v413, %v412
        %v427 = vpack.c.b16 %v415, %v414
        %v428 = vpack.c.b16 %v417, %v416
        %v429 = vpack.c.b16 %v419, %v418
        %v430 = vpack.c.b16 %v421, %v420
        %v431 = vpack.c.b16 %v423, %v422
        %440 = vmatprep.subr.bf16.mxu0 0
        %441 = vmatpush1.bf16.msra.mxu0 %v431
        %442 = vmatprep.subr.bf16.mxu0 0
        %443 = vmatpush1.bf16.msra.mxu0 %v430
        %444 = vmatprep.subr.bf16.mxu0 0
        %445 = vmatpush1.bf16.msra.mxu0 %v429
        %446 = vmatprep.subr.bf16.mxu0 0
        %447 = vmatpush1.bf16.msra.mxu0 %v428
        %448 = vmatprep.subr.bf16.mxu0 0
        %449 = vmatpush1.bf16.msra.mxu0 %v427
        %450 = vmatprep.subr.bf16.mxu0 0
        %451 = vmatpush1.bf16.msra.mxu0 %v426
        %452 = vmatprep.subr.bf16.mxu0 0
        %453 = vmatpush1.bf16.msra.mxu0 %v425
        %454 = vmatprep.subr.bf16.mxu0 0
        %455 = vmatpush1.bf16.msra.mxu0 %v424
        %456 = vmatprep.subr.bf16.mxu0 0
        %457 = vmatpush2.bf16.msra.mxu0 0
        %458 = vmatprep.subr.bf16.mxu0 0
        %459 = vmatpush2.bf16.msra.mxu0 0
        %460 = vmatprep.subr.bf16.mxu0 0
        %461 = vmatpush2.bf16.msra.mxu0 0
        %462 = vmatprep.subr.bf16.mxu0 0
        %463 = vmatpush2.bf16.msra.mxu0 0
        %464 = vmatprep.subr.bf16.mxu0 0
        %465 = vmatpush2.bf16.msra.mxu0 0
        %466 = vmatprep.subr.bf16.mxu0 0
        %467 = vmatpush2.bf16.msra.mxu0 0
        %468 = vmatprep.subr.bf16.mxu0 0
        %469 = vmatpush2.bf16.msra.mxu0 0
        %470 = vmatprep.subr.bf16.mxu0 0
        %471 = vmatpush2.bf16.msra.mxu0 0
        %472 = vmatprep.mubr.bf16.mxu0 0
        %473 = vmatmul.mubr.bf16.gmra.mxu0 %v356
        %v474 = vpop.f32.mrf.mxu0
        %v475 = vadd.f32 0.0, %v474
        %v476 = vpop.f32.mrf.mxu0
        %v477 = vpop.f32.mrf.mxu0
        %v478 = vadd.f32 0.0, %v477
        %v479 = vpop.f32.mrf.mxu0
        %480 = vmatprep.mubr.bf16.mxu0 0
        %481 = vmatmul.mubr.bf16.gmra.mxu0 %v357
        %v482 = vpop.f32.mrf.mxu0
        %v483 = vadd.f32 0.0, %v482
        %v484 = vpop.f32.mrf.mxu0
        %v485 = vpop.f32.mrf.mxu0
        %v486 = vadd.f32 0.0, %v485
        %v487 = vpop.f32.mrf.mxu0
        %488 = vmatprep.mubr.bf16.mxu0 0
        %489 = vmatmul.mubr.bf16.gmra.mxu0 %v358
        %v490 = vpop.f32.mrf.mxu0
        %v491 = vadd.f32 0.0, %v490
        %v492 = vpop.f32.mrf.mxu0
        %v493 = vpop.f32.mrf.mxu0
        %v494 = vadd.f32 0.0, %v493
        %v495 = vpop.f32.mrf.mxu0
        %496 = vmatprep.mubr.bf16.mxu0 0
        %497 = vmatmul.mubr.bf16.gmra.mxu0 %v359
        %v498 = vpop.f32.mrf.mxu0
        %v499 = vadd.f32 0.0, %v498
        %v500 = vpop.f32.mrf.mxu0
        %v501 = vpop.f32.mrf.mxu0
        %v502 = vadd.f32 0.0, %v501
        %v503 = vpop.f32.mrf.mxu0
        %504 = vmatprep.mubr.bf16.mxu0 0
        %505 = vmatmul.mubr.bf16.gmra.mxu0 %v360
        %v506 = vpop.f32.mrf.mxu0
        %v507 = vadd.f32 0.0, %v506
        %v508 = vpop.f32.mrf.mxu0
        %v509 = vpop.f32.mrf.mxu0
        %v510 = vadd.f32 0.0, %v509
        %v511 = vpop.f32.mrf.mxu0
        %512 = vmatprep.mubr.bf16.mxu0 0
        %513 = vmatmul.mubr.bf16.gmra.mxu0 %v361
        %v514 = vpop.f32.mrf.mxu0
        %v515 = vadd.f32 0.0, %v514
        %v516 = vpop.f32.mrf.mxu0
        %v517 = vpop.f32.mrf.mxu0
        %v518 = vadd.f32 0.0, %v517
        %v519 = vpop.f32.mrf.mxu0
        %520 = vmatprep.mubr.bf16.mxu0 0
        %521 = vmatmul.mubr.bf16.gmra.mxu0 %v362
        %v522 = vpop.f32.mrf.mxu0
        %v523 = vadd.f32 0.0, %v522
        %v524 = vpop.f32.mrf.mxu0
        %v525 = vpop.f32.mrf.mxu0
        %v526 = vadd.f32 0.0, %v525
        %v527 = vpop.f32.mrf.mxu0
        %528 = vmatprep.mubr.bf16.mxu0 0
        %529 = vmatmul.mubr.bf16.gmra.mxu0 %v363
        %v530 = vpop.f32.mrf.mxu0
        %v531 = vadd.f32 0.0, %v530
        %v532 = vpop.f32.mrf.mxu0
        %v533 = vpop.f32.mrf.mxu0
        %v534 = vadd.f32 0.0, %v533
        %v535 = vpop.f32.mrf.mxu0
        %536 = vmatprep.mubr.bf16.mxu0 0
        %537 = vmatmul.mubr.bf16.gmra.mxu0 %v364
        %v538 = vpop.f32.mrf.mxu0
        %v539 = vadd.f32 0.0, %v538
        %v540 = vpop.f32.mrf.mxu0
        %v541 = vpop.f32.mrf.mxu0
        %v542 = vadd.f32 0.0, %v541
        %v543 = vpop.f32.mrf.mxu0
        %544 = vmatprep.mubr.bf16.mxu0 0
        %545 = vmatmul.mubr.bf16.gmra.mxu0 %v365
        %v546 = vpop.f32.mrf.mxu0
        %v547 = vadd.f32 0.0, %v546
        %v548 = vpop.f32.mrf.mxu0
        %v549 = vpop.f32.mrf.mxu0
        %v550 = vadd.f32 0.0, %v549
        %v551 = vpop.f32.mrf.mxu0
        %552 = vmatprep.mubr.bf16.mxu0 0
        %553 = vmatmul.mubr.bf16.gmra.mxu0 %v366
        %v554 = vpop.f32.mrf.mxu0
        %v555 = vadd.f32 0.0, %v554
        %v556 = vpop.f32.mrf.mxu0
        %v557 = vpop.f32.mrf.mxu0
        %v558 = vadd.f32 0.0, %v557
        %v559 = vpop.f32.mrf.mxu0
        %560 = vmatprep.mubr.bf16.mxu0 0
        %561 = vmatmul.mubr.bf16.gmra.mxu0 %v367
        %v562 = vpop.f32.mrf.mxu0
        %v563 = vadd.f32 0.0, %v562
        %v564 = vpop.f32.mrf.mxu0
        %v565 = vpop.f32.mrf.mxu0
        %v566 = vadd.f32 0.0, %v565
        %v567 = vpop.f32.mrf.mxu0
        %568 = vmatprep.mubr.bf16.mxu0 0
        %569 = vmatmul.mubr.bf16.gmra.mxu0 %v368
        %v570 = vpop.f32.mrf.mxu0
        %v571 = vadd.f32 0.0, %v570
        %v572 = vpop.f32.mrf.mxu0
        %v573 = vpop.f32.mrf.mxu0
        %v574 = vadd.f32 0.0, %v573
        %v575 = vpop.f32.mrf.mxu0
        %576 = vmatprep.mubr.bf16.mxu0 0
        %577 = vmatmul.mubr.bf16.gmra.mxu0 %v369
        %v578 = vpop.f32.mrf.mxu0
        %v579 = vadd.f32 0.0, %v578
        %v580 = vpop.f32.mrf.mxu0
        %v581 = vpop.f32.mrf.mxu0
        %v582 = vadd.f32 0.0, %v581
        %v583 = vpop.f32.mrf.mxu0
        %584 = vmatprep.mubr.bf16.mxu0 0
        %585 = vmatmul.mubr.bf16.gmra.mxu0 %v370
        %v586 = vpop.f32.mrf.mxu0
        %v587 = vadd.f32 0.0, %v586
        %v588 = vpop.f32.mrf.mxu0
        %v589 = vpop.f32.mrf.mxu0
        %v590 = vadd.f32 0.0, %v589
        %v591 = vpop.f32.mrf.mxu0
        %592 = vmatprep.mubr.bf16.mxu0 0
        %593 = vmatmul.mubr.bf16.gmra.mxu0 %v371
        %v594 = vpop.f32.mrf.mxu0
        %v595 = vadd.f32 0.0, %v594
        %v596 = vpop.f32.mrf.mxu0
        %v597 = vpop.f32.mrf.mxu0
        %v598 = vadd.f32 0.0, %v597
        %v599 = vpop.f32.mrf.mxu0
        %600 = vmatprep.mubr.bf16.mxu0 0
        %601 = vmatmul.mubr.bf16.gmra.mxu0 %v372
        %v602 = vpop.f32.mrf.mxu0
        %v603 = vadd.f32 0.0, %v602
        %v604 = vpop.f32.mrf.mxu0
        %v605 = vpop.f32.mrf.mxu0
        %v606 = vadd.f32 0.0, %v605
        %v607 = vpop.f32.mrf.mxu0
        %608 = vmatprep.mubr.bf16.mxu0 0
        %609 = vmatmul.mubr.bf16.gmra.mxu0 %v373
        %v610 = vpop.f32.mrf.mxu0
        %v611 = vadd.f32 0.0, %v610
        %v612 = vpop.f32.mrf.mxu0
        %v613 = vpop.f32.mrf.mxu0
        %v614 = vadd.f32 0.0, %v613
        %v615 = vpop.f32.mrf.mxu0
        %616 = vdwg.mxu0
        %v617 = vld [vmem:[%s2] sm:$0x1]
        %v618 = vlaneseq
        %v619 = vshrl.u32 %v618, 7
        %v620 = vsub.s32 0, %v619
        %v621 = vrot.slane %v617, %v620
        %v622 = vmul.f32 %v475, %v621
        %v623 = vmul.f32 %v478, %v621
        %v624 = vmul.f32 %v483, %v621
        %v625 = vmul.f32 %v486, %v621
        %v626 = vmul.f32 %v491, %v621
        %v627 = vmul.f32 %v494, %v621
        %v628 = vmul.f32 %v499, %v621
        %v629 = vmul.f32 %v502, %v621
        %v630 = vmul.f32 %v507, %v621
        %v631 = vmul.f32 %v510, %v621
        %v632 = vmul.f32 %v515, %v621
        %v633 = vmul.f32 %v518, %v621
        %v634 = vmul.f32 %v523, %v621
        %v635 = vmul.f32 %v526, %v621
        %v636 = vmul.f32 %v531, %v621
        %v637 = vmul.f32 %v534, %v621
        %v638 = vmul.f32 %v539, %v621
        %v639 = vmul.f32 %v542, %v621
        %v640 = vmul.f32 %v547, %v621
        %v641 = vmul.f32 %v550, %v621
        %v642 = vmul.f32 %v555, %v621
        %v643 = vmul.f32 %v558, %v621
        %v644 = vmul.f32 %v563, %v621
        %v645 = vmul.f32 %v566, %v621
        %v646 = vmul.f32 %v571, %v621
        %v647 = vmul.f32 %v574, %v621
        %v648 = vmul.f32 %v579, %v621
        %v649 = vmul.f32 %v582, %v621
        %v650 = vmul.f32 %v587, %v621
        %v651 = vmul.f32 %v590, %v621
        %v652 = vmul.f32 %v595, %v621
        %v653 = vmul.f32 %v598, %v621
        %v654 = vmul.f32 %v603, %v621
        %v655 = vmul.f32 %v606, %v621
        %v656 = vmul.f32 %v611, %v621
        %v657 = vmul.f32 %v614, %v621
        %v658 = vld [vmem:[%s2 + $0x1] sm:$0x1]
        %v659 = vlaneseq
        %v660 = vshrl.u32 %v659, 7
        %v661 = vsub.s32 0, %v660
        %v662 = vrot.slane %v658, %v661
        %v663 = vadd.f32 %v622, %v662
        %v664 = vadd.f32 %v623, %v662
        %v665 = vadd.f32 %v624, %v662
        %v666 = vadd.f32 %v625, %v662
        %v667 = vadd.f32 %v626, %v662
        %v668 = vadd.f32 %v627, %v662
        %v669 = vadd.f32 %v628, %v662
        %v670 = vadd.f32 %v629, %v662
        %v671 = vadd.f32 %v630, %v662
        %v672 = vadd.f32 %v631, %v662
        %v673 = vadd.f32 %v632, %v662
        %v674 = vadd.f32 %v633, %v662
        %v675 = vadd.f32 %v634, %v662
        %v676 = vadd.f32 %v635, %v662
        %v677 = vadd.f32 %v636, %v662
        %v678 = vadd.f32 %v637, %v662
        %v679 = vadd.f32 %v638, %v662
        %v680 = vadd.f32 %v639, %v662
        %v681 = vadd.f32 %v640, %v662
        %v682 = vadd.f32 %v641, %v662
        %v683 = vadd.f32 %v642, %v662
        %v684 = vadd.f32 %v643, %v662
        %v685 = vadd.f32 %v644, %v662
        %v686 = vadd.f32 %v645, %v662
        %v687 = vadd.f32 %v646, %v662
        %v688 = vadd.f32 %v647, %v662
        %v689 = vadd.f32 %v648, %v662
        %v690 = vadd.f32 %v649, %v662
        %v691 = vadd.f32 %v650, %v662
        %v692 = vadd.f32 %v651, %v662
        %v693 = vadd.f32 %v652, %v662
        %v694 = vadd.f32 %v653, %v662
        %v695 = vadd.f32 %v654, %v662
        %v696 = vadd.f32 %v655, %v662
        %v697 = vadd.f32 %v656, %v662
        %v698 = vadd.f32 %v657, %v662
        %v699 = vmax.f32 %v663, 0.0
        %v700 = vmax.f32 %v664, 0.0
        %v701 = vmax.f32 %v665, 0.0
        %v702 = vmax.f32 %v666, 0.0
        %v703 = vmax.f32 %v667, 0.0
        %v704 = vmax.f32 %v668, 0.0
        %v705 = vmax.f32 %v669, 0.0
        %v706 = vmax.f32 %v670, 0.0
        %v707 = vmax.f32 %v671, 0.0
        %v708 = vmax.f32 %v672, 0.0
        %v709 = vmax.f32 %v673, 0.0
        %v710 = vmax.f32 %v674, 0.0
        %v711 = vmax.f32 %v675, 0.0
        %v712 = vmax.f32 %v676, 0.0
        %v713 = vmax.f32 %v677, 0.0
        %v714 = vmax.f32 %v678, 0.0
        %v715 = vmax.f32 %v679, 0.0
        %v716 = vmax.f32 %v680, 0.0
        %v717 = vmax.f32 %v681, 0.0
        %v718 = vmax.f32 %v682, 0.0
        %v719 = vmax.f32 %v683, 0.0
        %v720 = vmax.f32 %v684, 0.0
        %v721 = vmax.f32 %v685, 0.0
        %v722 = vmax.f32 %v686, 0.0
        %v723 = vmax.f32 %v687, 0.0
        %v724 = vmax.f32 %v688, 0.0
        %v725 = vmax.f32 %v689, 0.0
        %v726 = vmax.f32 %v690, 0.0
        %v727 = vmax.f32 %v691, 0.0
        %v728 = vmax.f32 %v692, 0.0
        %v729 = vmax.f32 %v693, 0.0
        %v730 = vmax.f32 %v694, 0.0
        %v731 = vmax.f32 %v695, 0.0
        %v732 = vmax.f32 %v696, 0.0
        %v733 = vmax.f32 %v697, 0.0
        %v734 = vmax.f32 %v698, 0.0
        %736 = vset.pattern.permute.xlu0 0
        %737 = vperm.xlu0 %736, %v196
        %v738 = vpop.permute.xlu0 %737
        %741 = vset.pattern.permute.xlu0 0
        %742 = vperm.xlu0 %741, %v197
        %v743 = vpop.permute.xlu0 %742
        %746 = vset.pattern.permute.xlu0 0
        %747 = vperm.xlu0 %746, %v198
        %v748 = vpop.permute.xlu0 %747
        %751 = vset.pattern.permute.xlu0 0
        %752 = vperm.xlu0 %751, %v199
        %v753 = vpop.permute.xlu0 %752
        %756 = vset.pattern.permute.xlu0 0
        %757 = vperm.xlu0 %756, %v200
        %v758 = vpop.permute.xlu0 %757
        %761 = vset.pattern.permute.xlu0 0
        %762 = vperm.xlu0 %761, %v201
        %v763 = vpop.permute.xlu0 %762
        %766 = vset.pattern.permute.xlu0 0
        %767 = vperm.xlu0 %766, %v202
        %v768 = vpop.permute.xlu0 %767
        %771 = vset.pattern.permute.xlu0 0
        %772 = vperm.xlu0 %771, %v203
        %v773 = vpop.permute.xlu0 %772
        %776 = vset.pattern.permute.xlu0 0
        %777 = vperm.xlu0 %776, %v204
        %v778 = vpop.permute.xlu0 %777
        %781 = vset.pattern.permute.xlu0 0
        %782 = vperm.xlu0 %781, %v205
        %v783 = vpop.permute.xlu0 %782
        %786 = vset.pattern.permute.xlu0 0
        %787 = vperm.xlu0 %786, %v206
        %v788 = vpop.permute.xlu0 %787
        %791 = vset.pattern.permute.xlu0 0
        %792 = vperm.xlu0 %791, %v207
        %v793 = vpop.permute.xlu0 %792
        %796 = vset.pattern.permute.xlu0 0
        %797 = vperm.xlu0 %796, %v208
        %v798 = vpop.permute.xlu0 %797
        %801 = vset.pattern.permute.xlu0 0
        %802 = vperm.xlu0 %801, %v209
        %v803 = vpop.permute.xlu0 %802
        %806 = vset.pattern.permute.xlu0 0
        %807 = vperm.xlu0 %806, %v210
        %v808 = vpop.permute.xlu0 %807
        %811 = vset.pattern.permute.xlu0 0
        %812 = vperm.xlu0 %811, %v211
        %v813 = vpop.permute.xlu0 %812
        %816 = vset.pattern.permute.xlu0 0
        %817 = vperm.xlu0 %816, %v212
        %v818 = vpop.permute.xlu0 %817
        %821 = vset.pattern.permute.xlu0 0
        %822 = vperm.xlu0 %821, %v213
        %v823 = vpop.permute.xlu0 %822
        %826 = vset.pattern.permute.xlu0 0
        %827 = vperm.xlu0 %826, %v214
        %v828 = vpop.permute.xlu0 %827
        %831 = vset.pattern.permute.xlu0 0
        %832 = vperm.xlu0 %831, %v215
        %v833 = vpop.permute.xlu0 %832
        %836 = vset.pattern.permute.xlu0 0
        %837 = vperm.xlu0 %836, %v216
        %v838 = vpop.permute.xlu0 %837
        %841 = vset.pattern.permute.xlu0 0
        %842 = vperm.xlu0 %841, %v217
        %v843 = vpop.permute.xlu0 %842
        %846 = vset.pattern.permute.xlu0 0
        %847 = vperm.xlu0 %846, %v218
        %v848 = vpop.permute.xlu0 %847
        %851 = vset.pattern.permute.xlu0 0
        %852 = vperm.xlu0 %851, %v219
        %v853 = vpop.permute.xlu0 %852
        %856 = vset.pattern.permute.xlu0 0
        %857 = vperm.xlu0 %856, %v220
        %v858 = vpop.permute.xlu0 %857
        %861 = vset.pattern.permute.xlu0 0
        %862 = vperm.xlu0 %861, %v221
        %v863 = vpop.permute.xlu0 %862
        %866 = vset.pattern.permute.xlu0 0
        %867 = vperm.xlu0 %866, %v222
        %v868 = vpop.permute.xlu0 %867
        %871 = vset.pattern.permute.xlu0 0
        %872 = vperm.xlu0 %871, %v223
        %v873 = vpop.permute.xlu0 %872
        %876 = vset.pattern.permute.xlu0 0
        %877 = vperm.xlu0 %876, %v224
        %v878 = vpop.permute.xlu0 %877
        %881 = vset.pattern.permute.xlu0 0
        %882 = vperm.xlu0 %881, %v225
        %v883 = vpop.permute.xlu0 %882
        %886 = vset.pattern.permute.xlu0 0
        %887 = vperm.xlu0 %886, %v226
        %v888 = vpop.permute.xlu0 %887
        %891 = vset.pattern.permute.xlu0 0
        %892 = vperm.xlu0 %891, %v227
        %v893 = vpop.permute.xlu0 %892
        %896 = vset.pattern.permute.xlu0 0
        %897 = vperm.xlu0 %896, %v228
        %v898 = vpop.permute.xlu0 %897
        %901 = vset.pattern.permute.xlu0 0
        %902 = vperm.xlu0 %901, %v229
        %v903 = vpop.permute.xlu0 %902
        %906 = vset.pattern.permute.xlu0 0
        %907 = vperm.xlu0 %906, %v230
        %v908 = vpop.permute.xlu0 %907
        %911 = vset.pattern.permute.xlu0 0
        %912 = vperm.xlu0 %911, %v231
        %v913 = vpop.permute.xlu0 %912
        %v915 = vmul.f32 %v699, %v738
        %v916 = vmul.f32 %v700, %v743
        %v917 = vmul.f32 %v701, %v748
        %v918 = vmul.f32 %v702, %v753
        %v919 = vmul.f32 %v703, %v758
        %v920 = vmul.f32 %v704, %v763
        %v921 = vmul.f32 %v705, %v768
        %v922 = vmul.f32 %v706, %v773
        %v923 = vmul.f32 %v707, %v778
        %v924 = vmul.f32 %v708, %v783
        %v925 = vmul.f32 %v709, %v788
        %v926 = vmul.f32 %v710, %v793
        %v927 = vmul.f32 %v711, %v798
        %v928 = vmul.f32 %v712, %v803
        %v929 = vmul.f32 %v713, %v808
        %v930 = vmul.f32 %v714, %v813
        %v931 = vmul.f32 %v715, %v818
        %v932 = vmul.f32 %v716, %v823
        %v933 = vmul.f32 %v717, %v828
        %v934 = vmul.f32 %v718, %v833
        %v935 = vmul.f32 %v719, %v838
        %v936 = vmul.f32 %v720, %v843
        %v937 = vmul.f32 %v721, %v848
        %v938 = vmul.f32 %v722, %v853
        %v939 = vmul.f32 %v723, %v858
        %v940 = vmul.f32 %v724, %v863
        %v941 = vmul.f32 %v725, %v868
        %v942 = vmul.f32 %v726, %v873
        %v943 = vmul.f32 %v727, %v878
        %v944 = vmul.f32 %v728, %v883
        %v945 = vmul.f32 %v729, %v888
        %v946 = vmul.f32 %v730, %v893
        %v947 = vmul.f32 %v731, %v898
        %v948 = vmul.f32 %v732, %v903
        %v949 = vmul.f32 %v733, %v908
        %v950 = vmul.f32 %v734, %v913
        %951 = vst [vmem:[#allocation2] sm:$0xff] 0.0
        %952 = vst [vmem:[#allocation2 + $0x8] sm:$0xff] 0.0
        %953 = vst [vmem:[#allocation2 + $0x10] sm:$0x7] 0.0
        %954 = vst [vmem:[#allocation2 + $0x133] sm:$0xff] 0.0
        %955 = vst [vmem:[#allocation2 + $0x13b] sm:$0xff] 0.0
        %956 = vst [vmem:[#allocation2 + $0x143] sm:$0xff] 0.0
        %957 = vst [vmem:[#allocation2 + $0x14b] sm:$0x1] 0.0
        %958 = vst [vmem:[#allocation2 + $0x13] sm:$0xff] %v915
        %959 = vst [vmem:[#allocation2 + $0x1b] sm:$0xff] %v916
        %960 = vst [vmem:[#allocation2 + $0x23] sm:$0xff] %v917
        %961 = vst [vmem:[#allocation2 + $0x2b] sm:$0xff] %v918
        %962 = vst [vmem:[#allocation2 + $0x33] sm:$0xff] %v919
        %963 = vst [vmem:[#allocation2 + $0x3b] sm:$0xff] %v920
        %964 = vst [vmem:[#allocation2 + $0x43] sm:$0xff] %v921
        %965 = vst [vmem:[#allocation2 + $0x4b] sm:$0xff] %v922
        %966 = vst [vmem:[#allocation2 + $0x53] sm:$0xff] %v923
        %967 = vst [vmem:[#allocation2 + $0x5b] sm:$0xff] %v924
        %968 = vst [vmem:[#allocation2 + $0x63] sm:$0xff] %v925
        %969 = vst [vmem:[#allocation2 + $0x6b] sm:$0xff] %v926
        %970 = vst [vmem:[#allocation2 + $0x73] sm:$0xff] %v927
        %971 = vst [vmem:[#allocation2 + $0x7b] sm:$0xff] %v928
        %972 = vst [vmem:[#allocation2 + $0x83] sm:$0xff] %v929
        %973 = vst [vmem:[#allocation2 + $0x8b] sm:$0xff] %v930
        %974 = vst [vmem:[#allocation2 + $0x93] sm:$0xff] %v931
        %975 = vst [vmem:[#allocation2 + $0x9b] sm:$0xff] %v932
        %976 = vst [vmem:[#allocation2 + $0xa3] sm:$0xff] %v933
        %977 = vst [vmem:[#allocation2 + $0xab] sm:$0xff] %v934
        %978 = vst [vmem:[#allocation2 + $0xb3] sm:$0xff] %v935
        %979 = vst [vmem:[#allocation2 + $0xbb] sm:$0xff] %v936
        %980 = vst [vmem:[#allocation2 + $0xc3] sm:$0xff] %v937
        %981 = vst [vmem:[#allocation2 + $0xcb] sm:$0xff] %v938
        %982 = vst [vmem:[#allocation2 + $0xd3] sm:$0xff] %v939
        %983 = vst [vmem:[#allocation2 + $0xdb] sm:$0xff] %v940
        %984 = vst [vmem:[#allocation2 + $0xe3] sm:$0xff] %v941
        %985 = vst [vmem:[#allocation2 + $0xeb] sm:$0xff] %v942
        %986 = vst [vmem:[#allocation2 + $0xf3] sm:$0xff] %v943
        %987 = vst [vmem:[#allocation2 + $0xfb] sm:$0xff] %v944
        %988 = vst [vmem:[#allocation2 + $0x103] sm:$0xff] %v945
        %989 = vst [vmem:[#allocation2 + $0x10b] sm:$0xff] %v946
        %990 = vst [vmem:[#allocation2 + $0x113] sm:$0xff] %v947
        %991 = vst [vmem:[#allocation2 + $0x11b] sm:$0xff] %v948
        %992 = vst [vmem:[#allocation2 + $0x123] sm:$0xff] %v949
        %993 = vst [vmem:[#allocation2 + $0x12b] sm:$0xff] %v950
        %v994 = vld [vmem:[#allocation2] sm:$0xff]
        %v995 = vld [vmem:[#allocation2 + $0x8] sm:$0xff]
        %v996 = vld [vmem:[#allocation2 + $0x10] sm:$0xff]
        %v997 = vld [vmem:[#allocation2 + $0x18] sm:$0xff]
        %v998 = vld [vmem:[#allocation2 + $0x20] sm:$0xff]
        %v999 = vld [vmem:[#allocation2 + $0x28] sm:$0xff]
        %v1000 = vld [vmem:[#allocation2 + $0x30] sm:$0xff]
        %v1001 = vld [vmem:[#allocation2 + $0x38] sm:$0xff]
        %v1002 = vld [vmem:[#allocation2 + $0x40] sm:$0xff]
        %v1003 = vld [vmem:[#allocation2 + $0x48] sm:$0xff]
        %v1004 = vld [vmem:[#allocation2 + $0x50] sm:$0xff]
        %v1005 = vld [vmem:[#allocation2 + $0x58] sm:$0xff]
        %v1006 = vld [vmem:[#allocation2 + $0x60] sm:$0xff]
        %v1007 = vld [vmem:[#allocation2 + $0x68] sm:$0xff]
        %v1008 = vld [vmem:[#allocation2 + $0x70] sm:$0xff]
        %v1009 = vld [vmem:[#allocation2 + $0x78] sm:$0xff]
        %v1010 = vld [vmem:[#allocation2 + $0x80] sm:$0xff]
        %v1011 = vld [vmem:[#allocation2 + $0x88] sm:$0xff]
        %v1012 = vld [vmem:[#allocation2 + $0x90] sm:$0xff]
        %v1013 = vld [vmem:[#allocation2 + $0x98] sm:$0xff]
        %v1014 = vld [vmem:[#allocation2 + $0xa0] sm:$0xff]
        %v1015 = vld [vmem:[#allocation2 + $0xa8] sm:$0xff]
        %v1016 = vld [vmem:[#allocation2 + $0xb0] sm:$0xff]
        %v1017 = vld [vmem:[#allocation2 + $0xb8] sm:$0xff]
        %v1018 = vld [vmem:[#allocation2 + $0xc0] sm:$0xff]
        %v1019 = vld [vmem:[#allocation2 + $0xc8] sm:$0xff]
        %v1020 = vld [vmem:[#allocation2 + $0xd0] sm:$0xff]
        %v1021 = vld [vmem:[#allocation2 + $0xd8] sm:$0xff]
        %v1022 = vld [vmem:[#allocation2 + $0xe0] sm:$0xff]
        %v1023 = vld [vmem:[#allocation2 + $0xe8] sm:$0xff]
        %v1024 = vld [vmem:[#allocation2 + $0xf0] sm:$0xff]
        %v1025 = vld [vmem:[#allocation2 + $0xf8] sm:$0xff]
        %v1026 = vld [vmem:[#allocation2 + $0x100] sm:$0xff]
        %v1027 = vld [vmem:[#allocation2 + $0x108] sm:$0xff]
        %v1028 = vld [vmem:[#allocation2 + $0x110] sm:$0xff]
        %v1029 = vld [vmem:[#allocation2 + $0x118] sm:$0xff]
        %v1030 = vpack.c.bf16 %v995, %v994
        %v1031 = vpack.c.bf16 %v997, %v996
        %v1032 = vpack.c.bf16 %v999, %v998
        %v1033 = vpack.c.bf16 %v1001, %v1000
        %v1034 = vpack.c.bf16 %v1003, %v1002
        %v1035 = vpack.c.bf16 %v1005, %v1004
        %v1036 = vpack.c.bf16 %v1007, %v1006
        %v1037 = vpack.c.bf16 %v1009, %v1008
        %v1038 = vpack.c.bf16 %v1011, %v1010
        %v1039 = vpack.c.bf16 %v1013, %v1012
        %v1040 = vpack.c.bf16 %v1015, %v1014
        %v1041 = vpack.c.bf16 %v1017, %v1016
        %v1042 = vpack.c.bf16 %v1019, %v1018
        %v1043 = vpack.c.bf16 %v1021, %v1020
        %v1044 = vpack.c.bf16 %v1023, %v1022
        %v1045 = vpack.c.bf16 %v1025, %v1024
        %v1046 = vpack.c.bf16 %v1027, %v1026
        %v1047 = vpack.c.bf16 %v1029, %v1028
        %s1048 = scalar_lea.vmem %s1, 64
        %v1049 = vld [vmem:[%s1048] sm:$0xf]
        %v1050 = vld [vmem:[%s1048 + $0x4] sm:$0xf]
        %v1051 = vld [vmem:[%s1048 + $0x8] sm:$0xf]
        %v1052 = vld [vmem:[%s1048 + $0xc] sm:$0xf]
        %v1053 = vld [vmem:[%s1048 + $0x10] sm:$0xf]
        %v1054 = vld [vmem:[%s1048 + $0x14] sm:$0xf]
        %v1055 = vld [vmem:[%s1048 + $0x18] sm:$0xf]
        %v1056 = vld [vmem:[%s1048 + $0x1c] sm:$0xf]
        %v1057 = vld [vmem:[%s1048 + $0x20] sm:$0xf]
        %v1058 = vld [vmem:[%s1048 + $0x24] sm:$0xf]
        %v1059 = vld [vmem:[%s1048 + $0x28] sm:$0xf]
        %v1060 = vld [vmem:[%s1048 + $0x2c] sm:$0xf]
        %v1061 = vld [vmem:[%s1048 + $0x30] sm:$0xf]
        %v1062 = vld [vmem:[%s1048 + $0x34] sm:$0xf]
        %v1063 = vld [vmem:[%s1048 + $0x38] sm:$0xf]
        %v1064 = vld [vmem:[%s1048 + $0x3c] sm:$0xf]
        %v1065 = vld [vmem:[#allocation2 + $0x1] sm:$0xff]
        %v1066 = vld [vmem:[#allocation2 + $0x9] sm:$0xff]
        %v1067 = vld [vmem:[#allocation2 + $0x11] sm:$0xff]
        %v1068 = vld [vmem:[#allocation2 + $0x19] sm:$0xff]
        %v1069 = vld [vmem:[#allocation2 + $0x21] sm:$0xff]
        %v1070 = vld [vmem:[#allocation2 + $0x29] sm:$0xff]
        %v1071 = vld [vmem:[#allocation2 + $0x31] sm:$0xff]
        %v1072 = vld [vmem:[#allocation2 + $0x39] sm:$0xff]
        %v1073 = vld [vmem:[#allocation2 + $0x41] sm:$0xff]
        %v1074 = vld [vmem:[#allocation2 + $0x49] sm:$0xff]
        %v1075 = vld [vmem:[#allocation2 + $0x51] sm:$0xff]
        %v1076 = vld [vmem:[#allocation2 + $0x59] sm:$0xff]
        %v1077 = vld [vmem:[#allocation2 + $0x61] sm:$0xff]
        %v1078 = vld [vmem:[#allocation2 + $0x69] sm:$0xff]
        %v1079 = vld [vmem:[#allocation2 + $0x71] sm:$0xff]
        %v1080 = vld [vmem:[#allocation2 + $0x79] sm:$0xff]
        %v1081 = vld [vmem:[#allocation2 + $0x81] sm:$0xff]
        %v1082 = vld [vmem:[#allocation2 + $0x89] sm:$0xff]
        %v1083 = vld [vmem:[#allocation2 + $0x91] sm:$0xff]
        %v1084 = vld [vmem:[#allocation2 + $0x99] sm:$0xff]
        %v1085 = vld [vmem:[#allocation2 + $0xa1] sm:$0xff]
        %v1086 = vld [vmem:[#allocation2 + $0xa9] sm:$0xff]
        %v1087 = vld [vmem:[#allocation2 + $0xb1] sm:$0xff]
        %v1088 = vld [vmem:[#allocation2 + $0xb9] sm:$0xff]
        %v1089 = vld [vmem:[#allocation2 + $0xc1] sm:$0xff]
        %v1090 = vld [vmem:[#allocation2 + $0xc9] sm:$0xff]
        %v1091 = vld [vmem:[#allocation2 + $0xd1] sm:$0xff]
        %v1092 = vld [vmem:[#allocation2 + $0xd9] sm:$0xff]
        %v1093 = vld [vmem:[#allocation2 + $0xe1] sm:$0xff]
        %v1094 = vld [vmem:[#allocation2 + $0xe9] sm:$0xff]
        %v1095 = vld [vmem:[#allocation2 + $0xf1] sm:$0xff]
        %v1096 = vld [vmem:[#allocation2 + $0xf9] sm:$0xff]
        %v1097 = vld [vmem:[#allocation2 + $0x101] sm:$0xff]
        %v1098 = vld [vmem:[#allocation2 + $0x109] sm:$0xff]
        %v1099 = vld [vmem:[#allocation2 + $0x111] sm:$0xff]
        %v1100 = vld [vmem:[#allocation2 + $0x119] sm:$0xff]
        %v1101 = vpack.c.bf16 %v1066, %v1065
        %v1102 = vpack.c.bf16 %v1068, %v1067
        %v1103 = vpack.c.bf16 %v1070, %v1069
        %v1104 = vpack.c.bf16 %v1072, %v1071
        %v1105 = vpack.c.bf16 %v1074, %v1073
        %v1106 = vpack.c.bf16 %v1076, %v1075
        %v1107 = vpack.c.bf16 %v1078, %v1077
        %v1108 = vpack.c.bf16 %v1080, %v1079
        %v1109 = vpack.c.bf16 %v1082, %v1081
        %v1110 = vpack.c.bf16 %v1084, %v1083
        %v1111 = vpack.c.bf16 %v1086, %v1085
        %v1112 = vpack.c.bf16 %v1088, %v1087
        %v1113 = vpack.c.bf16 %v1090, %v1089
        %v1114 = vpack.c.bf16 %v1092, %v1091
        %v1115 = vpack.c.bf16 %v1094, %v1093
        %v1116 = vpack.c.bf16 %v1096, %v1095
        %v1117 = vpack.c.bf16 %v1098, %v1097
        %v1118 = vpack.c.bf16 %v1100, %v1099
        %s1119 = scalar_lea.vmem %s1, 128
        %v1120 = vld [vmem:[%s1119] sm:$0xf]
        %v1121 = vld [vmem:[%s1119 + $0x4] sm:$0xf]
        %v1122 = vld [vmem:[%s1119 + $0x8] sm:$0xf]
        %v1123 = vld [vmem:[%s1119 + $0xc] sm:$0xf]
        %v1124 = vld [vmem:[%s1119 + $0x10] sm:$0xf]
        %v1125 = vld [vmem:[%s1119 + $0x14] sm:$0xf]
        %v1126 = vld [vmem:[%s1119 + $0x18] sm:$0xf]
        %v1127 = vld [vmem:[%s1119 + $0x1c] sm:$0xf]
        %v1128 = vld [vmem:[%s1119 + $0x20] sm:$0xf]
        %v1129 = vld [vmem:[%s1119 + $0x24] sm:$0xf]
        %v1130 = vld [vmem:[%s1119 + $0x28] sm:$0xf]
        %v1131 = vld [vmem:[%s1119 + $0x2c] sm:$0xf]
        %v1132 = vld [vmem:[%s1119 + $0x30] sm:$0xf]
        %v1133 = vld [vmem:[%s1119 + $0x34] sm:$0xf]
        %v1134 = vld [vmem:[%s1119 + $0x38] sm:$0xf]
        %v1135 = vld [vmem:[%s1119 + $0x3c] sm:$0xf]
        %v1152 = vunpack.c.l.b16 %v1120
        %v1153 = vunpack.c.l.b16 %v1121
        %v1154 = vunpack.c.l.b16 %v1122
        %v1155 = vunpack.c.l.b16 %v1123
        %v1156 = vunpack.c.l.b16 %v1124
        %v1157 = vunpack.c.l.b16 %v1125
        %v1158 = vunpack.c.l.b16 %v1126
        %v1159 = vunpack.c.l.b16 %v1127
        %v1160 = vunpack.c.l.b16 %v1128
        %v1161 = vunpack.c.l.b16 %v1129
        %v1162 = vunpack.c.l.b16 %v1130
        %v1163 = vunpack.c.l.b16 %v1131
        %v1164 = vunpack.c.l.b16 %v1132
        %v1165 = vunpack.c.l.b16 %v1133
        %v1166 = vunpack.c.l.b16 %v1134
        %v1167 = vunpack.c.l.b16 %v1135
        %v1168 = vpack.c.b16 %v1153, %v1152
        %v1169 = vpack.c.b16 %v1155, %v1154
        %v1170 = vpack.c.b16 %v1157, %v1156
        %v1171 = vpack.c.b16 %v1159, %v1158
        %v1172 = vpack.c.b16 %v1161, %v1160
        %v1173 = vpack.c.b16 %v1163, %v1162
        %v1174 = vpack.c.b16 %v1165, %v1164
        %v1175 = vpack.c.b16 %v1167, %v1166
        %1184 = vmatprep.subr.bf16.mxu0 0
        %1185 = vmatpush1.bf16.msra.mxu0 %v1175
        %1186 = vmatprep.subr.bf16.mxu0 0
        %1187 = vmatpush1.bf16.msra.mxu0 %v1174
        %1188 = vmatprep.subr.bf16.mxu0 0
        %1189 = vmatpush1.bf16.msra.mxu0 %v1173
        %1190 = vmatprep.subr.bf16.mxu0 0
        %1191 = vmatpush1.bf16.msra.mxu0 %v1172
        %1192 = vmatprep.subr.bf16.mxu0 0
        %1193 = vmatpush1.bf16.msra.mxu0 %v1171
        %1194 = vmatprep.subr.bf16.mxu0 0
        %1195 = vmatpush1.bf16.msra.mxu0 %v1170
        %1196 = vmatprep.subr.bf16.mxu0 0
        %1197 = vmatpush1.bf16.msra.mxu0 %v1169
        %1198 = vmatprep.subr.bf16.mxu0 0
        %1199 = vmatpush1.bf16.msra.mxu0 %v1168
        %1200 = vmatprep.subr.bf16.mxu0 0
        %1201 = vmatpush2.bf16.msra.mxu0 0
        %1202 = vmatprep.subr.bf16.mxu0 0
        %1203 = vmatpush2.bf16.msra.mxu0 0
        %1204 = vmatprep.subr.bf16.mxu0 0
        %1205 = vmatpush2.bf16.msra.mxu0 0
        %1206 = vmatprep.subr.bf16.mxu0 0
        %1207 = vmatpush2.bf16.msra.mxu0 0
        %1208 = vmatprep.subr.bf16.mxu0 0
        %1209 = vmatpush2.bf16.msra.mxu0 0
        %1210 = vmatprep.subr.bf16.mxu0 0
        %1211 = vmatpush2.bf16.msra.mxu0 0
        %1212 = vmatprep.subr.bf16.mxu0 0
        %1213 = vmatpush2.bf16.msra.mxu0 0
        %1214 = vmatprep.subr.bf16.mxu0 0
        %1215 = vmatpush2.bf16.msra.mxu0 0
        %1216 = vmatprep.mubr.bf16.mxu0 0
        %1217 = vmatmul.mubr.bf16.gmra.mxu0 %v1101
        %v1218 = vpop.f32.mrf.mxu0
        %v1219 = vadd.f32 0.0, %v1218
        %v1220 = vpop.f32.mrf.mxu0
        %v1221 = vpop.f32.mrf.mxu0
        %v1222 = vadd.f32 0.0, %v1221
        %v1223 = vpop.f32.mrf.mxu0
        %1224 = vmatprep.mubr.bf16.mxu0 0
        %1225 = vmatmul.mubr.bf16.gmra.mxu0 %v1102
        %v1226 = vpop.f32.mrf.mxu0
        %v1227 = vadd.f32 0.0, %v1226
        %v1228 = vpop.f32.mrf.mxu0
        %v1229 = vpop.f32.mrf.mxu0
        %v1230 = vadd.f32 0.0, %v1229
        %v1231 = vpop.f32.mrf.mxu0
        %1232 = vmatprep.mubr.bf16.mxu0 0
        %1233 = vmatmul.mubr.bf16.gmra.mxu0 %v1103
        %v1234 = vpop.f32.mrf.mxu0
        %v1235 = vadd.f32 0.0, %v1234
        %v1236 = vpop.f32.mrf.mxu0
        %v1237 = vpop.f32.mrf.mxu0
        %v1238 = vadd.f32 0.0, %v1237
        %v1239 = vpop.f32.mrf.mxu0
        %1240 = vmatprep.mubr.bf16.mxu0 0
        %1241 = vmatmul.mubr.bf16.gmra.mxu0 %v1104
        %v1242 = vpop.f32.mrf.mxu0
        %v1243 = vadd.f32 0.0, %v1242
        %v1244 = vpop.f32.mrf.mxu0
        %v1245 = vpop.f32.mrf.mxu0
        %v1246 = vadd.f32 0.0, %v1245
        %v1247 = vpop.f32.mrf.mxu0
        %1248 = vmatprep.mubr.bf16.mxu0 0
        %1249 = vmatmul.mubr.bf16.gmra.mxu0 %v1105
        %v1250 = vpop.f32.mrf.mxu0
        %v1251 = vadd.f32 0.0, %v1250
        %v1252 = vpop.f32.mrf.mxu0
        %v1253 = vpop.f32.mrf.mxu0
        %v1254 = vadd.f32 0.0, %v1253
        %v1255 = vpop.f32.mrf.mxu0
        %1256 = vmatprep.mubr.bf16.mxu0 0
        %1257 = vmatmul.mubr.bf16.gmra.mxu0 %v1106
        %v1258 = vpop.f32.mrf.mxu0
        %v1259 = vadd.f32 0.0, %v1258
        %v1260 = vpop.f32.mrf.mxu0
        %v1261 = vpop.f32.mrf.mxu0
        %v1262 = vadd.f32 0.0, %v1261
        %v1263 = vpop.f32.mrf.mxu0
        %1264 = vmatprep.mubr.bf16.mxu0 0
        %1265 = vmatmul.mubr.bf16.gmra.mxu0 %v1107
        %v1266 = vpop.f32.mrf.mxu0
        %v1267 = vadd.f32 0.0, %v1266
        %v1268 = vpop.f32.mrf.mxu0
        %v1269 = vpop.f32.mrf.mxu0
        %v1270 = vadd.f32 0.0, %v1269
        %v1271 = vpop.f32.mrf.mxu0
        %1272 = vmatprep.mubr.bf16.mxu0 0
        %1273 = vmatmul.mubr.bf16.gmra.mxu0 %v1108
        %v1274 = vpop.f32.mrf.mxu0
        %v1275 = vadd.f32 0.0, %v1274
        %v1276 = vpop.f32.mrf.mxu0
        %v1277 = vpop.f32.mrf.mxu0
        %v1278 = vadd.f32 0.0, %v1277
        %v1279 = vpop.f32.mrf.mxu0
        %1280 = vmatprep.mubr.bf16.mxu0 0
        %1281 = vmatmul.mubr.bf16.gmra.mxu0 %v1109
        %v1282 = vpop.f32.mrf.mxu0
        %v1283 = vadd.f32 0.0, %v1282
        %v1284 = vpop.f32.mrf.mxu0
        %v1285 = vpop.f32.mrf.mxu0
        %v1286 = vadd.f32 0.0, %v1285
        %v1287 = vpop.f32.mrf.mxu0
        %1288 = vmatprep.mubr.bf16.mxu0 0
        %1289 = vmatmul.mubr.bf16.gmra.mxu0 %v1110
        %v1290 = vpop.f32.mrf.mxu0
        %v1291 = vadd.f32 0.0, %v1290
        %v1292 = vpop.f32.mrf.mxu0
        %v1293 = vpop.f32.mrf.mxu0
        %v1294 = vadd.f32 0.0, %v1293
        %v1295 = vpop.f32.mrf.mxu0
        %1296 = vmatprep.mubr.bf16.mxu0 0
        %1297 = vmatmul.mubr.bf16.gmra.mxu0 %v1111
        %v1298 = vpop.f32.mrf.mxu0
        %v1299 = vadd.f32 0.0, %v1298
        %v1300 = vpop.f32.mrf.mxu0
        %v1301 = vpop.f32.mrf.mxu0
        %v1302 = vadd.f32 0.0, %v1301
        %v1303 = vpop.f32.mrf.mxu0
        %1304 = vmatprep.mubr.bf16.mxu0 0
        %1305 = vmatmul.mubr.bf16.gmra.mxu0 %v1112
        %v1306 = vpop.f32.mrf.mxu0
        %v1307 = vadd.f32 0.0, %v1306
        %v1308 = vpop.f32.mrf.mxu0
        %v1309 = vpop.f32.mrf.mxu0
        %v1310 = vadd.f32 0.0, %v1309
        %v1311 = vpop.f32.mrf.mxu0
        %1312 = vmatprep.mubr.bf16.mxu0 0
        %1313 = vmatmul.mubr.bf16.gmra.mxu0 %v1113
        %v1314 = vpop.f32.mrf.mxu0
        %v1315 = vadd.f32 0.0, %v1314
        %v1316 = vpop.f32.mrf.mxu0
        %v1317 = vpop.f32.mrf.mxu0
        %v1318 = vadd.f32 0.0, %v1317
        %v1319 = vpop.f32.mrf.mxu0
        %1320 = vmatprep.mubr.bf16.mxu0 0
        %1321 = vmatmul.mubr.bf16.gmra.mxu0 %v1114
        %v1322 = vpop.f32.mrf.mxu0
        %v1323 = vadd.f32 0.0, %v1322
        %v1324 = vpop.f32.mrf.mxu0
        %v1325 = vpop.f32.mrf.mxu0
        %v1326 = vadd.f32 0.0, %v1325
        %v1327 = vpop.f32.mrf.mxu0
        %1328 = vmatprep.mubr.bf16.mxu0 0
        %1329 = vmatmul.mubr.bf16.gmra.mxu0 %v1115
        %v1330 = vpop.f32.mrf.mxu0
        %v1331 = vadd.f32 0.0, %v1330
        %v1332 = vpop.f32.mrf.mxu0
        %v1333 = vpop.f32.mrf.mxu0
        %v1334 = vadd.f32 0.0, %v1333
        %v1335 = vpop.f32.mrf.mxu0
        %1336 = vmatprep.mubr.bf16.mxu0 0
        %1337 = vmatmul.mubr.bf16.gmra.mxu0 %v1116
        %v1338 = vpop.f32.mrf.mxu0
        %v1339 = vadd.f32 0.0, %v1338
        %v1340 = vpop.f32.mrf.mxu0
        %v1341 = vpop.f32.mrf.mxu0
        %v1342 = vadd.f32 0.0, %v1341
        %v1343 = vpop.f32.mrf.mxu0
        %1344 = vmatprep.mubr.bf16.mxu0 0
        %1345 = vmatmul.mubr.bf16.gmra.mxu0 %v1117
        %v1346 = vpop.f32.mrf.mxu0
        %v1347 = vadd.f32 0.0, %v1346
        %v1348 = vpop.f32.mrf.mxu0
        %v1349 = vpop.f32.mrf.mxu0
        %v1350 = vadd.f32 0.0, %v1349
        %v1351 = vpop.f32.mrf.mxu0
        %1352 = vmatprep.mubr.bf16.mxu0 0
        %1353 = vmatmul.mubr.bf16.gmra.mxu0 %v1118
        %v1354 = vpop.f32.mrf.mxu0
        %v1355 = vadd.f32 0.0, %v1354
        %v1356 = vpop.f32.mrf.mxu0
        %v1357 = vpop.f32.mrf.mxu0
        %v1358 = vadd.f32 0.0, %v1357
        %v1359 = vpop.f32.mrf.mxu0
        %1360 = vdwg.mxu0
        %v1377 = vunpack.c.l.b16 %v1049
        %v1378 = vunpack.c.l.b16 %v1050
        %v1379 = vunpack.c.l.b16 %v1051
        %v1380 = vunpack.c.l.b16 %v1052
        %v1381 = vunpack.c.l.b16 %v1053
        %v1382 = vunpack.c.l.b16 %v1054
        %v1383 = vunpack.c.l.b16 %v1055
        %v1384 = vunpack.c.l.b16 %v1056
        %v1385 = vunpack.c.l.b16 %v1057
        %v1386 = vunpack.c.l.b16 %v1058
        %v1387 = vunpack.c.l.b16 %v1059
        %v1388 = vunpack.c.l.b16 %v1060
        %v1389 = vunpack.c.l.b16 %v1061
        %v1390 = vunpack.c.l.b16 %v1062
        %v1391 = vunpack.c.l.b16 %v1063
        %v1392 = vunpack.c.l.b16 %v1064
        %v1393 = vpack.c.b16 %v1378, %v1377
        %v1394 = vpack.c.b16 %v1380, %v1379
        %v1395 = vpack.c.b16 %v1382, %v1381
        %v1396 = vpack.c.b16 %v1384, %v1383
        %v1397 = vpack.c.b16 %v1386, %v1385
        %v1398 = vpack.c.b16 %v1388, %v1387
        %v1399 = vpack.c.b16 %v1390, %v1389
        %v1400 = vpack.c.b16 %v1392, %v1391
        %1409 = vmatprep.subr.bf16.mxu0 0
        %1410 = vmatpush1.bf16.msra.mxu0 %v1400
        %1411 = vmatprep.subr.bf16.mxu0 0
        %1412 = vmatpush1.bf16.msra.mxu0 %v1399
        %1413 = vmatprep.subr.bf16.mxu0 0
        %1414 = vmatpush1.bf16.msra.mxu0 %v1398
        %1415 = vmatprep.subr.bf16.mxu0 0
        %1416 = vmatpush1.bf16.msra.mxu0 %v1397
        %1417 = vmatprep.subr.bf16.mxu0 0
        %1418 = vmatpush1.bf16.msra.mxu0 %v1396
        %1419 = vmatprep.subr.bf16.mxu0 0
        %1420 = vmatpush1.bf16.msra.mxu0 %v1395
        %1421 = vmatprep.subr.bf16.mxu0 0
        %1422 = vmatpush1.bf16.msra.mxu0 %v1394
        %1423 = vmatprep.subr.bf16.mxu0 0
        %1424 = vmatpush1.bf16.msra.mxu0 %v1393
        %1425 = vmatprep.subr.bf16.mxu0 0
        %1426 = vmatpush2.bf16.msra.mxu0 0
        %1427 = vmatprep.subr.bf16.mxu0 0
        %1428 = vmatpush2.bf16.msra.mxu0 0
        %1429 = vmatprep.subr.bf16.mxu0 0
        %1430 = vmatpush2.bf16.msra.mxu0 0
        %1431 = vmatprep.subr.bf16.mxu0 0
        %1432 = vmatpush2.bf16.msra.mxu0 0
        %1433 = vmatprep.subr.bf16.mxu0 0
        %1434 = vmatpush2.bf16.msra.mxu0 0
        %1435 = vmatprep.subr.bf16.mxu0 0
        %1436 = vmatpush2.bf16.msra.mxu0 0
        %1437 = vmatprep.subr.bf16.mxu0 0
        %1438 = vmatpush2.bf16.msra.mxu0 0
        %1439 = vmatprep.subr.bf16.mxu0 0
        %1440 = vmatpush2.bf16.msra.mxu0 0
        %1441 = vmatprep.mubr.bf16.mxu0 0
        %1442 = vmatmul.mubr.bf16.gmra.mxu0 %v1030
        %v1443 = vpop.f32.mrf.mxu0
        %v1444 = vadd.f32 %v1219, %v1443
        %v1445 = vpop.f32.mrf.mxu0
        %v1446 = vpop.f32.mrf.mxu0
        %v1447 = vadd.f32 %v1222, %v1446
        %v1448 = vpop.f32.mrf.mxu0
        %1449 = vmatprep.mubr.bf16.mxu0 0
        %1450 = vmatmul.mubr.bf16.gmra.mxu0 %v1031
        %v1451 = vpop.f32.mrf.mxu0
        %v1452 = vadd.f32 %v1227, %v1451
        %v1453 = vpop.f32.mrf.mxu0
        %v1454 = vpop.f32.mrf.mxu0
        %v1455 = vadd.f32 %v1230, %v1454
        %v1456 = vpop.f32.mrf.mxu0
        %1457 = vmatprep.mubr.bf16.mxu0 0
        %1458 = vmatmul.mubr.bf16.gmra.mxu0 %v1032
        %v1459 = vpop.f32.mrf.mxu0
        %v1460 = vadd.f32 %v1235, %v1459
        %v1461 = vpop.f32.mrf.mxu0
        %v1462 = vpop.f32.mrf.mxu0
        %v1463 = vadd.f32 %v1238, %v1462
        %v1464 = vpop.f32.mrf.mxu0
        %1465 = vmatprep.mubr.bf16.mxu0 0
        %1466 = vmatmul.mubr.bf16.gmra.mxu0 %v1033
        %v1467 = vpop.f32.mrf.mxu0
        %v1468 = vadd.f32 %v1243, %v1467
        %v1469 = vpop.f32.mrf.mxu0
        %v1470 = vpop.f32.mrf.mxu0
        %v1471 = vadd.f32 %v1246, %v1470
        %v1472 = vpop.f32.mrf.mxu0
        %1473 = vmatprep.mubr.bf16.mxu0 0
        %1474 = vmatmul.mubr.bf16.gmra.mxu0 %v1034
        %v1475 = vpop.f32.mrf.mxu0
        %v1476 = vadd.f32 %v1251, %v1475
        %v1477 = vpop.f32.mrf.mxu0
        %v1478 = vpop.f32.mrf.mxu0
        %v1479 = vadd.f32 %v1254, %v1478
        %v1480 = vpop.f32.mrf.mxu0
        %1481 = vmatprep.mubr.bf16.mxu0 0
        %1482 = vmatmul.mubr.bf16.gmra.mxu0 %v1035
        %v1483 = vpop.f32.mrf.mxu0
        %v1484 = vadd.f32 %v1259, %v1483
        %v1485 = vpop.f32.mrf.mxu0
        %v1486 = vpop.f32.mrf.mxu0
        %v1487 = vadd.f32 %v1262, %v1486
        %v1488 = vpop.f32.mrf.mxu0
        %1489 = vmatprep.mubr.bf16.mxu0 0
        %1490 = vmatmul.mubr.bf16.gmra.mxu0 %v1036
        %v1491 = vpop.f32.mrf.mxu0
        %v1492 = vadd.f32 %v1267, %v1491
        %v1493 = vpop.f32.mrf.mxu0
        %v1494 = vpop.f32.mrf.mxu0
        %v1495 = vadd.f32 %v1270, %v1494
        %v1496 = vpop.f32.mrf.mxu0
        %1497 = vmatprep.mubr.bf16.mxu0 0
        %1498 = vmatmul.mubr.bf16.gmra.mxu0 %v1037
        %v1499 = vpop.f32.mrf.mxu0
        %v1500 = vadd.f32 %v1275, %v1499
        %v1501 = vpop.f32.mrf.mxu0
        %v1502 = vpop.f32.mrf.mxu0
        %v1503 = vadd.f32 %v1278, %v1502
        %v1504 = vpop.f32.mrf.mxu0
        %1505 = vmatprep.mubr.bf16.mxu0 0
        %1506 = vmatmul.mubr.bf16.gmra.mxu0 %v1038
        %v1507 = vpop.f32.mrf.mxu0
        %v1508 = vadd.f32 %v1283, %v1507
        %v1509 = vpop.f32.mrf.mxu0
        %v1510 = vpop.f32.mrf.mxu0
        %v1511 = vadd.f32 %v1286, %v1510
        %v1512 = vpop.f32.mrf.mxu0
        %1513 = vmatprep.mubr.bf16.mxu0 0
        %1514 = vmatmul.mubr.bf16.gmra.mxu0 %v1039
        %v1515 = vpop.f32.mrf.mxu0
        %v1516 = vadd.f32 %v1291, %v1515
        %v1517 = vpop.f32.mrf.mxu0
        %v1518 = vpop.f32.mrf.mxu0
        %v1519 = vadd.f32 %v1294, %v1518
        %v1520 = vpop.f32.mrf.mxu0
        %1521 = vmatprep.mubr.bf16.mxu0 0
        %1522 = vmatmul.mubr.bf16.gmra.mxu0 %v1040
        %v1523 = vpop.f32.mrf.mxu0
        %v1524 = vadd.f32 %v1299, %v1523
        %v1525 = vpop.f32.mrf.mxu0
        %v1526 = vpop.f32.mrf.mxu0
        %v1527 = vadd.f32 %v1302, %v1526
        %v1528 = vpop.f32.mrf.mxu0
        %1529 = vmatprep.mubr.bf16.mxu0 0
        %1530 = vmatmul.mubr.bf16.gmra.mxu0 %v1041
        %v1531 = vpop.f32.mrf.mxu0
        %v1532 = vadd.f32 %v1307, %v1531
        %v1533 = vpop.f32.mrf.mxu0
        %v1534 = vpop.f32.mrf.mxu0
        %v1535 = vadd.f32 %v1310, %v1534
        %v1536 = vpop.f32.mrf.mxu0
        %1537 = vmatprep.mubr.bf16.mxu0 0
        %1538 = vmatmul.mubr.bf16.gmra.mxu0 %v1042
        %v1539 = vpop.f32.mrf.mxu0
        %v1540 = vadd.f32 %v1315, %v1539
        %v1541 = vpop.f32.mrf.mxu0
        %v1542 = vpop.f32.mrf.mxu0
        %v1543 = vadd.f32 %v1318, %v1542
        %v1544 = vpop.f32.mrf.mxu0
        %1545 = vmatprep.mubr.bf16.mxu0 0
        %1546 = vmatmul.mubr.bf16.gmra.mxu0 %v1043
        %v1547 = vpop.f32.mrf.mxu0
        %v1548 = vadd.f32 %v1323, %v1547
        %v1549 = vpop.f32.mrf.mxu0
        %v1550 = vpop.f32.mrf.mxu0
        %v1551 = vadd.f32 %v1326, %v1550
        %v1552 = vpop.f32.mrf.mxu0
        %1553 = vmatprep.mubr.bf16.mxu0 0
        %1554 = vmatmul.mubr.bf16.gmra.mxu0 %v1044
        %v1555 = vpop.f32.mrf.mxu0
        %v1556 = vadd.f32 %v1331, %v1555
        %v1557 = vpop.f32.mrf.mxu0
        %v1558 = vpop.f32.mrf.mxu0
        %v1559 = vadd.f32 %v1334, %v1558
        %v1560 = vpop.f32.mrf.mxu0
        %1561 = vmatprep.mubr.bf16.mxu0 0
        %1562 = vmatmul.mubr.bf16.gmra.mxu0 %v1045
        %v1563 = vpop.f32.mrf.mxu0
        %v1564 = vadd.f32 %v1339, %v1563
        %v1565 = vpop.f32.mrf.mxu0
        %v1566 = vpop.f32.mrf.mxu0
        %v1567 = vadd.f32 %v1342, %v1566
        %v1568 = vpop.f32.mrf.mxu0
        %1569 = vmatprep.mubr.bf16.mxu0 0
        %1570 = vmatmul.mubr.bf16.gmra.mxu0 %v1046
        %v1571 = vpop.f32.mrf.mxu0
        %v1572 = vadd.f32 %v1347, %v1571
        %v1573 = vpop.f32.mrf.mxu0
        %v1574 = vpop.f32.mrf.mxu0
        %v1575 = vadd.f32 %v1350, %v1574
        %v1576 = vpop.f32.mrf.mxu0
        %1577 = vmatprep.mubr.bf16.mxu0 0
        %1578 = vmatmul.mubr.bf16.gmra.mxu0 %v1047
        %v1579 = vpop.f32.mrf.mxu0
        %v1580 = vadd.f32 %v1355, %v1579
        %v1581 = vpop.f32.mrf.mxu0
        %v1582 = vpop.f32.mrf.mxu0
        %v1583 = vadd.f32 %v1358, %v1582
        %v1584 = vpop.f32.mrf.mxu0
        %1585 = vdwg.mxu0
        %v1586 = vld [vmem:[#allocation2 + $0x2] sm:$0xff]
        %v1587 = vld [vmem:[#allocation2 + $0xa] sm:$0xff]
        %v1588 = vld [vmem:[#allocation2 + $0x12] sm:$0xff]
        %v1589 = vld [vmem:[#allocation2 + $0x1a] sm:$0xff]
        %v1590 = vld [vmem:[#allocation2 + $0x22] sm:$0xff]
        %v1591 = vld [vmem:[#allocation2 + $0x2a] sm:$0xff]
        %v1592 = vld [vmem:[#allocation2 + $0x32] sm:$0xff]
        %v1593 = vld [vmem:[#allocation2 + $0x3a] sm:$0xff]
        %v1594 = vld [vmem:[#allocation2 + $0x42] sm:$0xff]
        %v1595 = vld [vmem:[#allocation2 + $0x4a] sm:$0xff]
        %v1596 = vld [vmem:[#allocation2 + $0x52] sm:$0xff]
        %v1597 = vld [vmem:[#allocation2 + $0x5a] sm:$0xff]
        %v1598 = vld [vmem:[#allocation2 + $0x62] sm:$0xff]
        %v1599 = vld [vmem:[#allocation2 + $0x6a] sm:$0xff]
        %v1600 = vld [vmem:[#allocation2 + $0x72] sm:$0xff]
        %v1601 = vld [vmem:[#allocation2 + $0x7a] sm:$0xff]
        %v1602 = vld [vmem:[#allocation2 + $0x82] sm:$0xff]
        %v1603 = vld [vmem:[#allocation2 + $0x8a] sm:$0xff]
        %v1604 = vld [vmem:[#allocation2 + $0x92] sm:$0xff]
        %v1605 = vld [vmem:[#allocation2 + $0x9a] sm:$0xff]
        %v1606 = vld [vmem:[#allocation2 + $0xa2] sm:$0xff]
        %v1607 = vld [vmem:[#allocation2 + $0xaa] sm:$0xff]
        %v1608 = vld [vmem:[#allocation2 + $0xb2] sm:$0xff]
        %v1609 = vld [vmem:[#allocation2 + $0xba] sm:$0xff]
        %v1610 = vld [vmem:[#allocation2 + $0xc2] sm:$0xff]
        %v1611 = vld [vmem:[#allocation2 + $0xca] sm:$0xff]
        %v1612 = vld [vmem:[#allocation2 + $0xd2] sm:$0xff]
        %v1613 = vld [vmem:[#allocation2 + $0xda] sm:$0xff]
        %v1614 = vld [vmem:[#allocation2 + $0xe2] sm:$0xff]
        %v1615 = vld [vmem:[#allocation2 + $0xea] sm:$0xff]
        %v1616 = vld [vmem:[#allocation2 + $0xf2] sm:$0xff]
        %v1617 = vld [vmem:[#allocation2 + $0xfa] sm:$0xff]
        %v1618 = vld [vmem:[#allocation2 + $0x102] sm:$0xff]
        %v1619 = vld [vmem:[#allocation2 + $0x10a] sm:$0xff]
        %v1620 = vld [vmem:[#allocation2 + $0x112] sm:$0xff]
        %v1621 = vld [vmem:[#allocation2 + $0x11a] sm:$0xff]
        %v1622 = vpack.c.bf16 %v1587, %v1586
        %v1623 = vpack.c.bf16 %v1589, %v1588
        %v1624 = vpack.c.bf16 %v1591, %v1590
        %v1625 = vpack.c.bf16 %v1593, %v1592
        %v1626 = vpack.c.bf16 %v1595, %v1594
        %v1627 = vpack.c.bf16 %v1597, %v1596
        %v1628 = vpack.c.bf16 %v1599, %v1598
        %v1629 = vpack.c.bf16 %v1601, %v1600
        %v1630 = vpack.c.bf16 %v1603, %v1602
        %v1631 = vpack.c.bf16 %v1605, %v1604
        %v1632 = vpack.c.bf16 %v1607, %v1606
        %v1633 = vpack.c.bf16 %v1609, %v1608
        %v1634 = vpack.c.bf16 %v1611, %v1610
        %v1635 = vpack.c.bf16 %v1613, %v1612
        %v1636 = vpack.c.bf16 %v1615, %v1614
        %v1637 = vpack.c.bf16 %v1617, %v1616
        %v1638 = vpack.c.bf16 %v1619, %v1618
        %v1639 = vpack.c.bf16 %v1621, %v1620
        %s1640 = scalar_lea.vmem %s1, 192
        %v1641 = vld [vmem:[%s1640] sm:$0xf]
        %v1642 = vld [vmem:[%s1640 + $0x4] sm:$0xf]
        %v1643 = vld [vmem:[%s1640 + $0x8] sm:$0xf]
        %v1644 = vld [vmem:[%s1640 + $0xc] sm:$0xf]
        %v1645 = vld [vmem:[%s1640 + $0x10] sm:$0xf]
        %v1646 = vld [vmem:[%s1640 + $0x14] sm:$0xf]
        %v1647 = vld [vmem:[%s1640 + $0x18] sm:$0xf]
        %v1648 = vld [vmem:[%s1640 + $0x1c] sm:$0xf]
        %v1649 = vld [vmem:[%s1640 + $0x20] sm:$0xf]
        %v1650 = vld [vmem:[%s1640 + $0x24] sm:$0xf]
        %v1651 = vld [vmem:[%s1640 + $0x28] sm:$0xf]
        %v1652 = vld [vmem:[%s1640 + $0x2c] sm:$0xf]
        %v1653 = vld [vmem:[%s1640 + $0x30] sm:$0xf]
        %v1654 = vld [vmem:[%s1640 + $0x34] sm:$0xf]
        %v1655 = vld [vmem:[%s1640 + $0x38] sm:$0xf]
        %v1656 = vld [vmem:[%s1640 + $0x3c] sm:$0xf]
        %v1673 = vunpack.c.l.b16 %v1641
        %v1674 = vunpack.c.l.b16 %v1642
        %v1675 = vunpack.c.l.b16 %v1643
        %v1676 = vunpack.c.l.b16 %v1644
        %v1677 = vunpack.c.l.b16 %v1645
        %v1678 = vunpack.c.l.b16 %v1646
        %v1679 = vunpack.c.l.b16 %v1647
        %v1680 = vunpack.c.l.b16 %v1648
        %v1681 = vunpack.c.l.b16 %v1649
        %v1682 = vunpack.c.l.b16 %v1650
        %v1683 = vunpack.c.l.b16 %v1651
        %v1684 = vunpack.c.l.b16 %v1652
        %v1685 = vunpack.c.l.b16 %v1653
        %v1686 = vunpack.c.l.b16 %v1654
        %v1687 = vunpack.c.l.b16 %v1655
        %v1688 = vunpack.c.l.b16 %v1656
        %v1689 = vpack.c.b16 %v1674, %v1673
        %v1690 = vpack.c.b16 %v1676, %v1675
        %v1691 = vpack.c.b16 %v1678, %v1677
        %v1692 = vpack.c.b16 %v1680, %v1679
        %v1693 = vpack.c.b16 %v1682, %v1681
        %v1694 = vpack.c.b16 %v1684, %v1683
        %v1695 = vpack.c.b16 %v1686, %v1685
        %v1696 = vpack.c.b16 %v1688, %v1687
        %1705 = vmatprep.subr.bf16.mxu0 0
        %1706 = vmatpush1.bf16.msra.mxu0 %v1696
        %1707 = vmatprep.subr.bf16.mxu0 0
        %1708 = vmatpush1.bf16.msra.mxu0 %v1695
        %1709 = vmatprep.subr.bf16.mxu0 0
        %1710 = vmatpush1.bf16.msra.mxu0 %v1694
        %1711 = vmatprep.subr.bf16.mxu0 0
        %1712 = vmatpush1.bf16.msra.mxu0 %v1693
        %1713 = vmatprep.subr.bf16.mxu0 0
        %1714 = vmatpush1.bf16.msra.mxu0 %v1692
        %1715 = vmatprep.subr.bf16.mxu0 0
        %1716 = vmatpush1.bf16.msra.mxu0 %v1691
        %1717 = vmatprep.subr.bf16.mxu0 0
        %1718 = vmatpush1.bf16.msra.mxu0 %v1690
        %1719 = vmatprep.subr.bf16.mxu0 0
        %1720 = vmatpush1.bf16.msra.mxu0 %v1689
        %1721 = vmatprep.subr.bf16.mxu0 0
        %1722 = vmatpush2.bf16.msra.mxu0 0
        %1723 = vmatprep.subr.bf16.mxu0 0
        %1724 = vmatpush2.bf16.msra.mxu0 0
        %1725 = vmatprep.subr.bf16.mxu0 0
        %1726 = vmatpush2.bf16.msra.mxu0 0
        %1727 = vmatprep.subr.bf16.mxu0 0
        %1728 = vmatpush2.bf16.msra.mxu0 0
        %1729 = vmatprep.subr.bf16.mxu0 0
        %1730 = vmatpush2.bf16.msra.mxu0 0
        %1731 = vmatprep.subr.bf16.mxu0 0
        %1732 = vmatpush2.bf16.msra.mxu0 0
        %1733 = vmatprep.subr.bf16.mxu0 0
        %1734 = vmatpush2.bf16.msra.mxu0 0
        %1735 = vmatprep.subr.bf16.mxu0 0
        %1736 = vmatpush2.bf16.msra.mxu0 0
        %1737 = vmatprep.mubr.bf16.mxu0 0
        %1738 = vmatmul.mubr.bf16.gmra.mxu0 %v1622
        %v1739 = vpop.f32.mrf.mxu0
        %v1740 = vadd.f32 0.0, %v1739
        %v1741 = vpop.f32.mrf.mxu0
        %v1742 = vpop.f32.mrf.mxu0
        %v1743 = vadd.f32 0.0, %v1742
        %v1744 = vpop.f32.mrf.mxu0
        %1745 = vmatprep.mubr.bf16.mxu0 0
        %1746 = vmatmul.mubr.bf16.gmra.mxu0 %v1623
        %v1747 = vpop.f32.mrf.mxu0
        %v1748 = vadd.f32 0.0, %v1747
        %v1749 = vpop.f32.mrf.mxu0
        %v1750 = vpop.f32.mrf.mxu0
        %v1751 = vadd.f32 0.0, %v1750
        %v1752 = vpop.f32.mrf.mxu0
        %1753 = vmatprep.mubr.bf16.mxu0 0
        %1754 = vmatmul.mubr.bf16.gmra.mxu0 %v1624
        %v1755 = vpop.f32.mrf.mxu0
        %v1756 = vadd.f32 0.0, %v1755
        %v1757 = vpop.f32.mrf.mxu0
        %v1758 = vpop.f32.mrf.mxu0
        %v1759 = vadd.f32 0.0, %v1758
        %v1760 = vpop.f32.mrf.mxu0
        %1761 = vmatprep.mubr.bf16.mxu0 0
        %1762 = vmatmul.mubr.bf16.gmra.mxu0 %v1625
        %v1763 = vpop.f32.mrf.mxu0
        %v1764 = vadd.f32 0.0, %v1763
        %v1765 = vpop.f32.mrf.mxu0
        %v1766 = vpop.f32.mrf.mxu0
        %v1767 = vadd.f32 0.0, %v1766
        %v1768 = vpop.f32.mrf.mxu0
        %1769 = vmatprep.mubr.bf16.mxu0 0
        %1770 = vmatmul.mubr.bf16.gmra.mxu0 %v1626
        %v1771 = vpop.f32.mrf.mxu0
        %v1772 = vadd.f32 0.0, %v1771
        %v1773 = vpop.f32.mrf.mxu0
        %v1774 = vpop.f32.mrf.mxu0
        %v1775 = vadd.f32 0.0, %v1774
        %v1776 = vpop.f32.mrf.mxu0
        %1777 = vmatprep.mubr.bf16.mxu0 0
        %1778 = vmatmul.mubr.bf16.gmra.mxu0 %v1627
        %v1779 = vpop.f32.mrf.mxu0
        %v1780 = vadd.f32 0.0, %v1779
        %v1781 = vpop.f32.mrf.mxu0
        %v1782 = vpop.f32.mrf.mxu0
        %v1783 = vadd.f32 0.0, %v1782
        %v1784 = vpop.f32.mrf.mxu0
        %1785 = vmatprep.mubr.bf16.mxu0 0
        %1786 = vmatmul.mubr.bf16.gmra.mxu0 %v1628
        %v1787 = vpop.f32.mrf.mxu0
        %v1788 = vadd.f32 0.0, %v1787
        %v1789 = vpop.f32.mrf.mxu0
        %v1790 = vpop.f32.mrf.mxu0
        %v1791 = vadd.f32 0.0, %v1790
        %v1792 = vpop.f32.mrf.mxu0
        %1793 = vmatprep.mubr.bf16.mxu0 0
        %1794 = vmatmul.mubr.bf16.gmra.mxu0 %v1629
        %v1795 = vpop.f32.mrf.mxu0
        %v1796 = vadd.f32 0.0, %v1795
        %v1797 = vpop.f32.mrf.mxu0
        %v1798 = vpop.f32.mrf.mxu0
        %v1799 = vadd.f32 0.0, %v1798
        %v1800 = vpop.f32.mrf.mxu0
        %1801 = vmatprep.mubr.bf16.mxu0 0
        %1802 = vmatmul.mubr.bf16.gmra.mxu0 %v1630
        %v1803 = vpop.f32.mrf.mxu0
        %v1804 = vadd.f32 0.0, %v1803
        %v1805 = vpop.f32.mrf.mxu0
        %v1806 = vpop.f32.mrf.mxu0
        %v1807 = vadd.f32 0.0, %v1806
        %v1808 = vpop.f32.mrf.mxu0
        %1809 = vmatprep.mubr.bf16.mxu0 0
        %1810 = vmatmul.mubr.bf16.gmra.mxu0 %v1631
        %v1811 = vpop.f32.mrf.mxu0
        %v1812 = vadd.f32 0.0, %v1811
        %v1813 = vpop.f32.mrf.mxu0
        %v1814 = vpop.f32.mrf.mxu0
        %v1815 = vadd.f32 0.0, %v1814
        %v1816 = vpop.f32.mrf.mxu0
        %1817 = vmatprep.mubr.bf16.mxu0 0
        %1818 = vmatmul.mubr.bf16.gmra.mxu0 %v1632
        %v1819 = vpop.f32.mrf.mxu0
        %v1820 = vadd.f32 0.0, %v1819
        %v1821 = vpop.f32.mrf.mxu0
        %v1822 = vpop.f32.mrf.mxu0
        %v1823 = vadd.f32 0.0, %v1822
        %v1824 = vpop.f32.mrf.mxu0
        %1825 = vmatprep.mubr.bf16.mxu0 0
        %1826 = vmatmul.mubr.bf16.gmra.mxu0 %v1633
        %v1827 = vpop.f32.mrf.mxu0
        %v1828 = vadd.f32 0.0, %v1827
        %v1829 = vpop.f32.mrf.mxu0
        %v1830 = vpop.f32.mrf.mxu0
        %v1831 = vadd.f32 0.0, %v1830
        %v1832 = vpop.f32.mrf.mxu0
        %1833 = vmatprep.mubr.bf16.mxu0 0
        %1834 = vmatmul.mubr.bf16.gmra.mxu0 %v1634
        %v1835 = vpop.f32.mrf.mxu0
        %v1836 = vadd.f32 0.0, %v1835
        %v1837 = vpop.f32.mrf.mxu0
        %v1838 = vpop.f32.mrf.mxu0
        %v1839 = vadd.f32 0.0, %v1838
        %v1840 = vpop.f32.mrf.mxu0
        %1841 = vmatprep.mubr.bf16.mxu0 0
        %1842 = vmatmul.mubr.bf16.gmra.mxu0 %v1635
        %v1843 = vpop.f32.mrf.mxu0
        %v1844 = vadd.f32 0.0, %v1843
        %v1845 = vpop.f32.mrf.mxu0
        %v1846 = vpop.f32.mrf.mxu0
        %v1847 = vadd.f32 0.0, %v1846
        %v1848 = vpop.f32.mrf.mxu0
        %1849 = vmatprep.mubr.bf16.mxu0 0
        %1850 = vmatmul.mubr.bf16.gmra.mxu0 %v1636
        %v1851 = vpop.f32.mrf.mxu0
        %v1852 = vadd.f32 0.0, %v1851
        %v1853 = vpop.f32.mrf.mxu0
        %v1854 = vpop.f32.mrf.mxu0
        %v1855 = vadd.f32 0.0, %v1854
        %v1856 = vpop.f32.mrf.mxu0
        %1857 = vmatprep.mubr.bf16.mxu0 0
        %1858 = vmatmul.mubr.bf16.gmra.mxu0 %v1637
        %v1859 = vpop.f32.mrf.mxu0
        %v1860 = vadd.f32 0.0, %v1859
        %v1861 = vpop.f32.mrf.mxu0
        %v1862 = vpop.f32.mrf.mxu0
        %v1863 = vadd.f32 0.0, %v1862
        %v1864 = vpop.f32.mrf.mxu0
        %1865 = vmatprep.mubr.bf16.mxu0 0
        %1866 = vmatmul.mubr.bf16.gmra.mxu0 %v1638
        %v1867 = vpop.f32.mrf.mxu0
        %v1868 = vadd.f32 0.0, %v1867
        %v1869 = vpop.f32.mrf.mxu0
        %v1870 = vpop.f32.mrf.mxu0
        %v1871 = vadd.f32 0.0, %v1870
        %v1872 = vpop.f32.mrf.mxu0
        %1873 = vmatprep.mubr.bf16.mxu0 0
        %1874 = vmatmul.mubr.bf16.gmra.mxu0 %v1639
        %v1875 = vpop.f32.mrf.mxu0
        %v1876 = vadd.f32 0.0, %v1875
        %v1877 = vpop.f32.mrf.mxu0
        %v1878 = vpop.f32.mrf.mxu0
        %v1879 = vadd.f32 0.0, %v1878
        %v1880 = vpop.f32.mrf.mxu0
        %1881 = vdwg.mxu0
        %v1882 = vadd.f32 %v1444, %v1740
        %v1883 = vadd.f32 %v1447, %v1743
        %v1884 = vadd.f32 %v1452, %v1748
        %v1885 = vadd.f32 %v1455, %v1751
        %v1886 = vadd.f32 %v1460, %v1756
        %v1887 = vadd.f32 %v1463, %v1759
        %v1888 = vadd.f32 %v1468, %v1764
        %v1889 = vadd.f32 %v1471, %v1767
        %v1890 = vadd.f32 %v1476, %v1772
        %v1891 = vadd.f32 %v1479, %v1775
        %v1892 = vadd.f32 %v1484, %v1780
        %v1893 = vadd.f32 %v1487, %v1783
        %v1894 = vadd.f32 %v1492, %v1788
        %v1895 = vadd.f32 %v1495, %v1791
        %v1896 = vadd.f32 %v1500, %v1796
        %v1897 = vadd.f32 %v1503, %v1799
        %v1898 = vadd.f32 %v1508, %v1804
        %v1899 = vadd.f32 %v1511, %v1807
        %v1900 = vadd.f32 %v1516, %v1812
        %v1901 = vadd.f32 %v1519, %v1815
        %v1902 = vadd.f32 %v1524, %v1820
        %v1903 = vadd.f32 %v1527, %v1823
        %v1904 = vadd.f32 %v1532, %v1828
        %v1905 = vadd.f32 %v1535, %v1831
        %v1906 = vadd.f32 %v1540, %v1836
        %v1907 = vadd.f32 %v1543, %v1839
        %v1908 = vadd.f32 %v1548, %v1844
        %v1909 = vadd.f32 %v1551, %v1847
        %v1910 = vadd.f32 %v1556, %v1852
        %v1911 = vadd.f32 %v1559, %v1855
        %v1912 = vadd.f32 %v1564, %v1860
        %v1913 = vadd.f32 %v1567, %v1863
        %v1914 = vadd.f32 %v1572, %v1868
        %v1915 = vadd.f32 %v1575, %v1871
        %v1916 = vadd.f32 %v1580, %v1876
        %v1917 = vadd.f32 %v1583, %v1879
        %v1918 = vld [vmem:[#allocation2 + $0x12] sm:$0xff]
        %v1919 = vld [vmem:[#allocation2 + $0x1a] sm:$0xff]
        %v1920 = vld [vmem:[#allocation2 + $0x22] sm:$0xff]
        %v1921 = vld [vmem:[#allocation2 + $0x2a] sm:$0xff]
        %v1922 = vld [vmem:[#allocation2 + $0x32] sm:$0xff]
        %v1923 = vld [vmem:[#allocation2 + $0x3a] sm:$0xff]
        %v1924 = vld [vmem:[#allocation2 + $0x42] sm:$0xff]
        %v1925 = vld [vmem:[#allocation2 + $0x4a] sm:$0xff]
        %v1926 = vld [vmem:[#allocation2 + $0x52] sm:$0xff]
        %v1927 = vld [vmem:[#allocation2 + $0x5a] sm:$0xff]
        %v1928 = vld [vmem:[#allocation2 + $0x62] sm:$0xff]
        %v1929 = vld [vmem:[#allocation2 + $0x6a] sm:$0xff]
        %v1930 = vld [vmem:[#allocation2 + $0x72] sm:$0xff]
        %v1931 = vld [vmem:[#allocation2 + $0x7a] sm:$0xff]
        %v1932 = vld [vmem:[#allocation2 + $0x82] sm:$0xff]
        %v1933 = vld [vmem:[#allocation2 + $0x8a] sm:$0xff]
        %v1934 = vld [vmem:[#allocation2 + $0x92] sm:$0xff]
        %v1935 = vld [vmem:[#allocation2 + $0x9a] sm:$0xff]
        %v1936 = vld [vmem:[#allocation2 + $0xa2] sm:$0xff]
        %v1937 = vld [vmem:[#allocation2 + $0xaa] sm:$0xff]
        %v1938 = vld [vmem:[#allocation2 + $0xb2] sm:$0xff]
        %v1939 = vld [vmem:[#allocation2 + $0xba] sm:$0xff]
        %v1940 = vld [vmem:[#allocation2 + $0xc2] sm:$0xff]
        %v1941 = vld [vmem:[#allocation2 + $0xca] sm:$0xff]
        %v1942 = vld [vmem:[#allocation2 + $0xd2] sm:$0xff]
        %v1943 = vld [vmem:[#allocation2 + $0xda] sm:$0xff]
        %v1944 = vld [vmem:[#allocation2 + $0xe2] sm:$0xff]
        %v1945 = vld [vmem:[#allocation2 + $0xea] sm:$0xff]
        %v1946 = vld [vmem:[#allocation2 + $0xf2] sm:$0xff]
        %v1947 = vld [vmem:[#allocation2 + $0xfa] sm:$0xff]
        %v1948 = vld [vmem:[#allocation2 + $0x102] sm:$0xff]
        %v1949 = vld [vmem:[#allocation2 + $0x10a] sm:$0xff]
        %v1950 = vld [vmem:[#allocation2 + $0x112] sm:$0xff]
        %v1951 = vld [vmem:[#allocation2 + $0x11a] sm:$0xff]
        %v1952 = vld [vmem:[#allocation2 + $0x122] sm:$0xff]
        %v1953 = vld [vmem:[#allocation2 + $0x12a] sm:$0xff]
        %v1954 = vpack.c.bf16 %v1919, %v1918
        %v1955 = vpack.c.bf16 %v1921, %v1920
        %v1956 = vpack.c.bf16 %v1923, %v1922
        %v1957 = vpack.c.bf16 %v1925, %v1924
        %v1958 = vpack.c.bf16 %v1927, %v1926
        %v1959 = vpack.c.bf16 %v1929, %v1928
        %v1960 = vpack.c.bf16 %v1931, %v1930
        %v1961 = vpack.c.bf16 %v1933, %v1932
        %v1962 = vpack.c.bf16 %v1935, %v1934
        %v1963 = vpack.c.bf16 %v1937, %v1936
        %v1964 = vpack.c.bf16 %v1939, %v1938
        %v1965 = vpack.c.bf16 %v1941, %v1940
        %v1966 = vpack.c.bf16 %v1943, %v1942
        %v1967 = vpack.c.bf16 %v1945, %v1944
        %v1968 = vpack.c.bf16 %v1947, %v1946
        %v1969 = vpack.c.bf16 %v1949, %v1948
        %v1970 = vpack.c.bf16 %v1951, %v1950
        %v1971 = vpack.c.bf16 %v1953, %v1952
        %s1972 = scalar_lea.vmem %s1, 256
        %v1973 = vld [vmem:[%s1972] sm:$0xf]
        %v1974 = vld [vmem:[%s1972 + $0x4] sm:$0xf]
        %v1975 = vld [vmem:[%s1972 + $0x8] sm:$0xf]
        %v1976 = vld [vmem:[%s1972 + $0xc] sm:$0xf]
        %v1977 = vld [vmem:[%s1972 + $0x10] sm:$0xf]
        %v1978 = vld [vmem:[%s1972 + $0x14] sm:$0xf]
        %v1979 = vld [vmem:[%s1972 + $0x18] sm:$0xf]
        %v1980 = vld [vmem:[%s1972 + $0x1c] sm:$0xf]
        %v1981 = vld [vmem:[%s1972 + $0x20] sm:$0xf]
        %v1982 = vld [vmem:[%s1972 + $0x24] sm:$0xf]
        %v1983 = vld [vmem:[%s1972 + $0x28] sm:$0xf]
        %v1984 = vld [vmem:[%s1972 + $0x2c] sm:$0xf]
        %v1985 = vld [vmem:[%s1972 + $0x30] sm:$0xf]
        %v1986 = vld [vmem:[%s1972 + $0x34] sm:$0xf]
        %v1987 = vld [vmem:[%s1972 + $0x38] sm:$0xf]
        %v1988 = vld [vmem:[%s1972 + $0x3c] sm:$0xf]
        %v2005 = vunpack.c.l.b16 %v1973
        %v2006 = vunpack.c.l.b16 %v1974
        %v2007 = vunpack.c.l.b16 %v1975
        %v2008 = vunpack.c.l.b16 %v1976
        %v2009 = vunpack.c.l.b16 %v1977
        %v2010 = vunpack.c.l.b16 %v1978
        %v2011 = vunpack.c.l.b16 %v1979
        %v2012 = vunpack.c.l.b16 %v1980
        %v2013 = vunpack.c.l.b16 %v1981
        %v2014 = vunpack.c.l.b16 %v1982
        %v2015 = vunpack.c.l.b16 %v1983
        %v2016 = vunpack.c.l.b16 %v1984
        %v2017 = vunpack.c.l.b16 %v1985
        %v2018 = vunpack.c.l.b16 %v1986
        %v2019 = vunpack.c.l.b16 %v1987
        %v2020 = vunpack.c.l.b16 %v1988
        %v2021 = vpack.c.b16 %v2006, %v2005
        %v2022 = vpack.c.b16 %v2008, %v2007
        %v2023 = vpack.c.b16 %v2010, %v2009
        %v2024 = vpack.c.b16 %v2012, %v2011
        %v2025 = vpack.c.b16 %v2014, %v2013
        %v2026 = vpack.c.b16 %v2016, %v2015
        %v2027 = vpack.c.b16 %v2018, %v2017
        %v2028 = vpack.c.b16 %v2020, %v2019
        %2037 = vmatprep.subr.bf16.mxu0 0
        %2038 = vmatpush1.bf16.msra.mxu0 %v2028
        %2039 = vmatprep.subr.bf16.mxu0 0
        %2040 = vmatpush1.bf16.msra.mxu0 %v2027
        %2041 = vmatprep.subr.bf16.mxu0 0
        %2042 = vmatpush1.bf16.msra.mxu0 %v2026
        %2043 = vmatprep.subr.bf16.mxu0 0
        %2044 = vmatpush1.bf16.msra.mxu0 %v2025
        %2045 = vmatprep.subr.bf16.mxu0 0
        %2046 = vmatpush1.bf16.msra.mxu0 %v2024
        %2047 = vmatprep.subr.bf16.mxu0 0
        %2048 = vmatpush1.bf16.msra.mxu0 %v2023
        %2049 = vmatprep.subr.bf16.mxu0 0
        %2050 = vmatpush1.bf16.msra.mxu0 %v2022
        %2051 = vmatprep.subr.bf16.mxu0 0
        %2052 = vmatpush1.bf16.msra.mxu0 %v2021
        %2053 = vmatprep.subr.bf16.mxu0 0
        %2054 = vmatpush2.bf16.msra.mxu0 0
        %2055 = vmatprep.subr.bf16.mxu0 0
        %2056 = vmatpush2.bf16.msra.mxu0 0
        %2057 = vmatprep.subr.bf16.mxu0 0
        %2058 = vmatpush2.bf16.msra.mxu0 0
        %2059 = vmatprep.subr.bf16.mxu0 0
        %2060 = vmatpush2.bf16.msra.mxu0 0
        %2061 = vmatprep.subr.bf16.mxu0 0
        %2062 = vmatpush2.bf16.msra.mxu0 0
        %2063 = vmatprep.subr.bf16.mxu0 0
        %2064 = vmatpush2.bf16.msra.mxu0 0
        %2065 = vmatprep.subr.bf16.mxu0 0
        %2066 = vmatpush2.bf16.msra.mxu0 0
        %2067 = vmatprep.subr.bf16.mxu0 0
        %2068 = vmatpush2.bf16.msra.mxu0 0
        %2069 = vmatprep.mubr.bf16.mxu0 0
        %2070 = vmatmul.mubr.bf16.gmra.mxu0 %v1954
        %v2071 = vpop.f32.mrf.mxu0
        %v2072 = vadd.f32 0.0, %v2071
        %v2073 = vpop.f32.mrf.mxu0
        %v2074 = vpop.f32.mrf.mxu0
        %v2075 = vadd.f32 0.0, %v2074
        %v2076 = vpop.f32.mrf.mxu0
        %2077 = vmatprep.mubr.bf16.mxu0 0
        %2078 = vmatmul.mubr.bf16.gmra.mxu0 %v1955
        %v2079 = vpop.f32.mrf.mxu0
        %v2080 = vadd.f32 0.0, %v2079
        %v2081 = vpop.f32.mrf.mxu0
        %v2082 = vpop.f32.mrf.mxu0
        %v2083 = vadd.f32 0.0, %v2082
        %v2084 = vpop.f32.mrf.mxu0
        %2085 = vmatprep.mubr.bf16.mxu0 0
        %2086 = vmatmul.mubr.bf16.gmra.mxu0 %v1956
        %v2087 = vpop.f32.mrf.mxu0
        %v2088 = vadd.f32 0.0, %v2087
        %v2089 = vpop.f32.mrf.mxu0
        %v2090 = vpop.f32.mrf.mxu0
        %v2091 = vadd.f32 0.0, %v2090
        %v2092 = vpop.f32.mrf.mxu0
        %2093 = vmatprep.mubr.bf16.mxu0 0
        %2094 = vmatmul.mubr.bf16.gmra.mxu0 %v1957
        %v2095 = vpop.f32.mrf.mxu0
        %v2096 = vadd.f32 0.0, %v2095
        %v2097 = vpop.f32.mrf.mxu0
        %v2098 = vpop.f32.mrf.mxu0
        %v2099 = vadd.f32 0.0, %v2098
        %v2100 = vpop.f32.mrf.mxu0
        %2101 = vmatprep.mubr.bf16.mxu0 0
        %2102 = vmatmul.mubr.bf16.gmra.mxu0 %v1958
        %v2103 = vpop.f32.mrf.mxu0
        %v2104 = vadd.f32 0.0, %v2103
        %v2105 = vpop.f32.mrf.mxu0
        %v2106 = vpop.f32.mrf.mxu0
        %v2107 = vadd.f32 0.0, %v2106
        %v2108 = vpop.f32.mrf.mxu0
        %2109 = vmatprep.mubr.bf16.mxu0 0
        %2110 = vmatmul.mubr.bf16.gmra.mxu0 %v1959
        %v2111 = vpop.f32.mrf.mxu0
        %v2112 = vadd.f32 0.0, %v2111
        %v2113 = vpop.f32.mrf.mxu0
        %v2114 = vpop.f32.mrf.mxu0
        %v2115 = vadd.f32 0.0, %v2114
        %v2116 = vpop.f32.mrf.mxu0
        %2117 = vmatprep.mubr.bf16.mxu0 0
        %2118 = vmatmul.mubr.bf16.gmra.mxu0 %v1960
        %v2119 = vpop.f32.mrf.mxu0
        %v2120 = vadd.f32 0.0, %v2119
        %v2121 = vpop.f32.mrf.mxu0
        %v2122 = vpop.f32.mrf.mxu0
        %v2123 = vadd.f32 0.0, %v2122
        %v2124 = vpop.f32.mrf.mxu0
        %2125 = vmatprep.mubr.bf16.mxu0 0
        %2126 = vmatmul.mubr.bf16.gmra.mxu0 %v1961
        %v2127 = vpop.f32.mrf.mxu0
        %v2128 = vadd.f32 0.0, %v2127
        %v2129 = vpop.f32.mrf.mxu0
        %v2130 = vpop.f32.mrf.mxu0
        %v2131 = vadd.f32 0.0, %v2130
        %v2132 = vpop.f32.mrf.mxu0
        %2133 = vmatprep.mubr.bf16.mxu0 0
        %2134 = vmatmul.mubr.bf16.gmra.mxu0 %v1962
        %v2135 = vpop.f32.mrf.mxu0
        %v2136 = vadd.f32 0.0, %v2135
        %v2137 = vpop.f32.mrf.mxu0
        %v2138 = vpop.f32.mrf.mxu0
        %v2139 = vadd.f32 0.0, %v2138
        %v2140 = vpop.f32.mrf.mxu0
        %2141 = vmatprep.mubr.bf16.mxu0 0
        %2142 = vmatmul.mubr.bf16.gmra.mxu0 %v1963
        %v2143 = vpop.f32.mrf.mxu0
        %v2144 = vadd.f32 0.0, %v2143
        %v2145 = vpop.f32.mrf.mxu0
        %v2146 = vpop.f32.mrf.mxu0
        %v2147 = vadd.f32 0.0, %v2146
        %v2148 = vpop.f32.mrf.mxu0
        %2149 = vmatprep.mubr.bf16.mxu0 0
        %2150 = vmatmul.mubr.bf16.gmra.mxu0 %v1964
        %v2151 = vpop.f32.mrf.mxu0
        %v2152 = vadd.f32 0.0, %v2151
        %v2153 = vpop.f32.mrf.mxu0
        %v2154 = vpop.f32.mrf.mxu0
        %v2155 = vadd.f32 0.0, %v2154
        %v2156 = vpop.f32.mrf.mxu0
        %2157 = vmatprep.mubr.bf16.mxu0 0
        %2158 = vmatmul.mubr.bf16.gmra.mxu0 %v1965
        %v2159 = vpop.f32.mrf.mxu0
        %v2160 = vadd.f32 0.0, %v2159
        %v2161 = vpop.f32.mrf.mxu0
        %v2162 = vpop.f32.mrf.mxu0
        %v2163 = vadd.f32 0.0, %v2162
        %v2164 = vpop.f32.mrf.mxu0
        %2165 = vmatprep.mubr.bf16.mxu0 0
        %2166 = vmatmul.mubr.bf16.gmra.mxu0 %v1966
        %v2167 = vpop.f32.mrf.mxu0
        %v2168 = vadd.f32 0.0, %v2167
        %v2169 = vpop.f32.mrf.mxu0
        %v2170 = vpop.f32.mrf.mxu0
        %v2171 = vadd.f32 0.0, %v2170
        %v2172 = vpop.f32.mrf.mxu0
        %2173 = vmatprep.mubr.bf16.mxu0 0
        %2174 = vmatmul.mubr.bf16.gmra.mxu0 %v1967
        %v2175 = vpop.f32.mrf.mxu0
        %v2176 = vadd.f32 0.0, %v2175
        %v2177 = vpop.f32.mrf.mxu0
        %v2178 = vpop.f32.mrf.mxu0
        %v2179 = vadd.f32 0.0, %v2178
        %v2180 = vpop.f32.mrf.mxu0
        %2181 = vmatprep.mubr.bf16.mxu0 0
        %2182 = vmatmul.mubr.bf16.gmra.mxu0 %v1968
        %v2183 = vpop.f32.mrf.mxu0
        %v2184 = vadd.f32 0.0, %v2183
        %v2185 = vpop.f32.mrf.mxu0
        %v2186 = vpop.f32.mrf.mxu0
        %v2187 = vadd.f32 0.0, %v2186
        %v2188 = vpop.f32.mrf.mxu0
        %2189 = vmatprep.mubr.bf16.mxu0 0
        %2190 = vmatmul.mubr.bf16.gmra.mxu0 %v1969
        %v2191 = vpop.f32.mrf.mxu0
        %v2192 = vadd.f32 0.0, %v2191
        %v2193 = vpop.f32.mrf.mxu0
        %v2194 = vpop.f32.mrf.mxu0
        %v2195 = vadd.f32 0.0, %v2194
        %v2196 = vpop.f32.mrf.mxu0
        %2197 = vmatprep.mubr.bf16.mxu0 0
        %2198 = vmatmul.mubr.bf16.gmra.mxu0 %v1970
        %v2199 = vpop.f32.mrf.mxu0
        %v2200 = vadd.f32 0.0, %v2199
        %v2201 = vpop.f32.mrf.mxu0
        %v2202 = vpop.f32.mrf.mxu0
        %v2203 = vadd.f32 0.0, %v2202
        %v2204 = vpop.f32.mrf.mxu0
        %2205 = vmatprep.mubr.bf16.mxu0 0
        %2206 = vmatmul.mubr.bf16.gmra.mxu0 %v1971
        %v2207 = vpop.f32.mrf.mxu0
        %v2208 = vadd.f32 0.0, %v2207
        %v2209 = vpop.f32.mrf.mxu0
        %v2210 = vpop.f32.mrf.mxu0
        %v2211 = vadd.f32 0.0, %v2210
        %v2212 = vpop.f32.mrf.mxu0
        %2213 = vdwg.mxu0
        %v2214 = vadd.f32 %v1882, %v2072
        %v2215 = vadd.f32 %v1883, %v2075
        %v2216 = vadd.f32 %v1884, %v2080
        %v2217 = vadd.f32 %v1885, %v2083
        %v2218 = vadd.f32 %v1886, %v2088
        %v2219 = vadd.f32 %v1887, %v2091
        %v2220 = vadd.f32 %v1888, %v2096
        %v2221 = vadd.f32 %v1889, %v2099
        %v2222 = vadd.f32 %v1890, %v2104
        %v2223 = vadd.f32 %v1891, %v2107
        %v2224 = vadd.f32 %v1892, %v2112
        %v2225 = vadd.f32 %v1893, %v2115
        %v2226 = vadd.f32 %v1894, %v2120
        %v2227 = vadd.f32 %v1895, %v2123
        %v2228 = vadd.f32 %v1896, %v2128
        %v2229 = vadd.f32 %v1897, %v2131
        %v2230 = vadd.f32 %v1898, %v2136
        %v2231 = vadd.f32 %v1899, %v2139
        %v2232 = vadd.f32 %v1900, %v2144
        %v2233 = vadd.f32 %v1901, %v2147
        %v2234 = vadd.f32 %v1902, %v2152
        %v2235 = vadd.f32 %v1903, %v2155
        %v2236 = vadd.f32 %v1904, %v2160
        %v2237 = vadd.f32 %v1905, %v2163
        %v2238 = vadd.f32 %v1906, %v2168
        %v2239 = vadd.f32 %v1907, %v2171
        %v2240 = vadd.f32 %v1908, %v2176
        %v2241 = vadd.f32 %v1909, %v2179
        %v2242 = vadd.f32 %v1910, %v2184
        %v2243 = vadd.f32 %v1911, %v2187
        %v2244 = vadd.f32 %v1912, %v2192
        %v2245 = vadd.f32 %v1913, %v2195
        %v2246 = vadd.f32 %v1914, %v2200
        %v2247 = vadd.f32 %v1915, %v2203
        %v2248 = vadd.f32 %v1916, %v2208
        %v2249 = vadd.f32 %v1917, %v2211
        %v2250 = vld [vmem:[#allocation2 + $0x13] sm:$0xff]
        %v2251 = vld [vmem:[#allocation2 + $0x1b] sm:$0xff]
        %v2252 = vld [vmem:[#allocation2 + $0x23] sm:$0xff]
        %v2253 = vld [vmem:[#allocation2 + $0x2b] sm:$0xff]
        %v2254 = vld [vmem:[#allocation2 + $0x33] sm:$0xff]
        %v2255 = vld [vmem:[#allocation2 + $0x3b] sm:$0xff]
        %v2256 = vld [vmem:[#allocation2 + $0x43] sm:$0xff]
        %v2257 = vld [vmem:[#allocation2 + $0x4b] sm:$0xff]
        %v2258 = vld [vmem:[#allocation2 + $0x53] sm:$0xff]
        %v2259 = vld [vmem:[#allocation2 + $0x5b] sm:$0xff]
        %v2260 = vld [vmem:[#allocation2 + $0x63] sm:$0xff]
        %v2261 = vld [vmem:[#allocation2 + $0x6b] sm:$0xff]
        %v2262 = vld [vmem:[#allocation2 + $0x73] sm:$0xff]
        %v2263 = vld [vmem:[#allocation2 + $0x7b] sm:$0xff]
        %v2264 = vld [vmem:[#allocation2 + $0x83] sm:$0xff]
        %v2265 = vld [vmem:[#allocation2 + $0x8b] sm:$0xff]
        %v2266 = vld [vmem:[#allocation2 + $0x93] sm:$0xff]
        %v2267 = vld [vmem:[#allocation2 + $0x9b] sm:$0xff]
        %v2268 = vld [vmem:[#allocation2 + $0xa3] sm:$0xff]
        %v2269 = vld [vmem:[#allocation2 + $0xab] sm:$0xff]
        %v2270 = vld [vmem:[#allocation2 + $0xb3] sm:$0xff]
        %v2271 = vld [vmem:[#allocation2 + $0xbb] sm:$0xff]
        %v2272 = vld [vmem:[#allocation2 + $0xc3] sm:$0xff]
        %v2273 = vld [vmem:[#allocation2 + $0xcb] sm:$0xff]
        %v2274 = vld [vmem:[#allocation2 + $0xd3] sm:$0xff]
        %v2275 = vld [vmem:[#allocation2 + $0xdb] sm:$0xff]
        %v2276 = vld [vmem:[#allocation2 + $0xe3] sm:$0xff]
        %v2277 = vld [vmem:[#allocation2 + $0xeb] sm:$0xff]
        %v2278 = vld [vmem:[#allocation2 + $0xf3] sm:$0xff]
        %v2279 = vld [vmem:[#allocation2 + $0xfb] sm:$0xff]
        %v2280 = vld [vmem:[#allocation2 + $0x103] sm:$0xff]
        %v2281 = vld [vmem:[#allocation2 + $0x10b] sm:$0xff]
        %v2282 = vld [vmem:[#allocation2 + $0x113] sm:$0xff]
        %v2283 = vld [vmem:[#allocation2 + $0x11b] sm:$0xff]
        %v2284 = vld [vmem:[#allocation2 + $0x123] sm:$0xff]
        %v2285 = vld [vmem:[#allocation2 + $0x12b] sm:$0xff]
        %v2286 = vpack.c.bf16 %v2251, %v2250
        %v2287 = vpack.c.bf16 %v2253, %v2252
        %v2288 = vpack.c.bf16 %v2255, %v2254
        %v2289 = vpack.c.bf16 %v2257, %v2256
        %v2290 = vpack.c.bf16 %v2259, %v2258
        %v2291 = vpack.c.bf16 %v2261, %v2260
        %v2292 = vpack.c.bf16 %v2263, %v2262
        %v2293 = vpack.c.bf16 %v2265, %v2264
        %v2294 = vpack.c.bf16 %v2267, %v2266
        %v2295 = vpack.c.bf16 %v2269, %v2268
        %v2296 = vpack.c.bf16 %v2271, %v2270
        %v2297 = vpack.c.bf16 %v2273, %v2272
        %v2298 = vpack.c.bf16 %v2275, %v2274
        %v2299 = vpack.c.bf16 %v2277, %v2276
        %v2300 = vpack.c.bf16 %v2279, %v2278
        %v2301 = vpack.c.bf16 %v2281, %v2280
        %v2302 = vpack.c.bf16 %v2283, %v2282
        %v2303 = vpack.c.bf16 %v2285, %v2284
        %s2304 = scalar_lea.vmem %s1, 320
        %v2305 = vld [vmem:[%s2304] sm:$0xf]
        %v2306 = vld [vmem:[%s2304 + $0x4] sm:$0xf]
        %v2307 = vld [vmem:[%s2304 + $0x8] sm:$0xf]
        %v2308 = vld [vmem:[%s2304 + $0xc] sm:$0xf]
        %v2309 = vld [vmem:[%s2304 + $0x10] sm:$0xf]
        %v2310 = vld [vmem:[%s2304 + $0x14] sm:$0xf]
        %v2311 = vld [vmem:[%s2304 + $0x18] sm:$0xf]
        %v2312 = vld [vmem:[%s2304 + $0x1c] sm:$0xf]
        %v2313 = vld [vmem:[%s2304 + $0x20] sm:$0xf]
        %v2314 = vld [vmem:[%s2304 + $0x24] sm:$0xf]
        %v2315 = vld [vmem:[%s2304 + $0x28] sm:$0xf]
        %v2316 = vld [vmem:[%s2304 + $0x2c] sm:$0xf]
        %v2317 = vld [vmem:[%s2304 + $0x30] sm:$0xf]
        %v2318 = vld [vmem:[%s2304 + $0x34] sm:$0xf]
        %v2319 = vld [vmem:[%s2304 + $0x38] sm:$0xf]
        %v2320 = vld [vmem:[%s2304 + $0x3c] sm:$0xf]
        %v2337 = vunpack.c.l.b16 %v2305
        %v2338 = vunpack.c.l.b16 %v2306
        %v2339 = vunpack.c.l.b16 %v2307
        %v2340 = vunpack.c.l.b16 %v2308
        %v2341 = vunpack.c.l.b16 %v2309
        %v2342 = vunpack.c.l.b16 %v2310
        %v2343 = vunpack.c.l.b16 %v2311
        %v2344 = vunpack.c.l.b16 %v2312
        %v2345 = vunpack.c.l.b16 %v2313
        %v2346 = vunpack.c.l.b16 %v2314
        %v2347 = vunpack.c.l.b16 %v2315
        %v2348 = vunpack.c.l.b16 %v2316
        %v2349 = vunpack.c.l.b16 %v2317
        %v2350 = vunpack.c.l.b16 %v2318
        %v2351 = vunpack.c.l.b16 %v2319
        %v2352 = vunpack.c.l.b16 %v2320
        %v2353 = vpack.c.b16 %v2338, %v2337
        %v2354 = vpack.c.b16 %v2340, %v2339
        %v2355 = vpack.c.b16 %v2342, %v2341
        %v2356 = vpack.c.b16 %v2344, %v2343
        %v2357 = vpack.c.b16 %v2346, %v2345
        %v2358 = vpack.c.b16 %v2348, %v2347
        %v2359 = vpack.c.b16 %v2350, %v2349
        %v2360 = vpack.c.b16 %v2352, %v2351
        %2369 = vmatprep.subr.bf16.mxu0 0
        %2370 = vmatpush1.bf16.msra.mxu0 %v2360
        %2371 = vmatprep.subr.bf16.mxu0 0
        %2372 = vmatpush1.bf16.msra.mxu0 %v2359
        %2373 = vmatprep.subr.bf16.mxu0 0
        %2374 = vmatpush1.bf16.msra.mxu0 %v2358
        %2375 = vmatprep.subr.bf16.mxu0 0
        %2376 = vmatpush1.bf16.msra.mxu0 %v2357
        %2377 = vmatprep.subr.bf16.mxu0 0
        %2378 = vmatpush1.bf16.msra.mxu0 %v2356
        %2379 = vmatprep.subr.bf16.mxu0 0
        %2380 = vmatpush1.bf16.msra.mxu0 %v2355
        %2381 = vmatprep.subr.bf16.mxu0 0
        %2382 = vmatpush1.bf16.msra.mxu0 %v2354
        %2383 = vmatprep.subr.bf16.mxu0 0
        %2384 = vmatpush1.bf16.msra.mxu0 %v2353
        %2385 = vmatprep.subr.bf16.mxu0 0
        %2386 = vmatpush2.bf16.msra.mxu0 0
        %2387 = vmatprep.subr.bf16.mxu0 0
        %2388 = vmatpush2.bf16.msra.mxu0 0
        %2389 = vmatprep.subr.bf16.mxu0 0
        %2390 = vmatpush2.bf16.msra.mxu0 0
        %2391 = vmatprep.subr.bf16.mxu0 0
        %2392 = vmatpush2.bf16.msra.mxu0 0
        %2393 = vmatprep.subr.bf16.mxu0 0
        %2394 = vmatpush2.bf16.msra.mxu0 0
        %2395 = vmatprep.subr.bf16.mxu0 0
        %2396 = vmatpush2.bf16.msra.mxu0 0
        %2397 = vmatprep.subr.bf16.mxu0 0
        %2398 = vmatpush2.bf16.msra.mxu0 0
        %2399 = vmatprep.subr.bf16.mxu0 0
        %2400 = vmatpush2.bf16.msra.mxu0 0
        %2401 = vmatprep.mubr.bf16.mxu0 0
        %2402 = vmatmul.mubr.bf16.gmra.mxu0 %v2286
        %v2403 = vpop.f32.mrf.mxu0
        %v2404 = vadd.f32 0.0, %v2403
        %v2405 = vpop.f32.mrf.mxu0
        %v2406 = vpop.f32.mrf.mxu0
        %v2407 = vadd.f32 0.0, %v2406
        %v2408 = vpop.f32.mrf.mxu0
        %2409 = vmatprep.mubr.bf16.mxu0 0
        %2410 = vmatmul.mubr.bf16.gmra.mxu0 %v2287
        %v2411 = vpop.f32.mrf.mxu0
        %v2412 = vadd.f32 0.0, %v2411
        %v2413 = vpop.f32.mrf.mxu0
        %v2414 = vpop.f32.mrf.mxu0
        %v2415 = vadd.f32 0.0, %v2414
        %v2416 = vpop.f32.mrf.mxu0
        %2417 = vmatprep.mubr.bf16.mxu0 0
        %2418 = vmatmul.mubr.bf16.gmra.mxu0 %v2288
        %v2419 = vpop.f32.mrf.mxu0
        %v2420 = vadd.f32 0.0, %v2419
        %v2421 = vpop.f32.mrf.mxu0
        %v2422 = vpop.f32.mrf.mxu0
        %v2423 = vadd.f32 0.0, %v2422
        %v2424 = vpop.f32.mrf.mxu0
        %2425 = vmatprep.mubr.bf16.mxu0 0
        %2426 = vmatmul.mubr.bf16.gmra.mxu0 %v2289
        %v2427 = vpop.f32.mrf.mxu0
        %v2428 = vadd.f32 0.0, %v2427
        %v2429 = vpop.f32.mrf.mxu0
        %v2430 = vpop.f32.mrf.mxu0
        %v2431 = vadd.f32 0.0, %v2430
        %v2432 = vpop.f32.mrf.mxu0
        %2433 = vmatprep.mubr.bf16.mxu0 0
        %2434 = vmatmul.mubr.bf16.gmra.mxu0 %v2290
        %v2435 = vpop.f32.mrf.mxu0
        %v2436 = vadd.f32 0.0, %v2435
        %v2437 = vpop.f32.mrf.mxu0
        %v2438 = vpop.f32.mrf.mxu0
        %v2439 = vadd.f32 0.0, %v2438
        %v2440 = vpop.f32.mrf.mxu0
        %2441 = vmatprep.mubr.bf16.mxu0 0
        %2442 = vmatmul.mubr.bf16.gmra.mxu0 %v2291
        %v2443 = vpop.f32.mrf.mxu0
        %v2444 = vadd.f32 0.0, %v2443
        %v2445 = vpop.f32.mrf.mxu0
        %v2446 = vpop.f32.mrf.mxu0
        %v2447 = vadd.f32 0.0, %v2446
        %v2448 = vpop.f32.mrf.mxu0
        %2449 = vmatprep.mubr.bf16.mxu0 0
        %2450 = vmatmul.mubr.bf16.gmra.mxu0 %v2292
        %v2451 = vpop.f32.mrf.mxu0
        %v2452 = vadd.f32 0.0, %v2451
        %v2453 = vpop.f32.mrf.mxu0
        %v2454 = vpop.f32.mrf.mxu0
        %v2455 = vadd.f32 0.0, %v2454
        %v2456 = vpop.f32.mrf.mxu0
        %2457 = vmatprep.mubr.bf16.mxu0 0
        %2458 = vmatmul.mubr.bf16.gmra.mxu0 %v2293
        %v2459 = vpop.f32.mrf.mxu0
        %v2460 = vadd.f32 0.0, %v2459
        %v2461 = vpop.f32.mrf.mxu0
        %v2462 = vpop.f32.mrf.mxu0
        %v2463 = vadd.f32 0.0, %v2462
        %v2464 = vpop.f32.mrf.mxu0
        %2465 = vmatprep.mubr.bf16.mxu0 0
        %2466 = vmatmul.mubr.bf16.gmra.mxu0 %v2294
        %v2467 = vpop.f32.mrf.mxu0
        %v2468 = vadd.f32 0.0, %v2467
        %v2469 = vpop.f32.mrf.mxu0
        %v2470 = vpop.f32.mrf.mxu0
        %v2471 = vadd.f32 0.0, %v2470
        %v2472 = vpop.f32.mrf.mxu0
        %2473 = vmatprep.mubr.bf16.mxu0 0
        %2474 = vmatmul.mubr.bf16.gmra.mxu0 %v2295
        %v2475 = vpop.f32.mrf.mxu0
        %v2476 = vadd.f32 0.0, %v2475
        %v2477 = vpop.f32.mrf.mxu0
        %v2478 = vpop.f32.mrf.mxu0
        %v2479 = vadd.f32 0.0, %v2478
        %v2480 = vpop.f32.mrf.mxu0
        %2481 = vmatprep.mubr.bf16.mxu0 0
        %2482 = vmatmul.mubr.bf16.gmra.mxu0 %v2296
        %v2483 = vpop.f32.mrf.mxu0
        %v2484 = vadd.f32 0.0, %v2483
        %v2485 = vpop.f32.mrf.mxu0
        %v2486 = vpop.f32.mrf.mxu0
        %v2487 = vadd.f32 0.0, %v2486
        %v2488 = vpop.f32.mrf.mxu0
        %2489 = vmatprep.mubr.bf16.mxu0 0
        %2490 = vmatmul.mubr.bf16.gmra.mxu0 %v2297
        %v2491 = vpop.f32.mrf.mxu0
        %v2492 = vadd.f32 0.0, %v2491
        %v2493 = vpop.f32.mrf.mxu0
        %v2494 = vpop.f32.mrf.mxu0
        %v2495 = vadd.f32 0.0, %v2494
        %v2496 = vpop.f32.mrf.mxu0
        %2497 = vmatprep.mubr.bf16.mxu0 0
        %2498 = vmatmul.mubr.bf16.gmra.mxu0 %v2298
        %v2499 = vpop.f32.mrf.mxu0
        %v2500 = vadd.f32 0.0, %v2499
        %v2501 = vpop.f32.mrf.mxu0
        %v2502 = vpop.f32.mrf.mxu0
        %v2503 = vadd.f32 0.0, %v2502
        %v2504 = vpop.f32.mrf.mxu0
        %2505 = vmatprep.mubr.bf16.mxu0 0
        %2506 = vmatmul.mubr.bf16.gmra.mxu0 %v2299
        %v2507 = vpop.f32.mrf.mxu0
        %v2508 = vadd.f32 0.0, %v2507
        %v2509 = vpop.f32.mrf.mxu0
        %v2510 = vpop.f32.mrf.mxu0
        %v2511 = vadd.f32 0.0, %v2510
        %v2512 = vpop.f32.mrf.mxu0
        %2513 = vmatprep.mubr.bf16.mxu0 0
        %2514 = vmatmul.mubr.bf16.gmra.mxu0 %v2300
        %v2515 = vpop.f32.mrf.mxu0
        %v2516 = vadd.f32 0.0, %v2515
        %v2517 = vpop.f32.mrf.mxu0
        %v2518 = vpop.f32.mrf.mxu0
        %v2519 = vadd.f32 0.0, %v2518
        %v2520 = vpop.f32.mrf.mxu0
        %2521 = vmatprep.mubr.bf16.mxu0 0
        %2522 = vmatmul.mubr.bf16.gmra.mxu0 %v2301
        %v2523 = vpop.f32.mrf.mxu0
        %v2524 = vadd.f32 0.0, %v2523
        %v2525 = vpop.f32.mrf.mxu0
        %v2526 = vpop.f32.mrf.mxu0
        %v2527 = vadd.f32 0.0, %v2526
        %v2528 = vpop.f32.mrf.mxu0
        %2529 = vmatprep.mubr.bf16.mxu0 0
        %2530 = vmatmul.mubr.bf16.gmra.mxu0 %v2302
        %v2531 = vpop.f32.mrf.mxu0
        %v2532 = vadd.f32 0.0, %v2531
        %v2533 = vpop.f32.mrf.mxu0
        %v2534 = vpop.f32.mrf.mxu0
        %v2535 = vadd.f32 0.0, %v2534
        %v2536 = vpop.f32.mrf.mxu0
        %2537 = vmatprep.mubr.bf16.mxu0 0
        %2538 = vmatmul.mubr.bf16.gmra.mxu0 %v2303
        %v2539 = vpop.f32.mrf.mxu0
        %v2540 = vadd.f32 0.0, %v2539
        %v2541 = vpop.f32.mrf.mxu0
        %v2542 = vpop.f32.mrf.mxu0
        %v2543 = vadd.f32 0.0, %v2542
        %v2544 = vpop.f32.mrf.mxu0
        %2545 = vdwg.mxu0
        %v2546 = vadd.f32 %v2214, %v2404
        %v2547 = vadd.f32 %v2215, %v2407
        %v2548 = vadd.f32 %v2216, %v2412
        %v2549 = vadd.f32 %v2217, %v2415
        %v2550 = vadd.f32 %v2218, %v2420
        %v2551 = vadd.f32 %v2219, %v2423
        %v2552 = vadd.f32 %v2220, %v2428
        %v2553 = vadd.f32 %v2221, %v2431
        %v2554 = vadd.f32 %v2222, %v2436
        %v2555 = vadd.f32 %v2223, %v2439
        %v2556 = vadd.f32 %v2224, %v2444
        %v2557 = vadd.f32 %v2225, %v2447
        %v2558 = vadd.f32 %v2226, %v2452
        %v2559 = vadd.f32 %v2227, %v2455
        %v2560 = vadd.f32 %v2228, %v2460
        %v2561 = vadd.f32 %v2229, %v2463
        %v2562 = vadd.f32 %v2230, %v2468
        %v2563 = vadd.f32 %v2231, %v2471
        %v2564 = vadd.f32 %v2232, %v2476
        %v2565 = vadd.f32 %v2233, %v2479
        %v2566 = vadd.f32 %v2234, %v2484
        %v2567 = vadd.f32 %v2235, %v2487
        %v2568 = vadd.f32 %v2236, %v2492
        %v2569 = vadd.f32 %v2237, %v2495
        %v2570 = vadd.f32 %v2238, %v2500
        %v2571 = vadd.f32 %v2239, %v2503
        %v2572 = vadd.f32 %v2240, %v2508
        %v2573 = vadd.f32 %v2241, %v2511
        %v2574 = vadd.f32 %v2242, %v2516
        %v2575 = vadd.f32 %v2243, %v2519
        %v2576 = vadd.f32 %v2244, %v2524
        %v2577 = vadd.f32 %v2245, %v2527
        %v2578 = vadd.f32 %v2246, %v2532
        %v2579 = vadd.f32 %v2247, %v2535
        %v2580 = vadd.f32 %v2248, %v2540
        %v2581 = vadd.f32 %v2249, %v2543
        %v2582 = vld [vmem:[#allocation2 + $0x14] sm:$0xff]
        %v2583 = vld [vmem:[#allocation2 + $0x1c] sm:$0xff]
        %v2584 = vld [vmem:[#allocation2 + $0x24] sm:$0xff]
        %v2585 = vld [vmem:[#allocation2 + $0x2c] sm:$0xff]
        %v2586 = vld [vmem:[#allocation2 + $0x34] sm:$0xff]
        %v2587 = vld [vmem:[#allocation2 + $0x3c] sm:$0xff]
        %v2588 = vld [vmem:[#allocation2 + $0x44] sm:$0xff]
        %v2589 = vld [vmem:[#allocation2 + $0x4c] sm:$0xff]
        %v2590 = vld [vmem:[#allocation2 + $0x54] sm:$0xff]
        %v2591 = vld [vmem:[#allocation2 + $0x5c] sm:$0xff]
        %v2592 = vld [vmem:[#allocation2 + $0x64] sm:$0xff]
        %v2593 = vld [vmem:[#allocation2 + $0x6c] sm:$0xff]
        %v2594 = vld [vmem:[#allocation2 + $0x74] sm:$0xff]
        %v2595 = vld [vmem:[#allocation2 + $0x7c] sm:$0xff]
        %v2596 = vld [vmem:[#allocation2 + $0x84] sm:$0xff]
        %v2597 = vld [vmem:[#allocation2 + $0x8c] sm:$0xff]
        %v2598 = vld [vmem:[#allocation2 + $0x94] sm:$0xff]
        %v2599 = vld [vmem:[#allocation2 + $0x9c] sm:$0xff]
        %v2600 = vld [vmem:[#allocation2 + $0xa4] sm:$0xff]
        %v2601 = vld [vmem:[#allocation2 + $0xac] sm:$0xff]
        %v2602 = vld [vmem:[#allocation2 + $0xb4] sm:$0xff]
        %v2603 = vld [vmem:[#allocation2 + $0xbc] sm:$0xff]
        %v2604 = vld [vmem:[#allocation2 + $0xc4] sm:$0xff]
        %v2605 = vld [vmem:[#allocation2 + $0xcc] sm:$0xff]
        %v2606 = vld [vmem:[#allocation2 + $0xd4] sm:$0xff]
        %v2607 = vld [vmem:[#allocation2 + $0xdc] sm:$0xff]
        %v2608 = vld [vmem:[#allocation2 + $0xe4] sm:$0xff]
        %v2609 = vld [vmem:[#allocation2 + $0xec] sm:$0xff]
        %v2610 = vld [vmem:[#allocation2 + $0xf4] sm:$0xff]
        %v2611 = vld [vmem:[#allocation2 + $0xfc] sm:$0xff]
        %v2612 = vld [vmem:[#allocation2 + $0x104] sm:$0xff]
        %v2613 = vld [vmem:[#allocation2 + $0x10c] sm:$0xff]
        %v2614 = vld [vmem:[#allocation2 + $0x114] sm:$0xff]
        %v2615 = vld [vmem:[#allocation2 + $0x11c] sm:$0xff]
        %v2616 = vld [vmem:[#allocation2 + $0x124] sm:$0xff]
        %v2617 = vld [vmem:[#allocation2 + $0x12c] sm:$0xff]
        %v2618 = vpack.c.bf16 %v2583, %v2582
        %v2619 = vpack.c.bf16 %v2585, %v2584
        %v2620 = vpack.c.bf16 %v2587, %v2586
        %v2621 = vpack.c.bf16 %v2589, %v2588
        %v2622 = vpack.c.bf16 %v2591, %v2590
        %v2623 = vpack.c.bf16 %v2593, %v2592
        %v2624 = vpack.c.bf16 %v2595, %v2594
        %v2625 = vpack.c.bf16 %v2597, %v2596
        %v2626 = vpack.c.bf16 %v2599, %v2598
        %v2627 = vpack.c.bf16 %v2601, %v2600
        %v2628 = vpack.c.bf16 %v2603, %v2602
        %v2629 = vpack.c.bf16 %v2605, %v2604
        %v2630 = vpack.c.bf16 %v2607, %v2606
        %v2631 = vpack.c.bf16 %v2609, %v2608
        %v2632 = vpack.c.bf16 %v2611, %v2610
        %v2633 = vpack.c.bf16 %v2613, %v2612
        %v2634 = vpack.c.bf16 %v2615, %v2614
        %v2635 = vpack.c.bf16 %v2617, %v2616
        %s2636 = scalar_lea.vmem %s1, 384
        %v2637 = vld [vmem:[%s2636] sm:$0xf]
        %v2638 = vld [vmem:[%s2636 + $0x4] sm:$0xf]
        %v2639 = vld [vmem:[%s2636 + $0x8] sm:$0xf]
        %v2640 = vld [vmem:[%s2636 + $0xc] sm:$0xf]
        %v2641 = vld [vmem:[%s2636 + $0x10] sm:$0xf]
        %v2642 = vld [vmem:[%s2636 + $0x14] sm:$0xf]
        %v2643 = vld [vmem:[%s2636 + $0x18] sm:$0xf]
        %v2644 = vld [vmem:[%s2636 + $0x1c] sm:$0xf]
        %v2645 = vld [vmem:[%s2636 + $0x20] sm:$0xf]
        %v2646 = vld [vmem:[%s2636 + $0x24] sm:$0xf]
        %v2647 = vld [vmem:[%s2636 + $0x28] sm:$0xf]
        %v2648 = vld [vmem:[%s2636 + $0x2c] sm:$0xf]
        %v2649 = vld [vmem:[%s2636 + $0x30] sm:$0xf]
        %v2650 = vld [vmem:[%s2636 + $0x34] sm:$0xf]
        %v2651 = vld [vmem:[%s2636 + $0x38] sm:$0xf]
        %v2652 = vld [vmem:[%s2636 + $0x3c] sm:$0xf]
        %v2669 = vunpack.c.l.b16 %v2637
        %v2670 = vunpack.c.l.b16 %v2638
        %v2671 = vunpack.c.l.b16 %v2639
        %v2672 = vunpack.c.l.b16 %v2640
        %v2673 = vunpack.c.l.b16 %v2641
        %v2674 = vunpack.c.l.b16 %v2642
        %v2675 = vunpack.c.l.b16 %v2643
        %v2676 = vunpack.c.l.b16 %v2644
        %v2677 = vunpack.c.l.b16 %v2645
        %v2678 = vunpack.c.l.b16 %v2646
        %v2679 = vunpack.c.l.b16 %v2647
        %v2680 = vunpack.c.l.b16 %v2648
        %v2681 = vunpack.c.l.b16 %v2649
        %v2682 = vunpack.c.l.b16 %v2650
        %v2683 = vunpack.c.l.b16 %v2651
        %v2684 = vunpack.c.l.b16 %v2652
        %v2685 = vpack.c.b16 %v2670, %v2669
        %v2686 = vpack.c.b16 %v2672, %v2671
        %v2687 = vpack.c.b16 %v2674, %v2673
        %v2688 = vpack.c.b16 %v2676, %v2675
        %v2689 = vpack.c.b16 %v2678, %v2677
        %v2690 = vpack.c.b16 %v2680, %v2679
        %v2691 = vpack.c.b16 %v2682, %v2681
        %v2692 = vpack.c.b16 %v2684, %v2683
        %2701 = vmatprep.subr.bf16.mxu0 0
        %2702 = vmatpush1.bf16.msra.mxu0 %v2692
        %2703 = vmatprep.subr.bf16.mxu0 0
        %2704 = vmatpush1.bf16.msra.mxu0 %v2691
        %2705 = vmatprep.subr.bf16.mxu0 0
        %2706 = vmatpush1.bf16.msra.mxu0 %v2690
        %2707 = vmatprep.subr.bf16.mxu0 0
        %2708 = vmatpush1.bf16.msra.mxu0 %v2689
        %2709 = vmatprep.subr.bf16.mxu0 0
        %2710 = vmatpush1.bf16.msra.mxu0 %v2688
        %2711 = vmatprep.subr.bf16.mxu0 0
        %2712 = vmatpush1.bf16.msra.mxu0 %v2687
        %2713 = vmatprep.subr.bf16.mxu0 0
        %2714 = vmatpush1.bf16.msra.mxu0 %v2686
        %2715 = vmatprep.subr.bf16.mxu0 0
        %2716 = vmatpush1.bf16.msra.mxu0 %v2685
        %2717 = vmatprep.subr.bf16.mxu0 0
        %2718 = vmatpush2.bf16.msra.mxu0 0
        %2719 = vmatprep.subr.bf16.mxu0 0
        %2720 = vmatpush2.bf16.msra.mxu0 0
        %2721 = vmatprep.subr.bf16.mxu0 0
        %2722 = vmatpush2.bf16.msra.mxu0 0
        %2723 = vmatprep.subr.bf16.mxu0 0
        %2724 = vmatpush2.bf16.msra.mxu0 0
        %2725 = vmatprep.subr.bf16.mxu0 0
        %2726 = vmatpush2.bf16.msra.mxu0 0
        %2727 = vmatprep.subr.bf16.mxu0 0
        %2728 = vmatpush2.bf16.msra.mxu0 0
        %2729 = vmatprep.subr.bf16.mxu0 0
        %2730 = vmatpush2.bf16.msra.mxu0 0
        %2731 = vmatprep.subr.bf16.mxu0 0
        %2732 = vmatpush2.bf16.msra.mxu0 0
        %2733 = vmatprep.mubr.bf16.mxu0 0
        %2734 = vmatmul.mubr.bf16.gmra.mxu0 %v2618
        %v2735 = vpop.f32.mrf.mxu0
        %v2736 = vadd.f32 0.0, %v2735
        %v2737 = vpop.f32.mrf.mxu0
        %v2738 = vpop.f32.mrf.mxu0
        %v2739 = vadd.f32 0.0, %v2738
        %v2740 = vpop.f32.mrf.mxu0
        %2741 = vmatprep.mubr.bf16.mxu0 0
        %2742 = vmatmul.mubr.bf16.gmra.mxu0 %v2619
        %v2743 = vpop.f32.mrf.mxu0
        %v2744 = vadd.f32 0.0, %v2743
        %v2745 = vpop.f32.mrf.mxu0
        %v2746 = vpop.f32.mrf.mxu0
        %v2747 = vadd.f32 0.0, %v2746
        %v2748 = vpop.f32.mrf.mxu0
        %2749 = vmatprep.mubr.bf16.mxu0 0
        %2750 = vmatmul.mubr.bf16.gmra.mxu0 %v2620
        %v2751 = vpop.f32.mrf.mxu0
        %v2752 = vadd.f32 0.0, %v2751
        %v2753 = vpop.f32.mrf.mxu0
        %v2754 = vpop.f32.mrf.mxu0
        %v2755 = vadd.f32 0.0, %v2754
        %v2756 = vpop.f32.mrf.mxu0
        %2757 = vmatprep.mubr.bf16.mxu0 0
        %2758 = vmatmul.mubr.bf16.gmra.mxu0 %v2621
        %v2759 = vpop.f32.mrf.mxu0
        %v2760 = vadd.f32 0.0, %v2759
        %v2761 = vpop.f32.mrf.mxu0
        %v2762 = vpop.f32.mrf.mxu0
        %v2763 = vadd.f32 0.0, %v2762
        %v2764 = vpop.f32.mrf.mxu0
        %2765 = vmatprep.mubr.bf16.mxu0 0
        %2766 = vmatmul.mubr.bf16.gmra.mxu0 %v2622
        %v2767 = vpop.f32.mrf.mxu0
        %v2768 = vadd.f32 0.0, %v2767
        %v2769 = vpop.f32.mrf.mxu0
        %v2770 = vpop.f32.mrf.mxu0
        %v2771 = vadd.f32 0.0, %v2770
        %v2772 = vpop.f32.mrf.mxu0
        %2773 = vmatprep.mubr.bf16.mxu0 0
        %2774 = vmatmul.mubr.bf16.gmra.mxu0 %v2623
        %v2775 = vpop.f32.mrf.mxu0
        %v2776 = vadd.f32 0.0, %v2775
        %v2777 = vpop.f32.mrf.mxu0
        %v2778 = vpop.f32.mrf.mxu0
        %v2779 = vadd.f32 0.0, %v2778
        %v2780 = vpop.f32.mrf.mxu0
        %2781 = vmatprep.mubr.bf16.mxu0 0
        %2782 = vmatmul.mubr.bf16.gmra.mxu0 %v2624
        %v2783 = vpop.f32.mrf.mxu0
        %v2784 = vadd.f32 0.0, %v2783
        %v2785 = vpop.f32.mrf.mxu0
        %v2786 = vpop.f32.mrf.mxu0
        %v2787 = vadd.f32 0.0, %v2786
        %v2788 = vpop.f32.mrf.mxu0
        %2789 = vmatprep.mubr.bf16.mxu0 0
        %2790 = vmatmul.mubr.bf16.gmra.mxu0 %v2625
        %v2791 = vpop.f32.mrf.mxu0
        %v2792 = vadd.f32 0.0, %v2791
        %v2793 = vpop.f32.mrf.mxu0
        %v2794 = vpop.f32.mrf.mxu0
        %v2795 = vadd.f32 0.0, %v2794
        %v2796 = vpop.f32.mrf.mxu0
        %2797 = vmatprep.mubr.bf16.mxu0 0
        %2798 = vmatmul.mubr.bf16.gmra.mxu0 %v2626
        %v2799 = vpop.f32.mrf.mxu0
        %v2800 = vadd.f32 0.0, %v2799
        %v2801 = vpop.f32.mrf.mxu0
        %v2802 = vpop.f32.mrf.mxu0
        %v2803 = vadd.f32 0.0, %v2802
        %v2804 = vpop.f32.mrf.mxu0
        %2805 = vmatprep.mubr.bf16.mxu0 0
        %2806 = vmatmul.mubr.bf16.gmra.mxu0 %v2627
        %v2807 = vpop.f32.mrf.mxu0
        %v2808 = vadd.f32 0.0, %v2807
        %v2809 = vpop.f32.mrf.mxu0
        %v2810 = vpop.f32.mrf.mxu0
        %v2811 = vadd.f32 0.0, %v2810
        %v2812 = vpop.f32.mrf.mxu0
        %2813 = vmatprep.mubr.bf16.mxu0 0
        %2814 = vmatmul.mubr.bf16.gmra.mxu0 %v2628
        %v2815 = vpop.f32.mrf.mxu0
        %v2816 = vadd.f32 0.0, %v2815
        %v2817 = vpop.f32.mrf.mxu0
        %v2818 = vpop.f32.mrf.mxu0
        %v2819 = vadd.f32 0.0, %v2818
        %v2820 = vpop.f32.mrf.mxu0
        %2821 = vmatprep.mubr.bf16.mxu0 0
        %2822 = vmatmul.mubr.bf16.gmra.mxu0 %v2629
        %v2823 = vpop.f32.mrf.mxu0
        %v2824 = vadd.f32 0.0, %v2823
        %v2825 = vpop.f32.mrf.mxu0
        %v2826 = vpop.f32.mrf.mxu0
        %v2827 = vadd.f32 0.0, %v2826
        %v2828 = vpop.f32.mrf.mxu0
        %2829 = vmatprep.mubr.bf16.mxu0 0
        %2830 = vmatmul.mubr.bf16.gmra.mxu0 %v2630
        %v2831 = vpop.f32.mrf.mxu0
        %v2832 = vadd.f32 0.0, %v2831
        %v2833 = vpop.f32.mrf.mxu0
        %v2834 = vpop.f32.mrf.mxu0
        %v2835 = vadd.f32 0.0, %v2834
        %v2836 = vpop.f32.mrf.mxu0
        %2837 = vmatprep.mubr.bf16.mxu0 0
        %2838 = vmatmul.mubr.bf16.gmra.mxu0 %v2631
        %v2839 = vpop.f32.mrf.mxu0
        %v2840 = vadd.f32 0.0, %v2839
        %v2841 = vpop.f32.mrf.mxu0
        %v2842 = vpop.f32.mrf.mxu0
        %v2843 = vadd.f32 0.0, %v2842
        %v2844 = vpop.f32.mrf.mxu0
        %2845 = vmatprep.mubr.bf16.mxu0 0
        %2846 = vmatmul.mubr.bf16.gmra.mxu0 %v2632
        %v2847 = vpop.f32.mrf.mxu0
        %v2848 = vadd.f32 0.0, %v2847
        %v2849 = vpop.f32.mrf.mxu0
        %v2850 = vpop.f32.mrf.mxu0
        %v2851 = vadd.f32 0.0, %v2850
        %v2852 = vpop.f32.mrf.mxu0
        %2853 = vmatprep.mubr.bf16.mxu0 0
        %2854 = vmatmul.mubr.bf16.gmra.mxu0 %v2633
        %v2855 = vpop.f32.mrf.mxu0
        %v2856 = vadd.f32 0.0, %v2855
        %v2857 = vpop.f32.mrf.mxu0
        %v2858 = vpop.f32.mrf.mxu0
        %v2859 = vadd.f32 0.0, %v2858
        %v2860 = vpop.f32.mrf.mxu0
        %2861 = vmatprep.mubr.bf16.mxu0 0
        %2862 = vmatmul.mubr.bf16.gmra.mxu0 %v2634
        %v2863 = vpop.f32.mrf.mxu0
        %v2864 = vadd.f32 0.0, %v2863
        %v2865 = vpop.f32.mrf.mxu0
        %v2866 = vpop.f32.mrf.mxu0
        %v2867 = vadd.f32 0.0, %v2866
        %v2868 = vpop.f32.mrf.mxu0
        %2869 = vmatprep.mubr.bf16.mxu0 0
        %2870 = vmatmul.mubr.bf16.gmra.mxu0 %v2635
        %v2871 = vpop.f32.mrf.mxu0
        %v2872 = vadd.f32 0.0, %v2871
        %v2873 = vpop.f32.mrf.mxu0
        %v2874 = vpop.f32.mrf.mxu0
        %v2875 = vadd.f32 0.0, %v2874
        %v2876 = vpop.f32.mrf.mxu0
        %2877 = vdwg.mxu0
        %v2878 = vadd.f32 %v2546, %v2736
        %v2879 = vadd.f32 %v2547, %v2739
        %v2880 = vadd.f32 %v2548, %v2744
        %v2881 = vadd.f32 %v2549, %v2747
        %v2882 = vadd.f32 %v2550, %v2752
        %v2883 = vadd.f32 %v2551, %v2755
        %v2884 = vadd.f32 %v2552, %v2760
        %v2885 = vadd.f32 %v2553, %v2763
        %v2886 = vadd.f32 %v2554, %v2768
        %v2887 = vadd.f32 %v2555, %v2771
        %v2888 = vadd.f32 %v2556, %v2776
        %v2889 = vadd.f32 %v2557, %v2779
        %v2890 = vadd.f32 %v2558, %v2784
        %v2891 = vadd.f32 %v2559, %v2787
        %v2892 = vadd.f32 %v2560, %v2792
        %v2893 = vadd.f32 %v2561, %v2795
        %v2894 = vadd.f32 %v2562, %v2800
        %v2895 = vadd.f32 %v2563, %v2803
        %v2896 = vadd.f32 %v2564, %v2808
        %v2897 = vadd.f32 %v2565, %v2811
        %v2898 = vadd.f32 %v2566, %v2816
        %v2899 = vadd.f32 %v2567, %v2819
        %v2900 = vadd.f32 %v2568, %v2824
        %v2901 = vadd.f32 %v2569, %v2827
        %v2902 = vadd.f32 %v2570, %v2832
        %v2903 = vadd.f32 %v2571, %v2835
        %v2904 = vadd.f32 %v2572, %v2840
        %v2905 = vadd.f32 %v2573, %v2843
        %v2906 = vadd.f32 %v2574, %v2848
        %v2907 = vadd.f32 %v2575, %v2851
        %v2908 = vadd.f32 %v2576, %v2856
        %v2909 = vadd.f32 %v2577, %v2859
        %v2910 = vadd.f32 %v2578, %v2864
        %v2911 = vadd.f32 %v2579, %v2867
        %v2912 = vadd.f32 %v2580, %v2872
        %v2913 = vadd.f32 %v2581, %v2875
        %v2914 = vld [vmem:[#allocation2 + $0x24] sm:$0xff]
        %v2915 = vld [vmem:[#allocation2 + $0x2c] sm:$0xff]
        %v2916 = vld [vmem:[#allocation2 + $0x34] sm:$0xff]
        %v2917 = vld [vmem:[#allocation2 + $0x3c] sm:$0xff]
        %v2918 = vld [vmem:[#allocation2 + $0x44] sm:$0xff]
        %v2919 = vld [vmem:[#allocation2 + $0x4c] sm:$0xff]
        %v2920 = vld [vmem:[#allocation2 + $0x54] sm:$0xff]
        %v2921 = vld [vmem:[#allocation2 + $0x5c] sm:$0xff]
        %v2922 = vld [vmem:[#allocation2 + $0x64] sm:$0xff]
        %v2923 = vld [vmem:[#allocation2 + $0x6c] sm:$0xff]
        %v2924 = vld [vmem:[#allocation2 + $0x74] sm:$0xff]
        %v2925 = vld [vmem:[#allocation2 + $0x7c] sm:$0xff]
        %v2926 = vld [vmem:[#allocation2 + $0x84] sm:$0xff]
        %v2927 = vld [vmem:[#allocation2 + $0x8c] sm:$0xff]
        %v2928 = vld [vmem:[#allocation2 + $0x94] sm:$0xff]
        %v2929 = vld [vmem:[#allocation2 + $0x9c] sm:$0xff]
        %v2930 = vld [vmem:[#allocation2 + $0xa4] sm:$0xff]
        %v2931 = vld [vmem:[#allocation2 + $0xac] sm:$0xff]
        %v2932 = vld [vmem:[#allocation2 + $0xb4] sm:$0xff]
        %v2933 = vld [vmem:[#allocation2 + $0xbc] sm:$0xff]
        %v2934 = vld [vmem:[#allocation2 + $0xc4] sm:$0xff]
        %v2935 = vld [vmem:[#allocation2 + $0xcc] sm:$0xff]
        %v2936 = vld [vmem:[#allocation2 + $0xd4] sm:$0xff]
        %v2937 = vld [vmem:[#allocation2 + $0xdc] sm:$0xff]
        %v2938 = vld [vmem:[#allocation2 + $0xe4] sm:$0xff]
        %v2939 = vld [vmem:[#allocation2 + $0xec] sm:$0xff]
        %v2940 = vld [vmem:[#allocation2 + $0xf4] sm:$0xff]
        %v2941 = vld [vmem:[#allocation2 + $0xfc] sm:$0xff]
        %v2942 = vld [vmem:[#allocation2 + $0x104] sm:$0xff]
        %v2943 = vld [vmem:[#allocation2 + $0x10c] sm:$0xff]
        %v2944 = vld [vmem:[#allocation2 + $0x114] sm:$0xff]
        %v2945 = vld [vmem:[#allocation2 + $0x11c] sm:$0xff]
        %v2946 = vld [vmem:[#allocation2 + $0x124] sm:$0xff]
        %v2947 = vld [vmem:[#allocation2 + $0x12c] sm:$0xff]
        %v2948 = vld [vmem:[#allocation2 + $0x134] sm:$0xff]
        %v2949 = vld [vmem:[#allocation2 + $0x13c] sm:$0xff]
        %v2950 = vpack.c.bf16 %v2915, %v2914
        %v2951 = vpack.c.bf16 %v2917, %v2916
        %v2952 = vpack.c.bf16 %v2919, %v2918
        %v2953 = vpack.c.bf16 %v2921, %v2920
        %v2954 = vpack.c.bf16 %v2923, %v2922
        %v2955 = vpack.c.bf16 %v2925, %v2924
        %v2956 = vpack.c.bf16 %v2927, %v2926
        %v2957 = vpack.c.bf16 %v2929, %v2928
        %v2958 = vpack.c.bf16 %v2931, %v2930
        %v2959 = vpack.c.bf16 %v2933, %v2932
        %v2960 = vpack.c.bf16 %v2935, %v2934
        %v2961 = vpack.c.bf16 %v2937, %v2936
        %v2962 = vpack.c.bf16 %v2939, %v2938
        %v2963 = vpack.c.bf16 %v2941, %v2940
        %v2964 = vpack.c.bf16 %v2943, %v2942
        %v2965 = vpack.c.bf16 %v2945, %v2944
        %v2966 = vpack.c.bf16 %v2947, %v2946
        %v2967 = vpack.c.bf16 %v2949, %v2948
        %s2968 = scalar_lea.vmem %s1, 448
        %v2969 = vld [vmem:[%s2968] sm:$0xf]
        %v2970 = vld [vmem:[%s2968 + $0x4] sm:$0xf]
        %v2971 = vld [vmem:[%s2968 + $0x8] sm:$0xf]
        %v2972 = vld [vmem:[%s2968 + $0xc] sm:$0xf]
        %v2973 = vld [vmem:[%s2968 + $0x10] sm:$0xf]
        %v2974 = vld [vmem:[%s2968 + $0x14] sm:$0xf]
        %v2975 = vld [vmem:[%s2968 + $0x18] sm:$0xf]
        %v2976 = vld [vmem:[%s2968 + $0x1c] sm:$0xf]
        %v2977 = vld [vmem:[%s2968 + $0x20] sm:$0xf]
        %v2978 = vld [vmem:[%s2968 + $0x24] sm:$0xf]
        %v2979 = vld [vmem:[%s2968 + $0x28] sm:$0xf]
        %v2980 = vld [vmem:[%s2968 + $0x2c] sm:$0xf]
        %v2981 = vld [vmem:[%s2968 + $0x30] sm:$0xf]
        %v2982 = vld [vmem:[%s2968 + $0x34] sm:$0xf]
        %v2983 = vld [vmem:[%s2968 + $0x38] sm:$0xf]
        %v2984 = vld [vmem:[%s2968 + $0x3c] sm:$0xf]
        %v3001 = vunpack.c.l.b16 %v2969
        %v3002 = vunpack.c.l.b16 %v2970
        %v3003 = vunpack.c.l.b16 %v2971
        %v3004 = vunpack.c.l.b16 %v2972
        %v3005 = vunpack.c.l.b16 %v2973
        %v3006 = vunpack.c.l.b16 %v2974
        %v3007 = vunpack.c.l.b16 %v2975
        %v3008 = vunpack.c.l.b16 %v2976
        %v3009 = vunpack.c.l.b16 %v2977
        %v3010 = vunpack.c.l.b16 %v2978
        %v3011 = vunpack.c.l.b16 %v2979
        %v3012 = vunpack.c.l.b16 %v2980
        %v3013 = vunpack.c.l.b16 %v2981
        %v3014 = vunpack.c.l.b16 %v2982
        %v3015 = vunpack.c.l.b16 %v2983
        %v3016 = vunpack.c.l.b16 %v2984
        %v3017 = vpack.c.b16 %v3002, %v3001
        %v3018 = vpack.c.b16 %v3004, %v3003
        %v3019 = vpack.c.b16 %v3006, %v3005
        %v3020 = vpack.c.b16 %v3008, %v3007
        %v3021 = vpack.c.b16 %v3010, %v3009
        %v3022 = vpack.c.b16 %v3012, %v3011
        %v3023 = vpack.c.b16 %v3014, %v3013
        %v3024 = vpack.c.b16 %v3016, %v3015
        %3033 = vmatprep.subr.bf16.mxu0 0
        %3034 = vmatpush1.bf16.msra.mxu0 %v3024
        %3035 = vmatprep.subr.bf16.mxu0 0
        %3036 = vmatpush1.bf16.msra.mxu0 %v3023
        %3037 = vmatprep.subr.bf16.mxu0 0
        %3038 = vmatpush1.bf16.msra.mxu0 %v3022
        %3039 = vmatprep.subr.bf16.mxu0 0
        %3040 = vmatpush1.bf16.msra.mxu0 %v3021
        %3041 = vmatprep.subr.bf16.mxu0 0
        %3042 = vmatpush1.bf16.msra.mxu0 %v3020
        %3043 = vmatprep.subr.bf16.mxu0 0
        %3044 = vmatpush1.bf16.msra.mxu0 %v3019
        %3045 = vmatprep.subr.bf16.mxu0 0
        %3046 = vmatpush1.bf16.msra.mxu0 %v3018
        %3047 = vmatprep.subr.bf16.mxu0 0
        %3048 = vmatpush1.bf16.msra.mxu0 %v3017
        %3049 = vmatprep.subr.bf16.mxu0 0
        %3050 = vmatpush2.bf16.msra.mxu0 0
        %3051 = vmatprep.subr.bf16.mxu0 0
        %3052 = vmatpush2.bf16.msra.mxu0 0
        %3053 = vmatprep.subr.bf16.mxu0 0
        %3054 = vmatpush2.bf16.msra.mxu0 0
        %3055 = vmatprep.subr.bf16.mxu0 0
        %3056 = vmatpush2.bf16.msra.mxu0 0
        %3057 = vmatprep.subr.bf16.mxu0 0
        %3058 = vmatpush2.bf16.msra.mxu0 0
        %3059 = vmatprep.subr.bf16.mxu0 0
        %3060 = vmatpush2.bf16.msra.mxu0 0
        %3061 = vmatprep.subr.bf16.mxu0 0
        %3062 = vmatpush2.bf16.msra.mxu0 0
        %3063 = vmatprep.subr.bf16.mxu0 0
        %3064 = vmatpush2.bf16.msra.mxu0 0
        %3065 = vmatprep.mubr.bf16.mxu0 0
        %3066 = vmatmul.mubr.bf16.gmra.mxu0 %v2950
        %v3067 = vpop.f32.mrf.mxu0
        %v3068 = vadd.f32 0.0, %v3067
        %v3069 = vpop.f32.mrf.mxu0
        %v3070 = vpop.f32.mrf.mxu0
        %v3071 = vadd.f32 0.0, %v3070
        %v3072 = vpop.f32.mrf.mxu0
        %3073 = vmatprep.mubr.bf16.mxu0 0
        %3074 = vmatmul.mubr.bf16.gmra.mxu0 %v2951
        %v3075 = vpop.f32.mrf.mxu0
        %v3076 = vadd.f32 0.0, %v3075
        %v3077 = vpop.f32.mrf.mxu0
        %v3078 = vpop.f32.mrf.mxu0
        %v3079 = vadd.f32 0.0, %v3078
        %v3080 = vpop.f32.mrf.mxu0
        %3081 = vmatprep.mubr.bf16.mxu0 0
        %3082 = vmatmul.mubr.bf16.gmra.mxu0 %v2952
        %v3083 = vpop.f32.mrf.mxu0
        %v3084 = vadd.f32 0.0, %v3083
        %v3085 = vpop.f32.mrf.mxu0
        %v3086 = vpop.f32.mrf.mxu0
        %v3087 = vadd.f32 0.0, %v3086
        %v3088 = vpop.f32.mrf.mxu0
        %3089 = vmatprep.mubr.bf16.mxu0 0
        %3090 = vmatmul.mubr.bf16.gmra.mxu0 %v2953
        %v3091 = vpop.f32.mrf.mxu0
        %v3092 = vadd.f32 0.0, %v3091
        %v3093 = vpop.f32.mrf.mxu0
        %v3094 = vpop.f32.mrf.mxu0
        %v3095 = vadd.f32 0.0, %v3094
        %v3096 = vpop.f32.mrf.mxu0
        %3097 = vmatprep.mubr.bf16.mxu0 0
        %3098 = vmatmul.mubr.bf16.gmra.mxu0 %v2954
        %v3099 = vpop.f32.mrf.mxu0
        %v3100 = vadd.f32 0.0, %v3099
        %v3101 = vpop.f32.mrf.mxu0
        %v3102 = vpop.f32.mrf.mxu0
        %v3103 = vadd.f32 0.0, %v3102
        %v3104 = vpop.f32.mrf.mxu0
        %3105 = vmatprep.mubr.bf16.mxu0 0
        %3106 = vmatmul.mubr.bf16.gmra.mxu0 %v2955
        %v3107 = vpop.f32.mrf.mxu0
        %v3108 = vadd.f32 0.0, %v3107
        %v3109 = vpop.f32.mrf.mxu0
        %v3110 = vpop.f32.mrf.mxu0
        %v3111 = vadd.f32 0.0, %v3110
        %v3112 = vpop.f32.mrf.mxu0
        %3113 = vmatprep.mubr.bf16.mxu0 0
        %3114 = vmatmul.mubr.bf16.gmra.mxu0 %v2956
        %v3115 = vpop.f32.mrf.mxu0
        %v3116 = vadd.f32 0.0, %v3115
        %v3117 = vpop.f32.mrf.mxu0
        %v3118 = vpop.f32.mrf.mxu0
        %v3119 = vadd.f32 0.0, %v3118
        %v3120 = vpop.f32.mrf.mxu0
        %3121 = vmatprep.mubr.bf16.mxu0 0
        %3122 = vmatmul.mubr.bf16.gmra.mxu0 %v2957
        %v3123 = vpop.f32.mrf.mxu0
        %v3124 = vadd.f32 0.0, %v3123
        %v3125 = vpop.f32.mrf.mxu0
        %v3126 = vpop.f32.mrf.mxu0
        %v3127 = vadd.f32 0.0, %v3126
        %v3128 = vpop.f32.mrf.mxu0
        %3129 = vmatprep.mubr.bf16.mxu0 0
        %3130 = vmatmul.mubr.bf16.gmra.mxu0 %v2958
        %v3131 = vpop.f32.mrf.mxu0
        %v3132 = vadd.f32 0.0, %v3131
        %v3133 = vpop.f32.mrf.mxu0
        %v3134 = vpop.f32.mrf.mxu0
        %v3135 = vadd.f32 0.0, %v3134
        %v3136 = vpop.f32.mrf.mxu0
        %3137 = vmatprep.mubr.bf16.mxu0 0
        %3138 = vmatmul.mubr.bf16.gmra.mxu0 %v2959
        %v3139 = vpop.f32.mrf.mxu0
        %v3140 = vadd.f32 0.0, %v3139
        %v3141 = vpop.f32.mrf.mxu0
        %v3142 = vpop.f32.mrf.mxu0
        %v3143 = vadd.f32 0.0, %v3142
        %v3144 = vpop.f32.mrf.mxu0
        %3145 = vmatprep.mubr.bf16.mxu0 0
        %3146 = vmatmul.mubr.bf16.gmra.mxu0 %v2960
        %v3147 = vpop.f32.mrf.mxu0
        %v3148 = vadd.f32 0.0, %v3147
        %v3149 = vpop.f32.mrf.mxu0
        %v3150 = vpop.f32.mrf.mxu0
        %v3151 = vadd.f32 0.0, %v3150
        %v3152 = vpop.f32.mrf.mxu0
        %3153 = vmatprep.mubr.bf16.mxu0 0
        %3154 = vmatmul.mubr.bf16.gmra.mxu0 %v2961
        %v3155 = vpop.f32.mrf.mxu0
        %v3156 = vadd.f32 0.0, %v3155
        %v3157 = vpop.f32.mrf.mxu0
        %v3158 = vpop.f32.mrf.mxu0
        %v3159 = vadd.f32 0.0, %v3158
        %v3160 = vpop.f32.mrf.mxu0
        %3161 = vmatprep.mubr.bf16.mxu0 0
        %3162 = vmatmul.mubr.bf16.gmra.mxu0 %v2962
        %v3163 = vpop.f32.mrf.mxu0
        %v3164 = vadd.f32 0.0, %v3163
        %v3165 = vpop.f32.mrf.mxu0
        %v3166 = vpop.f32.mrf.mxu0
        %v3167 = vadd.f32 0.0, %v3166
        %v3168 = vpop.f32.mrf.mxu0
        %3169 = vmatprep.mubr.bf16.mxu0 0
        %3170 = vmatmul.mubr.bf16.gmra.mxu0 %v2963
        %v3171 = vpop.f32.mrf.mxu0
        %v3172 = vadd.f32 0.0, %v3171
        %v3173 = vpop.f32.mrf.mxu0
        %v3174 = vpop.f32.mrf.mxu0
        %v3175 = vadd.f32 0.0, %v3174
        %v3176 = vpop.f32.mrf.mxu0
        %3177 = vmatprep.mubr.bf16.mxu0 0
        %3178 = vmatmul.mubr.bf16.gmra.mxu0 %v2964
        %v3179 = vpop.f32.mrf.mxu0
        %v3180 = vadd.f32 0.0, %v3179
        %v3181 = vpop.f32.mrf.mxu0
        %v3182 = vpop.f32.mrf.mxu0
        %v3183 = vadd.f32 0.0, %v3182
        %v3184 = vpop.f32.mrf.mxu0
        %3185 = vmatprep.mubr.bf16.mxu0 0
        %3186 = vmatmul.mubr.bf16.gmra.mxu0 %v2965
        %v3187 = vpop.f32.mrf.mxu0
        %v3188 = vadd.f32 0.0, %v3187
        %v3189 = vpop.f32.mrf.mxu0
        %v3190 = vpop.f32.mrf.mxu0
        %v3191 = vadd.f32 0.0, %v3190
        %v3192 = vpop.f32.mrf.mxu0
        %3193 = vmatprep.mubr.bf16.mxu0 0
        %3194 = vmatmul.mubr.bf16.gmra.mxu0 %v2966
        %v3195 = vpop.f32.mrf.mxu0
        %v3196 = vadd.f32 0.0, %v3195
        %v3197 = vpop.f32.mrf.mxu0
        %v3198 = vpop.f32.mrf.mxu0
        %v3199 = vadd.f32 0.0, %v3198
        %v3200 = vpop.f32.mrf.mxu0
        %3201 = vmatprep.mubr.bf16.mxu0 0
        %3202 = vmatmul.mubr.bf16.gmra.mxu0 %v2967
        %v3203 = vpop.f32.mrf.mxu0
        %v3204 = vadd.f32 0.0, %v3203
        %v3205 = vpop.f32.mrf.mxu0
        %v3206 = vpop.f32.mrf.mxu0
        %v3207 = vadd.f32 0.0, %v3206
        %v3208 = vpop.f32.mrf.mxu0
        %3209 = vdwg.mxu0
        %v3210 = vadd.f32 %v2878, %v3068
        %v3211 = vadd.f32 %v2879, %v3071
        %v3212 = vadd.f32 %v2880, %v3076
        %v3213 = vadd.f32 %v2881, %v3079
        %v3214 = vadd.f32 %v2882, %v3084
        %v3215 = vadd.f32 %v2883, %v3087
        %v3216 = vadd.f32 %v2884, %v3092
        %v3217 = vadd.f32 %v2885, %v3095
        %v3218 = vadd.f32 %v2886, %v3100
        %v3219 = vadd.f32 %v2887, %v3103
        %v3220 = vadd.f32 %v2888, %v3108
        %v3221 = vadd.f32 %v2889, %v3111
        %v3222 = vadd.f32 %v2890, %v3116
        %v3223 = vadd.f32 %v2891, %v3119
        %v3224 = vadd.f32 %v2892, %v3124
        %v3225 = vadd.f32 %v2893, %v3127
        %v3226 = vadd.f32 %v2894, %v3132
        %v3227 = vadd.f32 %v2895, %v3135
        %v3228 = vadd.f32 %v2896, %v3140
        %v3229 = vadd.f32 %v2897, %v3143
        %v3230 = vadd.f32 %v2898, %v3148
        %v3231 = vadd.f32 %v2899, %v3151
        %v3232 = vadd.f32 %v2900, %v3156
        %v3233 = vadd.f32 %v2901, %v3159
        %v3234 = vadd.f32 %v2902, %v3164
        %v3235 = vadd.f32 %v2903, %v3167
        %v3236 = vadd.f32 %v2904, %v3172
        %v3237 = vadd.f32 %v2905, %v3175
        %v3238 = vadd.f32 %v2906, %v3180
        %v3239 = vadd.f32 %v2907, %v3183
        %v3240 = vadd.f32 %v2908, %v3188
        %v3241 = vadd.f32 %v2909, %v3191
        %v3242 = vadd.f32 %v2910, %v3196
        %v3243 = vadd.f32 %v2911, %v3199
        %v3244 = vadd.f32 %v2912, %v3204
        %v3245 = vadd.f32 %v2913, %v3207
        %v3246 = vld [vmem:[#allocation2 + $0x25] sm:$0xff]
        %v3247 = vld [vmem:[#allocation2 + $0x2d] sm:$0xff]
        %v3248 = vld [vmem:[#allocation2 + $0x35] sm:$0xff]
        %v3249 = vld [vmem:[#allocation2 + $0x3d] sm:$0xff]
        %v3250 = vld [vmem:[#allocation2 + $0x45] sm:$0xff]
        %v3251 = vld [vmem:[#allocation2 + $0x4d] sm:$0xff]
        %v3252 = vld [vmem:[#allocation2 + $0x55] sm:$0xff]
        %v3253 = vld [vmem:[#allocation2 + $0x5d] sm:$0xff]
        %v3254 = vld [vmem:[#allocation2 + $0x65] sm:$0xff]
        %v3255 = vld [vmem:[#allocation2 + $0x6d] sm:$0xff]
        %v3256 = vld [vmem:[#allocation2 + $0x75] sm:$0xff]
        %v3257 = vld [vmem:[#allocation2 + $0x7d] sm:$0xff]
        %v3258 = vld [vmem:[#allocation2 + $0x85] sm:$0xff]
        %v3259 = vld [vmem:[#allocation2 + $0x8d] sm:$0xff]
        %v3260 = vld [vmem:[#allocation2 + $0x95] sm:$0xff]
        %v3261 = vld [vmem:[#allocation2 + $0x9d] sm:$0xff]
        %v3262 = vld [vmem:[#allocation2 + $0xa5] sm:$0xff]
        %v3263 = vld [vmem:[#allocation2 + $0xad] sm:$0xff]
        %v3264 = vld [vmem:[#allocation2 + $0xb5] sm:$0xff]
        %v3265 = vld [vmem:[#allocation2 + $0xbd] sm:$0xff]
        %v3266 = vld [vmem:[#allocation2 + $0xc5] sm:$0xff]
        %v3267 = vld [vmem:[#allocation2 + $0xcd] sm:$0xff]
        %v3268 = vld [vmem:[#allocation2 + $0xd5] sm:$0xff]
        %v3269 = vld [vmem:[#allocation2 + $0xdd] sm:$0xff]
        %v3270 = vld [vmem:[#allocation2 + $0xe5] sm:$0xff]
        %v3271 = vld [vmem:[#allocation2 + $0xed] sm:$0xff]
        %v3272 = vld [vmem:[#allocation2 + $0xf5] sm:$0xff]
        %v3273 = vld [vmem:[#allocation2 + $0xfd] sm:$0xff]
        %v3274 = vld [vmem:[#allocation2 + $0x105] sm:$0xff]
        %v3275 = vld [vmem:[#allocation2 + $0x10d] sm:$0xff]
        %v3276 = vld [vmem:[#allocation2 + $0x115] sm:$0xff]
        %v3277 = vld [vmem:[#allocation2 + $0x11d] sm:$0xff]
        %v3278 = vld [vmem:[#allocation2 + $0x125] sm:$0xff]
        %v3279 = vld [vmem:[#allocation2 + $0x12d] sm:$0xff]
        %v3280 = vld [vmem:[#allocation2 + $0x135] sm:$0xff]
        %v3281 = vld [vmem:[#allocation2 + $0x13d] sm:$0xff]
        %v3282 = vpack.c.bf16 %v3247, %v3246
        %v3283 = vpack.c.bf16 %v3249, %v3248
        %v3284 = vpack.c.bf16 %v3251, %v3250
        %v3285 = vpack.c.bf16 %v3253, %v3252
        %v3286 = vpack.c.bf16 %v3255, %v3254
        %v3287 = vpack.c.bf16 %v3257, %v3256
        %v3288 = vpack.c.bf16 %v3259, %v3258
        %v3289 = vpack.c.bf16 %v3261, %v3260
        %v3290 = vpack.c.bf16 %v3263, %v3262
        %v3291 = vpack.c.bf16 %v3265, %v3264
        %v3292 = vpack.c.bf16 %v3267, %v3266
        %v3293 = vpack.c.bf16 %v3269, %v3268
        %v3294 = vpack.c.bf16 %v3271, %v3270
        %v3295 = vpack.c.bf16 %v3273, %v3272
        %v3296 = vpack.c.bf16 %v3275, %v3274
        %v3297 = vpack.c.bf16 %v3277, %v3276
        %v3298 = vpack.c.bf16 %v3279, %v3278
        %v3299 = vpack.c.bf16 %v3281, %v3280
        %s3300 = scalar_lea.vmem %s1, 512
        %v3301 = vld [vmem:[%s3300] sm:$0xf]
        %v3302 = vld [vmem:[%s3300 + $0x4] sm:$0xf]
        %v3303 = vld [vmem:[%s3300 + $0x8] sm:$0xf]
        %v3304 = vld [vmem:[%s3300 + $0xc] sm:$0xf]
        %v3305 = vld [vmem:[%s3300 + $0x10] sm:$0xf]
        %v3306 = vld [vmem:[%s3300 + $0x14] sm:$0xf]
        %v3307 = vld [vmem:[%s3300 + $0x18] sm:$0xf]
        %v3308 = vld [vmem:[%s3300 + $0x1c] sm:$0xf]
        %v3309 = vld [vmem:[%s3300 + $0x20] sm:$0xf]
        %v3310 = vld [vmem:[%s3300 + $0x24] sm:$0xf]
        %v3311 = vld [vmem:[%s3300 + $0x28] sm:$0xf]
        %v3312 = vld [vmem:[%s3300 + $0x2c] sm:$0xf]
        %v3313 = vld [vmem:[%s3300 + $0x30] sm:$0xf]
        %v3314 = vld [vmem:[%s3300 + $0x34] sm:$0xf]
        %v3315 = vld [vmem:[%s3300 + $0x38] sm:$0xf]
        %v3316 = vld [vmem:[%s3300 + $0x3c] sm:$0xf]
        %v3333 = vunpack.c.l.b16 %v3301
        %v3334 = vunpack.c.l.b16 %v3302
        %v3335 = vunpack.c.l.b16 %v3303
        %v3336 = vunpack.c.l.b16 %v3304
        %v3337 = vunpack.c.l.b16 %v3305
        %v3338 = vunpack.c.l.b16 %v3306
        %v3339 = vunpack.c.l.b16 %v3307
        %v3340 = vunpack.c.l.b16 %v3308
        %v3341 = vunpack.c.l.b16 %v3309
        %v3342 = vunpack.c.l.b16 %v3310
        %v3343 = vunpack.c.l.b16 %v3311
        %v3344 = vunpack.c.l.b16 %v3312
        %v3345 = vunpack.c.l.b16 %v3313
        %v3346 = vunpack.c.l.b16 %v3314
        %v3347 = vunpack.c.l.b16 %v3315
        %v3348 = vunpack.c.l.b16 %v3316
        %v3349 = vpack.c.b16 %v3334, %v3333
        %v3350 = vpack.c.b16 %v3336, %v3335
        %v3351 = vpack.c.b16 %v3338, %v3337
        %v3352 = vpack.c.b16 %v3340, %v3339
        %v3353 = vpack.c.b16 %v3342, %v3341
        %v3354 = vpack.c.b16 %v3344, %v3343
        %v3355 = vpack.c.b16 %v3346, %v3345
        %v3356 = vpack.c.b16 %v3348, %v3347
        %3365 = vmatprep.subr.bf16.mxu0 0
        %3366 = vmatpush1.bf16.msra.mxu0 %v3356
        %3367 = vmatprep.subr.bf16.mxu0 0
        %3368 = vmatpush1.bf16.msra.mxu0 %v3355
        %3369 = vmatprep.subr.bf16.mxu0 0
        %3370 = vmatpush1.bf16.msra.mxu0 %v3354
        %3371 = vmatprep.subr.bf16.mxu0 0
        %3372 = vmatpush1.bf16.msra.mxu0 %v3353
        %3373 = vmatprep.subr.bf16.mxu0 0
        %3374 = vmatpush1.bf16.msra.mxu0 %v3352
        %3375 = vmatprep.subr.bf16.mxu0 0
        %3376 = vmatpush1.bf16.msra.mxu0 %v3351
        %3377 = vmatprep.subr.bf16.mxu0 0
        %3378 = vmatpush1.bf16.msra.mxu0 %v3350
        %3379 = vmatprep.subr.bf16.mxu0 0
        %3380 = vmatpush1.bf16.msra.mxu0 %v3349
        %3381 = vmatprep.subr.bf16.mxu0 0
        %3382 = vmatpush2.bf16.msra.mxu0 0
        %3383 = vmatprep.subr.bf16.mxu0 0
        %3384 = vmatpush2.bf16.msra.mxu0 0
        %3385 = vmatprep.subr.bf16.mxu0 0
        %3386 = vmatpush2.bf16.msra.mxu0 0
        %3387 = vmatprep.subr.bf16.mxu0 0
        %3388 = vmatpush2.bf16.msra.mxu0 0
        %3389 = vmatprep.subr.bf16.mxu0 0
        %3390 = vmatpush2.bf16.msra.mxu0 0
        %3391 = vmatprep.subr.bf16.mxu0 0
        %3392 = vmatpush2.bf16.msra.mxu0 0
        %3393 = vmatprep.subr.bf16.mxu0 0
        %3394 = vmatpush2.bf16.msra.mxu0 0
        %3395 = vmatprep.subr.bf16.mxu0 0
        %3396 = vmatpush2.bf16.msra.mxu0 0
        %3397 = vmatprep.mubr.bf16.mxu0 0
        %3398 = vmatmul.mubr.bf16.gmra.mxu0 %v3282
        %v3399 = vpop.f32.mrf.mxu0
        %v3400 = vadd.f32 0.0, %v3399
        %v3401 = vpop.f32.mrf.mxu0
        %v3402 = vpop.f32.mrf.mxu0
        %v3403 = vadd.f32 0.0, %v3402
        %v3404 = vpop.f32.mrf.mxu0
        %3405 = vmatprep.mubr.bf16.mxu0 0
        %3406 = vmatmul.mubr.bf16.gmra.mxu0 %v3283
        %v3407 = vpop.f32.mrf.mxu0
        %v3408 = vadd.f32 0.0, %v3407
        %v3409 = vpop.f32.mrf.mxu0
        %v3410 = vpop.f32.mrf.mxu0
        %v3411 = vadd.f32 0.0, %v3410
        %v3412 = vpop.f32.mrf.mxu0
        %3413 = vmatprep.mubr.bf16.mxu0 0
        %3414 = vmatmul.mubr.bf16.gmra.mxu0 %v3284
        %v3415 = vpop.f32.mrf.mxu0
        %v3416 = vadd.f32 0.0, %v3415
        %v3417 = vpop.f32.mrf.mxu0
        %v3418 = vpop.f32.mrf.mxu0
        %v3419 = vadd.f32 0.0, %v3418
        %v3420 = vpop.f32.mrf.mxu0
        %3421 = vmatprep.mubr.bf16.mxu0 0
        %3422 = vmatmul.mubr.bf16.gmra.mxu0 %v3285
        %v3423 = vpop.f32.mrf.mxu0
        %v3424 = vadd.f32 0.0, %v3423
        %v3425 = vpop.f32.mrf.mxu0
        %v3426 = vpop.f32.mrf.mxu0
        %v3427 = vadd.f32 0.0, %v3426
        %v3428 = vpop.f32.mrf.mxu0
        %3429 = vmatprep.mubr.bf16.mxu0 0
        %3430 = vmatmul.mubr.bf16.gmra.mxu0 %v3286
        %v3431 = vpop.f32.mrf.mxu0
        %v3432 = vadd.f32 0.0, %v3431
        %v3433 = vpop.f32.mrf.mxu0
        %v3434 = vpop.f32.mrf.mxu0
        %v3435 = vadd.f32 0.0, %v3434
        %v3436 = vpop.f32.mrf.mxu0
        %3437 = vmatprep.mubr.bf16.mxu0 0
        %3438 = vmatmul.mubr.bf16.gmra.mxu0 %v3287
        %v3439 = vpop.f32.mrf.mxu0
        %v3440 = vadd.f32 0.0, %v3439
        %v3441 = vpop.f32.mrf.mxu0
        %v3442 = vpop.f32.mrf.mxu0
        %v3443 = vadd.f32 0.0, %v3442
        %v3444 = vpop.f32.mrf.mxu0
        %3445 = vmatprep.mubr.bf16.mxu0 0
        %3446 = vmatmul.mubr.bf16.gmra.mxu0 %v3288
        %v3447 = vpop.f32.mrf.mxu0
        %v3448 = vadd.f32 0.0, %v3447
        %v3449 = vpop.f32.mrf.mxu0
        %v3450 = vpop.f32.mrf.mxu0
        %v3451 = vadd.f32 0.0, %v3450
        %v3452 = vpop.f32.mrf.mxu0
        %3453 = vmatprep.mubr.bf16.mxu0 0
        %3454 = vmatmul.mubr.bf16.gmra.mxu0 %v3289
        %v3455 = vpop.f32.mrf.mxu0
        %v3456 = vadd.f32 0.0, %v3455
        %v3457 = vpop.f32.mrf.mxu0
        %v3458 = vpop.f32.mrf.mxu0
        %v3459 = vadd.f32 0.0, %v3458
        %v3460 = vpop.f32.mrf.mxu0
        %3461 = vmatprep.mubr.bf16.mxu0 0
        %3462 = vmatmul.mubr.bf16.gmra.mxu0 %v3290
        %v3463 = vpop.f32.mrf.mxu0
        %v3464 = vadd.f32 0.0, %v3463
        %v3465 = vpop.f32.mrf.mxu0
        %v3466 = vpop.f32.mrf.mxu0
        %v3467 = vadd.f32 0.0, %v3466
        %v3468 = vpop.f32.mrf.mxu0
        %3469 = vmatprep.mubr.bf16.mxu0 0
        %3470 = vmatmul.mubr.bf16.gmra.mxu0 %v3291
        %v3471 = vpop.f32.mrf.mxu0
        %v3472 = vadd.f32 0.0, %v3471
        %v3473 = vpop.f32.mrf.mxu0
        %v3474 = vpop.f32.mrf.mxu0
        %v3475 = vadd.f32 0.0, %v3474
        %v3476 = vpop.f32.mrf.mxu0
        %3477 = vmatprep.mubr.bf16.mxu0 0
        %3478 = vmatmul.mubr.bf16.gmra.mxu0 %v3292
        %v3479 = vpop.f32.mrf.mxu0
        %v3480 = vadd.f32 0.0, %v3479
        %v3481 = vpop.f32.mrf.mxu0
        %v3482 = vpop.f32.mrf.mxu0
        %v3483 = vadd.f32 0.0, %v3482
        %v3484 = vpop.f32.mrf.mxu0
        %3485 = vmatprep.mubr.bf16.mxu0 0
        %3486 = vmatmul.mubr.bf16.gmra.mxu0 %v3293
        %v3487 = vpop.f32.mrf.mxu0
        %v3488 = vadd.f32 0.0, %v3487
        %v3489 = vpop.f32.mrf.mxu0
        %v3490 = vpop.f32.mrf.mxu0
        %v3491 = vadd.f32 0.0, %v3490
        %v3492 = vpop.f32.mrf.mxu0
        %3493 = vmatprep.mubr.bf16.mxu0 0
        %3494 = vmatmul.mubr.bf16.gmra.mxu0 %v3294
        %v3495 = vpop.f32.mrf.mxu0
        %v3496 = vadd.f32 0.0, %v3495
        %v3497 = vpop.f32.mrf.mxu0
        %v3498 = vpop.f32.mrf.mxu0
        %v3499 = vadd.f32 0.0, %v3498
        %v3500 = vpop.f32.mrf.mxu0
        %3501 = vmatprep.mubr.bf16.mxu0 0
        %3502 = vmatmul.mubr.bf16.gmra.mxu0 %v3295
        %v3503 = vpop.f32.mrf.mxu0
        %v3504 = vadd.f32 0.0, %v3503
        %v3505 = vpop.f32.mrf.mxu0
        %v3506 = vpop.f32.mrf.mxu0
        %v3507 = vadd.f32 0.0, %v3506
        %v3508 = vpop.f32.mrf.mxu0
        %3509 = vmatprep.mubr.bf16.mxu0 0
        %3510 = vmatmul.mubr.bf16.gmra.mxu0 %v3296
        %v3511 = vpop.f32.mrf.mxu0
        %v3512 = vadd.f32 0.0, %v3511
        %v3513 = vpop.f32.mrf.mxu0
        %v3514 = vpop.f32.mrf.mxu0
        %v3515 = vadd.f32 0.0, %v3514
        %v3516 = vpop.f32.mrf.mxu0
        %3517 = vmatprep.mubr.bf16.mxu0 0
        %3518 = vmatmul.mubr.bf16.gmra.mxu0 %v3297
        %v3519 = vpop.f32.mrf.mxu0
        %v3520 = vadd.f32 0.0, %v3519
        %v3521 = vpop.f32.mrf.mxu0
        %v3522 = vpop.f32.mrf.mxu0
        %v3523 = vadd.f32 0.0, %v3522
        %v3524 = vpop.f32.mrf.mxu0
        %3525 = vmatprep.mubr.bf16.mxu0 0
        %3526 = vmatmul.mubr.bf16.gmra.mxu0 %v3298
        %v3527 = vpop.f32.mrf.mxu0
        %v3528 = vadd.f32 0.0, %v3527
        %v3529 = vpop.f32.mrf.mxu0
        %v3530 = vpop.f32.mrf.mxu0
        %v3531 = vadd.f32 0.0, %v3530
        %v3532 = vpop.f32.mrf.mxu0
        %3533 = vmatprep.mubr.bf16.mxu0 0
        %3534 = vmatmul.mubr.bf16.gmra.mxu0 %v3299
        %v3535 = vpop.f32.mrf.mxu0
        %v3536 = vadd.f32 0.0, %v3535
        %v3537 = vpop.f32.mrf.mxu0
        %v3538 = vpop.f32.mrf.mxu0
        %v3539 = vadd.f32 0.0, %v3538
        %v3540 = vpop.f32.mrf.mxu0
        %3541 = vdwg.mxu0
        %v3542 = vadd.f32 %v3210, %v3400
        %v3543 = vadd.f32 %v3211, %v3403
        %v3544 = vadd.f32 %v3212, %v3408
        %v3545 = vadd.f32 %v3213, %v3411
        %v3546 = vadd.f32 %v3214, %v3416
        %v3547 = vadd.f32 %v3215, %v3419
        %v3548 = vadd.f32 %v3216, %v3424
        %v3549 = vadd.f32 %v3217, %v3427
        %v3550 = vadd.f32 %v3218, %v3432
        %v3551 = vadd.f32 %v3219, %v3435
        %v3552 = vadd.f32 %v3220, %v3440
        %v3553 = vadd.f32 %v3221, %v3443
        %v3554 = vadd.f32 %v3222, %v3448
        %v3555 = vadd.f32 %v3223, %v3451
        %v3556 = vadd.f32 %v3224, %v3456
        %v3557 = vadd.f32 %v3225, %v3459
        %v3558 = vadd.f32 %v3226, %v3464
        %v3559 = vadd.f32 %v3227, %v3467
        %v3560 = vadd.f32 %v3228, %v3472
        %v3561 = vadd.f32 %v3229, %v3475
        %v3562 = vadd.f32 %v3230, %v3480
        %v3563 = vadd.f32 %v3231, %v3483
        %v3564 = vadd.f32 %v3232, %v3488
        %v3565 = vadd.f32 %v3233, %v3491
        %v3566 = vadd.f32 %v3234, %v3496
        %v3567 = vadd.f32 %v3235, %v3499
        %v3568 = vadd.f32 %v3236, %v3504
        %v3569 = vadd.f32 %v3237, %v3507
        %v3570 = vadd.f32 %v3238, %v3512
        %v3571 = vadd.f32 %v3239, %v3515
        %v3572 = vadd.f32 %v3240, %v3520
        %v3573 = vadd.f32 %v3241, %v3523
        %v3574 = vadd.f32 %v3242, %v3528
        %v3575 = vadd.f32 %v3243, %v3531
        %v3576 = vadd.f32 %v3244, %v3536
        %v3577 = vadd.f32 %v3245, %v3539
        %v3578 = vld [vmem:[#allocation2 + $0x26] sm:$0xff]
        %v3579 = vld [vmem:[#allocation2 + $0x2e] sm:$0xff]
        %v3580 = vld [vmem:[#allocation2 + $0x36] sm:$0xff]
        %v3581 = vld [vmem:[#allocation2 + $0x3e] sm:$0xff]
        %v3582 = vld [vmem:[#allocation2 + $0x46] sm:$0xff]
        %v3583 = vld [vmem:[#allocation2 + $0x4e] sm:$0xff]
        %v3584 = vld [vmem:[#allocation2 + $0x56] sm:$0xff]
        %v3585 = vld [vmem:[#allocation2 + $0x5e] sm:$0xff]
        %v3586 = vld [vmem:[#allocation2 + $0x66] sm:$0xff]
        %v3587 = vld [vmem:[#allocation2 + $0x6e] sm:$0xff]
        %v3588 = vld [vmem:[#allocation2 + $0x76] sm:$0xff]
        %v3589 = vld [vmem:[#allocation2 + $0x7e] sm:$0xff]
        %v3590 = vld [vmem:[#allocation2 + $0x86] sm:$0xff]
        %v3591 = vld [vmem:[#allocation2 + $0x8e] sm:$0xff]
        %v3592 = vld [vmem:[#allocation2 + $0x96] sm:$0xff]
        %v3593 = vld [vmem:[#allocation2 + $0x9e] sm:$0xff]
        %v3594 = vld [vmem:[#allocation2 + $0xa6] sm:$0xff]
        %v3595 = vld [vmem:[#allocation2 + $0xae] sm:$0xff]
        %v3596 = vld [vmem:[#allocation2 + $0xb6] sm:$0xff]
        %v3597 = vld [vmem:[#allocation2 + $0xbe] sm:$0xff]
        %v3598 = vld [vmem:[#allocation2 + $0xc6] sm:$0xff]
        %v3599 = vld [vmem:[#allocation2 + $0xce] sm:$0xff]
        %v3600 = vld [vmem:[#allocation2 + $0xd6] sm:$0xff]
        %v3601 = vld [vmem:[#allocation2 + $0xde] sm:$0xff]
        %v3602 = vld [vmem:[#allocation2 + $0xe6] sm:$0xff]
        %v3603 = vld [vmem:[#allocation2 + $0xee] sm:$0xff]
        %v3604 = vld [vmem:[#allocation2 + $0xf6] sm:$0xff]
        %v3605 = vld [vmem:[#allocation2 + $0xfe] sm:$0xff]
        %v3606 = vld [vmem:[#allocation2 + $0x106] sm:$0xff]
        %v3607 = vld [vmem:[#allocation2 + $0x10e] sm:$0xff]
        %v3608 = vld [vmem:[#allocation2 + $0x116] sm:$0xff]
        %v3609 = vld [vmem:[#allocation2 + $0x11e] sm:$0xff]
        %v3610 = vld [vmem:[#allocation2 + $0x126] sm:$0xff]
        %v3611 = vld [vmem:[#allocation2 + $0x12e] sm:$0xff]
        %v3612 = vld [vmem:[#allocation2 + $0x136] sm:$0xff]
        %v3613 = vld [vmem:[#allocation2 + $0x13e] sm:$0xff]
        %v3614 = vpack.c.bf16 %v3579, %v3578
        %v3615 = vpack.c.bf16 %v3581, %v3580
        %v3616 = vpack.c.bf16 %v3583, %v3582
        %v3617 = vpack.c.bf16 %v3585, %v3584
        %v3618 = vpack.c.bf16 %v3587, %v3586
        %v3619 = vpack.c.bf16 %v3589, %v3588
        %v3620 = vpack.c.bf16 %v3591, %v3590
        %v3621 = vpack.c.bf16 %v3593, %v3592
        %v3622 = vpack.c.bf16 %v3595, %v3594
        %v3623 = vpack.c.bf16 %v3597, %v3596
        %v3624 = vpack.c.bf16 %v3599, %v3598
        %v3625 = vpack.c.bf16 %v3601, %v3600
        %v3626 = vpack.c.bf16 %v3603, %v3602
        %v3627 = vpack.c.bf16 %v3605, %v3604
        %v3628 = vpack.c.bf16 %v3607, %v3606
        %v3629 = vpack.c.bf16 %v3609, %v3608
        %v3630 = vpack.c.bf16 %v3611, %v3610
        %v3631 = vpack.c.bf16 %v3613, %v3612
        %s3632 = scalar_lea.vmem %s1, 576
        %v3633 = vld [vmem:[%s3632] sm:$0xf]
        %v3634 = vld [vmem:[%s3632 + $0x4] sm:$0xf]
        %v3635 = vld [vmem:[%s3632 + $0x8] sm:$0xf]
        %v3636 = vld [vmem:[%s3632 + $0xc] sm:$0xf]
        %v3637 = vld [vmem:[%s3632 + $0x10] sm:$0xf]
        %v3638 = vld [vmem:[%s3632 + $0x14] sm:$0xf]
        %v3639 = vld [vmem:[%s3632 + $0x18] sm:$0xf]
        %v3640 = vld [vmem:[%s3632 + $0x1c] sm:$0xf]
        %v3641 = vld [vmem:[%s3632 + $0x20] sm:$0xf]
        %v3642 = vld [vmem:[%s3632 + $0x24] sm:$0xf]
        %v3643 = vld [vmem:[%s3632 + $0x28] sm:$0xf]
        %v3644 = vld [vmem:[%s3632 + $0x2c] sm:$0xf]
        %v3645 = vld [vmem:[%s3632 + $0x30] sm:$0xf]
        %v3646 = vld [vmem:[%s3632 + $0x34] sm:$0xf]
        %v3647 = vld [vmem:[%s3632 + $0x38] sm:$0xf]
        %v3648 = vld [vmem:[%s3632 + $0x3c] sm:$0xf]
        %v3665 = vunpack.c.l.b16 %v3633
        %v3666 = vunpack.c.l.b16 %v3634
        %v3667 = vunpack.c.l.b16 %v3635
        %v3668 = vunpack.c.l.b16 %v3636
        %v3669 = vunpack.c.l.b16 %v3637
        %v3670 = vunpack.c.l.b16 %v3638
        %v3671 = vunpack.c.l.b16 %v3639
        %v3672 = vunpack.c.l.b16 %v3640
        %v3673 = vunpack.c.l.b16 %v3641
        %v3674 = vunpack.c.l.b16 %v3642
        %v3675 = vunpack.c.l.b16 %v3643
        %v3676 = vunpack.c.l.b16 %v3644
        %v3677 = vunpack.c.l.b16 %v3645
        %v3678 = vunpack.c.l.b16 %v3646
        %v3679 = vunpack.c.l.b16 %v3647
        %v3680 = vunpack.c.l.b16 %v3648
        %v3681 = vpack.c.b16 %v3666, %v3665
        %v3682 = vpack.c.b16 %v3668, %v3667
        %v3683 = vpack.c.b16 %v3670, %v3669
        %v3684 = vpack.c.b16 %v3672, %v3671
        %v3685 = vpack.c.b16 %v3674, %v3673
        %v3686 = vpack.c.b16 %v3676, %v3675
        %v3687 = vpack.c.b16 %v3678, %v3677
        %v3688 = vpack.c.b16 %v3680, %v3679
        %3697 = vmatprep.subr.bf16.mxu0 0
        %3698 = vmatpush1.bf16.msra.mxu0 %v3688
        %3699 = vmatprep.subr.bf16.mxu0 0
        %3700 = vmatpush1.bf16.msra.mxu0 %v3687
        %3701 = vmatprep.subr.bf16.mxu0 0
        %3702 = vmatpush1.bf16.msra.mxu0 %v3686
        %3703 = vmatprep.subr.bf16.mxu0 0
        %3704 = vmatpush1.bf16.msra.mxu0 %v3685
        %3705 = vmatprep.subr.bf16.mxu0 0
        %3706 = vmatpush1.bf16.msra.mxu0 %v3684
        %3707 = vmatprep.subr.bf16.mxu0 0
        %3708 = vmatpush1.bf16.msra.mxu0 %v3683
        %3709 = vmatprep.subr.bf16.mxu0 0
        %3710 = vmatpush1.bf16.msra.mxu0 %v3682
        %3711 = vmatprep.subr.bf16.mxu0 0
        %3712 = vmatpush1.bf16.msra.mxu0 %v3681
        %3713 = vmatprep.subr.bf16.mxu0 0
        %3714 = vmatpush2.bf16.msra.mxu0 0
        %3715 = vmatprep.subr.bf16.mxu0 0
        %3716 = vmatpush2.bf16.msra.mxu0 0
        %3717 = vmatprep.subr.bf16.mxu0 0
        %3718 = vmatpush2.bf16.msra.mxu0 0
        %3719 = vmatprep.subr.bf16.mxu0 0
        %3720 = vmatpush2.bf16.msra.mxu0 0
        %3721 = vmatprep.subr.bf16.mxu0 0
        %3722 = vmatpush2.bf16.msra.mxu0 0
        %3723 = vmatprep.subr.bf16.mxu0 0
        %3724 = vmatpush2.bf16.msra.mxu0 0
        %3725 = vmatprep.subr.bf16.mxu0 0
        %3726 = vmatpush2.bf16.msra.mxu0 0
        %3727 = vmatprep.subr.bf16.mxu0 0
        %3728 = vmatpush2.bf16.msra.mxu0 0
        %3729 = vmatprep.mubr.bf16.mxu0 0
        %3730 = vmatmul.mubr.bf16.gmra.mxu0 %v3614
        %v3731 = vpop.f32.mrf.mxu0
        %v3732 = vadd.f32 0.0, %v3731
        %v3733 = vpop.f32.mrf.mxu0
        %v3734 = vpop.f32.mrf.mxu0
        %v3735 = vadd.f32 0.0, %v3734
        %v3736 = vpop.f32.mrf.mxu0
        %3737 = vmatprep.mubr.bf16.mxu0 0
        %3738 = vmatmul.mubr.bf16.gmra.mxu0 %v3615
        %v3739 = vpop.f32.mrf.mxu0
        %v3740 = vadd.f32 0.0, %v3739
        %v3741 = vpop.f32.mrf.mxu0
        %v3742 = vpop.f32.mrf.mxu0
        %v3743 = vadd.f32 0.0, %v3742
        %v3744 = vpop.f32.mrf.mxu0
        %3745 = vmatprep.mubr.bf16.mxu0 0
        %3746 = vmatmul.mubr.bf16.gmra.mxu0 %v3616
        %v3747 = vpop.f32.mrf.mxu0
        %v3748 = vadd.f32 0.0, %v3747
        %v3749 = vpop.f32.mrf.mxu0
        %v3750 = vpop.f32.mrf.mxu0
        %v3751 = vadd.f32 0.0, %v3750
        %v3752 = vpop.f32.mrf.mxu0
        %3753 = vmatprep.mubr.bf16.mxu0 0
        %3754 = vmatmul.mubr.bf16.gmra.mxu0 %v3617
        %v3755 = vpop.f32.mrf.mxu0
        %v3756 = vadd.f32 0.0, %v3755
        %v3757 = vpop.f32.mrf.mxu0
        %v3758 = vpop.f32.mrf.mxu0
        %v3759 = vadd.f32 0.0, %v3758
        %v3760 = vpop.f32.mrf.mxu0
        %3761 = vmatprep.mubr.bf16.mxu0 0
        %3762 = vmatmul.mubr.bf16.gmra.mxu0 %v3618
        %v3763 = vpop.f32.mrf.mxu0
        %v3764 = vadd.f32 0.0, %v3763
        %v3765 = vpop.f32.mrf.mxu0
        %v3766 = vpop.f32.mrf.mxu0
        %v3767 = vadd.f32 0.0, %v3766
        %v3768 = vpop.f32.mrf.mxu0
        %3769 = vmatprep.mubr.bf16.mxu0 0
        %3770 = vmatmul.mubr.bf16.gmra.mxu0 %v3619
        %v3771 = vpop.f32.mrf.mxu0
        %v3772 = vadd.f32 0.0, %v3771
        %v3773 = vpop.f32.mrf.mxu0
        %v3774 = vpop.f32.mrf.mxu0
        %v3775 = vadd.f32 0.0, %v3774
        %v3776 = vpop.f32.mrf.mxu0
        %3777 = vmatprep.mubr.bf16.mxu0 0
        %3778 = vmatmul.mubr.bf16.gmra.mxu0 %v3620
        %v3779 = vpop.f32.mrf.mxu0
        %v3780 = vadd.f32 0.0, %v3779
        %v3781 = vpop.f32.mrf.mxu0
        %v3782 = vpop.f32.mrf.mxu0
        %v3783 = vadd.f32 0.0, %v3782
        %v3784 = vpop.f32.mrf.mxu0
        %3785 = vmatprep.mubr.bf16.mxu0 0
        %3786 = vmatmul.mubr.bf16.gmra.mxu0 %v3621
        %v3787 = vpop.f32.mrf.mxu0
        %v3788 = vadd.f32 0.0, %v3787
        %v3789 = vpop.f32.mrf.mxu0
        %v3790 = vpop.f32.mrf.mxu0
        %v3791 = vadd.f32 0.0, %v3790
        %v3792 = vpop.f32.mrf.mxu0
        %3793 = vmatprep.mubr.bf16.mxu0 0
        %3794 = vmatmul.mubr.bf16.gmra.mxu0 %v3622
        %v3795 = vpop.f32.mrf.mxu0
        %v3796 = vadd.f32 0.0, %v3795
        %v3797 = vpop.f32.mrf.mxu0
        %v3798 = vpop.f32.mrf.mxu0
        %v3799 = vadd.f32 0.0, %v3798
        %v3800 = vpop.f32.mrf.mxu0
        %3801 = vmatprep.mubr.bf16.mxu0 0
        %3802 = vmatmul.mubr.bf16.gmra.mxu0 %v3623
        %v3803 = vpop.f32.mrf.mxu0
        %v3804 = vadd.f32 0.0, %v3803
        %v3805 = vpop.f32.mrf.mxu0
        %v3806 = vpop.f32.mrf.mxu0
        %v3807 = vadd.f32 0.0, %v3806
        %v3808 = vpop.f32.mrf.mxu0
        %3809 = vmatprep.mubr.bf16.mxu0 0
        %3810 = vmatmul.mubr.bf16.gmra.mxu0 %v3624
        %v3811 = vpop.f32.mrf.mxu0
        %v3812 = vadd.f32 0.0, %v3811
        %v3813 = vpop.f32.mrf.mxu0
        %v3814 = vpop.f32.mrf.mxu0
        %v3815 = vadd.f32 0.0, %v3814
        %v3816 = vpop.f32.mrf.mxu0
        %3817 = vmatprep.mubr.bf16.mxu0 0
        %3818 = vmatmul.mubr.bf16.gmra.mxu0 %v3625
        %v3819 = vpop.f32.mrf.mxu0
        %v3820 = vadd.f32 0.0, %v3819
        %v3821 = vpop.f32.mrf.mxu0
        %v3822 = vpop.f32.mrf.mxu0
        %v3823 = vadd.f32 0.0, %v3822
        %v3824 = vpop.f32.mrf.mxu0
        %3825 = vmatprep.mubr.bf16.mxu0 0
        %3826 = vmatmul.mubr.bf16.gmra.mxu0 %v3626
        %v3827 = vpop.f32.mrf.mxu0
        %v3828 = vadd.f32 0.0, %v3827
        %v3829 = vpop.f32.mrf.mxu0
        %v3830 = vpop.f32.mrf.mxu0
        %v3831 = vadd.f32 0.0, %v3830
        %v3832 = vpop.f32.mrf.mxu0
        %3833 = vmatprep.mubr.bf16.mxu0 0
        %3834 = vmatmul.mubr.bf16.gmra.mxu0 %v3627
        %v3835 = vpop.f32.mrf.mxu0
        %v3836 = vadd.f32 0.0, %v3835
        %v3837 = vpop.f32.mrf.mxu0
        %v3838 = vpop.f32.mrf.mxu0
        %v3839 = vadd.f32 0.0, %v3838
        %v3840 = vpop.f32.mrf.mxu0
        %3841 = vmatprep.mubr.bf16.mxu0 0
        %3842 = vmatmul.mubr.bf16.gmra.mxu0 %v3628
        %v3843 = vpop.f32.mrf.mxu0
        %v3844 = vadd.f32 0.0, %v3843
        %v3845 = vpop.f32.mrf.mxu0
        %v3846 = vpop.f32.mrf.mxu0
        %v3847 = vadd.f32 0.0, %v3846
        %v3848 = vpop.f32.mrf.mxu0
        %3849 = vmatprep.mubr.bf16.mxu0 0
        %3850 = vmatmul.mubr.bf16.gmra.mxu0 %v3629
        %v3851 = vpop.f32.mrf.mxu0
        %v3852 = vadd.f32 0.0, %v3851
        %v3853 = vpop.f32.mrf.mxu0
        %v3854 = vpop.f32.mrf.mxu0
        %v3855 = vadd.f32 0.0, %v3854
        %v3856 = vpop.f32.mrf.mxu0
        %3857 = vmatprep.mubr.bf16.mxu0 0
        %3858 = vmatmul.mubr.bf16.gmra.mxu0 %v3630
        %v3859 = vpop.f32.mrf.mxu0
        %v3860 = vadd.f32 0.0, %v3859
        %v3861 = vpop.f32.mrf.mxu0
        %v3862 = vpop.f32.mrf.mxu0
        %v3863 = vadd.f32 0.0, %v3862
        %v3864 = vpop.f32.mrf.mxu0
        %3865 = vmatprep.mubr.bf16.mxu0 0
        %3866 = vmatmul.mubr.bf16.gmra.mxu0 %v3631
        %v3867 = vpop.f32.mrf.mxu0
        %v3868 = vadd.f32 0.0, %v3867
        %v3869 = vpop.f32.mrf.mxu0
        %v3870 = vpop.f32.mrf.mxu0
        %v3871 = vadd.f32 0.0, %v3870
        %v3872 = vpop.f32.mrf.mxu0
        %3873 = vdwg.mxu0
        %v3874 = vadd.f32 %v3542, %v3732
        %v3875 = vadd.f32 %v3543, %v3735
        %v3876 = vadd.f32 %v3544, %v3740
        %v3877 = vadd.f32 %v3545, %v3743
        %v3878 = vadd.f32 %v3546, %v3748
        %v3879 = vadd.f32 %v3547, %v3751
        %v3880 = vadd.f32 %v3548, %v3756
        %v3881 = vadd.f32 %v3549, %v3759
        %v3882 = vadd.f32 %v3550, %v3764
        %v3883 = vadd.f32 %v3551, %v3767
        %v3884 = vadd.f32 %v3552, %v3772
        %v3885 = vadd.f32 %v3553, %v3775
        %v3886 = vadd.f32 %v3554, %v3780
        %v3887 = vadd.f32 %v3555, %v3783
        %v3888 = vadd.f32 %v3556, %v3788
        %v3889 = vadd.f32 %v3557, %v3791
        %v3890 = vadd.f32 %v3558, %v3796
        %v3891 = vadd.f32 %v3559, %v3799
        %v3892 = vadd.f32 %v3560, %v3804
        %v3893 = vadd.f32 %v3561, %v3807
        %v3894 = vadd.f32 %v3562, %v3812
        %v3895 = vadd.f32 %v3563, %v3815
        %v3896 = vadd.f32 %v3564, %v3820
        %v3897 = vadd.f32 %v3565, %v3823
        %v3898 = vadd.f32 %v3566, %v3828
        %v3899 = vadd.f32 %v3567, %v3831
        %v3900 = vadd.f32 %v3568, %v3836
        %v3901 = vadd.f32 %v3569, %v3839
        %v3902 = vadd.f32 %v3570, %v3844
        %v3903 = vadd.f32 %v3571, %v3847
        %v3904 = vadd.f32 %v3572, %v3852
        %v3905 = vadd.f32 %v3573, %v3855
        %v3906 = vadd.f32 %v3574, %v3860
        %v3907 = vadd.f32 %v3575, %v3863
        %v3908 = vadd.f32 %v3576, %v3868
        %v3909 = vadd.f32 %v3577, %v3871
        %v3910 = vld [vmem:[%s2 + $0x2] sm:$0x1]
        %v3911 = vlaneseq
        %v3912 = vshrl.u32 %v3911, 7
        %v3913 = vsub.s32 0, %v3912
        %v3914 = vrot.slane %v3910, %v3913
        %v3915 = vmul.f32 %v3874, %v3914
        %v3916 = vmul.f32 %v3875, %v3914
        %v3917 = vmul.f32 %v3876, %v3914
        %v3918 = vmul.f32 %v3877, %v3914
        %v3919 = vmul.f32 %v3878, %v3914
        %v3920 = vmul.f32 %v3879, %v3914
        %v3921 = vmul.f32 %v3880, %v3914
        %v3922 = vmul.f32 %v3881, %v3914
        %v3923 = vmul.f32 %v3882, %v3914
        %v3924 = vmul.f32 %v3883, %v3914
        %v3925 = vmul.f32 %v3884, %v3914
        %v3926 = vmul.f32 %v3885, %v3914
        %v3927 = vmul.f32 %v3886, %v3914
        %v3928 = vmul.f32 %v3887, %v3914
        %v3929 = vmul.f32 %v3888, %v3914
        %v3930 = vmul.f32 %v3889, %v3914
        %v3931 = vmul.f32 %v3890, %v3914
        %v3932 = vmul.f32 %v3891, %v3914
        %v3933 = vmul.f32 %v3892, %v3914
        %v3934 = vmul.f32 %v3893, %v3914
        %v3935 = vmul.f32 %v3894, %v3914
        %v3936 = vmul.f32 %v3895, %v3914
        %v3937 = vmul.f32 %v3896, %v3914
        %v3938 = vmul.f32 %v3897, %v3914
        %v3939 = vmul.f32 %v3898, %v3914
        %v3940 = vmul.f32 %v3899, %v3914
        %v3941 = vmul.f32 %v3900, %v3914
        %v3942 = vmul.f32 %v3901, %v3914
        %v3943 = vmul.f32 %v3902, %v3914
        %v3944 = vmul.f32 %v3903, %v3914
        %v3945 = vmul.f32 %v3904, %v3914
        %v3946 = vmul.f32 %v3905, %v3914
        %v3947 = vmul.f32 %v3906, %v3914
        %v3948 = vmul.f32 %v3907, %v3914
        %v3949 = vmul.f32 %v3908, %v3914
        %v3950 = vmul.f32 %v3909, %v3914
        %v3951 = vld [vmem:[%s2 + $0x3] sm:$0x1]
        %v3952 = vlaneseq
        %v3953 = vshrl.u32 %v3952, 7
        %v3954 = vsub.s32 0, %v3953
        %v3955 = vrot.slane %v3951, %v3954
        %v3956 = vadd.f32 %v3915, %v3955
        %v3957 = vadd.f32 %v3916, %v3955
        %v3958 = vadd.f32 %v3917, %v3955
        %v3959 = vadd.f32 %v3918, %v3955
        %v3960 = vadd.f32 %v3919, %v3955
        %v3961 = vadd.f32 %v3920, %v3955
        %v3962 = vadd.f32 %v3921, %v3955
        %v3963 = vadd.f32 %v3922, %v3955
        %v3964 = vadd.f32 %v3923, %v3955
        %v3965 = vadd.f32 %v3924, %v3955
        %v3966 = vadd.f32 %v3925, %v3955
        %v3967 = vadd.f32 %v3926, %v3955
        %v3968 = vadd.f32 %v3927, %v3955
        %v3969 = vadd.f32 %v3928, %v3955
        %v3970 = vadd.f32 %v3929, %v3955
        %v3971 = vadd.f32 %v3930, %v3955
        %v3972 = vadd.f32 %v3931, %v3955
        %v3973 = vadd.f32 %v3932, %v3955
        %v3974 = vadd.f32 %v3933, %v3955
        %v3975 = vadd.f32 %v3934, %v3955
        %v3976 = vadd.f32 %v3935, %v3955
        %v3977 = vadd.f32 %v3936, %v3955
        %v3978 = vadd.f32 %v3937, %v3955
        %v3979 = vadd.f32 %v3938, %v3955
        %v3980 = vadd.f32 %v3939, %v3955
        %v3981 = vadd.f32 %v3940, %v3955
        %v3982 = vadd.f32 %v3941, %v3955
        %v3983 = vadd.f32 %v3942, %v3955
        %v3984 = vadd.f32 %v3943, %v3955
        %v3985 = vadd.f32 %v3944, %v3955
        %v3986 = vadd.f32 %v3945, %v3955
        %v3987 = vadd.f32 %v3946, %v3955
        %v3988 = vadd.f32 %v3947, %v3955
        %v3989 = vadd.f32 %v3948, %v3955
        %v3990 = vadd.f32 %v3949, %v3955
        %v3991 = vadd.f32 %v3950, %v3955
        %v3992 = vmax.f32 %v3956, 0.0
        %v3993 = vmax.f32 %v3957, 0.0
        %v3994 = vmax.f32 %v3958, 0.0
        %v3995 = vmax.f32 %v3959, 0.0
        %v3996 = vmax.f32 %v3960, 0.0
        %v3997 = vmax.f32 %v3961, 0.0
        %v3998 = vmax.f32 %v3962, 0.0
        %v3999 = vmax.f32 %v3963, 0.0
        %v4000 = vmax.f32 %v3964, 0.0
        %v4001 = vmax.f32 %v3965, 0.0
        %v4002 = vmax.f32 %v3966, 0.0
        %v4003 = vmax.f32 %v3967, 0.0
        %v4004 = vmax.f32 %v3968, 0.0
        %v4005 = vmax.f32 %v3969, 0.0
        %v4006 = vmax.f32 %v3970, 0.0
        %v4007 = vmax.f32 %v3971, 0.0
        %v4008 = vmax.f32 %v3972, 0.0
        %v4009 = vmax.f32 %v3973, 0.0
        %v4010 = vmax.f32 %v3974, 0.0
        %v4011 = vmax.f32 %v3975, 0.0
        %v4012 = vmax.f32 %v3976, 0.0
        %v4013 = vmax.f32 %v3977, 0.0
        %v4014 = vmax.f32 %v3978, 0.0
        %v4015 = vmax.f32 %v3979, 0.0
        %v4016 = vmax.f32 %v3980, 0.0
        %v4017 = vmax.f32 %v3981, 0.0
        %v4018 = vmax.f32 %v3982, 0.0
        %v4019 = vmax.f32 %v3983, 0.0
        %v4020 = vmax.f32 %v3984, 0.0
        %v4021 = vmax.f32 %v3985, 0.0
        %v4022 = vmax.f32 %v3986, 0.0
        %v4023 = vmax.f32 %v3987, 0.0
        %v4024 = vmax.f32 %v3988, 0.0
        %v4025 = vmax.f32 %v3989, 0.0
        %v4026 = vmax.f32 %v3990, 0.0
        %v4027 = vmax.f32 %v3991, 0.0
        %v4028 = vmul.f32 %v3992, %v738
        %v4029 = vmul.f32 %v3993, %v743
        %v4030 = vmul.f32 %v3994, %v748
        %v4031 = vmul.f32 %v3995, %v753
        %v4032 = vmul.f32 %v3996, %v758
        %v4033 = vmul.f32 %v3997, %v763
        %v4034 = vmul.f32 %v3998, %v768
        %v4035 = vmul.f32 %v3999, %v773
        %v4036 = vmul.f32 %v4000, %v778
        %v4037 = vmul.f32 %v4001, %v783
        %v4038 = vmul.f32 %v4002, %v788
        %v4039 = vmul.f32 %v4003, %v793
        %v4040 = vmul.f32 %v4004, %v798
        %v4041 = vmul.f32 %v4005, %v803
        %v4042 = vmul.f32 %v4006, %v808
        %v4043 = vmul.f32 %v4007, %v813
        %v4044 = vmul.f32 %v4008, %v818
        %v4045 = vmul.f32 %v4009, %v823
        %v4046 = vmul.f32 %v4010, %v828
        %v4047 = vmul.f32 %v4011, %v833
        %v4048 = vmul.f32 %v4012, %v838
        %v4049 = vmul.f32 %v4013, %v843
        %v4050 = vmul.f32 %v4014, %v848
        %v4051 = vmul.f32 %v4015, %v853
        %v4052 = vmul.f32 %v4016, %v858
        %v4053 = vmul.f32 %v4017, %v863
        %v4054 = vmul.f32 %v4018, %v868
        %v4055 = vmul.f32 %v4019, %v873
        %v4056 = vmul.f32 %v4020, %v878
        %v4057 = vmul.f32 %v4021, %v883
        %v4058 = vmul.f32 %v4022, %v888
        %v4059 = vmul.f32 %v4023, %v893
        %v4060 = vmul.f32 %v4024, %v898
        %v4061 = vmul.f32 %v4025, %v903
        %v4062 = vmul.f32 %v4026, %v908
        %v4063 = vmul.f32 %v4027, %v913
        %4064 = vst [vmem:[#allocation3] sm:$0xff] 0.0
        %4065 = vst [vmem:[#allocation3 + $0x8] sm:$0xff] 0.0
        %4066 = vst [vmem:[#allocation3 + $0x10] sm:$0x7] 0.0
        %4067 = vst [vmem:[#allocation3 + $0x133] sm:$0xff] 0.0
        %4068 = vst [vmem:[#allocation3 + $0x13b] sm:$0xff] 0.0
        %4069 = vst [vmem:[#allocation3 + $0x143] sm:$0xff] 0.0
        %4070 = vst [vmem:[#allocation3 + $0x14b] sm:$0x1] 0.0
        %4071 = vst [vmem:[#allocation3 + $0x13] sm:$0xff] %v4028
        %4072 = vst [vmem:[#allocation3 + $0x1b] sm:$0xff] %v4029
        %4073 = vst [vmem:[#allocation3 + $0x23] sm:$0xff] %v4030
        %4074 = vst [vmem:[#allocation3 + $0x2b] sm:$0xff] %v4031
        %4075 = vst [vmem:[#allocation3 + $0x33] sm:$0xff] %v4032
        %4076 = vst [vmem:[#allocation3 + $0x3b] sm:$0xff] %v4033
        %4077 = vst [vmem:[#allocation3 + $0x43] sm:$0xff] %v4034
        %4078 = vst [vmem:[#allocation3 + $0x4b] sm:$0xff] %v4035
        %4079 = vst [vmem:[#allocation3 + $0x53] sm:$0xff] %v4036
        %4080 = vst [vmem:[#allocation3 + $0x5b] sm:$0xff] %v4037
        %4081 = vst [vmem:[#allocation3 + $0x63] sm:$0xff] %v4038
        %4082 = vst [vmem:[#allocation3 + $0x6b] sm:$0xff] %v4039
        %4083 = vst [vmem:[#allocation3 + $0x73] sm:$0xff] %v4040
        %4084 = vst [vmem:[#allocation3 + $0x7b] sm:$0xff] %v4041
        %4085 = vst [vmem:[#allocation3 + $0x83] sm:$0xff] %v4042
        %4086 = vst [vmem:[#allocation3 + $0x8b] sm:$0xff] %v4043
        %4087 = vst [vmem:[#allocation3 + $0x93] sm:$0xff] %v4044
        %4088 = vst [vmem:[#allocation3 + $0x9b] sm:$0xff] %v4045
        %4089 = vst [vmem:[#allocation3 + $0xa3] sm:$0xff] %v4046
        %4090 = vst [vmem:[#allocation3 + $0xab] sm:$0xff] %v4047
        %4091 = vst [vmem:[#allocation3 + $0xb3] sm:$0xff] %v4048
        %4092 = vst [vmem:[#allocation3 + $0xbb] sm:$0xff] %v4049
        %4093 = vst [vmem:[#allocation3 + $0xc3] sm:$0xff] %v4050
        %4094 = vst [vmem:[#allocation3 + $0xcb] sm:$0xff] %v4051
        %4095 = vst [vmem:[#allocation3 + $0xd3] sm:$0xff] %v4052
        %4096 = vst [vmem:[#allocation3 + $0xdb] sm:$0xff] %v4053
        %4097 = vst [vmem:[#allocation3 + $0xe3] sm:$0xff] %v4054
        %4098 = vst [vmem:[#allocation3 + $0xeb] sm:$0xff] %v4055
        %4099 = vst [vmem:[#allocation3 + $0xf3] sm:$0xff] %v4056
        %4100 = vst [vmem:[#allocation3 + $0xfb] sm:$0xff] %v4057
        %4101 = vst [vmem:[#allocation3 + $0x103] sm:$0xff] %v4058
        %4102 = vst [vmem:[#allocation3 + $0x10b] sm:$0xff] %v4059
        %4103 = vst [vmem:[#allocation3 + $0x113] sm:$0xff] %v4060
        %4104 = vst [vmem:[#allocation3 + $0x11b] sm:$0xff] %v4061
        %4105 = vst [vmem:[#allocation3 + $0x123] sm:$0xff] %v4062
        %4106 = vst [vmem:[#allocation3 + $0x12b] sm:$0xff] %v4063
        %v4107 = vld [vmem:[#allocation2 + $0x13] sm:$0xff]
        %v4108 = vld [vmem:[#allocation2 + $0x1b] sm:$0xff]
        %v4109 = vld [vmem:[#allocation2 + $0x23] sm:$0xff]
        %v4110 = vld [vmem:[#allocation2 + $0x2b] sm:$0xff]
        %v4111 = vld [vmem:[#allocation2 + $0x33] sm:$0xff]
        %v4112 = vld [vmem:[#allocation2 + $0x3b] sm:$0xff]
        %v4113 = vld [vmem:[#allocation2 + $0x43] sm:$0xff]
        %v4114 = vld [vmem:[#allocation2 + $0x4b] sm:$0xff]
        %v4115 = vld [vmem:[#allocation2 + $0x53] sm:$0xff]
        %v4116 = vld [vmem:[#allocation2 + $0x5b] sm:$0xff]
        %v4117 = vld [vmem:[#allocation2 + $0x63] sm:$0xff]
        %v4118 = vld [vmem:[#allocation2 + $0x6b] sm:$0xff]
        %v4119 = vld [vmem:[#allocation2 + $0x73] sm:$0xff]
        %v4120 = vld [vmem:[#allocation2 + $0x7b] sm:$0xff]
        %v4121 = vld [vmem:[#allocation2 + $0x83] sm:$0xff]
        %v4122 = vld [vmem:[#allocation2 + $0x8b] sm:$0xff]
        %v4123 = vld [vmem:[#allocation2 + $0x93] sm:$0xff]
        %v4124 = vld [vmem:[#allocation2 + $0x9b] sm:$0xff]
        %v4125 = vld [vmem:[#allocation2 + $0xa3] sm:$0xff]
        %v4126 = vld [vmem:[#allocation2 + $0xab] sm:$0xff]
        %v4127 = vld [vmem:[#allocation2 + $0xb3] sm:$0xff]
        %v4128 = vld [vmem:[#allocation2 + $0xbb] sm:$0xff]
        %v4129 = vld [vmem:[#allocation2 + $0xc3] sm:$0xff]
        %v4130 = vld [vmem:[#allocation2 + $0xcb] sm:$0xff]
        %v4131 = vld [vmem:[#allocation2 + $0xd3] sm:$0xff]
        %v4132 = vld [vmem:[#allocation2 + $0xdb] sm:$0xff]
        %v4133 = vld [vmem:[#allocation2 + $0xe3] sm:$0xff]
        %v4134 = vld [vmem:[#allocation2 + $0xeb] sm:$0xff]
        %v4135 = vld [vmem:[#allocation2 + $0xf3] sm:$0xff]
        %v4136 = vld [vmem:[#allocation2 + $0xfb] sm:$0xff]
        %v4137 = vld [vmem:[#allocation2 + $0x103] sm:$0xff]
        %v4138 = vld [vmem:[#allocation2 + $0x10b] sm:$0xff]
        %v4139 = vld [vmem:[#allocation2 + $0x113] sm:$0xff]
        %v4140 = vld [vmem:[#allocation2 + $0x11b] sm:$0xff]
        %v4141 = vld [vmem:[#allocation2 + $0x123] sm:$0xff]
        %v4142 = vld [vmem:[#allocation2 + $0x12b] sm:$0xff]
        %v4143 = vld [vmem:[#allocation3] sm:$0xff]
        %v4144 = vld [vmem:[#allocation3 + $0x8] sm:$0xff]
        %v4145 = vld [vmem:[#allocation3 + $0x10] sm:$0xff]
        %v4146 = vld [vmem:[#allocation3 + $0x18] sm:$0xff]
        %v4147 = vld [vmem:[#allocation3 + $0x20] sm:$0xff]
        %v4148 = vld [vmem:[#allocation3 + $0x28] sm:$0xff]
        %v4149 = vld [vmem:[#allocation3 + $0x30] sm:$0xff]
        %v4150 = vld [vmem:[#allocation3 + $0x38] sm:$0xff]
        %v4151 = vld [vmem:[#allocation3 + $0x40] sm:$0xff]
        %v4152 = vld [vmem:[#allocation3 + $0x48] sm:$0xff]
        %v4153 = vld [vmem:[#allocation3 + $0x50] sm:$0xff]
        %v4154 = vld [vmem:[#allocation3 + $0x58] sm:$0xff]
        %v4155 = vld [vmem:[#allocation3 + $0x60] sm:$0xff]
        %v4156 = vld [vmem:[#allocation3 + $0x68] sm:$0xff]
        %v4157 = vld [vmem:[#allocation3 + $0x70] sm:$0xff]
        %v4158 = vld [vmem:[#allocation3 + $0x78] sm:$0xff]
        %v4159 = vld [vmem:[#allocation3 + $0x80] sm:$0xff]
        %v4160 = vld [vmem:[#allocation3 + $0x88] sm:$0xff]
        %v4161 = vld [vmem:[#allocation3 + $0x90] sm:$0xff]
        %v4162 = vld [vmem:[#allocation3 + $0x98] sm:$0xff]
        %v4163 = vld [vmem:[#allocation3 + $0xa0] sm:$0xff]
        %v4164 = vld [vmem:[#allocation3 + $0xa8] sm:$0xff]
        %v4165 = vld [vmem:[#allocation3 + $0xb0] sm:$0xff]
        %v4166 = vld [vmem:[#allocation3 + $0xb8] sm:$0xff]
        %v4167 = vld [vmem:[#allocation3 + $0xc0] sm:$0xff]
        %v4168 = vld [vmem:[#allocation3 + $0xc8] sm:$0xff]
        %v4169 = vld [vmem:[#allocation3 + $0xd0] sm:$0xff]
        %v4170 = vld [vmem:[#allocation3 + $0xd8] sm:$0xff]
        %v4171 = vld [vmem:[#allocation3 + $0xe0] sm:$0xff]
        %v4172 = vld [vmem:[#allocation3 + $0xe8] sm:$0xff]
        %v4173 = vld [vmem:[#allocation3 + $0xf0] sm:$0xff]
        %v4174 = vld [vmem:[#allocation3 + $0xf8] sm:$0xff]
        %v4175 = vld [vmem:[#allocation3 + $0x100] sm:$0xff]
        %v4176 = vld [vmem:[#allocation3 + $0x108] sm:$0xff]
        %v4177 = vld [vmem:[#allocation3 + $0x110] sm:$0xff]
        %v4178 = vld [vmem:[#allocation3 + $0x118] sm:$0xff]
        %v4179 = vpack.c.bf16 %v4144, %v4143
        %v4180 = vpack.c.bf16 %v4146, %v4145
        %v4181 = vpack.c.bf16 %v4148, %v4147
        %v4182 = vpack.c.bf16 %v4150, %v4149
        %v4183 = vpack.c.bf16 %v4152, %v4151
        %v4184 = vpack.c.bf16 %v4154, %v4153
        %v4185 = vpack.c.bf16 %v4156, %v4155
        %v4186 = vpack.c.bf16 %v4158, %v4157
        %v4187 = vpack.c.bf16 %v4160, %v4159
        %v4188 = vpack.c.bf16 %v4162, %v4161
        %v4189 = vpack.c.bf16 %v4164, %v4163
        %v4190 = vpack.c.bf16 %v4166, %v4165
        %v4191 = vpack.c.bf16 %v4168, %v4167
        %v4192 = vpack.c.bf16 %v4170, %v4169
        %v4193 = vpack.c.bf16 %v4172, %v4171
        %v4194 = vpack.c.bf16 %v4174, %v4173
        %v4195 = vpack.c.bf16 %v4176, %v4175
        %v4196 = vpack.c.bf16 %v4178, %v4177
        %s4197 = scalar_lea.vmem %s1, 640
        %v4198 = vld [vmem:[%s4197] sm:$0xf]
        %v4199 = vld [vmem:[%s4197 + $0x4] sm:$0xf]
        %v4200 = vld [vmem:[%s4197 + $0x8] sm:$0xf]
        %v4201 = vld [vmem:[%s4197 + $0xc] sm:$0xf]
        %v4202 = vld [vmem:[%s4197 + $0x10] sm:$0xf]
        %v4203 = vld [vmem:[%s4197 + $0x14] sm:$0xf]
        %v4204 = vld [vmem:[%s4197 + $0x18] sm:$0xf]
        %v4205 = vld [vmem:[%s4197 + $0x1c] sm:$0xf]
        %v4206 = vld [vmem:[%s4197 + $0x20] sm:$0xf]
        %v4207 = vld [vmem:[%s4197 + $0x24] sm:$0xf]
        %v4208 = vld [vmem:[%s4197 + $0x28] sm:$0xf]
        %v4209 = vld [vmem:[%s4197 + $0x2c] sm:$0xf]
        %v4210 = vld [vmem:[%s4197 + $0x30] sm:$0xf]
        %v4211 = vld [vmem:[%s4197 + $0x34] sm:$0xf]
        %v4212 = vld [vmem:[%s4197 + $0x38] sm:$0xf]
        %v4213 = vld [vmem:[%s4197 + $0x3c] sm:$0xf]
        %v4214 = vld [vmem:[#allocation3 + $0x1] sm:$0xff]
        %v4215 = vld [vmem:[#allocation3 + $0x9] sm:$0xff]
        %v4216 = vld [vmem:[#allocation3 + $0x11] sm:$0xff]
        %v4217 = vld [vmem:[#allocation3 + $0x19] sm:$0xff]
        %v4218 = vld [vmem:[#allocation3 + $0x21] sm:$0xff]
        %v4219 = vld [vmem:[#allocation3 + $0x29] sm:$0xff]
        %v4220 = vld [vmem:[#allocation3 + $0x31] sm:$0xff]
        %v4221 = vld [vmem:[#allocation3 + $0x39] sm:$0xff]
        %v4222 = vld [vmem:[#allocation3 + $0x41] sm:$0xff]
        %v4223 = vld [vmem:[#allocation3 + $0x49] sm:$0xff]
        %v4224 = vld [vmem:[#allocation3 + $0x51] sm:$0xff]
        %v4225 = vld [vmem:[#allocation3 + $0x59] sm:$0xff]
        %v4226 = vld [vmem:[#allocation3 + $0x61] sm:$0xff]
        %v4227 = vld [vmem:[#allocation3 + $0x69] sm:$0xff]
        %v4228 = vld [vmem:[#allocation3 + $0x71] sm:$0xff]
        %v4229 = vld [vmem:[#allocation3 + $0x79] sm:$0xff]
        %v4230 = vld [vmem:[#allocation3 + $0x81] sm:$0xff]
        %v4231 = vld [vmem:[#allocation3 + $0x89] sm:$0xff]
        %v4232 = vld [vmem:[#allocation3 + $0x91] sm:$0xff]
        %v4233 = vld [vmem:[#allocation3 + $0x99] sm:$0xff]
        %v4234 = vld [vmem:[#allocation3 + $0xa1] sm:$0xff]
        %v4235 = vld [vmem:[#allocation3 + $0xa9] sm:$0xff]
        %v4236 = vld [vmem:[#allocation3 + $0xb1] sm:$0xff]
        %v4237 = vld [vmem:[#allocation3 + $0xb9] sm:$0xff]
        %v4238 = vld [vmem:[#allocation3 + $0xc1] sm:$0xff]
        %v4239 = vld [vmem:[#allocation3 + $0xc9] sm:$0xff]
        %v4240 = vld [vmem:[#allocation3 + $0xd1] sm:$0xff]
        %v4241 = vld [vmem:[#allocation3 + $0xd9] sm:$0xff]
        %v4242 = vld [vmem:[#allocation3 + $0xe1] sm:$0xff]
        %v4243 = vld [vmem:[#allocation3 + $0xe9] sm:$0xff]
        %v4244 = vld [vmem:[#allocation3 + $0xf1] sm:$0xff]
        %v4245 = vld [vmem:[#allocation3 + $0xf9] sm:$0xff]
        %v4246 = vld [vmem:[#allocation3 + $0x101] sm:$0xff]
        %v4247 = vld [vmem:[#allocation3 + $0x109] sm:$0xff]
        %v4248 = vld [vmem:[#allocation3 + $0x111] sm:$0xff]
        %v4249 = vld [vmem:[#allocation3 + $0x119] sm:$0xff]
        %v4250 = vpack.c.bf16 %v4215, %v4214
        %v4251 = vpack.c.bf16 %v4217, %v4216
        %v4252 = vpack.c.bf16 %v4219, %v4218
        %v4253 = vpack.c.bf16 %v4221, %v4220
        %v4254 = vpack.c.bf16 %v4223, %v4222
        %v4255 = vpack.c.bf16 %v4225, %v4224
        %v4256 = vpack.c.bf16 %v4227, %v4226
        %v4257 = vpack.c.bf16 %v4229, %v4228
        %v4258 = vpack.c.bf16 %v4231, %v4230
        %v4259 = vpack.c.bf16 %v4233, %v4232
        %v4260 = vpack.c.bf16 %v4235, %v4234
        %v4261 = vpack.c.bf16 %v4237, %v4236
        %v4262 = vpack.c.bf16 %v4239, %v4238
        %v4263 = vpack.c.bf16 %v4241, %v4240
        %v4264 = vpack.c.bf16 %v4243, %v4242
        %v4265 = vpack.c.bf16 %v4245, %v4244
        %v4266 = vpack.c.bf16 %v4247, %v4246
        %v4267 = vpack.c.bf16 %v4249, %v4248
        %s4268 = scalar_lea.vmem %s1, 704
        %v4269 = vld [vmem:[%s4268] sm:$0xf]
        %v4270 = vld [vmem:[%s4268 + $0x4] sm:$0xf]
        %v4271 = vld [vmem:[%s4268 + $0x8] sm:$0xf]
        %v4272 = vld [vmem:[%s4268 + $0xc] sm:$0xf]
        %v4273 = vld [vmem:[%s4268 + $0x10] sm:$0xf]
        %v4274 = vld [vmem:[%s4268 + $0x14] sm:$0xf]
        %v4275 = vld [vmem:[%s4268 + $0x18] sm:$0xf]
        %v4276 = vld [vmem:[%s4268 + $0x1c] sm:$0xf]
        %v4277 = vld [vmem:[%s4268 + $0x20] sm:$0xf]
        %v4278 = vld [vmem:[%s4268 + $0x24] sm:$0xf]
        %v4279 = vld [vmem:[%s4268 + $0x28] sm:$0xf]
        %v4280 = vld [vmem:[%s4268 + $0x2c] sm:$0xf]
        %v4281 = vld [vmem:[%s4268 + $0x30] sm:$0xf]
        %v4282 = vld [vmem:[%s4268 + $0x34] sm:$0xf]
        %v4283 = vld [vmem:[%s4268 + $0x38] sm:$0xf]
        %v4284 = vld [vmem:[%s4268 + $0x3c] sm:$0xf]
        %v4301 = vunpack.c.l.b16 %v4269
        %v4302 = vunpack.c.l.b16 %v4270
        %v4303 = vunpack.c.l.b16 %v4271
        %v4304 = vunpack.c.l.b16 %v4272
        %v4305 = vunpack.c.l.b16 %v4273
        %v4306 = vunpack.c.l.b16 %v4274
        %v4307 = vunpack.c.l.b16 %v4275
        %v4308 = vunpack.c.l.b16 %v4276
        %v4309 = vunpack.c.l.b16 %v4277
        %v4310 = vunpack.c.l.b16 %v4278
        %v4311 = vunpack.c.l.b16 %v4279
        %v4312 = vunpack.c.l.b16 %v4280
        %v4313 = vunpack.c.l.b16 %v4281
        %v4314 = vunpack.c.l.b16 %v4282
        %v4315 = vunpack.c.l.b16 %v4283
        %v4316 = vunpack.c.l.b16 %v4284
        %v4317 = vpack.c.b16 %v4302, %v4301
        %v4318 = vpack.c.b16 %v4304, %v4303
        %v4319 = vpack.c.b16 %v4306, %v4305
        %v4320 = vpack.c.b16 %v4308, %v4307
        %v4321 = vpack.c.b16 %v4310, %v4309
        %v4322 = vpack.c.b16 %v4312, %v4311
        %v4323 = vpack.c.b16 %v4314, %v4313
        %v4324 = vpack.c.b16 %v4316, %v4315
        %4333 = vmatprep.subr.bf16.mxu0 0
        %4334 = vmatpush1.bf16.msra.mxu0 %v4324
        %4335 = vmatprep.subr.bf16.mxu0 0
        %4336 = vmatpush1.bf16.msra.mxu0 %v4323
        %4337 = vmatprep.subr.bf16.mxu0 0
        %4338 = vmatpush1.bf16.msra.mxu0 %v4322
        %4339 = vmatprep.subr.bf16.mxu0 0
        %4340 = vmatpush1.bf16.msra.mxu0 %v4321
        %4341 = vmatprep.subr.bf16.mxu0 0
        %4342 = vmatpush1.bf16.msra.mxu0 %v4320
        %4343 = vmatprep.subr.bf16.mxu0 0
        %4344 = vmatpush1.bf16.msra.mxu0 %v4319
        %4345 = vmatprep.subr.bf16.mxu0 0
        %4346 = vmatpush1.bf16.msra.mxu0 %v4318
        %4347 = vmatprep.subr.bf16.mxu0 0
        %4348 = vmatpush1.bf16.msra.mxu0 %v4317
        %4349 = vmatprep.subr.bf16.mxu0 0
        %4350 = vmatpush2.bf16.msra.mxu0 0
        %4351 = vmatprep.subr.bf16.mxu0 0
        %4352 = vmatpush2.bf16.msra.mxu0 0
        %4353 = vmatprep.subr.bf16.mxu0 0
        %4354 = vmatpush2.bf16.msra.mxu0 0
        %4355 = vmatprep.subr.bf16.mxu0 0
        %4356 = vmatpush2.bf16.msra.mxu0 0
        %4357 = vmatprep.subr.bf16.mxu0 0
        %4358 = vmatpush2.bf16.msra.mxu0 0
        %4359 = vmatprep.subr.bf16.mxu0 0
        %4360 = vmatpush2.bf16.msra.mxu0 0
        %4361 = vmatprep.subr.bf16.mxu0 0
        %4362 = vmatpush2.bf16.msra.mxu0 0
        %4363 = vmatprep.subr.bf16.mxu0 0
        %4364 = vmatpush2.bf16.msra.mxu0 0
        %4365 = vmatprep.mubr.bf16.mxu0 0
        %4366 = vmatmul.mubr.bf16.gmra.mxu0 %v4250
        %v4367 = vpop.f32.mrf.mxu0
        %v4368 = vadd.f32 0.0, %v4367
        %v4369 = vpop.f32.mrf.mxu0
        %v4370 = vpop.f32.mrf.mxu0
        %v4371 = vadd.f32 0.0, %v4370
        %v4372 = vpop.f32.mrf.mxu0
        %4373 = vmatprep.mubr.bf16.mxu0 0
        %4374 = vmatmul.mubr.bf16.gmra.mxu0 %v4251
        %v4375 = vpop.f32.mrf.mxu0
        %v4376 = vadd.f32 0.0, %v4375
        %v4377 = vpop.f32.mrf.mxu0
        %v4378 = vpop.f32.mrf.mxu0
        %v4379 = vadd.f32 0.0, %v4378
        %v4380 = vpop.f32.mrf.mxu0
        %4381 = vmatprep.mubr.bf16.mxu0 0
        %4382 = vmatmul.mubr.bf16.gmra.mxu0 %v4252
        %v4383 = vpop.f32.mrf.mxu0
        %v4384 = vadd.f32 0.0, %v4383
        %v4385 = vpop.f32.mrf.mxu0
        %v4386 = vpop.f32.mrf.mxu0
        %v4387 = vadd.f32 0.0, %v4386
        %v4388 = vpop.f32.mrf.mxu0
        %4389 = vmatprep.mubr.bf16.mxu0 0
        %4390 = vmatmul.mubr.bf16.gmra.mxu0 %v4253
        %v4391 = vpop.f32.mrf.mxu0
        %v4392 = vadd.f32 0.0, %v4391
        %v4393 = vpop.f32.mrf.mxu0
        %v4394 = vpop.f32.mrf.mxu0
        %v4395 = vadd.f32 0.0, %v4394
        %v4396 = vpop.f32.mrf.mxu0
        %4397 = vmatprep.mubr.bf16.mxu0 0
        %4398 = vmatmul.mubr.bf16.gmra.mxu0 %v4254
        %v4399 = vpop.f32.mrf.mxu0
        %v4400 = vadd.f32 0.0, %v4399
        %v4401 = vpop.f32.mrf.mxu0
        %v4402 = vpop.f32.mrf.mxu0
        %v4403 = vadd.f32 0.0, %v4402
        %v4404 = vpop.f32.mrf.mxu0
        %4405 = vmatprep.mubr.bf16.mxu0 0
        %4406 = vmatmul.mubr.bf16.gmra.mxu0 %v4255
        %v4407 = vpop.f32.mrf.mxu0
        %v4408 = vadd.f32 0.0, %v4407
        %v4409 = vpop.f32.mrf.mxu0
        %v4410 = vpop.f32.mrf.mxu0
        %v4411 = vadd.f32 0.0, %v4410
        %v4412 = vpop.f32.mrf.mxu0
        %4413 = vmatprep.mubr.bf16.mxu0 0
        %4414 = vmatmul.mubr.bf16.gmra.mxu0 %v4256
        %v4415 = vpop.f32.mrf.mxu0
        %v4416 = vadd.f32 0.0, %v4415
        %v4417 = vpop.f32.mrf.mxu0
        %v4418 = vpop.f32.mrf.mxu0
        %v4419 = vadd.f32 0.0, %v4418
        %v4420 = vpop.f32.mrf.mxu0
        %4421 = vmatprep.mubr.bf16.mxu0 0
        %4422 = vmatmul.mubr.bf16.gmra.mxu0 %v4257
        %v4423 = vpop.f32.mrf.mxu0
        %v4424 = vadd.f32 0.0, %v4423
        %v4425 = vpop.f32.mrf.mxu0
        %v4426 = vpop.f32.mrf.mxu0
        %v4427 = vadd.f32 0.0, %v4426
        %v4428 = vpop.f32.mrf.mxu0
        %4429 = vmatprep.mubr.bf16.mxu0 0
        %4430 = vmatmul.mubr.bf16.gmra.mxu0 %v4258
        %v4431 = vpop.f32.mrf.mxu0
        %v4432 = vadd.f32 0.0, %v4431
        %v4433 = vpop.f32.mrf.mxu0
        %v4434 = vpop.f32.mrf.mxu0
        %v4435 = vadd.f32 0.0, %v4434
        %v4436 = vpop.f32.mrf.mxu0
        %4437 = vmatprep.mubr.bf16.mxu0 0
        %4438 = vmatmul.mubr.bf16.gmra.mxu0 %v4259
        %v4439 = vpop.f32.mrf.mxu0
        %v4440 = vadd.f32 0.0, %v4439
        %v4441 = vpop.f32.mrf.mxu0
        %v4442 = vpop.f32.mrf.mxu0
        %v4443 = vadd.f32 0.0, %v4442
        %v4444 = vpop.f32.mrf.mxu0
        %4445 = vmatprep.mubr.bf16.mxu0 0
        %4446 = vmatmul.mubr.bf16.gmra.mxu0 %v4260
        %v4447 = vpop.f32.mrf.mxu0
        %v4448 = vadd.f32 0.0, %v4447
        %v4449 = vpop.f32.mrf.mxu0
        %v4450 = vpop.f32.mrf.mxu0
        %v4451 = vadd.f32 0.0, %v4450
        %v4452 = vpop.f32.mrf.mxu0
        %4453 = vmatprep.mubr.bf16.mxu0 0
        %4454 = vmatmul.mubr.bf16.gmra.mxu0 %v4261
        %v4455 = vpop.f32.mrf.mxu0
        %v4456 = vadd.f32 0.0, %v4455
        %v4457 = vpop.f32.mrf.mxu0
        %v4458 = vpop.f32.mrf.mxu0
        %v4459 = vadd.f32 0.0, %v4458
        %v4460 = vpop.f32.mrf.mxu0
        %4461 = vmatprep.mubr.bf16.mxu0 0
        %4462 = vmatmul.mubr.bf16.gmra.mxu0 %v4262
        %v4463 = vpop.f32.mrf.mxu0
        %v4464 = vadd.f32 0.0, %v4463
        %v4465 = vpop.f32.mrf.mxu0
        %v4466 = vpop.f32.mrf.mxu0
        %v4467 = vadd.f32 0.0, %v4466
        %v4468 = vpop.f32.mrf.mxu0
        %4469 = vmatprep.mubr.bf16.mxu0 0
        %4470 = vmatmul.mubr.bf16.gmra.mxu0 %v4263
        %v4471 = vpop.f32.mrf.mxu0
        %v4472 = vadd.f32 0.0, %v4471
        %v4473 = vpop.f32.mrf.mxu0
        %v4474 = vpop.f32.mrf.mxu0
        %v4475 = vadd.f32 0.0, %v4474
        %v4476 = vpop.f32.mrf.mxu0
        %4477 = vmatprep.mubr.bf16.mxu0 0
        %4478 = vmatmul.mubr.bf16.gmra.mxu0 %v4264
        %v4479 = vpop.f32.mrf.mxu0
        %v4480 = vadd.f32 0.0, %v4479
        %v4481 = vpop.f32.mrf.mxu0
        %v4482 = vpop.f32.mrf.mxu0
        %v4483 = vadd.f32 0.0, %v4482
        %v4484 = vpop.f32.mrf.mxu0
        %4485 = vmatprep.mubr.bf16.mxu0 0
        %4486 = vmatmul.mubr.bf16.gmra.mxu0 %v4265
        %v4487 = vpop.f32.mrf.mxu0
        %v4488 = vadd.f32 0.0, %v4487
        %v4489 = vpop.f32.mrf.mxu0
        %v4490 = vpop.f32.mrf.mxu0
        %v4491 = vadd.f32 0.0, %v4490
        %v4492 = vpop.f32.mrf.mxu0
        %4493 = vmatprep.mubr.bf16.mxu0 0
        %4494 = vmatmul.mubr.bf16.gmra.mxu0 %v4266
        %v4495 = vpop.f32.mrf.mxu0
        %v4496 = vadd.f32 0.0, %v4495
        %v4497 = vpop.f32.mrf.mxu0
        %v4498 = vpop.f32.mrf.mxu0
        %v4499 = vadd.f32 0.0, %v4498
        %v4500 = vpop.f32.mrf.mxu0
        %4501 = vmatprep.mubr.bf16.mxu0 0
        %4502 = vmatmul.mubr.bf16.gmra.mxu0 %v4267
        %v4503 = vpop.f32.mrf.mxu0
        %v4504 = vadd.f32 0.0, %v4503
        %v4505 = vpop.f32.mrf.mxu0
        %v4506 = vpop.f32.mrf.mxu0
        %v4507 = vadd.f32 0.0, %v4506
        %v4508 = vpop.f32.mrf.mxu0
        %4509 = vdwg.mxu0
        %v4526 = vunpack.c.l.b16 %v4198
        %v4527 = vunpack.c.l.b16 %v4199
        %v4528 = vunpack.c.l.b16 %v4200
        %v4529 = vunpack.c.l.b16 %v4201
        %v4530 = vunpack.c.l.b16 %v4202
        %v4531 = vunpack.c.l.b16 %v4203
        %v4532 = vunpack.c.l.b16 %v4204
        %v4533 = vunpack.c.l.b16 %v4205
        %v4534 = vunpack.c.l.b16 %v4206
        %v4535 = vunpack.c.l.b16 %v4207
        %v4536 = vunpack.c.l.b16 %v4208
        %v4537 = vunpack.c.l.b16 %v4209
        %v4538 = vunpack.c.l.b16 %v4210
        %v4539 = vunpack.c.l.b16 %v4211
        %v4540 = vunpack.c.l.b16 %v4212
        %v4541 = vunpack.c.l.b16 %v4213
        %v4542 = vpack.c.b16 %v4527, %v4526
        %v4543 = vpack.c.b16 %v4529, %v4528
        %v4544 = vpack.c.b16 %v4531, %v4530
        %v4545 = vpack.c.b16 %v4533, %v4532
        %v4546 = vpack.c.b16 %v4535, %v4534
        %v4547 = vpack.c.b16 %v4537, %v4536
        %v4548 = vpack.c.b16 %v4539, %v4538
        %v4549 = vpack.c.b16 %v4541, %v4540
        %4558 = vmatprep.subr.bf16.mxu0 0
        %4559 = vmatpush1.bf16.msra.mxu0 %v4549
        %4560 = vmatprep.subr.bf16.mxu0 0
        %4561 = vmatpush1.bf16.msra.mxu0 %v4548
        %4562 = vmatprep.subr.bf16.mxu0 0
        %4563 = vmatpush1.bf16.msra.mxu0 %v4547
        %4564 = vmatprep.subr.bf16.mxu0 0
        %4565 = vmatpush1.bf16.msra.mxu0 %v4546
        %4566 = vmatprep.subr.bf16.mxu0 0
        %4567 = vmatpush1.bf16.msra.mxu0 %v4545
        %4568 = vmatprep.subr.bf16.mxu0 0
        %4569 = vmatpush1.bf16.msra.mxu0 %v4544
        %4570 = vmatprep.subr.bf16.mxu0 0
        %4571 = vmatpush1.bf16.msra.mxu0 %v4543
        %4572 = vmatprep.subr.bf16.mxu0 0
        %4573 = vmatpush1.bf16.msra.mxu0 %v4542
        %4574 = vmatprep.subr.bf16.mxu0 0
        %4575 = vmatpush2.bf16.msra.mxu0 0
        %4576 = vmatprep.subr.bf16.mxu0 0
        %4577 = vmatpush2.bf16.msra.mxu0 0
        %4578 = vmatprep.subr.bf16.mxu0 0
        %4579 = vmatpush2.bf16.msra.mxu0 0
        %4580 = vmatprep.subr.bf16.mxu0 0
        %4581 = vmatpush2.bf16.msra.mxu0 0
        %4582 = vmatprep.subr.bf16.mxu0 0
        %4583 = vmatpush2.bf16.msra.mxu0 0
        %4584 = vmatprep.subr.bf16.mxu0 0
        %4585 = vmatpush2.bf16.msra.mxu0 0
        %4586 = vmatprep.subr.bf16.mxu0 0
        %4587 = vmatpush2.bf16.msra.mxu0 0
        %4588 = vmatprep.subr.bf16.mxu0 0
        %4589 = vmatpush2.bf16.msra.mxu0 0
        %4590 = vmatprep.mubr.bf16.mxu0 0
        %4591 = vmatmul.mubr.bf16.gmra.mxu0 %v4179
        %v4592 = vpop.f32.mrf.mxu0
        %v4593 = vadd.f32 %v4368, %v4592
        %v4594 = vpop.f32.mrf.mxu0
        %v4595 = vpop.f32.mrf.mxu0
        %v4596 = vadd.f32 %v4371, %v4595
        %v4597 = vpop.f32.mrf.mxu0
        %4598 = vmatprep.mubr.bf16.mxu0 0
        %4599 = vmatmul.mubr.bf16.gmra.mxu0 %v4180
        %v4600 = vpop.f32.mrf.mxu0
        %v4601 = vadd.f32 %v4376, %v4600
        %v4602 = vpop.f32.mrf.mxu0
        %v4603 = vpop.f32.mrf.mxu0
        %v4604 = vadd.f32 %v4379, %v4603
        %v4605 = vpop.f32.mrf.mxu0
        %4606 = vmatprep.mubr.bf16.mxu0 0
        %4607 = vmatmul.mubr.bf16.gmra.mxu0 %v4181
        %v4608 = vpop.f32.mrf.mxu0
        %v4609 = vadd.f32 %v4384, %v4608
        %v4610 = vpop.f32.mrf.mxu0
        %v4611 = vpop.f32.mrf.mxu0
        %v4612 = vadd.f32 %v4387, %v4611
        %v4613 = vpop.f32.mrf.mxu0
        %4614 = vmatprep.mubr.bf16.mxu0 0
        %4615 = vmatmul.mubr.bf16.gmra.mxu0 %v4182
        %v4616 = vpop.f32.mrf.mxu0
        %v4617 = vadd.f32 %v4392, %v4616
        %v4618 = vpop.f32.mrf.mxu0
        %v4619 = vpop.f32.mrf.mxu0
        %v4620 = vadd.f32 %v4395, %v4619
        %v4621 = vpop.f32.mrf.mxu0
        %4622 = vmatprep.mubr.bf16.mxu0 0
        %4623 = vmatmul.mubr.bf16.gmra.mxu0 %v4183
        %v4624 = vpop.f32.mrf.mxu0
        %v4625 = vadd.f32 %v4400, %v4624
        %v4626 = vpop.f32.mrf.mxu0
        %v4627 = vpop.f32.mrf.mxu0
        %v4628 = vadd.f32 %v4403, %v4627
        %v4629 = vpop.f32.mrf.mxu0
        %4630 = vmatprep.mubr.bf16.mxu0 0
        %4631 = vmatmul.mubr.bf16.gmra.mxu0 %v4184
        %v4632 = vpop.f32.mrf.mxu0
        %v4633 = vadd.f32 %v4408, %v4632
        %v4634 = vpop.f32.mrf.mxu0
        %v4635 = vpop.f32.mrf.mxu0
        %v4636 = vadd.f32 %v4411, %v4635
        %v4637 = vpop.f32.mrf.mxu0
        %4638 = vmatprep.mubr.bf16.mxu0 0
        %4639 = vmatmul.mubr.bf16.gmra.mxu0 %v4185
        %v4640 = vpop.f32.mrf.mxu0
        %v4641 = vadd.f32 %v4416, %v4640
        %v4642 = vpop.f32.mrf.mxu0
        %v4643 = vpop.f32.mrf.mxu0
        %v4644 = vadd.f32 %v4419, %v4643
        %v4645 = vpop.f32.mrf.mxu0
        %4646 = vmatprep.mubr.bf16.mxu0 0
        %4647 = vmatmul.mubr.bf16.gmra.mxu0 %v4186
        %v4648 = vpop.f32.mrf.mxu0
        %v4649 = vadd.f32 %v4424, %v4648
        %v4650 = vpop.f32.mrf.mxu0
        %v4651 = vpop.f32.mrf.mxu0
        %v4652 = vadd.f32 %v4427, %v4651
        %v4653 = vpop.f32.mrf.mxu0
        %4654 = vmatprep.mubr.bf16.mxu0 0
        %4655 = vmatmul.mubr.bf16.gmra.mxu0 %v4187
        %v4656 = vpop.f32.mrf.mxu0
        %v4657 = vadd.f32 %v4432, %v4656
        %v4658 = vpop.f32.mrf.mxu0
        %v4659 = vpop.f32.mrf.mxu0
        %v4660 = vadd.f32 %v4435, %v4659
        %v4661 = vpop.f32.mrf.mxu0
        %4662 = vmatprep.mubr.bf16.mxu0 0
        %4663 = vmatmul.mubr.bf16.gmra.mxu0 %v4188
        %v4664 = vpop.f32.mrf.mxu0
        %v4665 = vadd.f32 %v4440, %v4664
        %v4666 = vpop.f32.mrf.mxu0
        %v4667 = vpop.f32.mrf.mxu0
        %v4668 = vadd.f32 %v4443, %v4667
        %v4669 = vpop.f32.mrf.mxu0
        %4670 = vmatprep.mubr.bf16.mxu0 0
        %4671 = vmatmul.mubr.bf16.gmra.mxu0 %v4189
        %v4672 = vpop.f32.mrf.mxu0
        %v4673 = vadd.f32 %v4448, %v4672
        %v4674 = vpop.f32.mrf.mxu0
        %v4675 = vpop.f32.mrf.mxu0
        %v4676 = vadd.f32 %v4451, %v4675
        %v4677 = vpop.f32.mrf.mxu0
        %4678 = vmatprep.mubr.bf16.mxu0 0
        %4679 = vmatmul.mubr.bf16.gmra.mxu0 %v4190
        %v4680 = vpop.f32.mrf.mxu0
        %v4681 = vadd.f32 %v4456, %v4680
        %v4682 = vpop.f32.mrf.mxu0
        %v4683 = vpop.f32.mrf.mxu0
        %v4684 = vadd.f32 %v4459, %v4683
        %v4685 = vpop.f32.mrf.mxu0
        %4686 = vmatprep.mubr.bf16.mxu0 0
        %4687 = vmatmul.mubr.bf16.gmra.mxu0 %v4191
        %v4688 = vpop.f32.mrf.mxu0
        %v4689 = vadd.f32 %v4464, %v4688
        %v4690 = vpop.f32.mrf.mxu0
        %v4691 = vpop.f32.mrf.mxu0
        %v4692 = vadd.f32 %v4467, %v4691
        %v4693 = vpop.f32.mrf.mxu0
        %4694 = vmatprep.mubr.bf16.mxu0 0
        %4695 = vmatmul.mubr.bf16.gmra.mxu0 %v4192
        %v4696 = vpop.f32.mrf.mxu0
        %v4697 = vadd.f32 %v4472, %v4696
        %v4698 = vpop.f32.mrf.mxu0
        %v4699 = vpop.f32.mrf.mxu0
        %v4700 = vadd.f32 %v4475, %v4699
        %v4701 = vpop.f32.mrf.mxu0
        %4702 = vmatprep.mubr.bf16.mxu0 0
        %4703 = vmatmul.mubr.bf16.gmra.mxu0 %v4193
        %v4704 = vpop.f32.mrf.mxu0
        %v4705 = vadd.f32 %v4480, %v4704
        %v4706 = vpop.f32.mrf.mxu0
        %v4707 = vpop.f32.mrf.mxu0
        %v4708 = vadd.f32 %v4483, %v4707
        %v4709 = vpop.f32.mrf.mxu0
        %4710 = vmatprep.mubr.bf16.mxu0 0
        %4711 = vmatmul.mubr.bf16.gmra.mxu0 %v4194
        %v4712 = vpop.f32.mrf.mxu0
        %v4713 = vadd.f32 %v4488, %v4712
        %v4714 = vpop.f32.mrf.mxu0
        %v4715 = vpop.f32.mrf.mxu0
        %v4716 = vadd.f32 %v4491, %v4715
        %v4717 = vpop.f32.mrf.mxu0
        %4718 = vmatprep.mubr.bf16.mxu0 0
        %4719 = vmatmul.mubr.bf16.gmra.mxu0 %v4195
        %v4720 = vpop.f32.mrf.mxu0
        %v4721 = vadd.f32 %v4496, %v4720
        %v4722 = vpop.f32.mrf.mxu0
        %v4723 = vpop.f32.mrf.mxu0
        %v4724 = vadd.f32 %v4499, %v4723
        %v4725 = vpop.f32.mrf.mxu0
        %4726 = vmatprep.mubr.bf16.mxu0 0
        %4727 = vmatmul.mubr.bf16.gmra.mxu0 %v4196
        %v4728 = vpop.f32.mrf.mxu0
        %v4729 = vadd.f32 %v4504, %v4728
        %v4730 = vpop.f32.mrf.mxu0
        %v4731 = vpop.f32.mrf.mxu0
        %v4732 = vadd.f32 %v4507, %v4731
        %v4733 = vpop.f32.mrf.mxu0
        %4734 = vdwg.mxu0
        %v4735 = vld [vmem:[#allocation3 + $0x2] sm:$0xff]
        %v4736 = vld [vmem:[#allocation3 + $0xa] sm:$0xff]
        %v4737 = vld [vmem:[#allocation3 + $0x12] sm:$0xff]
        %v4738 = vld [vmem:[#allocation3 + $0x1a] sm:$0xff]
        %v4739 = vld [vmem:[#allocation3 + $0x22] sm:$0xff]
        %v4740 = vld [vmem:[#allocation3 + $0x2a] sm:$0xff]
        %v4741 = vld [vmem:[#allocation3 + $0x32] sm:$0xff]
        %v4742 = vld [vmem:[#allocation3 + $0x3a] sm:$0xff]
        %v4743 = vld [vmem:[#allocation3 + $0x42] sm:$0xff]
        %v4744 = vld [vmem:[#allocation3 + $0x4a] sm:$0xff]
        %v4745 = vld [vmem:[#allocation3 + $0x52] sm:$0xff]
        %v4746 = vld [vmem:[#allocation3 + $0x5a] sm:$0xff]
        %v4747 = vld [vmem:[#allocation3 + $0x62] sm:$0xff]
        %v4748 = vld [vmem:[#allocation3 + $0x6a] sm:$0xff]
        %v4749 = vld [vmem:[#allocation3 + $0x72] sm:$0xff]
        %v4750 = vld [vmem:[#allocation3 + $0x7a] sm:$0xff]
        %v4751 = vld [vmem:[#allocation3 + $0x82] sm:$0xff]
        %v4752 = vld [vmem:[#allocation3 + $0x8a] sm:$0xff]
        %v4753 = vld [vmem:[#allocation3 + $0x92] sm:$0xff]
        %v4754 = vld [vmem:[#allocation3 + $0x9a] sm:$0xff]
        %v4755 = vld [vmem:[#allocation3 + $0xa2] sm:$0xff]
        %v4756 = vld [vmem:[#allocation3 + $0xaa] sm:$0xff]
        %v4757 = vld [vmem:[#allocation3 + $0xb2] sm:$0xff]
        %v4758 = vld [vmem:[#allocation3 + $0xba] sm:$0xff]
        %v4759 = vld [vmem:[#allocation3 + $0xc2] sm:$0xff]
        %v4760 = vld [vmem:[#allocation3 + $0xca] sm:$0xff]
        %v4761 = vld [vmem:[#allocation3 + $0xd2] sm:$0xff]
        %v4762 = vld [vmem:[#allocation3 + $0xda] sm:$0xff]
        %v4763 = vld [vmem:[#allocation3 + $0xe2] sm:$0xff]
        %v4764 = vld [vmem:[#allocation3 + $0xea] sm:$0xff]
        %v4765 = vld [vmem:[#allocation3 + $0xf2] sm:$0xff]
        %v4766 = vld [vmem:[#allocation3 + $0xfa] sm:$0xff]
        %v4767 = vld [vmem:[#allocation3 + $0x102] sm:$0xff]
        %v4768 = vld [vmem:[#allocation3 + $0x10a] sm:$0xff]
        %v4769 = vld [vmem:[#allocation3 + $0x112] sm:$0xff]
        %v4770 = vld [vmem:[#allocation3 + $0x11a] sm:$0xff]
        %v4771 = vpack.c.bf16 %v4736, %v4735
        %v4772 = vpack.c.bf16 %v4738, %v4737
        %v4773 = vpack.c.bf16 %v4740, %v4739
        %v4774 = vpack.c.bf16 %v4742, %v4741
        %v4775 = vpack.c.bf16 %v4744, %v4743
        %v4776 = vpack.c.bf16 %v4746, %v4745
        %v4777 = vpack.c.bf16 %v4748, %v4747
        %v4778 = vpack.c.bf16 %v4750, %v4749
        %v4779 = vpack.c.bf16 %v4752, %v4751
        %v4780 = vpack.c.bf16 %v4754, %v4753
        %v4781 = vpack.c.bf16 %v4756, %v4755
        %v4782 = vpack.c.bf16 %v4758, %v4757
        %v4783 = vpack.c.bf16 %v4760, %v4759
        %v4784 = vpack.c.bf16 %v4762, %v4761
        %v4785 = vpack.c.bf16 %v4764, %v4763
        %v4786 = vpack.c.bf16 %v4766, %v4765
        %v4787 = vpack.c.bf16 %v4768, %v4767
        %v4788 = vpack.c.bf16 %v4770, %v4769
        %s4789 = scalar_lea.vmem %s1, 768
        %v4790 = vld [vmem:[%s4789] sm:$0xf]
        %v4791 = vld [vmem:[%s4789 + $0x4] sm:$0xf]
        %v4792 = vld [vmem:[%s4789 + $0x8] sm:$0xf]
        %v4793 = vld [vmem:[%s4789 + $0xc] sm:$0xf]
        %v4794 = vld [vmem:[%s4789 + $0x10] sm:$0xf]
        %v4795 = vld [vmem:[%s4789 + $0x14] sm:$0xf]
        %v4796 = vld [vmem:[%s4789 + $0x18] sm:$0xf]
        %v4797 = vld [vmem:[%s4789 + $0x1c] sm:$0xf]
        %v4798 = vld [vmem:[%s4789 + $0x20] sm:$0xf]
        %v4799 = vld [vmem:[%s4789 + $0x24] sm:$0xf]
        %v4800 = vld [vmem:[%s4789 + $0x28] sm:$0xf]
        %v4801 = vld [vmem:[%s4789 + $0x2c] sm:$0xf]
        %v4802 = vld [vmem:[%s4789 + $0x30] sm:$0xf]
        %v4803 = vld [vmem:[%s4789 + $0x34] sm:$0xf]
        %v4804 = vld [vmem:[%s4789 + $0x38] sm:$0xf]
        %v4805 = vld [vmem:[%s4789 + $0x3c] sm:$0xf]
        %v4822 = vunpack.c.l.b16 %v4790
        %v4823 = vunpack.c.l.b16 %v4791
        %v4824 = vunpack.c.l.b16 %v4792
        %v4825 = vunpack.c.l.b16 %v4793
        %v4826 = vunpack.c.l.b16 %v4794
        %v4827 = vunpack.c.l.b16 %v4795
        %v4828 = vunpack.c.l.b16 %v4796
        %v4829 = vunpack.c.l.b16 %v4797
        %v4830 = vunpack.c.l.b16 %v4798
        %v4831 = vunpack.c.l.b16 %v4799
        %v4832 = vunpack.c.l.b16 %v4800
        %v4833 = vunpack.c.l.b16 %v4801
        %v4834 = vunpack.c.l.b16 %v4802
        %v4835 = vunpack.c.l.b16 %v4803
        %v4836 = vunpack.c.l.b16 %v4804
        %v4837 = vunpack.c.l.b16 %v4805
        %v4838 = vpack.c.b16 %v4823, %v4822
        %v4839 = vpack.c.b16 %v4825, %v4824
        %v4840 = vpack.c.b16 %v4827, %v4826
        %v4841 = vpack.c.b16 %v4829, %v4828
        %v4842 = vpack.c.b16 %v4831, %v4830
        %v4843 = vpack.c.b16 %v4833, %v4832
        %v4844 = vpack.c.b16 %v4835, %v4834
        %v4845 = vpack.c.b16 %v4837, %v4836
        %4854 = vmatprep.subr.bf16.mxu0 0
        %4855 = vmatpush1.bf16.msra.mxu0 %v4845
        %4856 = vmatprep.subr.bf16.mxu0 0
        %4857 = vmatpush1.bf16.msra.mxu0 %v4844
        %4858 = vmatprep.subr.bf16.mxu0 0
        %4859 = vmatpush1.bf16.msra.mxu0 %v4843
        %4860 = vmatprep.subr.bf16.mxu0 0
        %4861 = vmatpush1.bf16.msra.mxu0 %v4842
        %4862 = vmatprep.subr.bf16.mxu0 0
        %4863 = vmatpush1.bf16.msra.mxu0 %v4841
        %4864 = vmatprep.subr.bf16.mxu0 0
        %4865 = vmatpush1.bf16.msra.mxu0 %v4840
        %4866 = vmatprep.subr.bf16.mxu0 0
        %4867 = vmatpush1.bf16.msra.mxu0 %v4839
        %4868 = vmatprep.subr.bf16.mxu0 0
        %4869 = vmatpush1.bf16.msra.mxu0 %v4838
        %4870 = vmatprep.subr.bf16.mxu0 0
        %4871 = vmatpush2.bf16.msra.mxu0 0
        %4872 = vmatprep.subr.bf16.mxu0 0
        %4873 = vmatpush2.bf16.msra.mxu0 0
        %4874 = vmatprep.subr.bf16.mxu0 0
        %4875 = vmatpush2.bf16.msra.mxu0 0
        %4876 = vmatprep.subr.bf16.mxu0 0
        %4877 = vmatpush2.bf16.msra.mxu0 0
        %4878 = vmatprep.subr.bf16.mxu0 0
        %4879 = vmatpush2.bf16.msra.mxu0 0
        %4880 = vmatprep.subr.bf16.mxu0 0
        %4881 = vmatpush2.bf16.msra.mxu0 0
        %4882 = vmatprep.subr.bf16.mxu0 0
        %4883 = vmatpush2.bf16.msra.mxu0 0
        %4884 = vmatprep.subr.bf16.mxu0 0
        %4885 = vmatpush2.bf16.msra.mxu0 0
        %4886 = vmatprep.mubr.bf16.mxu0 0
        %4887 = vmatmul.mubr.bf16.gmra.mxu0 %v4771
        %v4888 = vpop.f32.mrf.mxu0
        %v4889 = vadd.f32 0.0, %v4888
        %v4890 = vpop.f32.mrf.mxu0
        %v4891 = vpop.f32.mrf.mxu0
        %v4892 = vadd.f32 0.0, %v4891
        %v4893 = vpop.f32.mrf.mxu0
        %4894 = vmatprep.mubr.bf16.mxu0 0
        %4895 = vmatmul.mubr.bf16.gmra.mxu0 %v4772
        %v4896 = vpop.f32.mrf.mxu0
        %v4897 = vadd.f32 0.0, %v4896
        %v4898 = vpop.f32.mrf.mxu0
        %v4899 = vpop.f32.mrf.mxu0
        %v4900 = vadd.f32 0.0, %v4899
        %v4901 = vpop.f32.mrf.mxu0
        %4902 = vmatprep.mubr.bf16.mxu0 0
        %4903 = vmatmul.mubr.bf16.gmra.mxu0 %v4773
        %v4904 = vpop.f32.mrf.mxu0
        %v4905 = vadd.f32 0.0, %v4904
        %v4906 = vpop.f32.mrf.mxu0
        %v4907 = vpop.f32.mrf.mxu0
        %v4908 = vadd.f32 0.0, %v4907
        %v4909 = vpop.f32.mrf.mxu0
        %4910 = vmatprep.mubr.bf16.mxu0 0
        %4911 = vmatmul.mubr.bf16.gmra.mxu0 %v4774
        %v4912 = vpop.f32.mrf.mxu0
        %v4913 = vadd.f32 0.0, %v4912
        %v4914 = vpop.f32.mrf.mxu0
        %v4915 = vpop.f32.mrf.mxu0
        %v4916 = vadd.f32 0.0, %v4915
        %v4917 = vpop.f32.mrf.mxu0
        %4918 = vmatprep.mubr.bf16.mxu0 0
        %4919 = vmatmul.mubr.bf16.gmra.mxu0 %v4775
        %v4920 = vpop.f32.mrf.mxu0
        %v4921 = vadd.f32 0.0, %v4920
        %v4922 = vpop.f32.mrf.mxu0
        %v4923 = vpop.f32.mrf.mxu0
        %v4924 = vadd.f32 0.0, %v4923
        %v4925 = vpop.f32.mrf.mxu0
        %4926 = vmatprep.mubr.bf16.mxu0 0
        %4927 = vmatmul.mubr.bf16.gmra.mxu0 %v4776
        %v4928 = vpop.f32.mrf.mxu0
        %v4929 = vadd.f32 0.0, %v4928
        %v4930 = vpop.f32.mrf.mxu0
        %v4931 = vpop.f32.mrf.mxu0
        %v4932 = vadd.f32 0.0, %v4931
        %v4933 = vpop.f32.mrf.mxu0
        %4934 = vmatprep.mubr.bf16.mxu0 0
        %4935 = vmatmul.mubr.bf16.gmra.mxu0 %v4777
        %v4936 = vpop.f32.mrf.mxu0
        %v4937 = vadd.f32 0.0, %v4936
        %v4938 = vpop.f32.mrf.mxu0
        %v4939 = vpop.f32.mrf.mxu0
        %v4940 = vadd.f32 0.0, %v4939
        %v4941 = vpop.f32.mrf.mxu0
        %4942 = vmatprep.mubr.bf16.mxu0 0
        %4943 = vmatmul.mubr.bf16.gmra.mxu0 %v4778
        %v4944 = vpop.f32.mrf.mxu0
        %v4945 = vadd.f32 0.0, %v4944
        %v4946 = vpop.f32.mrf.mxu0
        %v4947 = vpop.f32.mrf.mxu0
        %v4948 = vadd.f32 0.0, %v4947
        %v4949 = vpop.f32.mrf.mxu0
        %4950 = vmatprep.mubr.bf16.mxu0 0
        %4951 = vmatmul.mubr.bf16.gmra.mxu0 %v4779
        %v4952 = vpop.f32.mrf.mxu0
        %v4953 = vadd.f32 0.0, %v4952
        %v4954 = vpop.f32.mrf.mxu0
        %v4955 = vpop.f32.mrf.mxu0
        %v4956 = vadd.f32 0.0, %v4955
        %v4957 = vpop.f32.mrf.mxu0
        %4958 = vmatprep.mubr.bf16.mxu0 0
        %4959 = vmatmul.mubr.bf16.gmra.mxu0 %v4780
        %v4960 = vpop.f32.mrf.mxu0
        %v4961 = vadd.f32 0.0, %v4960
        %v4962 = vpop.f32.mrf.mxu0
        %v4963 = vpop.f32.mrf.mxu0
        %v4964 = vadd.f32 0.0, %v4963
        %v4965 = vpop.f32.mrf.mxu0
        %4966 = vmatprep.mubr.bf16.mxu0 0
        %4967 = vmatmul.mubr.bf16.gmra.mxu0 %v4781
        %v4968 = vpop.f32.mrf.mxu0
        %v4969 = vadd.f32 0.0, %v4968
        %v4970 = vpop.f32.mrf.mxu0
        %v4971 = vpop.f32.mrf.mxu0
        %v4972 = vadd.f32 0.0, %v4971
        %v4973 = vpop.f32.mrf.mxu0
        %4974 = vmatprep.mubr.bf16.mxu0 0
        %4975 = vmatmul.mubr.bf16.gmra.mxu0 %v4782
        %v4976 = vpop.f32.mrf.mxu0
        %v4977 = vadd.f32 0.0, %v4976
        %v4978 = vpop.f32.mrf.mxu0
        %v4979 = vpop.f32.mrf.mxu0
        %v4980 = vadd.f32 0.0, %v4979
        %v4981 = vpop.f32.mrf.mxu0
        %4982 = vmatprep.mubr.bf16.mxu0 0
        %4983 = vmatmul.mubr.bf16.gmra.mxu0 %v4783
        %v4984 = vpop.f32.mrf.mxu0
        %v4985 = vadd.f32 0.0, %v4984
        %v4986 = vpop.f32.mrf.mxu0
        %v4987 = vpop.f32.mrf.mxu0
        %v4988 = vadd.f32 0.0, %v4987
        %v4989 = vpop.f32.mrf.mxu0
        %4990 = vmatprep.mubr.bf16.mxu0 0
        %4991 = vmatmul.mubr.bf16.gmra.mxu0 %v4784
        %v4992 = vpop.f32.mrf.mxu0
        %v4993 = vadd.f32 0.0, %v4992
        %v4994 = vpop.f32.mrf.mxu0
        %v4995 = vpop.f32.mrf.mxu0
        %v4996 = vadd.f32 0.0, %v4995
        %v4997 = vpop.f32.mrf.mxu0
        %4998 = vmatprep.mubr.bf16.mxu0 0
        %4999 = vmatmul.mubr.bf16.gmra.mxu0 %v4785
        %v5000 = vpop.f32.mrf.mxu0
        %v5001 = vadd.f32 0.0, %v5000
        %v5002 = vpop.f32.mrf.mxu0
        %v5003 = vpop.f32.mrf.mxu0
        %v5004 = vadd.f32 0.0, %v5003
        %v5005 = vpop.f32.mrf.mxu0
        %5006 = vmatprep.mubr.bf16.mxu0 0
        %5007 = vmatmul.mubr.bf16.gmra.mxu0 %v4786
        %v5008 = vpop.f32.mrf.mxu0
        %v5009 = vadd.f32 0.0, %v5008
        %v5010 = vpop.f32.mrf.mxu0
        %v5011 = vpop.f32.mrf.mxu0
        %v5012 = vadd.f32 0.0, %v5011
        %v5013 = vpop.f32.mrf.mxu0
        %5014 = vmatprep.mubr.bf16.mxu0 0
        %5015 = vmatmul.mubr.bf16.gmra.mxu0 %v4787
        %v5016 = vpop.f32.mrf.mxu0
        %v5017 = vadd.f32 0.0, %v5016
        %v5018 = vpop.f32.mrf.mxu0
        %v5019 = vpop.f32.mrf.mxu0
        %v5020 = vadd.f32 0.0, %v5019
        %v5021 = vpop.f32.mrf.mxu0
        %5022 = vmatprep.mubr.bf16.mxu0 0
        %5023 = vmatmul.mubr.bf16.gmra.mxu0 %v4788
        %v5024 = vpop.f32.mrf.mxu0
        %v5025 = vadd.f32 0.0, %v5024
        %v5026 = vpop.f32.mrf.mxu0
        %v5027 = vpop.f32.mrf.mxu0
        %v5028 = vadd.f32 0.0, %v5027
        %v5029 = vpop.f32.mrf.mxu0
        %5030 = vdwg.mxu0
        %v5031 = vadd.f32 %v4593, %v4889
        %v5032 = vadd.f32 %v4596, %v4892
        %v5033 = vadd.f32 %v4601, %v4897
        %v5034 = vadd.f32 %v4604, %v4900
        %v5035 = vadd.f32 %v4609, %v4905
        %v5036 = vadd.f32 %v4612, %v4908
        %v5037 = vadd.f32 %v4617, %v4913
        %v5038 = vadd.f32 %v4620, %v4916
        %v5039 = vadd.f32 %v4625, %v4921
        %v5040 = vadd.f32 %v4628, %v4924
        %v5041 = vadd.f32 %v4633, %v4929
        %v5042 = vadd.f32 %v4636, %v4932
        %v5043 = vadd.f32 %v4641, %v4937
        %v5044 = vadd.f32 %v4644, %v4940
        %v5045 = vadd.f32 %v4649, %v4945
        %v5046 = vadd.f32 %v4652, %v4948
        %v5047 = vadd.f32 %v4657, %v4953
        %v5048 = vadd.f32 %v4660, %v4956
        %v5049 = vadd.f32 %v4665, %v4961
        %v5050 = vadd.f32 %v4668, %v4964
        %v5051 = vadd.f32 %v4673, %v4969
        %v5052 = vadd.f32 %v4676, %v4972
        %v5053 = vadd.f32 %v4681, %v4977
        %v5054 = vadd.f32 %v4684, %v4980
        %v5055 = vadd.f32 %v4689, %v4985
        %v5056 = vadd.f32 %v4692, %v4988
        %v5057 = vadd.f32 %v4697, %v4993
        %v5058 = vadd.f32 %v4700, %v4996
        %v5059 = vadd.f32 %v4705, %v5001
        %v5060 = vadd.f32 %v4708, %v5004
        %v5061 = vadd.f32 %v4713, %v5009
        %v5062 = vadd.f32 %v4716, %v5012
        %v5063 = vadd.f32 %v4721, %v5017
        %v5064 = vadd.f32 %v4724, %v5020
        %v5065 = vadd.f32 %v4729, %v5025
        %v5066 = vadd.f32 %v4732, %v5028
        %v5067 = vld [vmem:[#allocation3 + $0x12] sm:$0xff]
        %v5068 = vld [vmem:[#allocation3 + $0x1a] sm:$0xff]
        %v5069 = vld [vmem:[#allocation3 + $0x22] sm:$0xff]
        %v5070 = vld [vmem:[#allocation3 + $0x2a] sm:$0xff]
        %v5071 = vld [vmem:[#allocation3 + $0x32] sm:$0xff]
        %v5072 = vld [vmem:[#allocation3 + $0x3a] sm:$0xff]
        %v5073 = vld [vmem:[#allocation3 + $0x42] sm:$0xff]
        %v5074 = vld [vmem:[#allocation3 + $0x4a] sm:$0xff]
        %v5075 = vld [vmem:[#allocation3 + $0x52] sm:$0xff]
        %v5076 = vld [vmem:[#allocation3 + $0x5a] sm:$0xff]
        %v5077 = vld [vmem:[#allocation3 + $0x62] sm:$0xff]
        %v5078 = vld [vmem:[#allocation3 + $0x6a] sm:$0xff]
        %v5079 = vld [vmem:[#allocation3 + $0x72] sm:$0xff]
        %v5080 = vld [vmem:[#allocation3 + $0x7a] sm:$0xff]
        %v5081 = vld [vmem:[#allocation3 + $0x82] sm:$0xff]
        %v5082 = vld [vmem:[#allocation3 + $0x8a] sm:$0xff]
        %v5083 = vld [vmem:[#allocation3 + $0x92] sm:$0xff]
        %v5084 = vld [vmem:[#allocation3 + $0x9a] sm:$0xff]
        %v5085 = vld [vmem:[#allocation3 + $0xa2] sm:$0xff]
        %v5086 = vld [vmem:[#allocation3 + $0xaa] sm:$0xff]
        %v5087 = vld [vmem:[#allocation3 + $0xb2] sm:$0xff]
        %v5088 = vld [vmem:[#allocation3 + $0xba] sm:$0xff]
        %v5089 = vld [vmem:[#allocation3 + $0xc2] sm:$0xff]
        %v5090 = vld [vmem:[#allocation3 + $0xca] sm:$0xff]
        %v5091 = vld [vmem:[#allocation3 + $0xd2] sm:$0xff]
        %v5092 = vld [vmem:[#allocation3 + $0xda] sm:$0xff]
        %v5093 = vld [vmem:[#allocation3 + $0xe2] sm:$0xff]
        %v5094 = vld [vmem:[#allocation3 + $0xea] sm:$0xff]
        %v5095 = vld [vmem:[#allocation3 + $0xf2] sm:$0xff]
        %v5096 = vld [vmem:[#allocation3 + $0xfa] sm:$0xff]
        %v5097 = vld [vmem:[#allocation3 + $0x102] sm:$0xff]
        %v5098 = vld [vmem:[#allocation3 + $0x10a] sm:$0xff]
        %v5099 = vld [vmem:[#allocation3 + $0x112] sm:$0xff]
        %v5100 = vld [vmem:[#allocation3 + $0x11a] sm:$0xff]
        %v5101 = vld [vmem:[#allocation3 + $0x122] sm:$0xff]
        %v5102 = vld [vmem:[#allocation3 + $0x12a] sm:$0xff]
        %v5103 = vpack.c.bf16 %v5068, %v5067
        %v5104 = vpack.c.bf16 %v5070, %v5069
        %v5105 = vpack.c.bf16 %v5072, %v5071
        %v5106 = vpack.c.bf16 %v5074, %v5073
        %v5107 = vpack.c.bf16 %v5076, %v5075
        %v5108 = vpack.c.bf16 %v5078, %v5077
        %v5109 = vpack.c.bf16 %v5080, %v5079
        %v5110 = vpack.c.bf16 %v5082, %v5081
        %v5111 = vpack.c.bf16 %v5084, %v5083
        %v5112 = vpack.c.bf16 %v5086, %v5085
        %v5113 = vpack.c.bf16 %v5088, %v5087
        %v5114 = vpack.c.bf16 %v5090, %v5089
        %v5115 = vpack.c.bf16 %v5092, %v5091
        %v5116 = vpack.c.bf16 %v5094, %v5093
        %v5117 = vpack.c.bf16 %v5096, %v5095
        %v5118 = vpack.c.bf16 %v5098, %v5097
        %v5119 = vpack.c.bf16 %v5100, %v5099
        %v5120 = vpack.c.bf16 %v5102, %v5101
        %s5121 = scalar_lea.vmem %s1, 832
        %v5122 = vld [vmem:[%s5121] sm:$0xf]
        %v5123 = vld [vmem:[%s5121 + $0x4] sm:$0xf]
        %v5124 = vld [vmem:[%s5121 + $0x8] sm:$0xf]
        %v5125 = vld [vmem:[%s5121 + $0xc] sm:$0xf]
        %v5126 = vld [vmem:[%s5121 + $0x10] sm:$0xf]
        %v5127 = vld [vmem:[%s5121 + $0x14] sm:$0xf]
        %v5128 = vld [vmem:[%s5121 + $0x18] sm:$0xf]
        %v5129 = vld [vmem:[%s5121 + $0x1c] sm:$0xf]
        %v5130 = vld [vmem:[%s5121 + $0x20] sm:$0xf]
        %v5131 = vld [vmem:[%s5121 + $0x24] sm:$0xf]
        %v5132 = vld [vmem:[%s5121 + $0x28] sm:$0xf]
        %v5133 = vld [vmem:[%s5121 + $0x2c] sm:$0xf]
        %v5134 = vld [vmem:[%s5121 + $0x30] sm:$0xf]
        %v5135 = vld [vmem:[%s5121 + $0x34] sm:$0xf]
        %v5136 = vld [vmem:[%s5121 + $0x38] sm:$0xf]
        %v5137 = vld [vmem:[%s5121 + $0x3c] sm:$0xf]
        %v5154 = vunpack.c.l.b16 %v5122
        %v5155 = vunpack.c.l.b16 %v5123
        %v5156 = vunpack.c.l.b16 %v5124
        %v5157 = vunpack.c.l.b16 %v5125
        %v5158 = vunpack.c.l.b16 %v5126
        %v5159 = vunpack.c.l.b16 %v5127
        %v5160 = vunpack.c.l.b16 %v5128
        %v5161 = vunpack.c.l.b16 %v5129
        %v5162 = vunpack.c.l.b16 %v5130
        %v5163 = vunpack.c.l.b16 %v5131
        %v5164 = vunpack.c.l.b16 %v5132
        %v5165 = vunpack.c.l.b16 %v5133
        %v5166 = vunpack.c.l.b16 %v5134
        %v5167 = vunpack.c.l.b16 %v5135
        %v5168 = vunpack.c.l.b16 %v5136
        %v5169 = vunpack.c.l.b16 %v5137
        %v5170 = vpack.c.b16 %v5155, %v5154
        %v5171 = vpack.c.b16 %v5157, %v5156
        %v5172 = vpack.c.b16 %v5159, %v5158
        %v5173 = vpack.c.b16 %v5161, %v5160
        %v5174 = vpack.c.b16 %v5163, %v5162
        %v5175 = vpack.c.b16 %v5165, %v5164
        %v5176 = vpack.c.b16 %v5167, %v5166
        %v5177 = vpack.c.b16 %v5169, %v5168
        %5186 = vmatprep.subr.bf16.mxu0 0
        %5187 = vmatpush1.bf16.msra.mxu0 %v5177
        %5188 = vmatprep.subr.bf16.mxu0 0
        %5189 = vmatpush1.bf16.msra.mxu0 %v5176
        %5190 = vmatprep.subr.bf16.mxu0 0
        %5191 = vmatpush1.bf16.msra.mxu0 %v5175
        %5192 = vmatprep.subr.bf16.mxu0 0
        %5193 = vmatpush1.bf16.msra.mxu0 %v5174
        %5194 = vmatprep.subr.bf16.mxu0 0
        %5195 = vmatpush1.bf16.msra.mxu0 %v5173
        %5196 = vmatprep.subr.bf16.mxu0 0
        %5197 = vmatpush1.bf16.msra.mxu0 %v5172
        %5198 = vmatprep.subr.bf16.mxu0 0
        %5199 = vmatpush1.bf16.msra.mxu0 %v5171
        %5200 = vmatprep.subr.bf16.mxu0 0
        %5201 = vmatpush1.bf16.msra.mxu0 %v5170
        %5202 = vmatprep.subr.bf16.mxu0 0
        %5203 = vmatpush2.bf16.msra.mxu0 0
        %5204 = vmatprep.subr.bf16.mxu0 0
        %5205 = vmatpush2.bf16.msra.mxu0 0
        %5206 = vmatprep.subr.bf16.mxu0 0
        %5207 = vmatpush2.bf16.msra.mxu0 0
        %5208 = vmatprep.subr.bf16.mxu0 0
        %5209 = vmatpush2.bf16.msra.mxu0 0
        %5210 = vmatprep.subr.bf16.mxu0 0
        %5211 = vmatpush2.bf16.msra.mxu0 0
        %5212 = vmatprep.subr.bf16.mxu0 0
        %5213 = vmatpush2.bf16.msra.mxu0 0
        %5214 = vmatprep.subr.bf16.mxu0 0
        %5215 = vmatpush2.bf16.msra.mxu0 0
        %5216 = vmatprep.subr.bf16.mxu0 0
        %5217 = vmatpush2.bf16.msra.mxu0 0
        %5218 = vmatprep.mubr.bf16.mxu0 0
        %5219 = vmatmul.mubr.bf16.gmra.mxu0 %v5103
        %v5220 = vpop.f32.mrf.mxu0
        %v5221 = vadd.f32 0.0, %v5220
        %v5222 = vpop.f32.mrf.mxu0
        %v5223 = vpop.f32.mrf.mxu0
        %v5224 = vadd.f32 0.0, %v5223
        %v5225 = vpop.f32.mrf.mxu0
        %5226 = vmatprep.mubr.bf16.mxu0 0
        %5227 = vmatmul.mubr.bf16.gmra.mxu0 %v5104
        %v5228 = vpop.f32.mrf.mxu0
        %v5229 = vadd.f32 0.0, %v5228
        %v5230 = vpop.f32.mrf.mxu0
        %v5231 = vpop.f32.mrf.mxu0
        %v5232 = vadd.f32 0.0, %v5231
        %v5233 = vpop.f32.mrf.mxu0
        %5234 = vmatprep.mubr.bf16.mxu0 0
        %5235 = vmatmul.mubr.bf16.gmra.mxu0 %v5105
        %v5236 = vpop.f32.mrf.mxu0
        %v5237 = vadd.f32 0.0, %v5236
        %v5238 = vpop.f32.mrf.mxu0
        %v5239 = vpop.f32.mrf.mxu0
        %v5240 = vadd.f32 0.0, %v5239
        %v5241 = vpop.f32.mrf.mxu0
        %5242 = vmatprep.mubr.bf16.mxu0 0
        %5243 = vmatmul.mubr.bf16.gmra.mxu0 %v5106
        %v5244 = vpop.f32.mrf.mxu0
        %v5245 = vadd.f32 0.0, %v5244
        %v5246 = vpop.f32.mrf.mxu0
        %v5247 = vpop.f32.mrf.mxu0
        %v5248 = vadd.f32 0.0, %v5247
        %v5249 = vpop.f32.mrf.mxu0
        %5250 = vmatprep.mubr.bf16.mxu0 0
        %5251 = vmatmul.mubr.bf16.gmra.mxu0 %v5107
        %v5252 = vpop.f32.mrf.mxu0
        %v5253 = vadd.f32 0.0, %v5252
        %v5254 = vpop.f32.mrf.mxu0
        %v5255 = vpop.f32.mrf.mxu0
        %v5256 = vadd.f32 0.0, %v5255
        %v5257 = vpop.f32.mrf.mxu0
        %5258 = vmatprep.mubr.bf16.mxu0 0
        %5259 = vmatmul.mubr.bf16.gmra.mxu0 %v5108
        %v5260 = vpop.f32.mrf.mxu0
        %v5261 = vadd.f32 0.0, %v5260
        %v5262 = vpop.f32.mrf.mxu0
        %v5263 = vpop.f32.mrf.mxu0
        %v5264 = vadd.f32 0.0, %v5263
        %v5265 = vpop.f32.mrf.mxu0
        %5266 = vmatprep.mubr.bf16.mxu0 0
        %5267 = vmatmul.mubr.bf16.gmra.mxu0 %v5109
        %v5268 = vpop.f32.mrf.mxu0
        %v5269 = vadd.f32 0.0, %v5268
        %v5270 = vpop.f32.mrf.mxu0
        %v5271 = vpop.f32.mrf.mxu0
        %v5272 = vadd.f32 0.0, %v5271
        %v5273 = vpop.f32.mrf.mxu0
        %5274 = vmatprep.mubr.bf16.mxu0 0
        %5275 = vmatmul.mubr.bf16.gmra.mxu0 %v5110
        %v5276 = vpop.f32.mrf.mxu0
        %v5277 = vadd.f32 0.0, %v5276
        %v5278 = vpop.f32.mrf.mxu0
        %v5279 = vpop.f32.mrf.mxu0
        %v5280 = vadd.f32 0.0, %v5279
        %v5281 = vpop.f32.mrf.mxu0
        %5282 = vmatprep.mubr.bf16.mxu0 0
        %5283 = vmatmul.mubr.bf16.gmra.mxu0 %v5111
        %v5284 = vpop.f32.mrf.mxu0
        %v5285 = vadd.f32 0.0, %v5284
        %v5286 = vpop.f32.mrf.mxu0
        %v5287 = vpop.f32.mrf.mxu0
        %v5288 = vadd.f32 0.0, %v5287
        %v5289 = vpop.f32.mrf.mxu0
        %5290 = vmatprep.mubr.bf16.mxu0 0
        %5291 = vmatmul.mubr.bf16.gmra.mxu0 %v5112
        %v5292 = vpop.f32.mrf.mxu0
        %v5293 = vadd.f32 0.0, %v5292
        %v5294 = vpop.f32.mrf.mxu0
        %v5295 = vpop.f32.mrf.mxu0
        %v5296 = vadd.f32 0.0, %v5295
        %v5297 = vpop.f32.mrf.mxu0
        %5298 = vmatprep.mubr.bf16.mxu0 0
        %5299 = vmatmul.mubr.bf16.gmra.mxu0 %v5113
        %v5300 = vpop.f32.mrf.mxu0
        %v5301 = vadd.f32 0.0, %v5300
        %v5302 = vpop.f32.mrf.mxu0
        %v5303 = vpop.f32.mrf.mxu0
        %v5304 = vadd.f32 0.0, %v5303
        %v5305 = vpop.f32.mrf.mxu0
        %5306 = vmatprep.mubr.bf16.mxu0 0
        %5307 = vmatmul.mubr.bf16.gmra.mxu0 %v5114
        %v5308 = vpop.f32.mrf.mxu0
        %v5309 = vadd.f32 0.0, %v5308
        %v5310 = vpop.f32.mrf.mxu0
        %v5311 = vpop.f32.mrf.mxu0
        %v5312 = vadd.f32 0.0, %v5311
        %v5313 = vpop.f32.mrf.mxu0
        %5314 = vmatprep.mubr.bf16.mxu0 0
        %5315 = vmatmul.mubr.bf16.gmra.mxu0 %v5115
        %v5316 = vpop.f32.mrf.mxu0
        %v5317 = vadd.f32 0.0, %v5316
        %v5318 = vpop.f32.mrf.mxu0
        %v5319 = vpop.f32.mrf.mxu0
        %v5320 = vadd.f32 0.0, %v5319
        %v5321 = vpop.f32.mrf.mxu0
        %5322 = vmatprep.mubr.bf16.mxu0 0
        %5323 = vmatmul.mubr.bf16.gmra.mxu0 %v5116
        %v5324 = vpop.f32.mrf.mxu0
        %v5325 = vadd.f32 0.0, %v5324
        %v5326 = vpop.f32.mrf.mxu0
        %v5327 = vpop.f32.mrf.mxu0
        %v5328 = vadd.f32 0.0, %v5327
        %v5329 = vpop.f32.mrf.mxu0
        %5330 = vmatprep.mubr.bf16.mxu0 0
        %5331 = vmatmul.mubr.bf16.gmra.mxu0 %v5117
        %v5332 = vpop.f32.mrf.mxu0
        %v5333 = vadd.f32 0.0, %v5332
        %v5334 = vpop.f32.mrf.mxu0
        %v5335 = vpop.f32.mrf.mxu0
        %v5336 = vadd.f32 0.0, %v5335
        %v5337 = vpop.f32.mrf.mxu0
        %5338 = vmatprep.mubr.bf16.mxu0 0
        %5339 = vmatmul.mubr.bf16.gmra.mxu0 %v5118
        %v5340 = vpop.f32.mrf.mxu0
        %v5341 = vadd.f32 0.0, %v5340
        %v5342 = vpop.f32.mrf.mxu0
        %v5343 = vpop.f32.mrf.mxu0
        %v5344 = vadd.f32 0.0, %v5343
        %v5345 = vpop.f32.mrf.mxu0
        %5346 = vmatprep.mubr.bf16.mxu0 0
        %5347 = vmatmul.mubr.bf16.gmra.mxu0 %v5119
        %v5348 = vpop.f32.mrf.mxu0
        %v5349 = vadd.f32 0.0, %v5348
        %v5350 = vpop.f32.mrf.mxu0
        %v5351 = vpop.f32.mrf.mxu0
        %v5352 = vadd.f32 0.0, %v5351
        %v5353 = vpop.f32.mrf.mxu0
        %5354 = vmatprep.mubr.bf16.mxu0 0
        %5355 = vmatmul.mubr.bf16.gmra.mxu0 %v5120
        %v5356 = vpop.f32.mrf.mxu0
        %v5357 = vadd.f32 0.0, %v5356
        %v5358 = vpop.f32.mrf.mxu0
        %v5359 = vpop.f32.mrf.mxu0
        %v5360 = vadd.f32 0.0, %v5359
        %v5361 = vpop.f32.mrf.mxu0
        %5362 = vdwg.mxu0
        %v5363 = vadd.f32 %v5031, %v5221
        %v5364 = vadd.f32 %v5032, %v5224
        %v5365 = vadd.f32 %v5033, %v5229
        %v5366 = vadd.f32 %v5034, %v5232
        %v5367 = vadd.f32 %v5035, %v5237
        %v5368 = vadd.f32 %v5036, %v5240
        %v5369 = vadd.f32 %v5037, %v5245
        %v5370 = vadd.f32 %v5038, %v5248
        %v5371 = vadd.f32 %v5039, %v5253
        %v5372 = vadd.f32 %v5040, %v5256
        %v5373 = vadd.f32 %v5041, %v5261
        %v5374 = vadd.f32 %v5042, %v5264
        %v5375 = vadd.f32 %v5043, %v5269
        %v5376 = vadd.f32 %v5044, %v5272
        %v5377 = vadd.f32 %v5045, %v5277
        %v5378 = vadd.f32 %v5046, %v5280
        %v5379 = vadd.f32 %v5047, %v5285
        %v5380 = vadd.f32 %v5048, %v5288
        %v5381 = vadd.f32 %v5049, %v5293
        %v5382 = vadd.f32 %v5050, %v5296
        %v5383 = vadd.f32 %v5051, %v5301
        %v5384 = vadd.f32 %v5052, %v5304
        %v5385 = vadd.f32 %v5053, %v5309
        %v5386 = vadd.f32 %v5054, %v5312
        %v5387 = vadd.f32 %v5055, %v5317
        %v5388 = vadd.f32 %v5056, %v5320
        %v5389 = vadd.f32 %v5057, %v5325
        %v5390 = vadd.f32 %v5058, %v5328
        %v5391 = vadd.f32 %v5059, %v5333
        %v5392 = vadd.f32 %v5060, %v5336
        %v5393 = vadd.f32 %v5061, %v5341
        %v5394 = vadd.f32 %v5062, %v5344
        %v5395 = vadd.f32 %v5063, %v5349
        %v5396 = vadd.f32 %v5064, %v5352
        %v5397 = vadd.f32 %v5065, %v5357
        %v5398 = vadd.f32 %v5066, %v5360
        %v5399 = vld [vmem:[#allocation3 + $0x13] sm:$0xff]
        %v5400 = vld [vmem:[#allocation3 + $0x1b] sm:$0xff]
        %v5401 = vld [vmem:[#allocation3 + $0x23] sm:$0xff]
        %v5402 = vld [vmem:[#allocation3 + $0x2b] sm:$0xff]
        %v5403 = vld [vmem:[#allocation3 + $0x33] sm:$0xff]
        %v5404 = vld [vmem:[#allocation3 + $0x3b] sm:$0xff]
        %v5405 = vld [vmem:[#allocation3 + $0x43] sm:$0xff]
        %v5406 = vld [vmem:[#allocation3 + $0x4b] sm:$0xff]
        %v5407 = vld [vmem:[#allocation3 + $0x53] sm:$0xff]
        %v5408 = vld [vmem:[#allocation3 + $0x5b] sm:$0xff]
        %v5409 = vld [vmem:[#allocation3 + $0x63] sm:$0xff]
        %v5410 = vld [vmem:[#allocation3 + $0x6b] sm:$0xff]
        %v5411 = vld [vmem:[#allocation3 + $0x73] sm:$0xff]
        %v5412 = vld [vmem:[#allocation3 + $0x7b] sm:$0xff]
        %v5413 = vld [vmem:[#allocation3 + $0x83] sm:$0xff]
        %v5414 = vld [vmem:[#allocation3 + $0x8b] sm:$0xff]
        %v5415 = vld [vmem:[#allocation3 + $0x93] sm:$0xff]
        %v5416 = vld [vmem:[#allocation3 + $0x9b] sm:$0xff]
        %v5417 = vld [vmem:[#allocation3 + $0xa3] sm:$0xff]
        %v5418 = vld [vmem:[#allocation3 + $0xab] sm:$0xff]
        %v5419 = vld [vmem:[#allocation3 + $0xb3] sm:$0xff]
        %v5420 = vld [vmem:[#allocation3 + $0xbb] sm:$0xff]
        %v5421 = vld [vmem:[#allocation3 + $0xc3] sm:$0xff]
        %v5422 = vld [vmem:[#allocation3 + $0xcb] sm:$0xff]
        %v5423 = vld [vmem:[#allocation3 + $0xd3] sm:$0xff]
        %v5424 = vld [vmem:[#allocation3 + $0xdb] sm:$0xff]
        %v5425 = vld [vmem:[#allocation3 + $0xe3] sm:$0xff]
        %v5426 = vld [vmem:[#allocation3 + $0xeb] sm:$0xff]
        %v5427 = vld [vmem:[#allocation3 + $0xf3] sm:$0xff]
        %v5428 = vld [vmem:[#allocation3 + $0xfb] sm:$0xff]
        %v5429 = vld [vmem:[#allocation3 + $0x103] sm:$0xff]
        %v5430 = vld [vmem:[#allocation3 + $0x10b] sm:$0xff]
        %v5431 = vld [vmem:[#allocation3 + $0x113] sm:$0xff]
        %v5432 = vld [vmem:[#allocation3 + $0x11b] sm:$0xff]
        %v5433 = vld [vmem:[#allocation3 + $0x123] sm:$0xff]
        %v5434 = vld [vmem:[#allocation3 + $0x12b] sm:$0xff]
        %v5435 = vpack.c.bf16 %v5400, %v5399
        %v5436 = vpack.c.bf16 %v5402, %v5401
        %v5437 = vpack.c.bf16 %v5404, %v5403
        %v5438 = vpack.c.bf16 %v5406, %v5405
        %v5439 = vpack.c.bf16 %v5408, %v5407
        %v5440 = vpack.c.bf16 %v5410, %v5409
        %v5441 = vpack.c.bf16 %v5412, %v5411
        %v5442 = vpack.c.bf16 %v5414, %v5413
        %v5443 = vpack.c.bf16 %v5416, %v5415
        %v5444 = vpack.c.bf16 %v5418, %v5417
        %v5445 = vpack.c.bf16 %v5420, %v5419
        %v5446 = vpack.c.bf16 %v5422, %v5421
        %v5447 = vpack.c.bf16 %v5424, %v5423
        %v5448 = vpack.c.bf16 %v5426, %v5425
        %v5449 = vpack.c.bf16 %v5428, %v5427
        %v5450 = vpack.c.bf16 %v5430, %v5429
        %v5451 = vpack.c.bf16 %v5432, %v5431
        %v5452 = vpack.c.bf16 %v5434, %v5433
        %s5453 = scalar_lea.vmem %s1, 896
        %v5454 = vld [vmem:[%s5453] sm:$0xf]
        %v5455 = vld [vmem:[%s5453 + $0x4] sm:$0xf]
        %v5456 = vld [vmem:[%s5453 + $0x8] sm:$0xf]
        %v5457 = vld [vmem:[%s5453 + $0xc] sm:$0xf]
        %v5458 = vld [vmem:[%s5453 + $0x10] sm:$0xf]
        %v5459 = vld [vmem:[%s5453 + $0x14] sm:$0xf]
        %v5460 = vld [vmem:[%s5453 + $0x18] sm:$0xf]
        %v5461 = vld [vmem:[%s5453 + $0x1c] sm:$0xf]
        %v5462 = vld [vmem:[%s5453 + $0x20] sm:$0xf]
        %v5463 = vld [vmem:[%s5453 + $0x24] sm:$0xf]
        %v5464 = vld [vmem:[%s5453 + $0x28] sm:$0xf]
        %v5465 = vld [vmem:[%s5453 + $0x2c] sm:$0xf]
        %v5466 = vld [vmem:[%s5453 + $0x30] sm:$0xf]
        %v5467 = vld [vmem:[%s5453 + $0x34] sm:$0xf]
        %v5468 = vld [vmem:[%s5453 + $0x38] sm:$0xf]
        %v5469 = vld [vmem:[%s5453 + $0x3c] sm:$0xf]
        %v5486 = vunpack.c.l.b16 %v5454
        %v5487 = vunpack.c.l.b16 %v5455
        %v5488 = vunpack.c.l.b16 %v5456
        %v5489 = vunpack.c.l.b16 %v5457
        %v5490 = vunpack.c.l.b16 %v5458
        %v5491 = vunpack.c.l.b16 %v5459
        %v5492 = vunpack.c.l.b16 %v5460
        %v5493 = vunpack.c.l.b16 %v5461
        %v5494 = vunpack.c.l.b16 %v5462
        %v5495 = vunpack.c.l.b16 %v5463
        %v5496 = vunpack.c.l.b16 %v5464
        %v5497 = vunpack.c.l.b16 %v5465
        %v5498 = vunpack.c.l.b16 %v5466
        %v5499 = vunpack.c.l.b16 %v5467
        %v5500 = vunpack.c.l.b16 %v5468
        %v5501 = vunpack.c.l.b16 %v5469
        %v5502 = vpack.c.b16 %v5487, %v5486
        %v5503 = vpack.c.b16 %v5489, %v5488
        %v5504 = vpack.c.b16 %v5491, %v5490
        %v5505 = vpack.c.b16 %v5493, %v5492
        %v5506 = vpack.c.b16 %v5495, %v5494
        %v5507 = vpack.c.b16 %v5497, %v5496
        %v5508 = vpack.c.b16 %v5499, %v5498
        %v5509 = vpack.c.b16 %v5501, %v5500
        %5518 = vmatprep.subr.bf16.mxu0 0
        %5519 = vmatpush1.bf16.msra.mxu0 %v5509
        %5520 = vmatprep.subr.bf16.mxu0 0
        %5521 = vmatpush1.bf16.msra.mxu0 %v5508
        %5522 = vmatprep.subr.bf16.mxu0 0
        %5523 = vmatpush1.bf16.msra.mxu0 %v5507
        %5524 = vmatprep.subr.bf16.mxu0 0
        %5525 = vmatpush1.bf16.msra.mxu0 %v5506
        %5526 = vmatprep.subr.bf16.mxu0 0
        %5527 = vmatpush1.bf16.msra.mxu0 %v5505
        %5528 = vmatprep.subr.bf16.mxu0 0
        %5529 = vmatpush1.bf16.msra.mxu0 %v5504
        %5530 = vmatprep.subr.bf16.mxu0 0
        %5531 = vmatpush1.bf16.msra.mxu0 %v5503
        %5532 = vmatprep.subr.bf16.mxu0 0
        %5533 = vmatpush1.bf16.msra.mxu0 %v5502
        %5534 = vmatprep.subr.bf16.mxu0 0
        %5535 = vmatpush2.bf16.msra.mxu0 0
        %5536 = vmatprep.subr.bf16.mxu0 0
        %5537 = vmatpush2.bf16.msra.mxu0 0
        %5538 = vmatprep.subr.bf16.mxu0 0
        %5539 = vmatpush2.bf16.msra.mxu0 0
        %5540 = vmatprep.subr.bf16.mxu0 0
        %5541 = vmatpush2.bf16.msra.mxu0 0
        %5542 = vmatprep.subr.bf16.mxu0 0
        %5543 = vmatpush2.bf16.msra.mxu0 0
        %5544 = vmatprep.subr.bf16.mxu0 0
        %5545 = vmatpush2.bf16.msra.mxu0 0
        %5546 = vmatprep.subr.bf16.mxu0 0
        %5547 = vmatpush2.bf16.msra.mxu0 0
        %5548 = vmatprep.subr.bf16.mxu0 0
        %5549 = vmatpush2.bf16.msra.mxu0 0
        %5550 = vmatprep.mubr.bf16.mxu0 0
        %5551 = vmatmul.mubr.bf16.gmra.mxu0 %v5435
        %v5552 = vpop.f32.mrf.mxu0
        %v5553 = vadd.f32 0.0, %v5552
        %v5554 = vpop.f32.mrf.mxu0
        %v5555 = vpop.f32.mrf.mxu0
        %v5556 = vadd.f32 0.0, %v5555
        %v5557 = vpop.f32.mrf.mxu0
        %5558 = vmatprep.mubr.bf16.mxu0 0
        %5559 = vmatmul.mubr.bf16.gmra.mxu0 %v5436
        %v5560 = vpop.f32.mrf.mxu0
        %v5561 = vadd.f32 0.0, %v5560
        %v5562 = vpop.f32.mrf.mxu0
        %v5563 = vpop.f32.mrf.mxu0
        %v5564 = vadd.f32 0.0, %v5563
        %v5565 = vpop.f32.mrf.mxu0
        %5566 = vmatprep.mubr.bf16.mxu0 0
        %5567 = vmatmul.mubr.bf16.gmra.mxu0 %v5437
        %v5568 = vpop.f32.mrf.mxu0
        %v5569 = vadd.f32 0.0, %v5568
        %v5570 = vpop.f32.mrf.mxu0
        %v5571 = vpop.f32.mrf.mxu0
        %v5572 = vadd.f32 0.0, %v5571
        %v5573 = vpop.f32.mrf.mxu0
        %5574 = vmatprep.mubr.bf16.mxu0 0
        %5575 = vmatmul.mubr.bf16.gmra.mxu0 %v5438
        %v5576 = vpop.f32.mrf.mxu0
        %v5577 = vadd.f32 0.0, %v5576
        %v5578 = vpop.f32.mrf.mxu0
        %v5579 = vpop.f32.mrf.mxu0
        %v5580 = vadd.f32 0.0, %v5579
        %v5581 = vpop.f32.mrf.mxu0
        %5582 = vmatprep.mubr.bf16.mxu0 0
        %5583 = vmatmul.mubr.bf16.gmra.mxu0 %v5439
        %v5584 = vpop.f32.mrf.mxu0
        %v5585 = vadd.f32 0.0, %v5584
        %v5586 = vpop.f32.mrf.mxu0
        %v5587 = vpop.f32.mrf.mxu0
        %v5588 = vadd.f32 0.0, %v5587
        %v5589 = vpop.f32.mrf.mxu0
        %5590 = vmatprep.mubr.bf16.mxu0 0
        %5591 = vmatmul.mubr.bf16.gmra.mxu0 %v5440
        %v5592 = vpop.f32.mrf.mxu0
        %v5593 = vadd.f32 0.0, %v5592
        %v5594 = vpop.f32.mrf.mxu0
        %v5595 = vpop.f32.mrf.mxu0
        %v5596 = vadd.f32 0.0, %v5595
        %v5597 = vpop.f32.mrf.mxu0
        %5598 = vmatprep.mubr.bf16.mxu0 0
        %5599 = vmatmul.mubr.bf16.gmra.mxu0 %v5441
        %v5600 = vpop.f32.mrf.mxu0
        %v5601 = vadd.f32 0.0, %v5600
        %v5602 = vpop.f32.mrf.mxu0
        %v5603 = vpop.f32.mrf.mxu0
        %v5604 = vadd.f32 0.0, %v5603
        %v5605 = vpop.f32.mrf.mxu0
        %5606 = vmatprep.mubr.bf16.mxu0 0
        %5607 = vmatmul.mubr.bf16.gmra.mxu0 %v5442
        %v5608 = vpop.f32.mrf.mxu0
        %v5609 = vadd.f32 0.0, %v5608
        %v5610 = vpop.f32.mrf.mxu0
        %v5611 = vpop.f32.mrf.mxu0
        %v5612 = vadd.f32 0.0, %v5611
        %v5613 = vpop.f32.mrf.mxu0
        %5614 = vmatprep.mubr.bf16.mxu0 0
        %5615 = vmatmul.mubr.bf16.gmra.mxu0 %v5443
        %v5616 = vpop.f32.mrf.mxu0
        %v5617 = vadd.f32 0.0, %v5616
        %v5618 = vpop.f32.mrf.mxu0
        %v5619 = vpop.f32.mrf.mxu0
        %v5620 = vadd.f32 0.0, %v5619
        %v5621 = vpop.f32.mrf.mxu0
        %5622 = vmatprep.mubr.bf16.mxu0 0
        %5623 = vmatmul.mubr.bf16.gmra.mxu0 %v5444
        %v5624 = vpop.f32.mrf.mxu0
        %v5625 = vadd.f32 0.0, %v5624
        %v5626 = vpop.f32.mrf.mxu0
        %v5627 = vpop.f32.mrf.mxu0
        %v5628 = vadd.f32 0.0, %v5627
        %v5629 = vpop.f32.mrf.mxu0
        %5630 = vmatprep.mubr.bf16.mxu0 0
        %5631 = vmatmul.mubr.bf16.gmra.mxu0 %v5445
        %v5632 = vpop.f32.mrf.mxu0
        %v5633 = vadd.f32 0.0, %v5632
        %v5634 = vpop.f32.mrf.mxu0
        %v5635 = vpop.f32.mrf.mxu0
        %v5636 = vadd.f32 0.0, %v5635
        %v5637 = vpop.f32.mrf.mxu0
        %5638 = vmatprep.mubr.bf16.mxu0 0
        %5639 = vmatmul.mubr.bf16.gmra.mxu0 %v5446
        %v5640 = vpop.f32.mrf.mxu0
        %v5641 = vadd.f32 0.0, %v5640
        %v5642 = vpop.f32.mrf.mxu0
        %v5643 = vpop.f32.mrf.mxu0
        %v5644 = vadd.f32 0.0, %v5643
        %v5645 = vpop.f32.mrf.mxu0
        %5646 = vmatprep.mubr.bf16.mxu0 0
        %5647 = vmatmul.mubr.bf16.gmra.mxu0 %v5447
        %v5648 = vpop.f32.mrf.mxu0
        %v5649 = vadd.f32 0.0, %v5648
        %v5650 = vpop.f32.mrf.mxu0
        %v5651 = vpop.f32.mrf.mxu0
        %v5652 = vadd.f32 0.0, %v5651
        %v5653 = vpop.f32.mrf.mxu0
        %5654 = vmatprep.mubr.bf16.mxu0 0
        %5655 = vmatmul.mubr.bf16.gmra.mxu0 %v5448
        %v5656 = vpop.f32.mrf.mxu0
        %v5657 = vadd.f32 0.0, %v5656
        %v5658 = vpop.f32.mrf.mxu0
        %v5659 = vpop.f32.mrf.mxu0
        %v5660 = vadd.f32 0.0, %v5659
        %v5661 = vpop.f32.mrf.mxu0
        %5662 = vmatprep.mubr.bf16.mxu0 0
        %5663 = vmatmul.mubr.bf16.gmra.mxu0 %v5449
        %v5664 = vpop.f32.mrf.mxu0
        %v5665 = vadd.f32 0.0, %v5664
        %v5666 = vpop.f32.mrf.mxu0
        %v5667 = vpop.f32.mrf.mxu0
        %v5668 = vadd.f32 0.0, %v5667
        %v5669 = vpop.f32.mrf.mxu0
        %5670 = vmatprep.mubr.bf16.mxu0 0
        %5671 = vmatmul.mubr.bf16.gmra.mxu0 %v5450
        %v5672 = vpop.f32.mrf.mxu0
        %v5673 = vadd.f32 0.0, %v5672
        %v5674 = vpop.f32.mrf.mxu0
        %v5675 = vpop.f32.mrf.mxu0
        %v5676 = vadd.f32 0.0, %v5675
        %v5677 = vpop.f32.mrf.mxu0
        %5678 = vmatprep.mubr.bf16.mxu0 0
        %5679 = vmatmul.mubr.bf16.gmra.mxu0 %v5451
        %v5680 = vpop.f32.mrf.mxu0
        %v5681 = vadd.f32 0.0, %v5680
        %v5682 = vpop.f32.mrf.mxu0
        %v5683 = vpop.f32.mrf.mxu0
        %v5684 = vadd.f32 0.0, %v5683
        %v5685 = vpop.f32.mrf.mxu0
        %5686 = vmatprep.mubr.bf16.mxu0 0
        %5687 = vmatmul.mubr.bf16.gmra.mxu0 %v5452
        %v5688 = vpop.f32.mrf.mxu0
        %v5689 = vadd.f32 0.0, %v5688
        %v5690 = vpop.f32.mrf.mxu0
        %v5691 = vpop.f32.mrf.mxu0
        %v5692 = vadd.f32 0.0, %v5691
        %v5693 = vpop.f32.mrf.mxu0
        %5694 = vdwg.mxu0
        %v5695 = vadd.f32 %v5363, %v5553
        %v5696 = vadd.f32 %v5364, %v5556
        %v5697 = vadd.f32 %v5365, %v5561
        %v5698 = vadd.f32 %v5366, %v5564
        %v5699 = vadd.f32 %v5367, %v5569
        %v5700 = vadd.f32 %v5368, %v5572
        %v5701 = vadd.f32 %v5369, %v5577
        %v5702 = vadd.f32 %v5370, %v5580
        %v5703 = vadd.f32 %v5371, %v5585
        %v5704 = vadd.f32 %v5372, %v5588
        %v5705 = vadd.f32 %v5373, %v5593
        %v5706 = vadd.f32 %v5374, %v5596
        %v5707 = vadd.f32 %v5375, %v5601
        %v5708 = vadd.f32 %v5376, %v5604
        %v5709 = vadd.f32 %v5377, %v5609
        %v5710 = vadd.f32 %v5378, %v5612
        %v5711 = vadd.f32 %v5379, %v5617
        %v5712 = vadd.f32 %v5380, %v5620
        %v5713 = vadd.f32 %v5381, %v5625
        %v5714 = vadd.f32 %v5382, %v5628
        %v5715 = vadd.f32 %v5383, %v5633
        %v5716 = vadd.f32 %v5384, %v5636
        %v5717 = vadd.f32 %v5385, %v5641
        %v5718 = vadd.f32 %v5386, %v5644
        %v5719 = vadd.f32 %v5387, %v5649
        %v5720 = vadd.f32 %v5388, %v5652
        %v5721 = vadd.f32 %v5389, %v5657
        %v5722 = vadd.f32 %v5390, %v5660
        %v5723 = vadd.f32 %v5391, %v5665
        %v5724 = vadd.f32 %v5392, %v5668
        %v5725 = vadd.f32 %v5393, %v5673
        %v5726 = vadd.f32 %v5394, %v5676
        %v5727 = vadd.f32 %v5395, %v5681
        %v5728 = vadd.f32 %v5396, %v5684
        %v5729 = vadd.f32 %v5397, %v5689
        %v5730 = vadd.f32 %v5398, %v5692
        %v5731 = vld [vmem:[#allocation3 + $0x14] sm:$0xff]
        %v5732 = vld [vmem:[#allocation3 + $0x1c] sm:$0xff]
        %v5733 = vld [vmem:[#allocation3 + $0x24] sm:$0xff]
        %v5734 = vld [vmem:[#allocation3 + $0x2c] sm:$0xff]
        %v5735 = vld [vmem:[#allocation3 + $0x34] sm:$0xff]
        %v5736 = vld [vmem:[#allocation3 + $0x3c] sm:$0xff]
        %v5737 = vld [vmem:[#allocation3 + $0x44] sm:$0xff]
        %v5738 = vld [vmem:[#allocation3 + $0x4c] sm:$0xff]
        %v5739 = vld [vmem:[#allocation3 + $0x54] sm:$0xff]
        %v5740 = vld [vmem:[#allocation3 + $0x5c] sm:$0xff]
        %v5741 = vld [vmem:[#allocation3 + $0x64] sm:$0xff]
        %v5742 = vld [vmem:[#allocation3 + $0x6c] sm:$0xff]
        %v5743 = vld [vmem:[#allocation3 + $0x74] sm:$0xff]
        %v5744 = vld [vmem:[#allocation3 + $0x7c] sm:$0xff]
        %v5745 = vld [vmem:[#allocation3 + $0x84] sm:$0xff]
        %v5746 = vld [vmem:[#allocation3 + $0x8c] sm:$0xff]
        %v5747 = vld [vmem:[#allocation3 + $0x94] sm:$0xff]
        %v5748 = vld [vmem:[#allocation3 + $0x9c] sm:$0xff]
        %v5749 = vld [vmem:[#allocation3 + $0xa4] sm:$0xff]
        %v5750 = vld [vmem:[#allocation3 + $0xac] sm:$0xff]
        %v5751 = vld [vmem:[#allocation3 + $0xb4] sm:$0xff]
        %v5752 = vld [vmem:[#allocation3 + $0xbc] sm:$0xff]
        %v5753 = vld [vmem:[#allocation3 + $0xc4] sm:$0xff]
        %v5754 = vld [vmem:[#allocation3 + $0xcc] sm:$0xff]
        %v5755 = vld [vmem:[#allocation3 + $0xd4] sm:$0xff]
        %v5756 = vld [vmem:[#allocation3 + $0xdc] sm:$0xff]
        %v5757 = vld [vmem:[#allocation3 + $0xe4] sm:$0xff]
        %v5758 = vld [vmem:[#allocation3 + $0xec] sm:$0xff]
        %v5759 = vld [vmem:[#allocation3 + $0xf4] sm:$0xff]
        %v5760 = vld [vmem:[#allocation3 + $0xfc] sm:$0xff]
        %v5761 = vld [vmem:[#allocation3 + $0x104] sm:$0xff]
        %v5762 = vld [vmem:[#allocation3 + $0x10c] sm:$0xff]
        %v5763 = vld [vmem:[#allocation3 + $0x114] sm:$0xff]
        %v5764 = vld [vmem:[#allocation3 + $0x11c] sm:$0xff]
        %v5765 = vld [vmem:[#allocation3 + $0x124] sm:$0xff]
        %v5766 = vld [vmem:[#allocation3 + $0x12c] sm:$0xff]
        %v5767 = vpack.c.bf16 %v5732, %v5731
        %v5768 = vpack.c.bf16 %v5734, %v5733
        %v5769 = vpack.c.bf16 %v5736, %v5735
        %v5770 = vpack.c.bf16 %v5738, %v5737
        %v5771 = vpack.c.bf16 %v5740, %v5739
        %v5772 = vpack.c.bf16 %v5742, %v5741
        %v5773 = vpack.c.bf16 %v5744, %v5743
        %v5774 = vpack.c.bf16 %v5746, %v5745
        %v5775 = vpack.c.bf16 %v5748, %v5747
        %v5776 = vpack.c.bf16 %v5750, %v5749
        %v5777 = vpack.c.bf16 %v5752, %v5751
        %v5778 = vpack.c.bf16 %v5754, %v5753
        %v5779 = vpack.c.bf16 %v5756, %v5755
        %v5780 = vpack.c.bf16 %v5758, %v5757
        %v5781 = vpack.c.bf16 %v5760, %v5759
        %v5782 = vpack.c.bf16 %v5762, %v5761
        %v5783 = vpack.c.bf16 %v5764, %v5763
        %v5784 = vpack.c.bf16 %v5766, %v5765
        %s5785 = scalar_lea.vmem %s1, 960
        %v5786 = vld [vmem:[%s5785] sm:$0xf]
        %v5787 = vld [vmem:[%s5785 + $0x4] sm:$0xf]
        %v5788 = vld [vmem:[%s5785 + $0x8] sm:$0xf]
        %v5789 = vld [vmem:[%s5785 + $0xc] sm:$0xf]
        %v5790 = vld [vmem:[%s5785 + $0x10] sm:$0xf]
        %v5791 = vld [vmem:[%s5785 + $0x14] sm:$0xf]
        %v5792 = vld [vmem:[%s5785 + $0x18] sm:$0xf]
        %v5793 = vld [vmem:[%s5785 + $0x1c] sm:$0xf]
        %v5794 = vld [vmem:[%s5785 + $0x20] sm:$0xf]
        %v5795 = vld [vmem:[%s5785 + $0x24] sm:$0xf]
        %v5796 = vld [vmem:[%s5785 + $0x28] sm:$0xf]
        %v5797 = vld [vmem:[%s5785 + $0x2c] sm:$0xf]
        %v5798 = vld [vmem:[%s5785 + $0x30] sm:$0xf]
        %v5799 = vld [vmem:[%s5785 + $0x34] sm:$0xf]
        %v5800 = vld [vmem:[%s5785 + $0x38] sm:$0xf]
        %v5801 = vld [vmem:[%s5785 + $0x3c] sm:$0xf]
        %v5818 = vunpack.c.l.b16 %v5786
        %v5819 = vunpack.c.l.b16 %v5787
        %v5820 = vunpack.c.l.b16 %v5788
        %v5821 = vunpack.c.l.b16 %v5789
        %v5822 = vunpack.c.l.b16 %v5790
        %v5823 = vunpack.c.l.b16 %v5791
        %v5824 = vunpack.c.l.b16 %v5792
        %v5825 = vunpack.c.l.b16 %v5793
        %v5826 = vunpack.c.l.b16 %v5794
        %v5827 = vunpack.c.l.b16 %v5795
        %v5828 = vunpack.c.l.b16 %v5796
        %v5829 = vunpack.c.l.b16 %v5797
        %v5830 = vunpack.c.l.b16 %v5798
        %v5831 = vunpack.c.l.b16 %v5799
        %v5832 = vunpack.c.l.b16 %v5800
        %v5833 = vunpack.c.l.b16 %v5801
        %v5834 = vpack.c.b16 %v5819, %v5818
        %v5835 = vpack.c.b16 %v5821, %v5820
        %v5836 = vpack.c.b16 %v5823, %v5822
        %v5837 = vpack.c.b16 %v5825, %v5824
        %v5838 = vpack.c.b16 %v5827, %v5826
        %v5839 = vpack.c.b16 %v5829, %v5828
        %v5840 = vpack.c.b16 %v5831, %v5830
        %v5841 = vpack.c.b16 %v5833, %v5832
        %5850 = vmatprep.subr.bf16.mxu0 0
        %5851 = vmatpush1.bf16.msra.mxu0 %v5841
        %5852 = vmatprep.subr.bf16.mxu0 0
        %5853 = vmatpush1.bf16.msra.mxu0 %v5840
        %5854 = vmatprep.subr.bf16.mxu0 0
        %5855 = vmatpush1.bf16.msra.mxu0 %v5839
        %5856 = vmatprep.subr.bf16.mxu0 0
        %5857 = vmatpush1.bf16.msra.mxu0 %v5838
        %5858 = vmatprep.subr.bf16.mxu0 0
        %5859 = vmatpush1.bf16.msra.mxu0 %v5837
        %5860 = vmatprep.subr.bf16.mxu0 0
        %5861 = vmatpush1.bf16.msra.mxu0 %v5836
        %5862 = vmatprep.subr.bf16.mxu0 0
        %5863 = vmatpush1.bf16.msra.mxu0 %v5835
        %5864 = vmatprep.subr.bf16.mxu0 0
        %5865 = vmatpush1.bf16.msra.mxu0 %v5834
        %5866 = vmatprep.subr.bf16.mxu0 0
        %5867 = vmatpush2.bf16.msra.mxu0 0
        %5868 = vmatprep.subr.bf16.mxu0 0
        %5869 = vmatpush2.bf16.msra.mxu0 0
        %5870 = vmatprep.subr.bf16.mxu0 0
        %5871 = vmatpush2.bf16.msra.mxu0 0
        %5872 = vmatprep.subr.bf16.mxu0 0
        %5873 = vmatpush2.bf16.msra.mxu0 0
        %5874 = vmatprep.subr.bf16.mxu0 0
        %5875 = vmatpush2.bf16.msra.mxu0 0
        %5876 = vmatprep.subr.bf16.mxu0 0
        %5877 = vmatpush2.bf16.msra.mxu0 0
        %5878 = vmatprep.subr.bf16.mxu0 0
        %5879 = vmatpush2.bf16.msra.mxu0 0
        %5880 = vmatprep.subr.bf16.mxu0 0
        %5881 = vmatpush2.bf16.msra.mxu0 0
        %5882 = vmatprep.mubr.bf16.mxu0 0
        %5883 = vmatmul.mubr.bf16.gmra.mxu0 %v5767
        %v5884 = vpop.f32.mrf.mxu0
        %v5885 = vadd.f32 0.0, %v5884
        %v5886 = vpop.f32.mrf.mxu0
        %v5887 = vpop.f32.mrf.mxu0
        %v5888 = vadd.f32 0.0, %v5887
        %v5889 = vpop.f32.mrf.mxu0
        %5890 = vmatprep.mubr.bf16.mxu0 0
        %5891 = vmatmul.mubr.bf16.gmra.mxu0 %v5768
        %v5892 = vpop.f32.mrf.mxu0
        %v5893 = vadd.f32 0.0, %v5892
        %v5894 = vpop.f32.mrf.mxu0
        %v5895 = vpop.f32.mrf.mxu0
        %v5896 = vadd.f32 0.0, %v5895
        %v5897 = vpop.f32.mrf.mxu0
        %5898 = vmatprep.mubr.bf16.mxu0 0
        %5899 = vmatmul.mubr.bf16.gmra.mxu0 %v5769
        %v5900 = vpop.f32.mrf.mxu0
        %v5901 = vadd.f32 0.0, %v5900
        %v5902 = vpop.f32.mrf.mxu0
        %v5903 = vpop.f32.mrf.mxu0
        %v5904 = vadd.f32 0.0, %v5903
        %v5905 = vpop.f32.mrf.mxu0
        %5906 = vmatprep.mubr.bf16.mxu0 0
        %5907 = vmatmul.mubr.bf16.gmra.mxu0 %v5770
        %v5908 = vpop.f32.mrf.mxu0
        %v5909 = vadd.f32 0.0, %v5908
        %v5910 = vpop.f32.mrf.mxu0
        %v5911 = vpop.f32.mrf.mxu0
        %v5912 = vadd.f32 0.0, %v5911
        %v5913 = vpop.f32.mrf.mxu0
        %5914 = vmatprep.mubr.bf16.mxu0 0
        %5915 = vmatmul.mubr.bf16.gmra.mxu0 %v5771
        %v5916 = vpop.f32.mrf.mxu0
        %v5917 = vadd.f32 0.0, %v5916
        %v5918 = vpop.f32.mrf.mxu0
        %v5919 = vpop.f32.mrf.mxu0
        %v5920 = vadd.f32 0.0, %v5919
        %v5921 = vpop.f32.mrf.mxu0
        %5922 = vmatprep.mubr.bf16.mxu0 0
        %5923 = vmatmul.mubr.bf16.gmra.mxu0 %v5772
        %v5924 = vpop.f32.mrf.mxu0
        %v5925 = vadd.f32 0.0, %v5924
        %v5926 = vpop.f32.mrf.mxu0
        %v5927 = vpop.f32.mrf.mxu0
        %v5928 = vadd.f32 0.0, %v5927
        %v5929 = vpop.f32.mrf.mxu0
        %5930 = vmatprep.mubr.bf16.mxu0 0
        %5931 = vmatmul.mubr.bf16.gmra.mxu0 %v5773
        %v5932 = vpop.f32.mrf.mxu0
        %v5933 = vadd.f32 0.0, %v5932
        %v5934 = vpop.f32.mrf.mxu0
        %v5935 = vpop.f32.mrf.mxu0
        %v5936 = vadd.f32 0.0, %v5935
        %v5937 = vpop.f32.mrf.mxu0
        %5938 = vmatprep.mubr.bf16.mxu0 0
        %5939 = vmatmul.mubr.bf16.gmra.mxu0 %v5774
        %v5940 = vpop.f32.mrf.mxu0
        %v5941 = vadd.f32 0.0, %v5940
        %v5942 = vpop.f32.mrf.mxu0
        %v5943 = vpop.f32.mrf.mxu0
        %v5944 = vadd.f32 0.0, %v5943
        %v5945 = vpop.f32.mrf.mxu0
        %5946 = vmatprep.mubr.bf16.mxu0 0
        %5947 = vmatmul.mubr.bf16.gmra.mxu0 %v5775
        %v5948 = vpop.f32.mrf.mxu0
        %v5949 = vadd.f32 0.0, %v5948
        %v5950 = vpop.f32.mrf.mxu0
        %v5951 = vpop.f32.mrf.mxu0
        %v5952 = vadd.f32 0.0, %v5951
        %v5953 = vpop.f32.mrf.mxu0
        %5954 = vmatprep.mubr.bf16.mxu0 0
        %5955 = vmatmul.mubr.bf16.gmra.mxu0 %v5776
        %v5956 = vpop.f32.mrf.mxu0
        %v5957 = vadd.f32 0.0, %v5956
        %v5958 = vpop.f32.mrf.mxu0
        %v5959 = vpop.f32.mrf.mxu0
        %v5960 = vadd.f32 0.0, %v5959
        %v5961 = vpop.f32.mrf.mxu0
        %5962 = vmatprep.mubr.bf16.mxu0 0
        %5963 = vmatmul.mubr.bf16.gmra.mxu0 %v5777
        %v5964 = vpop.f32.mrf.mxu0
        %v5965 = vadd.f32 0.0, %v5964
        %v5966 = vpop.f32.mrf.mxu0
        %v5967 = vpop.f32.mrf.mxu0
        %v5968 = vadd.f32 0.0, %v5967
        %v5969 = vpop.f32.mrf.mxu0
        %5970 = vmatprep.mubr.bf16.mxu0 0
        %5971 = vmatmul.mubr.bf16.gmra.mxu0 %v5778
        %v5972 = vpop.f32.mrf.mxu0
        %v5973 = vadd.f32 0.0, %v5972
        %v5974 = vpop.f32.mrf.mxu0
        %v5975 = vpop.f32.mrf.mxu0
        %v5976 = vadd.f32 0.0, %v5975
        %v5977 = vpop.f32.mrf.mxu0
        %5978 = vmatprep.mubr.bf16.mxu0 0
        %5979 = vmatmul.mubr.bf16.gmra.mxu0 %v5779
        %v5980 = vpop.f32.mrf.mxu0
        %v5981 = vadd.f32 0.0, %v5980
        %v5982 = vpop.f32.mrf.mxu0
        %v5983 = vpop.f32.mrf.mxu0
        %v5984 = vadd.f32 0.0, %v5983
        %v5985 = vpop.f32.mrf.mxu0
        %5986 = vmatprep.mubr.bf16.mxu0 0
        %5987 = vmatmul.mubr.bf16.gmra.mxu0 %v5780
        %v5988 = vpop.f32.mrf.mxu0
        %v5989 = vadd.f32 0.0, %v5988
        %v5990 = vpop.f32.mrf.mxu0
        %v5991 = vpop.f32.mrf.mxu0
        %v5992 = vadd.f32 0.0, %v5991
        %v5993 = vpop.f32.mrf.mxu0
        %5994 = vmatprep.mubr.bf16.mxu0 0
        %5995 = vmatmul.mubr.bf16.gmra.mxu0 %v5781
        %v5996 = vpop.f32.mrf.mxu0
        %v5997 = vadd.f32 0.0, %v5996
        %v5998 = vpop.f32.mrf.mxu0
        %v5999 = vpop.f32.mrf.mxu0
        %v6000 = vadd.f32 0.0, %v5999
        %v6001 = vpop.f32.mrf.mxu0
        %6002 = vmatprep.mubr.bf16.mxu0 0
        %6003 = vmatmul.mubr.bf16.gmra.mxu0 %v5782
        %v6004 = vpop.f32.mrf.mxu0
        %v6005 = vadd.f32 0.0, %v6004
        %v6006 = vpop.f32.mrf.mxu0
        %v6007 = vpop.f32.mrf.mxu0
        %v6008 = vadd.f32 0.0, %v6007
        %v6009 = vpop.f32.mrf.mxu0
        %6010 = vmatprep.mubr.bf16.mxu0 0
        %6011 = vmatmul.mubr.bf16.gmra.mxu0 %v5783
        %v6012 = vpop.f32.mrf.mxu0
        %v6013 = vadd.f32 0.0, %v6012
        %v6014 = vpop.f32.mrf.mxu0
        %v6015 = vpop.f32.mrf.mxu0
        %v6016 = vadd.f32 0.0, %v6015
        %v6017 = vpop.f32.mrf.mxu0
        %6018 = vmatprep.mubr.bf16.mxu0 0
        %6019 = vmatmul.mubr.bf16.gmra.mxu0 %v5784
        %v6020 = vpop.f32.mrf.mxu0
        %v6021 = vadd.f32 0.0, %v6020
        %v6022 = vpop.f32.mrf.mxu0
        %v6023 = vpop.f32.mrf.mxu0
        %v6024 = vadd.f32 0.0, %v6023
        %v6025 = vpop.f32.mrf.mxu0
        %6026 = vdwg.mxu0
        %v6027 = vadd.f32 %v5695, %v5885
        %v6028 = vadd.f32 %v5696, %v5888
        %v6029 = vadd.f32 %v5697, %v5893
        %v6030 = vadd.f32 %v5698, %v5896
        %v6031 = vadd.f32 %v5699, %v5901
        %v6032 = vadd.f32 %v5700, %v5904
        %v6033 = vadd.f32 %v5701, %v5909
        %v6034 = vadd.f32 %v5702, %v5912
        %v6035 = vadd.f32 %v5703, %v5917
        %v6036 = vadd.f32 %v5704, %v5920
        %v6037 = vadd.f32 %v5705, %v5925
        %v6038 = vadd.f32 %v5706, %v5928
        %v6039 = vadd.f32 %v5707, %v5933
        %v6040 = vadd.f32 %v5708, %v5936
        %v6041 = vadd.f32 %v5709, %v5941
        %v6042 = vadd.f32 %v5710, %v5944
        %v6043 = vadd.f32 %v5711, %v5949
        %v6044 = vadd.f32 %v5712, %v5952
        %v6045 = vadd.f32 %v5713, %v5957
        %v6046 = vadd.f32 %v5714, %v5960
        %v6047 = vadd.f32 %v5715, %v5965
        %v6048 = vadd.f32 %v5716, %v5968
        %v6049 = vadd.f32 %v5717, %v5973
        %v6050 = vadd.f32 %v5718, %v5976
        %v6051 = vadd.f32 %v5719, %v5981
        %v6052 = vadd.f32 %v5720, %v5984
        %v6053 = vadd.f32 %v5721, %v5989
        %v6054 = vadd.f32 %v5722, %v5992
        %v6055 = vadd.f32 %v5723, %v5997
        %v6056 = vadd.f32 %v5724, %v6000
        %v6057 = vadd.f32 %v5725, %v6005
        %v6058 = vadd.f32 %v5726, %v6008
        %v6059 = vadd.f32 %v5727, %v6013
        %v6060 = vadd.f32 %v5728, %v6016
        %v6061 = vadd.f32 %v5729, %v6021
        %v6062 = vadd.f32 %v5730, %v6024
        %v6063 = vld [vmem:[#allocation3 + $0x24] sm:$0xff]
        %v6064 = vld [vmem:[#allocation3 + $0x2c] sm:$0xff]
        %v6065 = vld [vmem:[#allocation3 + $0x34] sm:$0xff]
        %v6066 = vld [vmem:[#allocation3 + $0x3c] sm:$0xff]
        %v6067 = vld [vmem:[#allocation3 + $0x44] sm:$0xff]
        %v6068 = vld [vmem:[#allocation3 + $0x4c] sm:$0xff]
        %v6069 = vld [vmem:[#allocation3 + $0x54] sm:$0xff]
        %v6070 = vld [vmem:[#allocation3 + $0x5c] sm:$0xff]
        %v6071 = vld [vmem:[#allocation3 + $0x64] sm:$0xff]
        %v6072 = vld [vmem:[#allocation3 + $0x6c] sm:$0xff]
        %v6073 = vld [vmem:[#allocation3 + $0x74] sm:$0xff]
        %v6074 = vld [vmem:[#allocation3 + $0x7c] sm:$0xff]
        %v6075 = vld [vmem:[#allocation3 + $0x84] sm:$0xff]
        %v6076 = vld [vmem:[#allocation3 + $0x8c] sm:$0xff]
        %v6077 = vld [vmem:[#allocation3 + $0x94] sm:$0xff]
        %v6078 = vld [vmem:[#allocation3 + $0x9c] sm:$0xff]
        %v6079 = vld [vmem:[#allocation3 + $0xa4] sm:$0xff]
        %v6080 = vld [vmem:[#allocation3 + $0xac] sm:$0xff]
        %v6081 = vld [vmem:[#allocation3 + $0xb4] sm:$0xff]
        %v6082 = vld [vmem:[#allocation3 + $0xbc] sm:$0xff]
        %v6083 = vld [vmem:[#allocation3 + $0xc4] sm:$0xff]
        %v6084 = vld [vmem:[#allocation3 + $0xcc] sm:$0xff]
        %v6085 = vld [vmem:[#allocation3 + $0xd4] sm:$0xff]
        %v6086 = vld [vmem:[#allocation3 + $0xdc] sm:$0xff]
        %v6087 = vld [vmem:[#allocation3 + $0xe4] sm:$0xff]
        %v6088 = vld [vmem:[#allocation3 + $0xec] sm:$0xff]
        %v6089 = vld [vmem:[#allocation3 + $0xf4] sm:$0xff]
        %v6090 = vld [vmem:[#allocation3 + $0xfc] sm:$0xff]
        %v6091 = vld [vmem:[#allocation3 + $0x104] sm:$0xff]
        %v6092 = vld [vmem:[#allocation3 + $0x10c] sm:$0xff]
        %v6093 = vld [vmem:[#allocation3 + $0x114] sm:$0xff]
        %v6094 = vld [vmem:[#allocation3 + $0x11c] sm:$0xff]
        %v6095 = vld [vmem:[#allocation3 + $0x124] sm:$0xff]
        %v6096 = vld [vmem:[#allocation3 + $0x12c] sm:$0xff]
        %v6097 = vld [vmem:[#allocation3 + $0x134] sm:$0xff]
        %v6098 = vld [vmem:[#allocation3 + $0x13c] sm:$0xff]
        %v6099 = vpack.c.bf16 %v6064, %v6063
        %v6100 = vpack.c.bf16 %v6066, %v6065
        %v6101 = vpack.c.bf16 %v6068, %v6067
        %v6102 = vpack.c.bf16 %v6070, %v6069
        %v6103 = vpack.c.bf16 %v6072, %v6071
        %v6104 = vpack.c.bf16 %v6074, %v6073
        %v6105 = vpack.c.bf16 %v6076, %v6075
        %v6106 = vpack.c.bf16 %v6078, %v6077
        %v6107 = vpack.c.bf16 %v6080, %v6079
        %v6108 = vpack.c.bf16 %v6082, %v6081
        %v6109 = vpack.c.bf16 %v6084, %v6083
        %v6110 = vpack.c.bf16 %v6086, %v6085
        %v6111 = vpack.c.bf16 %v6088, %v6087
        %v6112 = vpack.c.bf16 %v6090, %v6089
        %v6113 = vpack.c.bf16 %v6092, %v6091
        %v6114 = vpack.c.bf16 %v6094, %v6093
        %v6115 = vpack.c.bf16 %v6096, %v6095
        %v6116 = vpack.c.bf16 %v6098, %v6097
        %s6117 = scalar_lea.vmem %s1, 1024
        %v6118 = vld [vmem:[%s6117] sm:$0xf]
        %v6119 = vld [vmem:[%s6117 + $0x4] sm:$0xf]
        %v6120 = vld [vmem:[%s6117 + $0x8] sm:$0xf]
        %v6121 = vld [vmem:[%s6117 + $0xc] sm:$0xf]
        %v6122 = vld [vmem:[%s6117 + $0x10] sm:$0xf]
        %v6123 = vld [vmem:[%s6117 + $0x14] sm:$0xf]
        %v6124 = vld [vmem:[%s6117 + $0x18] sm:$0xf]
        %v6125 = vld [vmem:[%s6117 + $0x1c] sm:$0xf]
        %v6126 = vld [vmem:[%s6117 + $0x20] sm:$0xf]
        %v6127 = vld [vmem:[%s6117 + $0x24] sm:$0xf]
        %v6128 = vld [vmem:[%s6117 + $0x28] sm:$0xf]
        %v6129 = vld [vmem:[%s6117 + $0x2c] sm:$0xf]
        %v6130 = vld [vmem:[%s6117 + $0x30] sm:$0xf]
        %v6131 = vld [vmem:[%s6117 + $0x34] sm:$0xf]
        %v6132 = vld [vmem:[%s6117 + $0x38] sm:$0xf]
        %v6133 = vld [vmem:[%s6117 + $0x3c] sm:$0xf]
        %v6150 = vunpack.c.l.b16 %v6118
        %v6151 = vunpack.c.l.b16 %v6119
        %v6152 = vunpack.c.l.b16 %v6120
        %v6153 = vunpack.c.l.b16 %v6121
        %v6154 = vunpack.c.l.b16 %v6122
        %v6155 = vunpack.c.l.b16 %v6123
        %v6156 = vunpack.c.l.b16 %v6124
        %v6157 = vunpack.c.l.b16 %v6125
        %v6158 = vunpack.c.l.b16 %v6126
        %v6159 = vunpack.c.l.b16 %v6127
        %v6160 = vunpack.c.l.b16 %v6128
        %v6161 = vunpack.c.l.b16 %v6129
        %v6162 = vunpack.c.l.b16 %v6130
        %v6163 = vunpack.c.l.b16 %v6131
        %v6164 = vunpack.c.l.b16 %v6132
        %v6165 = vunpack.c.l.b16 %v6133
        %v6166 = vpack.c.b16 %v6151, %v6150
        %v6167 = vpack.c.b16 %v6153, %v6152
        %v6168 = vpack.c.b16 %v6155, %v6154
        %v6169 = vpack.c.b16 %v6157, %v6156
        %v6170 = vpack.c.b16 %v6159, %v6158
        %v6171 = vpack.c.b16 %v6161, %v6160
        %v6172 = vpack.c.b16 %v6163, %v6162
        %v6173 = vpack.c.b16 %v6165, %v6164
        %6182 = vmatprep.subr.bf16.mxu0 0
        %6183 = vmatpush1.bf16.msra.mxu0 %v6173
        %6184 = vmatprep.subr.bf16.mxu0 0
        %6185 = vmatpush1.bf16.msra.mxu0 %v6172
        %6186 = vmatprep.subr.bf16.mxu0 0
        %6187 = vmatpush1.bf16.msra.mxu0 %v6171
        %6188 = vmatprep.subr.bf16.mxu0 0
        %6189 = vmatpush1.bf16.msra.mxu0 %v6170
        %6190 = vmatprep.subr.bf16.mxu0 0
        %6191 = vmatpush1.bf16.msra.mxu0 %v6169
        %6192 = vmatprep.subr.bf16.mxu0 0
        %6193 = vmatpush1.bf16.msra.mxu0 %v6168
        %6194 = vmatprep.subr.bf16.mxu0 0
        %6195 = vmatpush1.bf16.msra.mxu0 %v6167
        %6196 = vmatprep.subr.bf16.mxu0 0
        %6197 = vmatpush1.bf16.msra.mxu0 %v6166
        %6198 = vmatprep.subr.bf16.mxu0 0
        %6199 = vmatpush2.bf16.msra.mxu0 0
        %6200 = vmatprep.subr.bf16.mxu0 0
        %6201 = vmatpush2.bf16.msra.mxu0 0
        %6202 = vmatprep.subr.bf16.mxu0 0
        %6203 = vmatpush2.bf16.msra.mxu0 0
        %6204 = vmatprep.subr.bf16.mxu0 0
        %6205 = vmatpush2.bf16.msra.mxu0 0
        %6206 = vmatprep.subr.bf16.mxu0 0
        %6207 = vmatpush2.bf16.msra.mxu0 0
        %6208 = vmatprep.subr.bf16.mxu0 0
        %6209 = vmatpush2.bf16.msra.mxu0 0
        %6210 = vmatprep.subr.bf16.mxu0 0
        %6211 = vmatpush2.bf16.msra.mxu0 0
        %6212 = vmatprep.subr.bf16.mxu0 0
        %6213 = vmatpush2.bf16.msra.mxu0 0
        %6214 = vmatprep.mubr.bf16.mxu0 0
        %6215 = vmatmul.mubr.bf16.gmra.mxu0 %v6099
        %v6216 = vpop.f32.mrf.mxu0
        %v6217 = vadd.f32 0.0, %v6216
        %v6218 = vpop.f32.mrf.mxu0
        %v6219 = vpop.f32.mrf.mxu0
        %v6220 = vadd.f32 0.0, %v6219
        %v6221 = vpop.f32.mrf.mxu0
        %6222 = vmatprep.mubr.bf16.mxu0 0
        %6223 = vmatmul.mubr.bf16.gmra.mxu0 %v6100
        %v6224 = vpop.f32.mrf.mxu0
        %v6225 = vadd.f32 0.0, %v6224
        %v6226 = vpop.f32.mrf.mxu0
        %v6227 = vpop.f32.mrf.mxu0
        %v6228 = vadd.f32 0.0, %v6227
        %v6229 = vpop.f32.mrf.mxu0
        %6230 = vmatprep.mubr.bf16.mxu0 0
        %6231 = vmatmul.mubr.bf16.gmra.mxu0 %v6101
        %v6232 = vpop.f32.mrf.mxu0
        %v6233 = vadd.f32 0.0, %v6232
        %v6234 = vpop.f32.mrf.mxu0
        %v6235 = vpop.f32.mrf.mxu0
        %v6236 = vadd.f32 0.0, %v6235
        %v6237 = vpop.f32.mrf.mxu0
        %6238 = vmatprep.mubr.bf16.mxu0 0
        %6239 = vmatmul.mubr.bf16.gmra.mxu0 %v6102
        %v6240 = vpop.f32.mrf.mxu0
        %v6241 = vadd.f32 0.0, %v6240
        %v6242 = vpop.f32.mrf.mxu0
        %v6243 = vpop.f32.mrf.mxu0
        %v6244 = vadd.f32 0.0, %v6243
        %v6245 = vpop.f32.mrf.mxu0
        %6246 = vmatprep.mubr.bf16.mxu0 0
        %6247 = vmatmul.mubr.bf16.gmra.mxu0 %v6103
        %v6248 = vpop.f32.mrf.mxu0
        %v6249 = vadd.f32 0.0, %v6248
        %v6250 = vpop.f32.mrf.mxu0
        %v6251 = vpop.f32.mrf.mxu0
        %v6252 = vadd.f32 0.0, %v6251
        %v6253 = vpop.f32.mrf.mxu0
        %6254 = vmatprep.mubr.bf16.mxu0 0
        %6255 = vmatmul.mubr.bf16.gmra.mxu0 %v6104
        %v6256 = vpop.f32.mrf.mxu0
        %v6257 = vadd.f32 0.0, %v6256
        %v6258 = vpop.f32.mrf.mxu0
        %v6259 = vpop.f32.mrf.mxu0
        %v6260 = vadd.f32 0.0, %v6259
        %v6261 = vpop.f32.mrf.mxu0
        %6262 = vmatprep.mubr.bf16.mxu0 0
        %6263 = vmatmul.mubr.bf16.gmra.mxu0 %v6105
        %v6264 = vpop.f32.mrf.mxu0
        %v6265 = vadd.f32 0.0, %v6264
        %v6266 = vpop.f32.mrf.mxu0
        %v6267 = vpop.f32.mrf.mxu0
        %v6268 = vadd.f32 0.0, %v6267
        %v6269 = vpop.f32.mrf.mxu0
        %6270 = vmatprep.mubr.bf16.mxu0 0
        %6271 = vmatmul.mubr.bf16.gmra.mxu0 %v6106
        %v6272 = vpop.f32.mrf.mxu0
        %v6273 = vadd.f32 0.0, %v6272
        %v6274 = vpop.f32.mrf.mxu0
        %v6275 = vpop.f32.mrf.mxu0
        %v6276 = vadd.f32 0.0, %v6275
        %v6277 = vpop.f32.mrf.mxu0
        %6278 = vmatprep.mubr.bf16.mxu0 0
        %6279 = vmatmul.mubr.bf16.gmra.mxu0 %v6107
        %v6280 = vpop.f32.mrf.mxu0
        %v6281 = vadd.f32 0.0, %v6280
        %v6282 = vpop.f32.mrf.mxu0
        %v6283 = vpop.f32.mrf.mxu0
        %v6284 = vadd.f32 0.0, %v6283
        %v6285 = vpop.f32.mrf.mxu0
        %6286 = vmatprep.mubr.bf16.mxu0 0
        %6287 = vmatmul.mubr.bf16.gmra.mxu0 %v6108
        %v6288 = vpop.f32.mrf.mxu0
        %v6289 = vadd.f32 0.0, %v6288
        %v6290 = vpop.f32.mrf.mxu0
        %v6291 = vpop.f32.mrf.mxu0
        %v6292 = vadd.f32 0.0, %v6291
        %v6293 = vpop.f32.mrf.mxu0
        %6294 = vmatprep.mubr.bf16.mxu0 0
        %6295 = vmatmul.mubr.bf16.gmra.mxu0 %v6109
        %v6296 = vpop.f32.mrf.mxu0
        %v6297 = vadd.f32 0.0, %v6296
        %v6298 = vpop.f32.mrf.mxu0
        %v6299 = vpop.f32.mrf.mxu0
        %v6300 = vadd.f32 0.0, %v6299
        %v6301 = vpop.f32.mrf.mxu0
        %6302 = vmatprep.mubr.bf16.mxu0 0
        %6303 = vmatmul.mubr.bf16.gmra.mxu0 %v6110
        %v6304 = vpop.f32.mrf.mxu0
        %v6305 = vadd.f32 0.0, %v6304
        %v6306 = vpop.f32.mrf.mxu0
        %v6307 = vpop.f32.mrf.mxu0
        %v6308 = vadd.f32 0.0, %v6307
        %v6309 = vpop.f32.mrf.mxu0
        %6310 = vmatprep.mubr.bf16.mxu0 0
        %6311 = vmatmul.mubr.bf16.gmra.mxu0 %v6111
        %v6312 = vpop.f32.mrf.mxu0
        %v6313 = vadd.f32 0.0, %v6312
        %v6314 = vpop.f32.mrf.mxu0
        %v6315 = vpop.f32.mrf.mxu0
        %v6316 = vadd.f32 0.0, %v6315
        %v6317 = vpop.f32.mrf.mxu0
        %6318 = vmatprep.mubr.bf16.mxu0 0
        %6319 = vmatmul.mubr.bf16.gmra.mxu0 %v6112
        %v6320 = vpop.f32.mrf.mxu0
        %v6321 = vadd.f32 0.0, %v6320
        %v6322 = vpop.f32.mrf.mxu0
        %v6323 = vpop.f32.mrf.mxu0
        %v6324 = vadd.f32 0.0, %v6323
        %v6325 = vpop.f32.mrf.mxu0
        %6326 = vmatprep.mubr.bf16.mxu0 0
        %6327 = vmatmul.mubr.bf16.gmra.mxu0 %v6113
        %v6328 = vpop.f32.mrf.mxu0
        %v6329 = vadd.f32 0.0, %v6328
        %v6330 = vpop.f32.mrf.mxu0
        %v6331 = vpop.f32.mrf.mxu0
        %v6332 = vadd.f32 0.0, %v6331
        %v6333 = vpop.f32.mrf.mxu0
        %6334 = vmatprep.mubr.bf16.mxu0 0
        %6335 = vmatmul.mubr.bf16.gmra.mxu0 %v6114
        %v6336 = vpop.f32.mrf.mxu0
        %v6337 = vadd.f32 0.0, %v6336
        %v6338 = vpop.f32.mrf.mxu0
        %v6339 = vpop.f32.mrf.mxu0
        %v6340 = vadd.f32 0.0, %v6339
        %v6341 = vpop.f32.mrf.mxu0
        %6342 = vmatprep.mubr.bf16.mxu0 0
        %6343 = vmatmul.mubr.bf16.gmra.mxu0 %v6115
        %v6344 = vpop.f32.mrf.mxu0
        %v6345 = vadd.f32 0.0, %v6344
        %v6346 = vpop.f32.mrf.mxu0
        %v6347 = vpop.f32.mrf.mxu0
        %v6348 = vadd.f32 0.0, %v6347
        %v6349 = vpop.f32.mrf.mxu0
        %6350 = vmatprep.mubr.bf16.mxu0 0
        %6351 = vmatmul.mubr.bf16.gmra.mxu0 %v6116
        %v6352 = vpop.f32.mrf.mxu0
        %v6353 = vadd.f32 0.0, %v6352
        %v6354 = vpop.f32.mrf.mxu0
        %v6355 = vpop.f32.mrf.mxu0
        %v6356 = vadd.f32 0.0, %v6355
        %v6357 = vpop.f32.mrf.mxu0
        %6358 = vdwg.mxu0
        %v6359 = vadd.f32 %v6027, %v6217
        %v6360 = vadd.f32 %v6028, %v6220
        %v6361 = vadd.f32 %v6029, %v6225
        %v6362 = vadd.f32 %v6030, %v6228
        %v6363 = vadd.f32 %v6031, %v6233
        %v6364 = vadd.f32 %v6032, %v6236
        %v6365 = vadd.f32 %v6033, %v6241
        %v6366 = vadd.f32 %v6034, %v6244
        %v6367 = vadd.f32 %v6035, %v6249
        %v6368 = vadd.f32 %v6036, %v6252
        %v6369 = vadd.f32 %v6037, %v6257
        %v6370 = vadd.f32 %v6038, %v6260
        %v6371 = vadd.f32 %v6039, %v6265
        %v6372 = vadd.f32 %v6040, %v6268
        %v6373 = vadd.f32 %v6041, %v6273
        %v6374 = vadd.f32 %v6042, %v6276
        %v6375 = vadd.f32 %v6043, %v6281
        %v6376 = vadd.f32 %v6044, %v6284
        %v6377 = vadd.f32 %v6045, %v6289
        %v6378 = vadd.f32 %v6046, %v6292
        %v6379 = vadd.f32 %v6047, %v6297
        %v6380 = vadd.f32 %v6048, %v6300
        %v6381 = vadd.f32 %v6049, %v6305
        %v6382 = vadd.f32 %v6050, %v6308
        %v6383 = vadd.f32 %v6051, %v6313
        %v6384 = vadd.f32 %v6052, %v6316
        %v6385 = vadd.f32 %v6053, %v6321
        %v6386 = vadd.f32 %v6054, %v6324
        %v6387 = vadd.f32 %v6055, %v6329
        %v6388 = vadd.f32 %v6056, %v6332
        %v6389 = vadd.f32 %v6057, %v6337
        %v6390 = vadd.f32 %v6058, %v6340
        %v6391 = vadd.f32 %v6059, %v6345
        %v6392 = vadd.f32 %v6060, %v6348
        %v6393 = vadd.f32 %v6061, %v6353
        %v6394 = vadd.f32 %v6062, %v6356
        %v6395 = vld [vmem:[#allocation3 + $0x25] sm:$0xff]
        %v6396 = vld [vmem:[#allocation3 + $0x2d] sm:$0xff]
        %v6397 = vld [vmem:[#allocation3 + $0x35] sm:$0xff]
        %v6398 = vld [vmem:[#allocation3 + $0x3d] sm:$0xff]
        %v6399 = vld [vmem:[#allocation3 + $0x45] sm:$0xff]
        %v6400 = vld [vmem:[#allocation3 + $0x4d] sm:$0xff]
        %v6401 = vld [vmem:[#allocation3 + $0x55] sm:$0xff]
        %v6402 = vld [vmem:[#allocation3 + $0x5d] sm:$0xff]
        %v6403 = vld [vmem:[#allocation3 + $0x65] sm:$0xff]
        %v6404 = vld [vmem:[#allocation3 + $0x6d] sm:$0xff]
        %v6405 = vld [vmem:[#allocation3 + $0x75] sm:$0xff]
        %v6406 = vld [vmem:[#allocation3 + $0x7d] sm:$0xff]
        %v6407 = vld [vmem:[#allocation3 + $0x85] sm:$0xff]
        %v6408 = vld [vmem:[#allocation3 + $0x8d] sm:$0xff]
        %v6409 = vld [vmem:[#allocation3 + $0x95] sm:$0xff]
        %v6410 = vld [vmem:[#allocation3 + $0x9d] sm:$0xff]
        %v6411 = vld [vmem:[#allocation3 + $0xa5] sm:$0xff]
        %v6412 = vld [vmem:[#allocation3 + $0xad] sm:$0xff]
        %v6413 = vld [vmem:[#allocation3 + $0xb5] sm:$0xff]
        %v6414 = vld [vmem:[#allocation3 + $0xbd] sm:$0xff]
        %v6415 = vld [vmem:[#allocation3 + $0xc5] sm:$0xff]
        %v6416 = vld [vmem:[#allocation3 + $0xcd] sm:$0xff]
        %v6417 = vld [vmem:[#allocation3 + $0xd5] sm:$0xff]
        %v6418 = vld [vmem:[#allocation3 + $0xdd] sm:$0xff]
        %v6419 = vld [vmem:[#allocation3 + $0xe5] sm:$0xff]
        %v6420 = vld [vmem:[#allocation3 + $0xed] sm:$0xff]
        %v6421 = vld [vmem:[#allocation3 + $0xf5] sm:$0xff]
        %v6422 = vld [vmem:[#allocation3 + $0xfd] sm:$0xff]
        %v6423 = vld [vmem:[#allocation3 + $0x105] sm:$0xff]
        %v6424 = vld [vmem:[#allocation3 + $0x10d] sm:$0xff]
        %v6425 = vld [vmem:[#allocation3 + $0x115] sm:$0xff]
        %v6426 = vld [vmem:[#allocation3 + $0x11d] sm:$0xff]
        %v6427 = vld [vmem:[#allocation3 + $0x125] sm:$0xff]
        %v6428 = vld [vmem:[#allocation3 + $0x12d] sm:$0xff]
        %v6429 = vld [vmem:[#allocation3 + $0x135] sm:$0xff]
        %v6430 = vld [vmem:[#allocation3 + $0x13d] sm:$0xff]
        %v6431 = vpack.c.bf16 %v6396, %v6395
        %v6432 = vpack.c.bf16 %v6398, %v6397
        %v6433 = vpack.c.bf16 %v6400, %v6399
        %v6434 = vpack.c.bf16 %v6402, %v6401
        %v6435 = vpack.c.bf16 %v6404, %v6403
        %v6436 = vpack.c.bf16 %v6406, %v6405
        %v6437 = vpack.c.bf16 %v6408, %v6407
        %v6438 = vpack.c.bf16 %v6410, %v6409
        %v6439 = vpack.c.bf16 %v6412, %v6411
        %v6440 = vpack.c.bf16 %v6414, %v6413
        %v6441 = vpack.c.bf16 %v6416, %v6415
        %v6442 = vpack.c.bf16 %v6418, %v6417
        %v6443 = vpack.c.bf16 %v6420, %v6419
        %v6444 = vpack.c.bf16 %v6422, %v6421
        %v6445 = vpack.c.bf16 %v6424, %v6423
        %v6446 = vpack.c.bf16 %v6426, %v6425
        %v6447 = vpack.c.bf16 %v6428, %v6427
        %v6448 = vpack.c.bf16 %v6430, %v6429
        %s6449 = scalar_lea.vmem %s1, 1088
        %v6450 = vld [vmem:[%s6449] sm:$0xf]
        %v6451 = vld [vmem:[%s6449 + $0x4] sm:$0xf]
        %v6452 = vld [vmem:[%s6449 + $0x8] sm:$0xf]
        %v6453 = vld [vmem:[%s6449 + $0xc] sm:$0xf]
        %v6454 = vld [vmem:[%s6449 + $0x10] sm:$0xf]
        %v6455 = vld [vmem:[%s6449 + $0x14] sm:$0xf]
        %v6456 = vld [vmem:[%s6449 + $0x18] sm:$0xf]
        %v6457 = vld [vmem:[%s6449 + $0x1c] sm:$0xf]
        %v6458 = vld [vmem:[%s6449 + $0x20] sm:$0xf]
        %v6459 = vld [vmem:[%s6449 + $0x24] sm:$0xf]
        %v6460 = vld [vmem:[%s6449 + $0x28] sm:$0xf]
        %v6461 = vld [vmem:[%s6449 + $0x2c] sm:$0xf]
        %v6462 = vld [vmem:[%s6449 + $0x30] sm:$0xf]
        %v6463 = vld [vmem:[%s6449 + $0x34] sm:$0xf]
        %v6464 = vld [vmem:[%s6449 + $0x38] sm:$0xf]
        %v6465 = vld [vmem:[%s6449 + $0x3c] sm:$0xf]
        %v6482 = vunpack.c.l.b16 %v6450
        %v6483 = vunpack.c.l.b16 %v6451
        %v6484 = vunpack.c.l.b16 %v6452
        %v6485 = vunpack.c.l.b16 %v6453
        %v6486 = vunpack.c.l.b16 %v6454
        %v6487 = vunpack.c.l.b16 %v6455
        %v6488 = vunpack.c.l.b16 %v6456
        %v6489 = vunpack.c.l.b16 %v6457
        %v6490 = vunpack.c.l.b16 %v6458
        %v6491 = vunpack.c.l.b16 %v6459
        %v6492 = vunpack.c.l.b16 %v6460
        %v6493 = vunpack.c.l.b16 %v6461
        %v6494 = vunpack.c.l.b16 %v6462
        %v6495 = vunpack.c.l.b16 %v6463
        %v6496 = vunpack.c.l.b16 %v6464
        %v6497 = vunpack.c.l.b16 %v6465
        %v6498 = vpack.c.b16 %v6483, %v6482
        %v6499 = vpack.c.b16 %v6485, %v6484
        %v6500 = vpack.c.b16 %v6487, %v6486
        %v6501 = vpack.c.b16 %v6489, %v6488
        %v6502 = vpack.c.b16 %v6491, %v6490
        %v6503 = vpack.c.b16 %v6493, %v6492
        %v6504 = vpack.c.b16 %v6495, %v6494
        %v6505 = vpack.c.b16 %v6497, %v6496
        %6514 = vmatprep.subr.bf16.mxu0 0
        %6515 = vmatpush1.bf16.msra.mxu0 %v6505
        %6516 = vmatprep.subr.bf16.mxu0 0
        %6517 = vmatpush1.bf16.msra.mxu0 %v6504
        %6518 = vmatprep.subr.bf16.mxu0 0
        %6519 = vmatpush1.bf16.msra.mxu0 %v6503
        %6520 = vmatprep.subr.bf16.mxu0 0
        %6521 = vmatpush1.bf16.msra.mxu0 %v6502
        %6522 = vmatprep.subr.bf16.mxu0 0
        %6523 = vmatpush1.bf16.msra.mxu0 %v6501
        %6524 = vmatprep.subr.bf16.mxu0 0
        %6525 = vmatpush1.bf16.msra.mxu0 %v6500
        %6526 = vmatprep.subr.bf16.mxu0 0
        %6527 = vmatpush1.bf16.msra.mxu0 %v6499
        %6528 = vmatprep.subr.bf16.mxu0 0
        %6529 = vmatpush1.bf16.msra.mxu0 %v6498
        %6530 = vmatprep.subr.bf16.mxu0 0
        %6531 = vmatpush2.bf16.msra.mxu0 0
        %6532 = vmatprep.subr.bf16.mxu0 0
        %6533 = vmatpush2.bf16.msra.mxu0 0
        %6534 = vmatprep.subr.bf16.mxu0 0
        %6535 = vmatpush2.bf16.msra.mxu0 0
        %6536 = vmatprep.subr.bf16.mxu0 0
        %6537 = vmatpush2.bf16.msra.mxu0 0
        %6538 = vmatprep.subr.bf16.mxu0 0
        %6539 = vmatpush2.bf16.msra.mxu0 0
        %6540 = vmatprep.subr.bf16.mxu0 0
        %6541 = vmatpush2.bf16.msra.mxu0 0
        %6542 = vmatprep.subr.bf16.mxu0 0
        %6543 = vmatpush2.bf16.msra.mxu0 0
        %6544 = vmatprep.subr.bf16.mxu0 0
        %6545 = vmatpush2.bf16.msra.mxu0 0
        %6546 = vmatprep.mubr.bf16.mxu0 0
        %6547 = vmatmul.mubr.bf16.gmra.mxu0 %v6431
        %v6548 = vpop.f32.mrf.mxu0
        %v6549 = vadd.f32 0.0, %v6548
        %v6550 = vpop.f32.mrf.mxu0
        %v6551 = vpop.f32.mrf.mxu0
        %v6552 = vadd.f32 0.0, %v6551
        %v6553 = vpop.f32.mrf.mxu0
        %6554 = vmatprep.mubr.bf16.mxu0 0
        %6555 = vmatmul.mubr.bf16.gmra.mxu0 %v6432
        %v6556 = vpop.f32.mrf.mxu0
        %v6557 = vadd.f32 0.0, %v6556
        %v6558 = vpop.f32.mrf.mxu0
        %v6559 = vpop.f32.mrf.mxu0
        %v6560 = vadd.f32 0.0, %v6559
        %v6561 = vpop.f32.mrf.mxu0
        %6562 = vmatprep.mubr.bf16.mxu0 0
        %6563 = vmatmul.mubr.bf16.gmra.mxu0 %v6433
        %v6564 = vpop.f32.mrf.mxu0
        %v6565 = vadd.f32 0.0, %v6564
        %v6566 = vpop.f32.mrf.mxu0
        %v6567 = vpop.f32.mrf.mxu0
        %v6568 = vadd.f32 0.0, %v6567
        %v6569 = vpop.f32.mrf.mxu0
        %6570 = vmatprep.mubr.bf16.mxu0 0
        %6571 = vmatmul.mubr.bf16.gmra.mxu0 %v6434
        %v6572 = vpop.f32.mrf.mxu0
        %v6573 = vadd.f32 0.0, %v6572
        %v6574 = vpop.f32.mrf.mxu0
        %v6575 = vpop.f32.mrf.mxu0
        %v6576 = vadd.f32 0.0, %v6575
        %v6577 = vpop.f32.mrf.mxu0
        %6578 = vmatprep.mubr.bf16.mxu0 0
        %6579 = vmatmul.mubr.bf16.gmra.mxu0 %v6435
        %v6580 = vpop.f32.mrf.mxu0
        %v6581 = vadd.f32 0.0, %v6580
        %v6582 = vpop.f32.mrf.mxu0
        %v6583 = vpop.f32.mrf.mxu0
        %v6584 = vadd.f32 0.0, %v6583
        %v6585 = vpop.f32.mrf.mxu0
        %6586 = vmatprep.mubr.bf16.mxu0 0
        %6587 = vmatmul.mubr.bf16.gmra.mxu0 %v6436
        %v6588 = vpop.f32.mrf.mxu0
        %v6589 = vadd.f32 0.0, %v6588
        %v6590 = vpop.f32.mrf.mxu0
        %v6591 = vpop.f32.mrf.mxu0
        %v6592 = vadd.f32 0.0, %v6591
        %v6593 = vpop.f32.mrf.mxu0
        %6594 = vmatprep.mubr.bf16.mxu0 0
        %6595 = vmatmul.mubr.bf16.gmra.mxu0 %v6437
        %v6596 = vpop.f32.mrf.mxu0
        %v6597 = vadd.f32 0.0, %v6596
        %v6598 = vpop.f32.mrf.mxu0
        %v6599 = vpop.f32.mrf.mxu0
        %v6600 = vadd.f32 0.0, %v6599
        %v6601 = vpop.f32.mrf.mxu0
        %6602 = vmatprep.mubr.bf16.mxu0 0
        %6603 = vmatmul.mubr.bf16.gmra.mxu0 %v6438
        %v6604 = vpop.f32.mrf.mxu0
        %v6605 = vadd.f32 0.0, %v6604
        %v6606 = vpop.f32.mrf.mxu0
        %v6607 = vpop.f32.mrf.mxu0
        %v6608 = vadd.f32 0.0, %v6607
        %v6609 = vpop.f32.mrf.mxu0
        %6610 = vmatprep.mubr.bf16.mxu0 0
        %6611 = vmatmul.mubr.bf16.gmra.mxu0 %v6439
        %v6612 = vpop.f32.mrf.mxu0
        %v6613 = vadd.f32 0.0, %v6612
        %v6614 = vpop.f32.mrf.mxu0
        %v6615 = vpop.f32.mrf.mxu0
        %v6616 = vadd.f32 0.0, %v6615
        %v6617 = vpop.f32.mrf.mxu0
        %6618 = vmatprep.mubr.bf16.mxu0 0
        %6619 = vmatmul.mubr.bf16.gmra.mxu0 %v6440
        %v6620 = vpop.f32.mrf.mxu0
        %v6621 = vadd.f32 0.0, %v6620
        %v6622 = vpop.f32.mrf.mxu0
        %v6623 = vpop.f32.mrf.mxu0
        %v6624 = vadd.f32 0.0, %v6623
        %v6625 = vpop.f32.mrf.mxu0
        %6626 = vmatprep.mubr.bf16.mxu0 0
        %6627 = vmatmul.mubr.bf16.gmra.mxu0 %v6441
        %v6628 = vpop.f32.mrf.mxu0
        %v6629 = vadd.f32 0.0, %v6628
        %v6630 = vpop.f32.mrf.mxu0
        %v6631 = vpop.f32.mrf.mxu0
        %v6632 = vadd.f32 0.0, %v6631
        %v6633 = vpop.f32.mrf.mxu0
        %6634 = vmatprep.mubr.bf16.mxu0 0
        %6635 = vmatmul.mubr.bf16.gmra.mxu0 %v6442
        %v6636 = vpop.f32.mrf.mxu0
        %v6637 = vadd.f32 0.0, %v6636
        %v6638 = vpop.f32.mrf.mxu0
        %v6639 = vpop.f32.mrf.mxu0
        %v6640 = vadd.f32 0.0, %v6639
        %v6641 = vpop.f32.mrf.mxu0
        %6642 = vmatprep.mubr.bf16.mxu0 0
        %6643 = vmatmul.mubr.bf16.gmra.mxu0 %v6443
        %v6644 = vpop.f32.mrf.mxu0
        %v6645 = vadd.f32 0.0, %v6644
        %v6646 = vpop.f32.mrf.mxu0
        %v6647 = vpop.f32.mrf.mxu0
        %v6648 = vadd.f32 0.0, %v6647
        %v6649 = vpop.f32.mrf.mxu0
        %6650 = vmatprep.mubr.bf16.mxu0 0
        %6651 = vmatmul.mubr.bf16.gmra.mxu0 %v6444
        %v6652 = vpop.f32.mrf.mxu0
        %v6653 = vadd.f32 0.0, %v6652
        %v6654 = vpop.f32.mrf.mxu0
        %v6655 = vpop.f32.mrf.mxu0
        %v6656 = vadd.f32 0.0, %v6655
        %v6657 = vpop.f32.mrf.mxu0
        %6658 = vmatprep.mubr.bf16.mxu0 0
        %6659 = vmatmul.mubr.bf16.gmra.mxu0 %v6445
        %v6660 = vpop.f32.mrf.mxu0
        %v6661 = vadd.f32 0.0, %v6660
        %v6662 = vpop.f32.mrf.mxu0
        %v6663 = vpop.f32.mrf.mxu0
        %v6664 = vadd.f32 0.0, %v6663
        %v6665 = vpop.f32.mrf.mxu0
        %6666 = vmatprep.mubr.bf16.mxu0 0
        %6667 = vmatmul.mubr.bf16.gmra.mxu0 %v6446
        %v6668 = vpop.f32.mrf.mxu0
        %v6669 = vadd.f32 0.0, %v6668
        %v6670 = vpop.f32.mrf.mxu0
        %v6671 = vpop.f32.mrf.mxu0
        %v6672 = vadd.f32 0.0, %v6671
        %v6673 = vpop.f32.mrf.mxu0
        %6674 = vmatprep.mubr.bf16.mxu0 0
        %6675 = vmatmul.mubr.bf16.gmra.mxu0 %v6447
        %v6676 = vpop.f32.mrf.mxu0
        %v6677 = vadd.f32 0.0, %v6676
        %v6678 = vpop.f32.mrf.mxu0
        %v6679 = vpop.f32.mrf.mxu0
        %v6680 = vadd.f32 0.0, %v6679
        %v6681 = vpop.f32.mrf.mxu0
        %6682 = vmatprep.mubr.bf16.mxu0 0
        %6683 = vmatmul.mubr.bf16.gmra.mxu0 %v6448
        %v6684 = vpop.f32.mrf.mxu0
        %v6685 = vadd.f32 0.0, %v6684
        %v6686 = vpop.f32.mrf.mxu0
        %v6687 = vpop.f32.mrf.mxu0
        %v6688 = vadd.f32 0.0, %v6687
        %v6689 = vpop.f32.mrf.mxu0
        %6690 = vdwg.mxu0
        %v6691 = vadd.f32 %v6359, %v6549
        %v6692 = vadd.f32 %v6360, %v6552
        %v6693 = vadd.f32 %v6361, %v6557
        %v6694 = vadd.f32 %v6362, %v6560
        %v6695 = vadd.f32 %v6363, %v6565
        %v6696 = vadd.f32 %v6364, %v6568
        %v6697 = vadd.f32 %v6365, %v6573
        %v6698 = vadd.f32 %v6366, %v6576
        %v6699 = vadd.f32 %v6367, %v6581
        %v6700 = vadd.f32 %v6368, %v6584
        %v6701 = vadd.f32 %v6369, %v6589
        %v6702 = vadd.f32 %v6370, %v6592
        %v6703 = vadd.f32 %v6371, %v6597
        %v6704 = vadd.f32 %v6372, %v6600
        %v6705 = vadd.f32 %v6373, %v6605
        %v6706 = vadd.f32 %v6374, %v6608
        %v6707 = vadd.f32 %v6375, %v6613
        %v6708 = vadd.f32 %v6376, %v6616
        %v6709 = vadd.f32 %v6377, %v6621
        %v6710 = vadd.f32 %v6378, %v6624
        %v6711 = vadd.f32 %v6379, %v6629
        %v6712 = vadd.f32 %v6380, %v6632
        %v6713 = vadd.f32 %v6381, %v6637
        %v6714 = vadd.f32 %v6382, %v6640
        %v6715 = vadd.f32 %v6383, %v6645
        %v6716 = vadd.f32 %v6384, %v6648
        %v6717 = vadd.f32 %v6385, %v6653
        %v6718 = vadd.f32 %v6386, %v6656
        %v6719 = vadd.f32 %v6387, %v6661
        %v6720 = vadd.f32 %v6388, %v6664
        %v6721 = vadd.f32 %v6389, %v6669
        %v6722 = vadd.f32 %v6390, %v6672
        %v6723 = vadd.f32 %v6391, %v6677
        %v6724 = vadd.f32 %v6392, %v6680
        %v6725 = vadd.f32 %v6393, %v6685
        %v6726 = vadd.f32 %v6394, %v6688
        %v6727 = vld [vmem:[#allocation3 + $0x26] sm:$0xff]
        %v6728 = vld [vmem:[#allocation3 + $0x2e] sm:$0xff]
        %v6729 = vld [vmem:[#allocation3 + $0x36] sm:$0xff]
        %v6730 = vld [vmem:[#allocation3 + $0x3e] sm:$0xff]
        %v6731 = vld [vmem:[#allocation3 + $0x46] sm:$0xff]
        %v6732 = vld [vmem:[#allocation3 + $0x4e] sm:$0xff]
        %v6733 = vld [vmem:[#allocation3 + $0x56] sm:$0xff]
        %v6734 = vld [vmem:[#allocation3 + $0x5e] sm:$0xff]
        %v6735 = vld [vmem:[#allocation3 + $0x66] sm:$0xff]
        %v6736 = vld [vmem:[#allocation3 + $0x6e] sm:$0xff]
        %v6737 = vld [vmem:[#allocation3 + $0x76] sm:$0xff]
        %v6738 = vld [vmem:[#allocation3 + $0x7e] sm:$0xff]
        %v6739 = vld [vmem:[#allocation3 + $0x86] sm:$0xff]
        %v6740 = vld [vmem:[#allocation3 + $0x8e] sm:$0xff]
        %v6741 = vld [vmem:[#allocation3 + $0x96] sm:$0xff]
        %v6742 = vld [vmem:[#allocation3 + $0x9e] sm:$0xff]
        %v6743 = vld [vmem:[#allocation3 + $0xa6] sm:$0xff]
        %v6744 = vld [vmem:[#allocation3 + $0xae] sm:$0xff]
        %v6745 = vld [vmem:[#allocation3 + $0xb6] sm:$0xff]
        %v6746 = vld [vmem:[#allocation3 + $0xbe] sm:$0xff]
        %v6747 = vld [vmem:[#allocation3 + $0xc6] sm:$0xff]
        %v6748 = vld [vmem:[#allocation3 + $0xce] sm:$0xff]
        %v6749 = vld [vmem:[#allocation3 + $0xd6] sm:$0xff]
        %v6750 = vld [vmem:[#allocation3 + $0xde] sm:$0xff]
        %v6751 = vld [vmem:[#allocation3 + $0xe6] sm:$0xff]
        %v6752 = vld [vmem:[#allocation3 + $0xee] sm:$0xff]
        %v6753 = vld [vmem:[#allocation3 + $0xf6] sm:$0xff]
        %v6754 = vld [vmem:[#allocation3 + $0xfe] sm:$0xff]
        %v6755 = vld [vmem:[#allocation3 + $0x106] sm:$0xff]
        %v6756 = vld [vmem:[#allocation3 + $0x10e] sm:$0xff]
        %v6757 = vld [vmem:[#allocation3 + $0x116] sm:$0xff]
        %v6758 = vld [vmem:[#allocation3 + $0x11e] sm:$0xff]
        %v6759 = vld [vmem:[#allocation3 + $0x126] sm:$0xff]
        %v6760 = vld [vmem:[#allocation3 + $0x12e] sm:$0xff]
        %v6761 = vld [vmem:[#allocation3 + $0x136] sm:$0xff]
        %v6762 = vld [vmem:[#allocation3 + $0x13e] sm:$0xff]
        %v6763 = vpack.c.bf16 %v6728, %v6727
        %v6764 = vpack.c.bf16 %v6730, %v6729
        %v6765 = vpack.c.bf16 %v6732, %v6731
        %v6766 = vpack.c.bf16 %v6734, %v6733
        %v6767 = vpack.c.bf16 %v6736, %v6735
        %v6768 = vpack.c.bf16 %v6738, %v6737
        %v6769 = vpack.c.bf16 %v6740, %v6739
        %v6770 = vpack.c.bf16 %v6742, %v6741
        %v6771 = vpack.c.bf16 %v6744, %v6743
        %v6772 = vpack.c.bf16 %v6746, %v6745
        %v6773 = vpack.c.bf16 %v6748, %v6747
        %v6774 = vpack.c.bf16 %v6750, %v6749
        %v6775 = vpack.c.bf16 %v6752, %v6751
        %v6776 = vpack.c.bf16 %v6754, %v6753
        %v6777 = vpack.c.bf16 %v6756, %v6755
        %v6778 = vpack.c.bf16 %v6758, %v6757
        %v6779 = vpack.c.bf16 %v6760, %v6759
        %v6780 = vpack.c.bf16 %v6762, %v6761
        %s6781 = scalar_lea.vmem %s1, 1152
        %v6782 = vld [vmem:[%s6781] sm:$0xf]
        %v6783 = vld [vmem:[%s6781 + $0x4] sm:$0xf]
        %v6784 = vld [vmem:[%s6781 + $0x8] sm:$0xf]
        %v6785 = vld [vmem:[%s6781 + $0xc] sm:$0xf]
        %v6786 = vld [vmem:[%s6781 + $0x10] sm:$0xf]
        %v6787 = vld [vmem:[%s6781 + $0x14] sm:$0xf]
        %v6788 = vld [vmem:[%s6781 + $0x18] sm:$0xf]
        %v6789 = vld [vmem:[%s6781 + $0x1c] sm:$0xf]
        %v6790 = vld [vmem:[%s6781 + $0x20] sm:$0xf]
        %v6791 = vld [vmem:[%s6781 + $0x24] sm:$0xf]
        %v6792 = vld [vmem:[%s6781 + $0x28] sm:$0xf]
        %v6793 = vld [vmem:[%s6781 + $0x2c] sm:$0xf]
        %v6794 = vld [vmem:[%s6781 + $0x30] sm:$0xf]
        %v6795 = vld [vmem:[%s6781 + $0x34] sm:$0xf]
        %v6796 = vld [vmem:[%s6781 + $0x38] sm:$0xf]
        %v6797 = vld [vmem:[%s6781 + $0x3c] sm:$0xf]
        %v6814 = vunpack.c.l.b16 %v6782
        %v6815 = vunpack.c.l.b16 %v6783
        %v6816 = vunpack.c.l.b16 %v6784
        %v6817 = vunpack.c.l.b16 %v6785
        %v6818 = vunpack.c.l.b16 %v6786
        %v6819 = vunpack.c.l.b16 %v6787
        %v6820 = vunpack.c.l.b16 %v6788
        %v6821 = vunpack.c.l.b16 %v6789
        %v6822 = vunpack.c.l.b16 %v6790
        %v6823 = vunpack.c.l.b16 %v6791
        %v6824 = vunpack.c.l.b16 %v6792
        %v6825 = vunpack.c.l.b16 %v6793
        %v6826 = vunpack.c.l.b16 %v6794
        %v6827 = vunpack.c.l.b16 %v6795
        %v6828 = vunpack.c.l.b16 %v6796
        %v6829 = vunpack.c.l.b16 %v6797
        %v6830 = vpack.c.b16 %v6815, %v6814
        %v6831 = vpack.c.b16 %v6817, %v6816
        %v6832 = vpack.c.b16 %v6819, %v6818
        %v6833 = vpack.c.b16 %v6821, %v6820
        %v6834 = vpack.c.b16 %v6823, %v6822
        %v6835 = vpack.c.b16 %v6825, %v6824
        %v6836 = vpack.c.b16 %v6827, %v6826
        %v6837 = vpack.c.b16 %v6829, %v6828
        %6846 = vmatprep.subr.bf16.mxu0 0
        %6847 = vmatpush1.bf16.msra.mxu0 %v6837
        %6848 = vmatprep.subr.bf16.mxu0 0
        %6849 = vmatpush1.bf16.msra.mxu0 %v6836
        %6850 = vmatprep.subr.bf16.mxu0 0
        %6851 = vmatpush1.bf16.msra.mxu0 %v6835
        %6852 = vmatprep.subr.bf16.mxu0 0
        %6853 = vmatpush1.bf16.msra.mxu0 %v6834
        %6854 = vmatprep.subr.bf16.mxu0 0
        %6855 = vmatpush1.bf16.msra.mxu0 %v6833
        %6856 = vmatprep.subr.bf16.mxu0 0
        %6857 = vmatpush1.bf16.msra.mxu0 %v6832
        %6858 = vmatprep.subr.bf16.mxu0 0
        %6859 = vmatpush1.bf16.msra.mxu0 %v6831
        %6860 = vmatprep.subr.bf16.mxu0 0
        %6861 = vmatpush1.bf16.msra.mxu0 %v6830
        %6862 = vmatprep.subr.bf16.mxu0 0
        %6863 = vmatpush2.bf16.msra.mxu0 0
        %6864 = vmatprep.subr.bf16.mxu0 0
        %6865 = vmatpush2.bf16.msra.mxu0 0
        %6866 = vmatprep.subr.bf16.mxu0 0
        %6867 = vmatpush2.bf16.msra.mxu0 0
        %6868 = vmatprep.subr.bf16.mxu0 0
        %6869 = vmatpush2.bf16.msra.mxu0 0
        %6870 = vmatprep.subr.bf16.mxu0 0
        %6871 = vmatpush2.bf16.msra.mxu0 0
        %6872 = vmatprep.subr.bf16.mxu0 0
        %6873 = vmatpush2.bf16.msra.mxu0 0
        %6874 = vmatprep.subr.bf16.mxu0 0
        %6875 = vmatpush2.bf16.msra.mxu0 0
        %6876 = vmatprep.subr.bf16.mxu0 0
        %6877 = vmatpush2.bf16.msra.mxu0 0
        %6878 = vmatprep.mubr.bf16.mxu0 0
        %6879 = vmatmul.mubr.bf16.gmra.mxu0 %v6763
        %v6880 = vpop.f32.mrf.mxu0
        %v6881 = vadd.f32 0.0, %v6880
        %v6882 = vpop.f32.mrf.mxu0
        %v6883 = vpop.f32.mrf.mxu0
        %v6884 = vadd.f32 0.0, %v6883
        %v6885 = vpop.f32.mrf.mxu0
        %6886 = vmatprep.mubr.bf16.mxu0 0
        %6887 = vmatmul.mubr.bf16.gmra.mxu0 %v6764
        %v6888 = vpop.f32.mrf.mxu0
        %v6889 = vadd.f32 0.0, %v6888
        %v6890 = vpop.f32.mrf.mxu0
        %v6891 = vpop.f32.mrf.mxu0
        %v6892 = vadd.f32 0.0, %v6891
        %v6893 = vpop.f32.mrf.mxu0
        %6894 = vmatprep.mubr.bf16.mxu0 0
        %6895 = vmatmul.mubr.bf16.gmra.mxu0 %v6765
        %v6896 = vpop.f32.mrf.mxu0
        %v6897 = vadd.f32 0.0, %v6896
        %v6898 = vpop.f32.mrf.mxu0
        %v6899 = vpop.f32.mrf.mxu0
        %v6900 = vadd.f32 0.0, %v6899
        %v6901 = vpop.f32.mrf.mxu0
        %6902 = vmatprep.mubr.bf16.mxu0 0
        %6903 = vmatmul.mubr.bf16.gmra.mxu0 %v6766
        %v6904 = vpop.f32.mrf.mxu0
        %v6905 = vadd.f32 0.0, %v6904
        %v6906 = vpop.f32.mrf.mxu0
        %v6907 = vpop.f32.mrf.mxu0
        %v6908 = vadd.f32 0.0, %v6907
        %v6909 = vpop.f32.mrf.mxu0
        %6910 = vmatprep.mubr.bf16.mxu0 0
        %6911 = vmatmul.mubr.bf16.gmra.mxu0 %v6767
        %v6912 = vpop.f32.mrf.mxu0
        %v6913 = vadd.f32 0.0, %v6912
        %v6914 = vpop.f32.mrf.mxu0
        %v6915 = vpop.f32.mrf.mxu0
        %v6916 = vadd.f32 0.0, %v6915
        %v6917 = vpop.f32.mrf.mxu0
        %6918 = vmatprep.mubr.bf16.mxu0 0
        %6919 = vmatmul.mubr.bf16.gmra.mxu0 %v6768
        %v6920 = vpop.f32.mrf.mxu0
        %v6921 = vadd.f32 0.0, %v6920
        %v6922 = vpop.f32.mrf.mxu0
        %v6923 = vpop.f32.mrf.mxu0
        %v6924 = vadd.f32 0.0, %v6923
        %v6925 = vpop.f32.mrf.mxu0
        %6926 = vmatprep.mubr.bf16.mxu0 0
        %6927 = vmatmul.mubr.bf16.gmra.mxu0 %v6769
        %v6928 = vpop.f32.mrf.mxu0
        %v6929 = vadd.f32 0.0, %v6928
        %v6930 = vpop.f32.mrf.mxu0
        %v6931 = vpop.f32.mrf.mxu0
        %v6932 = vadd.f32 0.0, %v6931
        %v6933 = vpop.f32.mrf.mxu0
        %6934 = vmatprep.mubr.bf16.mxu0 0
        %6935 = vmatmul.mubr.bf16.gmra.mxu0 %v6770
        %v6936 = vpop.f32.mrf.mxu0
        %v6937 = vadd.f32 0.0, %v6936
        %v6938 = vpop.f32.mrf.mxu0
        %v6939 = vpop.f32.mrf.mxu0
        %v6940 = vadd.f32 0.0, %v6939
        %v6941 = vpop.f32.mrf.mxu0
        %6942 = vmatprep.mubr.bf16.mxu0 0
        %6943 = vmatmul.mubr.bf16.gmra.mxu0 %v6771
        %v6944 = vpop.f32.mrf.mxu0
        %v6945 = vadd.f32 0.0, %v6944
        %v6946 = vpop.f32.mrf.mxu0
        %v6947 = vpop.f32.mrf.mxu0
        %v6948 = vadd.f32 0.0, %v6947
        %v6949 = vpop.f32.mrf.mxu0
        %6950 = vmatprep.mubr.bf16.mxu0 0
        %6951 = vmatmul.mubr.bf16.gmra.mxu0 %v6772
        %v6952 = vpop.f32.mrf.mxu0
        %v6953 = vadd.f32 0.0, %v6952
        %v6954 = vpop.f32.mrf.mxu0
        %v6955 = vpop.f32.mrf.mxu0
        %v6956 = vadd.f32 0.0, %v6955
        %v6957 = vpop.f32.mrf.mxu0
        %6958 = vmatprep.mubr.bf16.mxu0 0
        %6959 = vmatmul.mubr.bf16.gmra.mxu0 %v6773
        %v6960 = vpop.f32.mrf.mxu0
        %v6961 = vadd.f32 0.0, %v6960
        %v6962 = vpop.f32.mrf.mxu0
        %v6963 = vpop.f32.mrf.mxu0
        %v6964 = vadd.f32 0.0, %v6963
        %v6965 = vpop.f32.mrf.mxu0
        %6966 = vmatprep.mubr.bf16.mxu0 0
        %6967 = vmatmul.mubr.bf16.gmra.mxu0 %v6774
        %v6968 = vpop.f32.mrf.mxu0
        %v6969 = vadd.f32 0.0, %v6968
        %v6970 = vpop.f32.mrf.mxu0
        %v6971 = vpop.f32.mrf.mxu0
        %v6972 = vadd.f32 0.0, %v6971
        %v6973 = vpop.f32.mrf.mxu0
        %6974 = vmatprep.mubr.bf16.mxu0 0
        %6975 = vmatmul.mubr.bf16.gmra.mxu0 %v6775
        %v6976 = vpop.f32.mrf.mxu0
        %v6977 = vadd.f32 0.0, %v6976
        %v6978 = vpop.f32.mrf.mxu0
        %v6979 = vpop.f32.mrf.mxu0
        %v6980 = vadd.f32 0.0, %v6979
        %v6981 = vpop.f32.mrf.mxu0
        %6982 = vmatprep.mubr.bf16.mxu0 0
        %6983 = vmatmul.mubr.bf16.gmra.mxu0 %v6776
        %v6984 = vpop.f32.mrf.mxu0
        %v6985 = vadd.f32 0.0, %v6984
        %v6986 = vpop.f32.mrf.mxu0
        %v6987 = vpop.f32.mrf.mxu0
        %v6988 = vadd.f32 0.0, %v6987
        %v6989 = vpop.f32.mrf.mxu0
        %6990 = vmatprep.mubr.bf16.mxu0 0
        %6991 = vmatmul.mubr.bf16.gmra.mxu0 %v6777
        %v6992 = vpop.f32.mrf.mxu0
        %v6993 = vadd.f32 0.0, %v6992
        %v6994 = vpop.f32.mrf.mxu0
        %v6995 = vpop.f32.mrf.mxu0
        %v6996 = vadd.f32 0.0, %v6995
        %v6997 = vpop.f32.mrf.mxu0
        %6998 = vmatprep.mubr.bf16.mxu0 0
        %6999 = vmatmul.mubr.bf16.gmra.mxu0 %v6778
        %v7000 = vpop.f32.mrf.mxu0
        %v7001 = vadd.f32 0.0, %v7000
        %v7002 = vpop.f32.mrf.mxu0
        %v7003 = vpop.f32.mrf.mxu0
        %v7004 = vadd.f32 0.0, %v7003
        %v7005 = vpop.f32.mrf.mxu0
        %7006 = vmatprep.mubr.bf16.mxu0 0
        %7007 = vmatmul.mubr.bf16.gmra.mxu0 %v6779
        %v7008 = vpop.f32.mrf.mxu0
        %v7009 = vadd.f32 0.0, %v7008
        %v7010 = vpop.f32.mrf.mxu0
        %v7011 = vpop.f32.mrf.mxu0
        %v7012 = vadd.f32 0.0, %v7011
        %v7013 = vpop.f32.mrf.mxu0
        %7014 = vmatprep.mubr.bf16.mxu0 0
        %7015 = vmatmul.mubr.bf16.gmra.mxu0 %v6780
        %v7016 = vpop.f32.mrf.mxu0
        %v7017 = vadd.f32 0.0, %v7016
        %v7018 = vpop.f32.mrf.mxu0
        %v7019 = vpop.f32.mrf.mxu0
        %v7020 = vadd.f32 0.0, %v7019
        %v7021 = vpop.f32.mrf.mxu0
        %7022 = vdwg.mxu0
        %v7023 = vadd.f32 %v6691, %v6881
        %v7024 = vadd.f32 %v6692, %v6884
        %v7025 = vadd.f32 %v6693, %v6889
        %v7026 = vadd.f32 %v6694, %v6892
        %v7027 = vadd.f32 %v6695, %v6897
        %v7028 = vadd.f32 %v6696, %v6900
        %v7029 = vadd.f32 %v6697, %v6905
        %v7030 = vadd.f32 %v6698, %v6908
        %v7031 = vadd.f32 %v6699, %v6913
        %v7032 = vadd.f32 %v6700, %v6916
        %v7033 = vadd.f32 %v6701, %v6921
        %v7034 = vadd.f32 %v6702, %v6924
        %v7035 = vadd.f32 %v6703, %v6929
        %v7036 = vadd.f32 %v6704, %v6932
        %v7037 = vadd.f32 %v6705, %v6937
        %v7038 = vadd.f32 %v6706, %v6940
        %v7039 = vadd.f32 %v6707, %v6945
        %v7040 = vadd.f32 %v6708, %v6948
        %v7041 = vadd.f32 %v6709, %v6953
        %v7042 = vadd.f32 %v6710, %v6956
        %v7043 = vadd.f32 %v6711, %v6961
        %v7044 = vadd.f32 %v6712, %v6964
        %v7045 = vadd.f32 %v6713, %v6969
        %v7046 = vadd.f32 %v6714, %v6972
        %v7047 = vadd.f32 %v6715, %v6977
        %v7048 = vadd.f32 %v6716, %v6980
        %v7049 = vadd.f32 %v6717, %v6985
        %v7050 = vadd.f32 %v6718, %v6988
        %v7051 = vadd.f32 %v6719, %v6993
        %v7052 = vadd.f32 %v6720, %v6996
        %v7053 = vadd.f32 %v6721, %v7001
        %v7054 = vadd.f32 %v6722, %v7004
        %v7055 = vadd.f32 %v6723, %v7009
        %v7056 = vadd.f32 %v6724, %v7012
        %v7057 = vadd.f32 %v6725, %v7017
        %v7058 = vadd.f32 %v6726, %v7020
        %v7059 = vld [vmem:[%s2 + $0x4] sm:$0x1]
        %v7060 = vlaneseq
        %v7061 = vshrl.u32 %v7060, 7
        %v7062 = vsub.s32 0, %v7061
        %v7063 = vrot.slane %v7059, %v7062
        %v7064 = vmul.f32 %v7023, %v7063
        %v7065 = vmul.f32 %v7024, %v7063
        %v7066 = vmul.f32 %v7025, %v7063
        %v7067 = vmul.f32 %v7026, %v7063
        %v7068 = vmul.f32 %v7027, %v7063
        %v7069 = vmul.f32 %v7028, %v7063
        %v7070 = vmul.f32 %v7029, %v7063
        %v7071 = vmul.f32 %v7030, %v7063
        %v7072 = vmul.f32 %v7031, %v7063
        %v7073 = vmul.f32 %v7032, %v7063
        %v7074 = vmul.f32 %v7033, %v7063
        %v7075 = vmul.f32 %v7034, %v7063
        %v7076 = vmul.f32 %v7035, %v7063
        %v7077 = vmul.f32 %v7036, %v7063
        %v7078 = vmul.f32 %v7037, %v7063
        %v7079 = vmul.f32 %v7038, %v7063
        %v7080 = vmul.f32 %v7039, %v7063
        %v7081 = vmul.f32 %v7040, %v7063
        %v7082 = vmul.f32 %v7041, %v7063
        %v7083 = vmul.f32 %v7042, %v7063
        %v7084 = vmul.f32 %v7043, %v7063
        %v7085 = vmul.f32 %v7044, %v7063
        %v7086 = vmul.f32 %v7045, %v7063
        %v7087 = vmul.f32 %v7046, %v7063
        %v7088 = vmul.f32 %v7047, %v7063
        %v7089 = vmul.f32 %v7048, %v7063
        %v7090 = vmul.f32 %v7049, %v7063
        %v7091 = vmul.f32 %v7050, %v7063
        %v7092 = vmul.f32 %v7051, %v7063
        %v7093 = vmul.f32 %v7052, %v7063
        %v7094 = vmul.f32 %v7053, %v7063
        %v7095 = vmul.f32 %v7054, %v7063
        %v7096 = vmul.f32 %v7055, %v7063
        %v7097 = vmul.f32 %v7056, %v7063
        %v7098 = vmul.f32 %v7057, %v7063
        %v7099 = vmul.f32 %v7058, %v7063
        %v7100 = vld [vmem:[%s2 + $0x5] sm:$0x1]
        %v7101 = vlaneseq
        %v7102 = vshrl.u32 %v7101, 7
        %v7103 = vsub.s32 0, %v7102
        %v7104 = vrot.slane %v7100, %v7103
        %v7105 = vadd.f32 %v7064, %v7104
        %v7106 = vadd.f32 %v7065, %v7104
        %v7107 = vadd.f32 %v7066, %v7104
        %v7108 = vadd.f32 %v7067, %v7104
        %v7109 = vadd.f32 %v7068, %v7104
        %v7110 = vadd.f32 %v7069, %v7104
        %v7111 = vadd.f32 %v7070, %v7104
        %v7112 = vadd.f32 %v7071, %v7104
        %v7113 = vadd.f32 %v7072, %v7104
        %v7114 = vadd.f32 %v7073, %v7104
        %v7115 = vadd.f32 %v7074, %v7104
        %v7116 = vadd.f32 %v7075, %v7104
        %v7117 = vadd.f32 %v7076, %v7104
        %v7118 = vadd.f32 %v7077, %v7104
        %v7119 = vadd.f32 %v7078, %v7104
        %v7120 = vadd.f32 %v7079, %v7104
        %v7121 = vadd.f32 %v7080, %v7104
        %v7122 = vadd.f32 %v7081, %v7104
        %v7123 = vadd.f32 %v7082, %v7104
        %v7124 = vadd.f32 %v7083, %v7104
        %v7125 = vadd.f32 %v7084, %v7104
        %v7126 = vadd.f32 %v7085, %v7104
        %v7127 = vadd.f32 %v7086, %v7104
        %v7128 = vadd.f32 %v7087, %v7104
        %v7129 = vadd.f32 %v7088, %v7104
        %v7130 = vadd.f32 %v7089, %v7104
        %v7131 = vadd.f32 %v7090, %v7104
        %v7132 = vadd.f32 %v7091, %v7104
        %v7133 = vadd.f32 %v7092, %v7104
        %v7134 = vadd.f32 %v7093, %v7104
        %v7135 = vadd.f32 %v7094, %v7104
        %v7136 = vadd.f32 %v7095, %v7104
        %v7137 = vadd.f32 %v7096, %v7104
        %v7138 = vadd.f32 %v7097, %v7104
        %v7139 = vadd.f32 %v7098, %v7104
        %v7140 = vadd.f32 %v7099, %v7104
        %v7141 = vadd.f32 %v7105, %v4107
        %v7142 = vadd.f32 %v7106, %v4108
        %v7143 = vadd.f32 %v7107, %v4109
        %v7144 = vadd.f32 %v7108, %v4110
        %v7145 = vadd.f32 %v7109, %v4111
        %v7146 = vadd.f32 %v7110, %v4112
        %v7147 = vadd.f32 %v7111, %v4113
        %v7148 = vadd.f32 %v7112, %v4114
        %v7149 = vadd.f32 %v7113, %v4115
        %v7150 = vadd.f32 %v7114, %v4116
        %v7151 = vadd.f32 %v7115, %v4117
        %v7152 = vadd.f32 %v7116, %v4118
        %v7153 = vadd.f32 %v7117, %v4119
        %v7154 = vadd.f32 %v7118, %v4120
        %v7155 = vadd.f32 %v7119, %v4121
        %v7156 = vadd.f32 %v7120, %v4122
        %v7157 = vadd.f32 %v7121, %v4123
        %v7158 = vadd.f32 %v7122, %v4124
        %v7159 = vadd.f32 %v7123, %v4125
        %v7160 = vadd.f32 %v7124, %v4126
        %v7161 = vadd.f32 %v7125, %v4127
        %v7162 = vadd.f32 %v7126, %v4128
        %v7163 = vadd.f32 %v7127, %v4129
        %v7164 = vadd.f32 %v7128, %v4130
        %v7165 = vadd.f32 %v7129, %v4131
        %v7166 = vadd.f32 %v7130, %v4132
        %v7167 = vadd.f32 %v7131, %v4133
        %v7168 = vadd.f32 %v7132, %v4134
        %v7169 = vadd.f32 %v7133, %v4135
        %v7170 = vadd.f32 %v7134, %v4136
        %v7171 = vadd.f32 %v7135, %v4137
        %v7172 = vadd.f32 %v7136, %v4138
        %v7173 = vadd.f32 %v7137, %v4139
        %v7174 = vadd.f32 %v7138, %v4140
        %v7175 = vadd.f32 %v7139, %v4141
        %v7176 = vadd.f32 %v7140, %v4142
        %v7177 = vmax.f32 %v7141, 0.0
        %v7178 = vmax.f32 %v7142, 0.0
        %v7179 = vmax.f32 %v7143, 0.0
        %v7180 = vmax.f32 %v7144, 0.0
        %v7181 = vmax.f32 %v7145, 0.0
        %v7182 = vmax.f32 %v7146, 0.0
        %v7183 = vmax.f32 %v7147, 0.0
        %v7184 = vmax.f32 %v7148, 0.0
        %v7185 = vmax.f32 %v7149, 0.0
        %v7186 = vmax.f32 %v7150, 0.0
        %v7187 = vmax.f32 %v7151, 0.0
        %v7188 = vmax.f32 %v7152, 0.0
        %v7189 = vmax.f32 %v7153, 0.0
        %v7190 = vmax.f32 %v7154, 0.0
        %v7191 = vmax.f32 %v7155, 0.0
        %v7192 = vmax.f32 %v7156, 0.0
        %v7193 = vmax.f32 %v7157, 0.0
        %v7194 = vmax.f32 %v7158, 0.0
        %v7195 = vmax.f32 %v7159, 0.0
        %v7196 = vmax.f32 %v7160, 0.0
        %v7197 = vmax.f32 %v7161, 0.0
        %v7198 = vmax.f32 %v7162, 0.0
        %v7199 = vmax.f32 %v7163, 0.0
        %v7200 = vmax.f32 %v7164, 0.0
        %v7201 = vmax.f32 %v7165, 0.0
        %v7202 = vmax.f32 %v7166, 0.0
        %v7203 = vmax.f32 %v7167, 0.0
        %v7204 = vmax.f32 %v7168, 0.0
        %v7205 = vmax.f32 %v7169, 0.0
        %v7206 = vmax.f32 %v7170, 0.0
        %v7207 = vmax.f32 %v7171, 0.0
        %v7208 = vmax.f32 %v7172, 0.0
        %v7209 = vmax.f32 %v7173, 0.0
        %v7210 = vmax.f32 %v7174, 0.0
        %v7211 = vmax.f32 %v7175, 0.0
        %v7212 = vmax.f32 %v7176, 0.0
        %v7213 = vmul.f32 %v7177, %v738
        %v7214 = vmul.f32 %v7178, %v743
        %v7215 = vmul.f32 %v7179, %v748
        %v7216 = vmul.f32 %v7180, %v753
        %v7217 = vmul.f32 %v7181, %v758
        %v7218 = vmul.f32 %v7182, %v763
        %v7219 = vmul.f32 %v7183, %v768
        %v7220 = vmul.f32 %v7184, %v773
        %v7221 = vmul.f32 %v7185, %v778
        %v7222 = vmul.f32 %v7186, %v783
        %v7223 = vmul.f32 %v7187, %v788
        %v7224 = vmul.f32 %v7188, %v793
        %v7225 = vmul.f32 %v7189, %v798
        %v7226 = vmul.f32 %v7190, %v803
        %v7227 = vmul.f32 %v7191, %v808
        %v7228 = vmul.f32 %v7192, %v813
        %v7229 = vmul.f32 %v7193, %v818
        %v7230 = vmul.f32 %v7194, %v823
        %v7231 = vmul.f32 %v7195, %v828
        %v7232 = vmul.f32 %v7196, %v833
        %v7233 = vmul.f32 %v7197, %v838
        %v7234 = vmul.f32 %v7198, %v843
        %v7235 = vmul.f32 %v7199, %v848
        %v7236 = vmul.f32 %v7200, %v853
        %v7237 = vmul.f32 %v7201, %v858
        %v7238 = vmul.f32 %v7202, %v863
        %v7239 = vmul.f32 %v7203, %v868
        %v7240 = vmul.f32 %v7204, %v873
        %v7241 = vmul.f32 %v7205, %v878
        %v7242 = vmul.f32 %v7206, %v883
        %v7243 = vmul.f32 %v7207, %v888
        %v7244 = vmul.f32 %v7208, %v893
        %v7245 = vmul.f32 %v7209, %v898
        %v7246 = vmul.f32 %v7210, %v903
        %v7247 = vmul.f32 %v7211, %v908
        %v7248 = vmul.f32 %v7212, %v913
        %v7249 = vadd.f32 %v7213, %v7214
        %v7250 = vadd.f32 %v7249, %v7215
        %v7251 = vadd.f32 %v7250, %v7216
        %v7252 = vadd.f32 %v7251, %v7217
        %v7253 = vadd.f32 %v7252, %v7218
        %v7254 = vadd.f32 %v7253, %v7219
        %v7255 = vadd.f32 %v7254, %v7220
        %v7256 = vadd.f32 %v7255, %v7221
        %v7257 = vadd.f32 %v7256, %v7222
        %v7258 = vadd.f32 %v7257, %v7223
        %v7259 = vadd.f32 %v7258, %v7224
        %v7260 = vadd.f32 %v7259, %v7225
        %v7261 = vadd.f32 %v7260, %v7226
        %v7262 = vadd.f32 %v7261, %v7227
        %v7263 = vadd.f32 %v7262, %v7228
        %v7264 = vadd.f32 %v7263, %v7229
        %v7265 = vadd.f32 %v7264, %v7230
        %v7266 = vadd.f32 %v7265, %v7231
        %v7267 = vadd.f32 %v7266, %v7232
        %v7268 = vadd.f32 %v7267, %v7233
        %v7269 = vadd.f32 %v7268, %v7234
        %v7270 = vadd.f32 %v7269, %v7235
        %v7271 = vadd.f32 %v7270, %v7236
        %v7272 = vadd.f32 %v7271, %v7237
        %v7273 = vadd.f32 %v7272, %v7238
        %v7274 = vadd.f32 %v7273, %v7239
        %v7275 = vadd.f32 %v7274, %v7240
        %v7276 = vadd.f32 %v7275, %v7241
        %v7277 = vadd.f32 %v7276, %v7242
        %v7278 = vadd.f32 %v7277, %v7243
        %v7279 = vadd.f32 %v7278, %v7244
        %v7280 = vadd.f32 %v7279, %v7245
        %v7281 = vadd.f32 %v7280, %v7246
        %v7282 = vadd.f32 %v7281, %v7247
        %v7283 = vadd.f32 %v7282, %v7248
        %v7284 = vrot.slane %v7283, 4
        %v7285 = vadd.f32 %v7283, %v7284
        %v7286 = vrot.slane %v7285, 2
        %v7287 = vadd.f32 %v7285, %v7286
        %v7288 = vrot.slane %v7287, 1
        %v7289 = vadd.f32 %v7287, %v7288
        %v7290 = vmul.f32 %v7289, 0.00390625
        %v7291 = vpack.c.bf16 %v7290, %v7290
        %s7292 = scalar_lea.vmem %s1, 1216
        %v7293 = vld [vmem:[%s7292] sm:$0xf]
        %v7294 = vld [vmem:[%s7292 + $0x4] sm:$0xf]
        %v7295 = vld [vmem:[%s7292 + $0x8] sm:$0xf]
        %v7296 = vld [vmem:[%s7292 + $0xc] sm:$0xf]
        %v7297 = vld [vmem:[%s7292 + $0x10] sm:$0xf]
        %v7298 = vld [vmem:[%s7292 + $0x14] sm:$0xf]
        %v7299 = vld [vmem:[%s7292 + $0x18] sm:$0xf]
        %v7300 = vld [vmem:[%s7292 + $0x1c] sm:$0xf]
        %v7301 = vld [vmem:[%s7292 + $0x20] sm:$0xf]
        %v7302 = vld [vmem:[%s7292 + $0x24] sm:$0xf]
        %v7303 = vld [vmem:[%s7292 + $0x28] sm:$0xf]
        %v7304 = vld [vmem:[%s7292 + $0x2c] sm:$0xf]
        %v7305 = vld [vmem:[%s7292 + $0x30] sm:$0xf]
        %v7306 = vld [vmem:[%s7292 + $0x34] sm:$0xf]
        %v7307 = vld [vmem:[%s7292 + $0x38] sm:$0xf]
        %v7308 = vld [vmem:[%s7292 + $0x3c] sm:$0xf]
        %v7309 = vld [vmem:[%s2 + $0x6] sm:$0x1]
        %v7326 = vunpack.c.l.b16 %v7293
        %v7327 = vunpack.c.l.b16 %v7294
        %v7328 = vunpack.c.l.b16 %v7295
        %v7329 = vunpack.c.l.b16 %v7296
        %v7330 = vunpack.c.l.b16 %v7297
        %v7331 = vunpack.c.l.b16 %v7298
        %v7332 = vunpack.c.l.b16 %v7299
        %v7333 = vunpack.c.l.b16 %v7300
        %v7334 = vunpack.c.l.b16 %v7301
        %v7335 = vunpack.c.l.b16 %v7302
        %v7336 = vunpack.c.l.b16 %v7303
        %v7337 = vunpack.c.l.b16 %v7304
        %v7338 = vunpack.c.l.b16 %v7305
        %v7339 = vunpack.c.l.b16 %v7306
        %v7340 = vunpack.c.l.b16 %v7307
        %v7341 = vunpack.c.l.b16 %v7308
        %v7342 = vpack.c.b16 %v7327, %v7326
        %v7343 = vpack.c.b16 %v7329, %v7328
        %v7344 = vpack.c.b16 %v7331, %v7330
        %v7345 = vpack.c.b16 %v7333, %v7332
        %v7346 = vpack.c.b16 %v7335, %v7334
        %v7347 = vpack.c.b16 %v7337, %v7336
        %v7348 = vpack.c.b16 %v7339, %v7338
        %v7349 = vpack.c.b16 %v7341, %v7340
        %7358 = vmatprep.subr.bf16.mxu0 0
        %7359 = vmatpush1.bf16.msra.mxu0 %v7349
        %7360 = vmatprep.subr.bf16.mxu0 0
        %7361 = vmatpush1.bf16.msra.mxu0 %v7348
        %7362 = vmatprep.subr.bf16.mxu0 0
        %7363 = vmatpush1.bf16.msra.mxu0 %v7347
        %7364 = vmatprep.subr.bf16.mxu0 0
        %7365 = vmatpush1.bf16.msra.mxu0 %v7346
        %7366 = vmatprep.subr.bf16.mxu0 0
        %7367 = vmatpush1.bf16.msra.mxu0 %v7345
        %7368 = vmatprep.subr.bf16.mxu0 0
        %7369 = vmatpush1.bf16.msra.mxu0 %v7344
        %7370 = vmatprep.subr.bf16.mxu0 0
        %7371 = vmatpush1.bf16.msra.mxu0 %v7343
        %7372 = vmatprep.subr.bf16.mxu0 0
        %7373 = vmatpush1.bf16.msra.mxu0 %v7342
        %7374 = vmatprep.subr.bf16.mxu0 0
        %7375 = vmatpush2.bf16.msra.mxu0 0
        %7376 = vmatprep.subr.bf16.mxu0 0
        %7377 = vmatpush2.bf16.msra.mxu0 0
        %7378 = vmatprep.subr.bf16.mxu0 0
        %7379 = vmatpush2.bf16.msra.mxu0 0
        %7380 = vmatprep.subr.bf16.mxu0 0
        %7381 = vmatpush2.bf16.msra.mxu0 0
        %7382 = vmatprep.subr.bf16.mxu0 0
        %7383 = vmatpush2.bf16.msra.mxu0 0
        %7384 = vmatprep.subr.bf16.mxu0 0
        %7385 = vmatpush2.bf16.msra.mxu0 0
        %7386 = vmatprep.subr.bf16.mxu0 0
        %7387 = vmatpush2.bf16.msra.mxu0 0
        %7388 = vmatprep.subr.bf16.mxu0 0
        %7389 = vmatpush2.bf16.msra.mxu0 0
        %7390 = vmatprep.mubr.bf16.mxu0 0
        %7391 = vmatmul.mubr.bf16.gmra.mxu0 %v7291
        %v7392 = vpop.f32.mrf.mxu0
        %v7393 = vadd.f32 %v7309, %v7392
        %v7394 = vpop.f32.mrf.mxu0
        %v7395 = vpop.f32.mrf.mxu0
        %v7396 = vpop.f32.mrf.mxu0
        %7397 = vdwg.mxu0
        %7398 = vst [vmem:[%s189] sm:$0x1] %v7393
        %s7399 = sand.u32 %s115, 1
        %s7400 = scalar_lea.sflag [#allocation5], %s7399
        %s7401 = sand.u32 %s115, 1
        %s7402 = scalar_lea.vmem [#allocation4], %s7401
        // Predicated region
        $region37: #{forward.1} parent=35 // pred_check
          %p7403 = pneg %p125
        $region38: #{forward.1} parent=35 // pred_check_branch
          %7405 = sbr.rel (%p7403) target = $region40
        $region39: #{forward.1} parent=35 // pred_region
          %s7407 = ssub.s32 16, 16
          %7408 = vsyncadd %s7400, %s7407
          %s7409 = smul.addr %s18, 16
          %s7410 = scalar_lea.hbm %s4, %s7409
          %s7412 = sshll.u32 %s7402, 4
          %s7413 = int_to_ptr.vmem [resolvable:$true] %s7412
          %7415 = dma.vmem_to_hbm [thread:$0]  %s7413, 16, %s7410, %s7400
        $region40: #{forward.1} parent=35 // pred_fallthru
          _
      $region36: #{forward.1} parent=5 // pred_fallthru
        _
      %p7416 = scmp.le.s32.totalorder 2, %s13
      // Predicated region
      $region41: #{forward.1} parent=5 // pred_check
        %p7417 = pneg %p7416
      $region42: #{forward.1} parent=5 // pred_check_branch
        %7419 = sbr.rel (%p7417) target = $region44
      $region43: #{forward.1} parent=5 // pred_region
        %s7420 = ssub.s32 %s13, 2
        // Predicated region
        $region45: #{forward.1} parent=43 // pred_check
          %p7421 = pneg %p131
        $region46: #{forward.1} parent=43 // pred_check_branch
          %7423 = sbr.rel (%p7421) target = $region48
        $region47: #{forward.1} parent=43 // pred_region
          %s7424 = sand.u32 %s116, 1
          %s7425 = scalar_lea.sflag [#allocation5], %s7424
          %s7426 = sand.u32 %s116, 1
          %s7427 = scalar_lea.vmem [#allocation4], %s7426
          %7428 = dma.done %s7425, 16
        $region48: #{forward.1} parent=43 // pred_fallthru
          _
      $region44: #{forward.1} parent=5 // pred_fallthru
        _
    $region6: #{forward.1} parent=1 // loop_footer
      %s17 = sadd.s32 1, %s13
    $region7: #{forward.1} parent=1 // loop_footer_branch
      %12 = sbr.rel target = $region3
    $region8: #{forward.1} parent=1 // loop_exit
      _
    %7429 = vsyncpa [#allocation5], 1
    %s7430 = scalar_lea.sflag [#allocation5], 1
    %7431 = vsyncpa %s7430, 1

</llo_original>
